<compile_context>
chip_gen: v6e
topology: v6e:2x2x1
jax: 0.10.0
libtpu: 0.0.40
codegen_flags: <defaults>
</compile_context>

<pallas_src>
import functools

import jax
import jax.numpy as jnp
import numpy as np
from jax.experimental import pallas as pl
from jax.experimental.pallas import tpu as pltpu


_VMEM_LIMIT = 32 * 1024 * 1024  # safe scoped limit on v5e/v6e (128 MiB phys) and v7x (64 MiB)


def _pick_tile(dim, max_tile, quantum):
    """Largest tile <= max_tile that divides `dim` and is a multiple of
    `quantum`; falls back to the full dim (always legal for BlockSpec)."""
    if dim <= max_tile:
        return dim
    t = (max_tile // quantum) * quantum
    while t >= quantum:
        if dim % t == 0:
            return t
        t -= quantum
    return dim


# ----------------------------------------------------------------------------
# Kernel 1: fused Linear1 + Linear2, tiled over N, bf16 output.
# ----------------------------------------------------------------------------
def _fused_mlp_kernel(z_ref, w1_ref, b1_ref, w2_ref, b2_ref, o_ref):
    # Layer 1: tiny (B,L)x(L,2L) matmul, recomputed per N-tile (negligible).
    h = jnp.dot(z_ref[...], w1_ref[...], preferred_element_type=jnp.float32)
    h = jnp.maximum(h + b1_ref[...], 0.0)
    # Layer 2: bf16 operands on the MXU, f32 accumulation; bias+ReLU in f32,
    # cast to bf16 only on the final store (v5e has no bf16 VPU).
    acc = jnp.dot(h.astype(jnp.bfloat16), w2_ref[...],
                  preferred_element_type=jnp.float32)
    o_ref[...] = jnp.maximum(acc + b2_ref[...], 0.0).astype(o_ref.dtype)


def fused_mlp(z, w1, b1, w2_bf16, b2, *, tn_cap=16384):
    B, L = z.shape
    L2 = w1.shape[1]
    N = w2_bf16.shape[1]
    tn = _pick_tile(N, tn_cap, 128)              # 131072 -> 16384 => 8 grid steps
    grid = (N // tn,)
    # Double-buffered per-step footprint (w2 tile dominates) must fit VMEM.
    step_bytes = 2 * (L2 * tn * 2 + tn * 4 + B * tn * 2) + 4 * (B * L + L * L2 + L2)
    assert step_bytes < _VMEM_LIMIT, step_bytes
    cost = pl.CostEstimate(
        flops=2 * B * L2 * N + 2 * B * L * L2 * (N // tn),
        transcendentals=0,
        bytes_accessed=(z.size * 4 + w1.size * 4 + b1.size * 4
                        + w2_bf16.size * 2 + b2.size * 4 + B * N * 2))
    return pl.pallas_call(
        _fused_mlp_kernel,
        out_shape=jax.ShapeDtypeStruct((B, N), jnp.bfloat16),
        grid_spec=pltpu.PrefetchScalarGridSpec(
            num_scalar_prefetch=0,
            grid=grid,
            in_specs=[
                pl.BlockSpec((B, L), lambda j: (0, 0)),
                pl.BlockSpec((L, L2), lambda j: (0, 0)),
                pl.BlockSpec((1, L2), lambda j: (0, 0)),
                pl.BlockSpec((L2, tn), lambda j: (0, j)),
                pl.BlockSpec((1, tn), lambda j: (0, j)),
            ],
            out_specs=pl.BlockSpec((B, tn), lambda j: (0, j)),
        ),
        compiler_params=pltpu.CompilerParams(
            dimension_semantics=("parallel",),
            vmem_limit_bytes=_VMEM_LIMIT),
        cost_estimate=cost,
    )(z, w1, b1, w2_bf16, b2)


# ----------------------------------------------------------------------------
# Kernel 2: fully fused deconv chain (3 chained per-pixel matmuls + ReLUs).
# Weights are pre-flattened / block-diagonal-lifted offline (bf16); biases f32.
# ----------------------------------------------------------------------------
def _fused_deconv_kernel(x_ref, w1_ref, b1_ref, w2_ref, b2_ref, w3_ref, b3_ref,
                         o_ref):
    y = jnp.dot(x_ref[...], w1_ref[...], preferred_element_type=jnp.float32)
    y = jnp.maximum(y + b1_ref[...], 0.0)
    y = jnp.dot(y.astype(jnp.bfloat16), w2_ref[...],
                preferred_element_type=jnp.float32)
    y = jnp.maximum(y + b2_ref[...], 0.0)
    y = jnp.dot(y.astype(jnp.bfloat16), w3_ref[...],
                preferred_element_type=jnp.float32)
    o_ref[...] = jnp.maximum(y + b3_ref[...], 0.0).astype(o_ref.dtype)


def fused_deconv_chain(x, wd1, bd1, wd2bd, bd2, wd3bd, bd3, *, tm_cap=256):
    """x: (M, 128) bf16 pixel rows.  Returns (M, 64) f32 where the 64 columns
    are (di1, dj1, di2, dj2, di3, dj3) sub-pixel offsets."""
    M, Cin = x.shape
    N1 = wd1.shape[1]
    N2 = wd2bd.shape[1]
    N3 = wd3bd.shape[1]
    tm = _pick_tile(M, tm_cap, 16)               # 2048 -> 256 => 8 grid steps
    grid = (M // tm,)
    # Rough per-step VMEM footprint (double-buffered I/O + resident weights +
    # in-kernel f32 intermediates).
    step_bytes = (2 * (tm * Cin * 2 + tm * N3 * 4)
                  + 2 * (Cin * N1 + N1 * N2 + N2 * N3) * 2
                  + tm * (N1 + N2) * 4)
    assert step_bytes < _VMEM_LIMIT, step_bytes
    w_bytes = (wd1.size + wd2bd.size + wd3bd.size) * 2
    cost = pl.CostEstimate(
        flops=2 * M * (Cin * N1 + N1 * N2 + N2 * N3),
        transcendentals=0,
        bytes_accessed=M * Cin * 2 + w_bytes + (N1 + N2 + N3) * 4 + M * N3 * 4)
    return pl.pallas_call(
        _fused_deconv_kernel,
        out_shape=jax.ShapeDtypeStruct((M, N3), jnp.float32),
        grid_spec=pltpu.PrefetchScalarGridSpec(
            num_scalar_prefetch=0,
            grid=grid,
            in_specs=[
                pl.BlockSpec((tm, Cin), lambda i: (i, 0)),
                pl.BlockSpec((Cin, N1), lambda i: (0, 0)),   # constant index
                pl.BlockSpec((1, N1), lambda i: (0, 0)),     #  -> weights DMA'd once
                pl.BlockSpec((N1, N2), lambda i: (0, 0)),
                pl.BlockSpec((1, N2), lambda i: (0, 0)),
                pl.BlockSpec((N2, N3), lambda i: (0, 0)),
                pl.BlockSpec((1, N3), lambda i: (0, 0)),
            ],
            out_specs=pl.BlockSpec((tm, N3), lambda i: (i, 0)),
        ),
        compiler_params=pltpu.CompilerParams(
            dimension_semantics=("parallel",),
            vmem_limit_bytes=_VMEM_LIMIT),
        cost_estimate=cost,
    )(x, wd1, bd1, wd2bd, bd2, wd3bd, bd3)


# ----------------------------------------------------------------------------
# Full decoder forward (matches torch VariationalDecoder.forward)
# ----------------------------------------------------------------------------
def variational_decoder_forward(z, prep):
    B = z.shape[0]
    h = fused_mlp(z, prep["w1"], prep["b1"], prep["w2"], prep["b2"])  # (B, 32*32*128) bf16
    # Pixel-major rows (b, h1, w1) with 128 channels each.  This is the only
    # intermediate activation that touches HBM (bf16, 512 KiB at B=2).
    x = h.reshape(B * 32 * 32, 128)
    y = fused_deconv_chain(x, prep["wd1"], prep["bd1"],
                           prep["wd2bd"], prep["bd2"],
                           prep["wd3bd"], prep["bd3"])                # (B*1024, 64) f32
    # Single final un-shuffle: rows = (b, h1, w1), cols = (di1,dj1,di2,dj2,di3,dj3).
    # Output pixel: H = 8*h1 + 4*di1 + 2*di2 + di3, W = 8*w1 + 4*dj1 + 2*dj2 + dj3.
    y = y.reshape(B, 32, 32, 2, 2, 2, 2, 2, 2)
    y = jnp.transpose(y, (0, 1, 3, 5, 7, 2, 4, 6, 8))
    return y.reshape(B, 1, 256, 256)


# ----------------------------------------------------------------------------
# Offline parameter re-layout (done once, outside the jitted forward)
# ----------------------------------------------------------------------------
def prepare_params(params):
    w1 = params["w1"].T.astype(jnp.float32)                       # (L, 2L)
    b1 = params["b1"].reshape(1, -1).astype(jnp.float32)

    # Linear2: (out,in) -> (in,out), then permute output columns from NCHW
    # order (c*1024 + h*32 + w) to pixel-major order ((h*32 + w)*128 + c).
    L2 = params["w2"].shape[1]
    w2 = params["w2"].T.reshape(L2, 128, 32, 32)
    w2 = jnp.transpose(w2, (0, 2, 3, 1)).reshape(L2, -1).astype(jnp.bfloat16)
    b2 = jnp.transpose(params["b2"].reshape(128, 32, 32), (1, 2, 0))
    b2 = b2.reshape(1, -1).astype(jnp.float32)

    def deconv_flat(w):   # (cin, cout, 2, 2) -> (cin, 4*cout), col = (di*2+dj)*cout + co
        cin, cout = w.shape[0], w.shape[1]
        return jnp.transpose(w, (0, 2, 3, 1)).reshape(cin, 4 * cout)

    # deconv1: plain per-pixel matmul weight.
    wd1 = deconv_flat(params["dw1"]).astype(jnp.bfloat16)          # (128, 256)
    bd1 = jnp.tile(params["db1"], 4).reshape(1, -1).astype(jnp.float32)   # (1, 256)

    # deconv2: block-diagonal lift over the 4 (di1,dj1) groups.
    wd2f = deconv_flat(params["dw2"])                              # (64, 128)
    wd2bd = jnp.kron(jnp.eye(4, dtype=jnp.float32), wd2f).astype(jnp.bfloat16)   # (256, 512)
    bd2 = jnp.tile(params["db2"], 16).reshape(1, -1).astype(jnp.float32)  # (1, 512)

    # deconv3 (cout=1): block-diagonal lift over the 16 (di1,dj1,di2,dj2) groups.
    wd3f = deconv_flat(params["dw3"])                              # (32, 4)
    wd3bd = jnp.kron(jnp.eye(16, dtype=jnp.float32), wd3f).astype(jnp.bfloat16)  # (512, 64)
    bd3 = jnp.full((1, 64), params["db3"][0], jnp.float32)

    return dict(w1=w1, b1=b1, w2=w2, b2=b2,
                wd1=wd1, bd1=bd1, wd2bd=wd2bd, bd2=bd2, wd3bd=wd3bd, bd3=bd3)


# ----------------------------------------------------------------------------
# Deterministic parameter init (PyTorch-style uniform(-1/sqrt(fan_in), ...))
# ----------------------------------------------------------------------------
def init_params(key, latent_dims):
    ks = jax.random.split(key, 10)

    def lin(kw, kb, out_f, in_f):
        bound = 1.0 / np.sqrt(in_f)
        w = jax.random.uniform(kw, (out_f, in_f), jnp.float32, -bound, bound)
        b = jax.random.uniform(kb, (out_f,), jnp.float32, -bound, bound)
        return w, b

    def deconv(kw, kb, cin, cout):
        bound = 1.0 / np.sqrt(cin * 4)
        w = jax.random.uniform(kw, (cin, cout, 2, 2), jnp.float32, -bound, bound)
        b = jax.random.uniform(kb, (cout,), jnp.float32, -bound, bound)
        return w, b

    w1, b1 = lin(ks[0], ks[1], latent_dims * 2, latent_dims)
    w2, b2 = lin(ks[2], ks[3], 128 * 32 * 32, latent_dims * 2)
    dw1, db1 = deconv(ks[4], ks[5], 128, 64)
    dw2, db2 = deconv(ks[6], ks[7], 64, 32)
    dw3, db3 = deconv(ks[8], ks[9], 32, 1)
    return dict(w1=w1, b1=b1, w2=w2, b2=b2,
                dw1=dw1, db1=db1, dw2=dw2, db2=db2, dw3=dw3, db3=db3)


# ----------------------------------------------------------------------------
# Pure-JAX reference (independent code path, original NCHW layout)
# ----------------------------------------------------------------------------
def _deconv_ref(x_nchw, w, b):
    y = jnp.einsum("bchw,cokl->bohkwl", x_nchw, w,
                   precision=jax.lax.Precision.HIGHEST)
    y = y + b[None, :, None, None, None, None]
    B, Co, H, _, W, _ = y.shape
    return jax.nn.relu(y.reshape(B, Co, 2 * H, 2 * W))


def ref_forward(z, params):
    hi = jax.lax.Precision.HIGHEST
    B = z.shape[0]
    h = jax.nn.relu(jnp.dot(z, params["w1"].T, precision=hi) + params["b1"])
    h = jax.nn.relu(jnp.dot(h, params["w2"].T, precision=hi) + params["b2"])
    x = h.reshape(B, 128, 32, 32)
    x = _deconv_ref(x, params["dw1"], params["db1"])
    x = _deconv_ref(x, params["dw2"], params["db2"])
    x = _deconv_ref(x, params["dw3"], params["db3"])
    return x


if __name__ == "__main__":
    latent_dims = 8
    batch = 2

    key = jax.random.PRNGKey(0)
    kz, kp = jax.random.split(key)
    z = jax.random.normal(kz, (batch, latent_dims), dtype=jnp.float32)
    params = init_params(kp, latent_dims)
    prep = prepare_params(params)          # offline weight re-layout (not jitted)

    fwd = jax.jit(functools.partial(variational_decoder_forward, prep=prep))
    out = jax.block_until_ready(fwd(z))
    assert out.shape == (batch, 1, 256, 256), out.shape

    ref = jax.block_until_ready(ref_forward(z, params))
    np.testing.assert_allclose(np.asarray(out), np.asarray(ref),
                               rtol=1e-2, atol=1e-2)

    print("KERNEL_OK")
</pallas_src>

<mosaic_0001>
module attributes {stable_mosaic.version = 11 : i64} {
  func.func @_fused_deconv_kernel(%arg0: i32, %arg1: memref<256x128xbf16, #tpu.memory_space<vmem>>, %arg2: memref<128x256xbf16, #tpu.memory_space<vmem>>, %arg3: memref<1x256xf32, #tpu.memory_space<vmem>>, %arg4: memref<256x512xbf16, #tpu.memory_space<vmem>>, %arg5: memref<1x512xf32, #tpu.memory_space<vmem>>, %arg6: memref<512x64xbf16, #tpu.memory_space<vmem>>, %arg7: memref<1x64xf32, #tpu.memory_space<vmem>>, %arg8: memref<256x64xf32, #tpu.memory_space<vmem>>) attributes {dimension_semantics = [#tpu.dimension_semantics<parallel>], iteration_bounds = array<i64: 8>, scalar_prefetch = 0 : i64, scratch_operands = 0 : i64, tpu.core_type = #tpu.core_type<tc>, window_params = [{transform_indices = @transform_0, window_bounds = array<i64: 256, 128>}, {pipeline_mode = #tpu.pipeline_mode<synchronous>, transform_indices = @transform_1, window_bounds = array<i64: 128, 256>}, {pipeline_mode = #tpu.pipeline_mode<synchronous>, transform_indices = @transform_2, window_bounds = array<i64: 1, 256>}, {pipeline_mode = #tpu.pipeline_mode<synchronous>, transform_indices = @transform_3, window_bounds = array<i64: 256, 512>}, {pipeline_mode = #tpu.pipeline_mode<synchronous>, transform_indices = @transform_4, window_bounds = array<i64: 1, 512>}, {pipeline_mode = #tpu.pipeline_mode<synchronous>, transform_indices = @transform_5, window_bounds = array<i64: 512, 64>}, {pipeline_mode = #tpu.pipeline_mode<synchronous>, transform_indices = @transform_6, window_bounds = array<i64: 1, 64>}, {transform_indices = @transform_7, window_bounds = array<i64: 256, 64>}]} {
    %c0 = arith.constant 0 : index
    %c0_0 = arith.constant 0 : index
    %0 = vector.load %arg1[%c0, %c0_0] : memref<256x128xbf16, #tpu.memory_space<vmem>>, vector<256x128xbf16>
    %c0_1 = arith.constant 0 : index
    %c0_2 = arith.constant 0 : index
    %1 = vector.load %arg2[%c0_1, %c0_2] : memref<128x256xbf16, #tpu.memory_space<vmem>>, vector<128x256xbf16>
    %cst = arith.constant dense<0.000000e+00> : vector<256x256xf32>
    %2 = tpu.matmul %0, %1, %cst {dimension_numbers = #tpu.dot_dimension_numbers<[1], [0], [0], [1], [0, 0, 1, 1], [], []>} : vector<256x128xbf16>, vector<128x256xbf16>, vector<256x256xf32> -> vector<256x256xf32>
    %c0_3 = arith.constant 0 : index
    %c0_4 = arith.constant 0 : index
    %3 = vector.load %arg3[%c0_3, %c0_4] : memref<1x256xf32, #tpu.memory_space<vmem>>, vector<1x256xf32>
    %4 = vector.broadcast %3 : vector<1x256xf32> to vector<256x256xf32>
    %5 = arith.addf %2, %4 : vector<256x256xf32>
    %cst_5 = arith.constant 0.000000e+00 : f32
    %6 = vector.broadcast %cst_5 : f32 to vector<256x256xf32>
    %7 = arith.maximumf %5, %6 : vector<256x256xf32>
    %8 = arith.truncf %7 : vector<256x256xf32> to vector<256x256xbf16>
    %c0_6 = arith.constant 0 : index
    %c0_7 = arith.constant 0 : index
    %9 = vector.load %arg4[%c0_6, %c0_7] : memref<256x512xbf16, #tpu.memory_space<vmem>>, vector<256x512xbf16>
    %cst_8 = arith.constant dense<0.000000e+00> : vector<256x512xf32>
    %10 = tpu.matmul %8, %9, %cst_8 {dimension_numbers = #tpu.dot_dimension_numbers<[1], [0], [0], [1], [0, 0, 1, 1], [], []>} : vector<256x256xbf16>, vector<256x512xbf16>, vector<256x512xf32> -> vector<256x512xf32>
    %c0_9 = arith.constant 0 : index
    %c0_10 = arith.constant 0 : index
    %11 = vector.load %arg5[%c0_9, %c0_10] : memref<1x512xf32, #tpu.memory_space<vmem>>, vector<1x512xf32>
    %12 = vector.broadcast %11 : vector<1x512xf32> to vector<256x512xf32>
    %13 = arith.addf %10, %12 : vector<256x512xf32>
    %cst_11 = arith.constant 0.000000e+00 : f32
    %14 = vector.broadcast %cst_11 : f32 to vector<256x512xf32>
    %15 = arith.maximumf %13, %14 : vector<256x512xf32>
    %16 = arith.truncf %15 : vector<256x512xf32> to vector<256x512xbf16>
    %c0_12 = arith.constant 0 : index
    %c0_13 = arith.constant 0 : index
    %17 = vector.load %arg6[%c0_12, %c0_13] : memref<512x64xbf16, #tpu.memory_space<vmem>>, vector<512x64xbf16>
    %cst_14 = arith.constant dense<0.000000e+00> : vector<256x64xf32>
    %18 = tpu.matmul %16, %17, %cst_14 {dimension_numbers = #tpu.dot_dimension_numbers<[1], [0], [0], [1], [0, 0, 1, 1], [], []>} : vector<256x512xbf16>, vector<512x64xbf16>, vector<256x64xf32> -> vector<256x64xf32>
    %c0_15 = arith.constant 0 : index
    %c0_16 = arith.constant 0 : index
    %19 = vector.load %arg7[%c0_15, %c0_16] : memref<1x64xf32, #tpu.memory_space<vmem>>, vector<1x64xf32>
    %20 = vector.broadcast %19 : vector<1x64xf32> to vector<256x64xf32>
    %21 = arith.addf %18, %20 : vector<256x64xf32>
    %cst_17 = arith.constant 0.000000e+00 : f32
    %22 = vector.broadcast %cst_17 : f32 to vector<256x64xf32>
    %23 = arith.maximumf %21, %22 : vector<256x64xf32>
    %c0_18 = arith.constant 0 : index
    %c0_19 = arith.constant 0 : index
    %24 = vector.load %arg8[%c0_18, %c0_19] : memref<256x64xf32, #tpu.memory_space<vmem>>, vector<256x64xf32>
    tpu.vector_store %arg8[%c0_18, %c0_19], %23 {strides = array<i32>} : memref<256x64xf32, #tpu.memory_space<vmem>>, vector<256x64xf32>,
    return
  }
  func.func @transform_0(%arg0: i32) -> (i32, i32) {
    %c0_i32 = arith.constant 0 : i32
    %c0_i32_0 = arith.constant 0 : i32
    return %arg0, %c0_i32 : i32, i32
  }
  func.func @transform_1(%arg0: i32) -> (i32, i32) {
    %c0_i32 = arith.constant 0 : i32
    %c0_i32_0 = arith.constant 0 : i32
    %c0_i32_1 = arith.constant 0 : i32
    return %c0_i32, %c0_i32_0 : i32, i32
  }
  func.func @transform_2(%arg0: i32) -> (i32, i32) {
    %c0_i32 = arith.constant 0 : i32
    %c0_i32_0 = arith.constant 0 : i32
    %c0_i32_1 = arith.constant 0 : i32
    return %c0_i32, %c0_i32_0 : i32, i32
  }
  func.func @transform_3(%arg0: i32) -> (i32, i32) {
    %c0_i32 = arith.constant 0 : i32
    %c0_i32_0 = arith.constant 0 : i32
    %c0_i32_1 = arith.constant 0 : i32
    return %c0_i32, %c0_i32_0 : i32, i32
  }
  func.func @transform_4(%arg0: i32) -> (i32, i32) {
    %c0_i32 = arith.constant 0 : i32
    %c0_i32_0 = arith.constant 0 : i32
    %c0_i32_1 = arith.constant 0 : i32
    return %c0_i32, %c0_i32_0 : i32, i32
  }
  func.func @transform_5(%arg0: i32) -> (i32, i32) {
    %c0_i32 = arith.constant 0 : i32
    %c0_i32_0 = arith.constant 0 : i32
    %c0_i32_1 = arith.constant 0 : i32
    return %c0_i32, %c0_i32_0 : i32, i32
  }
  func.func @transform_6(%arg0: i32) -> (i32, i32) {
    %c0_i32 = arith.constant 0 : i32
    %c0_i32_0 = arith.constant 0 : i32
    %c0_i32_1 = arith.constant 0 : i32
    return %c0_i32, %c0_i32_0 : i32, i32
  }
  func.func @transform_7(%arg0: i32) -> (i32, i32) {
    %c0_i32 = arith.constant 0 : i32
    %c0_i32_0 = arith.constant 0 : i32
    return %arg0, %c0_i32 : i32, i32
  }
}

module attributes {stable_mosaic.version = 11 : i64} {
  func.func @_fused_mlp_kernel(%arg0: i32, %arg1: memref<2x8xf32, #tpu.memory_space<vmem>>, %arg2: memref<8x16xf32, #tpu.memory_space<vmem>>, %arg3: memref<1x16xf32, #tpu.memory_space<vmem>>, %arg4: memref<16x16384xbf16, #tpu.memory_space<vmem>>, %arg5: memref<1x16384xf32, #tpu.memory_space<vmem>>, %arg6: memref<2x16384xbf16, #tpu.memory_space<vmem>>) attributes {dimension_semantics = [#tpu.dimension_semantics<parallel>], iteration_bounds = array<i64: 8>, scalar_prefetch = 0 : i64, scratch_operands = 0 : i64, tpu.core_type = #tpu.core_type<tc>, window_params = [{pipeline_mode = #tpu.pipeline_mode<synchronous>, transform_indices = @transform_0, window_bounds = array<i64: 2, 8>}, {pipeline_mode = #tpu.pipeline_mode<synchronous>, transform_indices = @transform_1, window_bounds = array<i64: 8, 16>}, {pipeline_mode = #tpu.pipeline_mode<synchronous>, transform_indices = @transform_2, window_bounds = array<i64: 1, 16>}, {transform_indices = @transform_3, window_bounds = array<i64: 16, 16384>}, {transform_indices = @transform_4, window_bounds = array<i64: 1, 16384>}, {transform_indices = @transform_5, window_bounds = array<i64: 2, 16384>}]} {
    %c0 = arith.constant 0 : index
    %c0_0 = arith.constant 0 : index
    %0 = vector.load %arg1[%c0, %c0_0] : memref<2x8xf32, #tpu.memory_space<vmem>>, vector<2x8xf32>
    %c0_1 = arith.constant 0 : index
    %c0_2 = arith.constant 0 : index
    %1 = vector.load %arg2[%c0_1, %c0_2] : memref<8x16xf32, #tpu.memory_space<vmem>>, vector<8x16xf32>
    %cst = arith.constant dense<0.000000e+00> : vector<2x16xf32>
    %2 = tpu.matmul %0, %1, %cst {dimension_numbers = #tpu.dot_dimension_numbers<[1], [0], [0], [1], [0, 0, 1, 1], [], []>} : vector<2x8xf32>, vector<8x16xf32>, vector<2x16xf32> -> vector<2x16xf32>
    %c0_3 = arith.constant 0 : index
    %c0_4 = arith.constant 0 : index
    %3 = vector.load %arg3[%c0_3, %c0_4] : memref<1x16xf32, #tpu.memory_space<vmem>>, vector<1x16xf32>
    %4 = vector.broadcast %3 : vector<1x16xf32> to vector<2x16xf32>
    %5 = arith.addf %2, %4 : vector<2x16xf32>
    %cst_5 = arith.constant 0.000000e+00 : f32
    %6 = vector.broadcast %cst_5 : f32 to vector<2x16xf32>
    %7 = arith.maximumf %5, %6 : vector<2x16xf32>
    %8 = arith.truncf %7 : vector<2x16xf32> to vector<2x16xbf16>
    %c0_6 = arith.constant 0 : index
    %c0_7 = arith.constant 0 : index
    %9 = vector.load %arg4[%c0_6, %c0_7] : memref<16x16384xbf16, #tpu.memory_space<vmem>>, vector<16x16384xbf16>
    %cst_8 = arith.constant dense<0.000000e+00> : vector<2x16384xf32>
    %10 = tpu.matmul %8, %9, %cst_8 {dimension_numbers = #tpu.dot_dimension_numbers<[1], [0], [0], [1], [0, 0, 1, 1], [], []>} : vector<2x16xbf16>, vector<16x16384xbf16>, vector<2x16384xf32> -> vector<2x16384xf32>
    %c0_9 = arith.constant 0 : index
    %c0_10 = arith.constant 0 : index
    %11 = vector.load %arg5[%c0_9, %c0_10] : memref<1x16384xf32, #tpu.memory_space<vmem>>, vector<1x16384xf32>
    %12 = vector.broadcast %11 : vector<1x16384xf32> to vector<2x16384xf32>
    %13 = arith.addf %10, %12 : vector<2x16384xf32>
    %cst_11 = arith.constant 0.000000e+00 : f32
    %14 = vector.broadcast %cst_11 : f32 to vector<2x16384xf32>
    %15 = arith.maximumf %13, %14 : vector<2x16384xf32>
    %16 = arith.truncf %15 : vector<2x16384xf32> to vector<2x16384xbf16>
    %c0_12 = arith.constant 0 : index
    %c0_13 = arith.constant 0 : index
    %17 = vector.load %arg6[%c0_12, %c0_13] : memref<2x16384xbf16, #tpu.memory_space<vmem>>, vector<2x16384xbf16>
    tpu.vector_store %arg6[%c0_12, %c0_13], %16 {strides = array<i32>} : memref<2x16384xbf16, #tpu.memory_space<vmem>>, vector<2x16384xbf16>,
    return
  }
  func.func @transform_0(%arg0: i32) -> (i32, i32) {
    %c0_i32 = arith.constant 0 : i32
    %c0_i32_0 = arith.constant 0 : i32
    %c0_i32_1 = arith.constant 0 : i32
    return %c0_i32, %c0_i32_0 : i32, i32
  }
  func.func @transform_1(%arg0: i32) -> (i32, i32) {
    %c0_i32 = arith.constant 0 : i32
    %c0_i32_0 = arith.constant 0 : i32
    %c0_i32_1 = arith.constant 0 : i32
    return %c0_i32, %c0_i32_0 : i32, i32
  }
  func.func @transform_2(%arg0: i32) -> (i32, i32) {
    %c0_i32 = arith.constant 0 : i32
    %c0_i32_0 = arith.constant 0 : i32
    %c0_i32_1 = arith.constant 0 : i32
    return %c0_i32, %c0_i32_0 : i32, i32
  }
  func.func @transform_3(%arg0: i32) -> (i32, i32) {
    %c0_i32 = arith.constant 0 : i32
    %c0_i32_0 = arith.constant 0 : i32
    return %c0_i32, %arg0 : i32, i32
  }
  func.func @transform_4(%arg0: i32) -> (i32, i32) {
    %c0_i32 = arith.constant 0 : i32
    %c0_i32_0 = arith.constant 0 : i32
    return %c0_i32, %arg0 : i32, i32
  }
  func.func @transform_5(%arg0: i32) -> (i32, i32) {
    %c0_i32 = arith.constant 0 : i32
    %c0_i32_0 = arith.constant 0 : i32
    return %c0_i32, %arg0 : i32, i32
  }
}

</mosaic_0001>

<llo_original>
// kernel: variational_decoder_forward.3
$region0: #{variational_decoder_forward.3}
  #allocation0 [shape = 'u32[]', space=smem, size = 0x4, offset = 0x4, fixed_abs, tag = 'smem constant byte address 0x4 - core index']
  #allocation1 [shape = 'u32[144,128]{1,0:T(1,128)}', space=vmem, size = 0x12000, scoped, tag = 'internal scratch']
  %s0 = inlined_call_operand.vmem [shape: bf16[2048,128], index: 0, kind: input, shape index: {}]
  %s1 = inlined_call_operand.vmem [shape: bf16[128,256], index: 1, kind: input, shape index: {}]
  %s2 = inlined_call_operand.vmem [shape: f32[1,256], index: 2, kind: input, shape index: {}]
  %s3 = inlined_call_operand.vmem [shape: bf16[256,512], index: 3, kind: input, shape index: {}]
  %s4 = inlined_call_operand.vmem [shape: f32[1,512], index: 4, kind: input, shape index: {}]
  %s5 = inlined_call_operand.vmem [shape: bf16[512,64], index: 5, kind: input, shape index: {}]
  %s6 = inlined_call_operand.vmem [shape: f32[1,64], index: 6, kind: input, shape index: {}]
  %s7 = inlined_call_operand.vmem [shape: f32[2048,64], index: 7, kind: output, shape index: {}]
  %s8 = sld [smem:[#allocation0]]
  $region61: #{variational_decoder_forward.3} parent=0
    _
  %s10 = ssub.s32 1, %s8
  %s11 = scalar_select 0, %s10, %s8
  loop: start=0, step=1, limit=10
  $region2: #{variational_decoder_forward.3} parent=0 // loop_pre_header
    _
  $region3: #{variational_decoder_forward.3} parent=0 // loop_header
    %s13 = sphi 0, %s17
    %p14 = scmp.ge.s32.totalorder %s13, 10
    %s23 = sphi 0, %s25
    %s26 = sphi 0, %s23
    %s27 = sphi 0, %s26
    %s43 = sphi 0, %s27
    %s47 = sphi 0, %s47
    %s49 = sphi 0, %s47
    %s50 = sphi 0, %s49
    %s64 = sphi 0, %s50
    %s68 = sphi 0, %s68
    %s70 = sphi 0, %s68
    %s71 = sphi 0, %s70
    %s85 = sphi 0, %s71
    %s89 = sphi 0, %s89
    %s91 = sphi 0, %s89
    %s92 = sphi 0, %s91
    %s106 = sphi 0, %s92
    %s110 = sphi 0, %s110
    %s112 = sphi 0, %s110
    %s113 = sphi 0, %s112
    %s127 = sphi 0, %s113
    %s131 = sphi 0, %s131
    %s133 = sphi 0, %s131
    %s134 = sphi 0, %s133
    %s148 = sphi 0, %s134
    %s152 = sphi 0, %s152
    %s154 = sphi 0, %s152
    %s155 = sphi 0, %s154
    %s169 = sphi 0, %s155
    %s175 = sphi 0, %s177
    %s178 = sphi 0, %s175
    %s179 = sphi 0, %s178
    %s195 = sphi 0, %s179
  $region4: #{variational_decoder_forward.3} parent=0 // loop_header_branch
    %16 = sbr.rel (%p14) target = $region8
  $region5: #{variational_decoder_forward.3} parent=0 // loop_body
    %s18 = ssub.s32 %s13, 1
    %s19 = ssub.s32 %s13, 2
    %s20 = sadd.s32 %s13, 1
    %s21 = ssub.s32 %s13, %s20
    %p22 = scmp.eq.s32.totalorder %s21, 0
    %s24 = sadd.s32 %s23, 1
    %s25 = scalar_select %p22, %s23, %s24
    %p28 = pneg %p22
    %p29 = scmp.eq.s32.totalorder %s13, 7
    %p30 = por %p28, %p29
    %p31 = scmp.ne.s32.totalorder %s23, %s26
    %p32 = scmp.eq.s32.totalorder %s13, 0
    %p33 = por %p31, %p32
    %p34 = scmp.ne.s32.totalorder %s23, %s26
    %p35 = scmp.eq.s32.totalorder %s18, 7
    %p36 = por %p34, %p35
    %p37 = scmp.ne.s32.totalorder %s26, %s27
    %p38 = scmp.eq.s32.totalorder %s18, 0
    %p39 = por %p37, %p38
    %p40 = scmp.ne.s32.totalorder %s26, %s27
    %p41 = scmp.eq.s32.totalorder %s19, 7
    %p42 = por %p40, %p41
    %p44 = scmp.ne.s32.totalorder %s27, %s43
    %p45 = scmp.eq.s32.totalorder %s19, 0
    %p46 = por %p44, %p45
    %s48 = sadd.s32 %s47, 1
    %p51 = scmp.eq.s32.totalorder %s13, 7
    %p52 = scmp.ne.s32.totalorder %s47, %s49
    %p53 = scmp.eq.s32.totalorder %s13, 0
    %p54 = por %p52, %p53
    %p55 = scmp.ne.s32.totalorder %s47, %s49
    %p56 = scmp.eq.s32.totalorder %s18, 7
    %p57 = por %p55, %p56
    %p58 = scmp.ne.s32.totalorder %s49, %s50
    %p59 = scmp.eq.s32.totalorder %s18, 0
    %p60 = por %p58, %p59
    %p61 = scmp.ne.s32.totalorder %s49, %s50
    %p62 = scmp.eq.s32.totalorder %s19, 7
    %p63 = por %p61, %p62
    %p65 = scmp.ne.s32.totalorder %s50, %s64
    %p66 = scmp.eq.s32.totalorder %s19, 0
    %p67 = por %p65, %p66
    %s69 = sadd.s32 %s68, 1
    %p72 = scmp.eq.s32.totalorder %s13, 7
    %p73 = scmp.ne.s32.totalorder %s68, %s70
    %p74 = scmp.eq.s32.totalorder %s13, 0
    %p75 = por %p73, %p74
    %p76 = scmp.ne.s32.totalorder %s68, %s70
    %p77 = scmp.eq.s32.totalorder %s18, 7
    %p78 = por %p76, %p77
    %p79 = scmp.ne.s32.totalorder %s70, %s71
    %p80 = scmp.eq.s32.totalorder %s18, 0
    %p81 = por %p79, %p80
    %p82 = scmp.ne.s32.totalorder %s70, %s71
    %p83 = scmp.eq.s32.totalorder %s19, 7
    %p84 = por %p82, %p83
    %p86 = scmp.ne.s32.totalorder %s71, %s85
    %p87 = scmp.eq.s32.totalorder %s19, 0
    %p88 = por %p86, %p87
    %s90 = sadd.s32 %s89, 1
    %p93 = scmp.eq.s32.totalorder %s13, 7
    %p94 = scmp.ne.s32.totalorder %s89, %s91
    %p95 = scmp.eq.s32.totalorder %s13, 0
    %p96 = por %p94, %p95
    %p97 = scmp.ne.s32.totalorder %s89, %s91
    %p98 = scmp.eq.s32.totalorder %s18, 7
    %p99 = por %p97, %p98
    %p100 = scmp.ne.s32.totalorder %s91, %s92
    %p101 = scmp.eq.s32.totalorder %s18, 0
    %p102 = por %p100, %p101
    %p103 = scmp.ne.s32.totalorder %s91, %s92
    %p104 = scmp.eq.s32.totalorder %s19, 7
    %p105 = por %p103, %p104
    %p107 = scmp.ne.s32.totalorder %s92, %s106
    %p108 = scmp.eq.s32.totalorder %s19, 0
    %p109 = por %p107, %p108
    %s111 = sadd.s32 %s110, 1
    %p114 = scmp.eq.s32.totalorder %s13, 7
    %p115 = scmp.ne.s32.totalorder %s110, %s112
    %p116 = scmp.eq.s32.totalorder %s13, 0
    %p117 = por %p115, %p116
    %p118 = scmp.ne.s32.totalorder %s110, %s112
    %p119 = scmp.eq.s32.totalorder %s18, 7
    %p120 = por %p118, %p119
    %p121 = scmp.ne.s32.totalorder %s112, %s113
    %p122 = scmp.eq.s32.totalorder %s18, 0
    %p123 = por %p121, %p122
    %p124 = scmp.ne.s32.totalorder %s112, %s113
    %p125 = scmp.eq.s32.totalorder %s19, 7
    %p126 = por %p124, %p125
    %p128 = scmp.ne.s32.totalorder %s113, %s127
    %p129 = scmp.eq.s32.totalorder %s19, 0
    %p130 = por %p128, %p129
    %s132 = sadd.s32 %s131, 1
    %p135 = scmp.eq.s32.totalorder %s13, 7
    %p136 = scmp.ne.s32.totalorder %s131, %s133
    %p137 = scmp.eq.s32.totalorder %s13, 0
    %p138 = por %p136, %p137
    %p139 = scmp.ne.s32.totalorder %s131, %s133
    %p140 = scmp.eq.s32.totalorder %s18, 7
    %p141 = por %p139, %p140
    %p142 = scmp.ne.s32.totalorder %s133, %s134
    %p143 = scmp.eq.s32.totalorder %s18, 0
    %p144 = por %p142, %p143
    %p145 = scmp.ne.s32.totalorder %s133, %s134
    %p146 = scmp.eq.s32.totalorder %s19, 7
    %p147 = por %p145, %p146
    %p149 = scmp.ne.s32.totalorder %s134, %s148
    %p150 = scmp.eq.s32.totalorder %s19, 0
    %p151 = por %p149, %p150
    %s153 = sadd.s32 %s152, 1
    %p156 = scmp.eq.s32.totalorder %s13, 7
    %p157 = scmp.ne.s32.totalorder %s152, %s154
    %p158 = scmp.eq.s32.totalorder %s13, 0
    %p159 = por %p157, %p158
    %p160 = scmp.ne.s32.totalorder %s152, %s154
    %p161 = scmp.eq.s32.totalorder %s18, 7
    %p162 = por %p160, %p161
    %p163 = scmp.ne.s32.totalorder %s154, %s155
    %p164 = scmp.eq.s32.totalorder %s18, 0
    %p165 = por %p163, %p164
    %p166 = scmp.ne.s32.totalorder %s154, %s155
    %p167 = scmp.eq.s32.totalorder %s19, 7
    %p168 = por %p166, %p167
    %p170 = scmp.ne.s32.totalorder %s155, %s169
    %p171 = scmp.eq.s32.totalorder %s19, 0
    %p172 = por %p170, %p171
    %s173 = ssub.s32 %s13, %s20
    %p174 = scmp.eq.s32.totalorder %s173, 0
    %s176 = sadd.s32 %s175, 1
    %s177 = scalar_select %p174, %s175, %s176
    %p180 = pneg %p174
    %p181 = scmp.eq.s32.totalorder %s13, 7
    %p182 = por %p180, %p181
    %p183 = scmp.ne.s32.totalorder %s175, %s178
    %p184 = scmp.eq.s32.totalorder %s13, 0
    %p185 = por %p183, %p184
    %p186 = scmp.ne.s32.totalorder %s175, %s178
    %p187 = scmp.eq.s32.totalorder %s18, 7
    %p188 = por %p186, %p187
    %p189 = scmp.ne.s32.totalorder %s178, %s179
    %p190 = scmp.eq.s32.totalorder %s18, 0
    %p191 = por %p189, %p190
    %p192 = scmp.ne.s32.totalorder %s178, %s179
    %p193 = scmp.eq.s32.totalorder %s19, 7
    %p194 = por %p192, %p193
    %p196 = scmp.ne.s32.totalorder %s179, %s195
    %p197 = scmp.eq.s32.totalorder %s19, 0
    %p198 = por %p196, %p197
    %p199 = scmp.le.s32.totalorder 1, %s13
    %p200 = scmp.lt.s32.totalorder %s13, 9
    %p201 = pnand %p199, %p200
    %p202 = pneg %p201
    // Predicated region
    $region9: #{variational_decoder_forward.3} parent=5 // pred_check
      _
    $region10: #{variational_decoder_forward.3} parent=5 // pred_check_branch
      %204 = sbr.rel (%p201) target = $region12
    $region11: #{variational_decoder_forward.3} parent=5 // pred_region
      %s205 = ssub.s32 %s13, 1
      // Predicated region
      $region13: #{variational_decoder_forward.3} parent=11 // pred_check
        %p206 = pneg %p60
      $region14: #{variational_decoder_forward.3} parent=11 // pred_check_branch
        %208 = sbr.rel (%p206) target = $region16
      $region15: #{variational_decoder_forward.3} parent=11 // pred_region
        _
      $region16: #{variational_decoder_forward.3} parent=11 // pred_fallthru
        _
      // Predicated region
      $region17: #{variational_decoder_forward.3} parent=11 // pred_check
        %p209 = pneg %p81
      $region18: #{variational_decoder_forward.3} parent=11 // pred_check_branch
        %211 = sbr.rel (%p209) target = $region20
      $region19: #{variational_decoder_forward.3} parent=11 // pred_region
        _
      $region20: #{variational_decoder_forward.3} parent=11 // pred_fallthru
        _
      // Predicated region
      $region21: #{variational_decoder_forward.3} parent=11 // pred_check
        %p212 = pneg %p102
      $region22: #{variational_decoder_forward.3} parent=11 // pred_check_branch
        %214 = sbr.rel (%p212) target = $region24
      $region23: #{variational_decoder_forward.3} parent=11 // pred_region
        _
      $region24: #{variational_decoder_forward.3} parent=11 // pred_fallthru
        _
      // Predicated region
      $region25: #{variational_decoder_forward.3} parent=11 // pred_check
        %p215 = pneg %p123
      $region26: #{variational_decoder_forward.3} parent=11 // pred_check_branch
        %217 = sbr.rel (%p215) target = $region28
      $region27: #{variational_decoder_forward.3} parent=11 // pred_region
        _
      $region28: #{variational_decoder_forward.3} parent=11 // pred_fallthru
        _
      // Predicated region
      $region29: #{variational_decoder_forward.3} parent=11 // pred_check
        %p218 = pneg %p144
      $region30: #{variational_decoder_forward.3} parent=11 // pred_check_branch
        %220 = sbr.rel (%p218) target = $region32
      $region31: #{variational_decoder_forward.3} parent=11 // pred_region
        _
      $region32: #{variational_decoder_forward.3} parent=11 // pred_fallthru
        _
      // Predicated region
      $region33: #{variational_decoder_forward.3} parent=11 // pred_check
        %p221 = pneg %p165
      $region34: #{variational_decoder_forward.3} parent=11 // pred_check_branch
        %223 = sbr.rel (%p221) target = $region36
      $region35: #{variational_decoder_forward.3} parent=11 // pred_region
        _
      $region36: #{variational_decoder_forward.3} parent=11 // pred_fallthru
        _
    $region12: #{variational_decoder_forward.3} parent=5 // pred_fallthru
      _
    %p224 = scmp.lt.s32.totalorder %s13, 8
    // Predicated region
    $region37: #{variational_decoder_forward.3} parent=5 // pred_check
      %p225 = pneg %p224
    $region38: #{variational_decoder_forward.3} parent=5 // pred_check_branch
      %227 = sbr.rel (%p225) target = $region40
    $region39: #{variational_decoder_forward.3} parent=5 // pred_region
      // Predicated region
      $region41: #{variational_decoder_forward.3} parent=39 // pred_check
        %p228 = pneg %p33
      $region42: #{variational_decoder_forward.3} parent=39 // pred_check_branch
        %230 = sbr.rel (%p228) target = $region44
      $region43: #{variational_decoder_forward.3} parent=39 // pred_region
        %s231 = smul.u32 32, %s13
        %p232 = scmp.lt.s32.totalorder %s231, 255
        %s233 = scalar_select %p232, %s231, 255
        %s234 = smul.addr %s233, 4
        %s235 = scalar_lea.vmem %s0, %s234
        %s236 = smul.u32 32, %s13
      $region44: #{variational_decoder_forward.3} parent=39 // pred_fallthru
        _
    $region40: #{variational_decoder_forward.3} parent=5 // pred_fallthru
      _
    %p237 = scmp.le.s32.totalorder 1, %s13
    %p238 = scmp.lt.s32.totalorder %s13, 9
    %p239 = pnand %p237, %p238
    %p240 = pneg %p239
    // Predicated region
    $region45: #{variational_decoder_forward.3} parent=5 // pred_check
      _
    $region46: #{variational_decoder_forward.3} parent=5 // pred_check_branch
      %242 = sbr.rel (%p239) target = $region48
    $region47: #{variational_decoder_forward.3} parent=5 // pred_region
      %s243 = ssub.s32 %s13, 1
      %s244 = smul.u32 32, %s18
      %p245 = scmp.lt.s32.totalorder %s244, 255
      %s246 = scalar_select %p245, %s244, 255
      %s247 = smul.addr %s246, 4
      %s248 = scalar_lea.vmem %s0, %s247
      %p249 = pneg %p39
      %p250 = pneg %p36
      %p251 = pneg %p60
      %p252 = pneg %p57
      %p253 = pneg %p81
      %p254 = pneg %p78
      %p255 = pneg %p102
      %p256 = pneg %p99
      %p257 = pneg %p123
      %p258 = pneg %p120
      %p259 = pneg %p144
      %p260 = pneg %p141
      %p261 = pneg %p165
      %p262 = pneg %p162
      %p263 = pneg %p191
      %p264 = pneg %p188
      %s265 = smul.u32 32, %s18
      %p266 = scmp.lt.s32.totalorder %s265, 255
      %s267 = scalar_select %p266, %s265, 255
      %s268 = smul.addr %s267, 8
      %s269 = scalar_lea.vmem %s7, %s268
      %s270 = smul.u32 32, %s18
      %p271 = scmp.lt.s32.totalorder %s270, 255
      %s272 = scalar_select %p271, %s270, 255
      %s273 = smul.addr %s272, 4
      %s274 = scalar_lea.vmem %s0, %s273
      %s275 = smul.u32 32, %s18
      %s276 = smul.u32 32, %s18
      %p277 = scmp.lt.s32.totalorder %s276, 255
      %s278 = scalar_select %p277, %s276, 255
      %s279 = smul.addr %s278, 8
      %s280 = scalar_lea.vmem %s7, %s279
      %s281 = smul.u32 32, %s18
      %v283 = vld [vmem:[%s274] sm:$0xf]
      %v284 = vld [vmem:[%s274 + $0x4] sm:$0xf]
      %v285 = vld [vmem:[%s274 + $0x8] sm:$0xf]
      %v286 = vld [vmem:[%s274 + $0xc] sm:$0xf]
      %v287 = vld [vmem:[%s274 + $0x10] sm:$0xf]
      %v288 = vld [vmem:[%s274 + $0x14] sm:$0xf]
      %v289 = vld [vmem:[%s274 + $0x18] sm:$0xf]
      %v290 = vld [vmem:[%s274 + $0x1c] sm:$0xf]
      %v291 = vld [vmem:[%s274 + $0x20] sm:$0xf]
      %v292 = vld [vmem:[%s274 + $0x24] sm:$0xf]
      %v293 = vld [vmem:[%s274 + $0x28] sm:$0xf]
      %v294 = vld [vmem:[%s274 + $0x2c] sm:$0xf]
      %v295 = vld [vmem:[%s274 + $0x30] sm:$0xf]
      %v296 = vld [vmem:[%s274 + $0x34] sm:$0xf]
      %v297 = vld [vmem:[%s274 + $0x38] sm:$0xf]
      %v298 = vld [vmem:[%s274 + $0x3c] sm:$0xf]
      %v299 = vld [vmem:[%s274 + $0x40] sm:$0xf]
      %v300 = vld [vmem:[%s274 + $0x44] sm:$0xf]
      %v301 = vld [vmem:[%s274 + $0x48] sm:$0xf]
      %v302 = vld [vmem:[%s274 + $0x4c] sm:$0xf]
      %v303 = vld [vmem:[%s274 + $0x50] sm:$0xf]
      %v304 = vld [vmem:[%s274 + $0x54] sm:$0xf]
      %v305 = vld [vmem:[%s274 + $0x58] sm:$0xf]
      %v306 = vld [vmem:[%s274 + $0x5c] sm:$0xf]
      %v307 = vld [vmem:[%s274 + $0x60] sm:$0xf]
      %v308 = vld [vmem:[%s274 + $0x64] sm:$0xf]
      %v309 = vld [vmem:[%s274 + $0x68] sm:$0xf]
      %v310 = vld [vmem:[%s274 + $0x6c] sm:$0xf]
      %v311 = vld [vmem:[%s274 + $0x70] sm:$0xf]
      %v312 = vld [vmem:[%s274 + $0x74] sm:$0xf]
      %v313 = vld [vmem:[%s274 + $0x78] sm:$0xf]
      %v314 = vld [vmem:[%s274 + $0x7c] sm:$0xf]
      %v315 = vld [vmem:[%s1] sm:$0xff]
      %v316 = vld [vmem:[%s1 + $0x8] sm:$0xff]
      %v317 = vld [vmem:[%s1 + $0x10] sm:$0xff]
      %v318 = vld [vmem:[%s1 + $0x18] sm:$0xff]
      %v319 = vld [vmem:[%s1 + $0x20] sm:$0xff]
      %v320 = vld [vmem:[%s1 + $0x28] sm:$0xff]
      %v321 = vld [vmem:[%s1 + $0x30] sm:$0xff]
      %v322 = vld [vmem:[%s1 + $0x38] sm:$0xff]
      %v323 = vld [vmem:[%s1 + $0x40] sm:$0xff]
      %v324 = vld [vmem:[%s1 + $0x48] sm:$0xff]
      %v325 = vld [vmem:[%s1 + $0x50] sm:$0xff]
      %v326 = vld [vmem:[%s1 + $0x58] sm:$0xff]
      %v327 = vld [vmem:[%s1 + $0x60] sm:$0xff]
      %v328 = vld [vmem:[%s1 + $0x68] sm:$0xff]
      %v329 = vld [vmem:[%s1 + $0x70] sm:$0xff]
      %v330 = vld [vmem:[%s1 + $0x78] sm:$0xff]
      %v331 = vld [vmem:[%s2] sm:$0x3]
      %v333 = vlaneseq
      %v334 = vshrl.u32 %v333, 7
      %v335 = vsub.s32 0, %v334
      %v336 = vrot.slane %v331, %v335
      %v337 = vlaneseq
      %v338 = vshrl.u32 %v337, 7
      %v339 = vsub.s32 1, %v338
      %v340 = vrot.slane %v331, %v339
      %v375 = vunpack.c.l.b16 %v283
      %v376 = vunpack.c.l.b16 %v284
      %v377 = vunpack.c.l.b16 %v285
      %v378 = vunpack.c.l.b16 %v286
      %v379 = vunpack.c.l.b16 %v287
      %v380 = vunpack.c.l.b16 %v288
      %v381 = vunpack.c.l.b16 %v289
      %v382 = vunpack.c.l.b16 %v290
      %v383 = vunpack.c.l.b16 %v291
      %v384 = vunpack.c.l.b16 %v292
      %v385 = vunpack.c.l.b16 %v293
      %v386 = vunpack.c.l.b16 %v294
      %v387 = vunpack.c.l.b16 %v295
      %v388 = vunpack.c.l.b16 %v296
      %v389 = vunpack.c.l.b16 %v297
      %v390 = vunpack.c.l.b16 %v298
      %v391 = vunpack.c.l.b16 %v299
      %v392 = vunpack.c.l.b16 %v300
      %v393 = vunpack.c.l.b16 %v301
      %v394 = vunpack.c.l.b16 %v302
      %v395 = vunpack.c.l.b16 %v303
      %v396 = vunpack.c.l.b16 %v304
      %v397 = vunpack.c.l.b16 %v305
      %v398 = vunpack.c.l.b16 %v306
      %v399 = vunpack.c.l.b16 %v307
      %v400 = vunpack.c.l.b16 %v308
      %v401 = vunpack.c.l.b16 %v309
      %v402 = vunpack.c.l.b16 %v310
      %v403 = vunpack.c.l.b16 %v311
      %v404 = vunpack.c.l.b16 %v312
      %v405 = vunpack.c.l.b16 %v313
      %v406 = vunpack.c.l.b16 %v314
      %v407 = vpack.c.b16 %v376, %v375
      %v408 = vpack.c.b16 %v378, %v377
      %v409 = vpack.c.b16 %v380, %v379
      %v410 = vpack.c.b16 %v382, %v381
      %v411 = vpack.c.b16 %v384, %v383
      %v412 = vpack.c.b16 %v386, %v385
      %v413 = vpack.c.b16 %v388, %v387
      %v414 = vpack.c.b16 %v390, %v389
      %v415 = vpack.c.b16 %v392, %v391
      %v416 = vpack.c.b16 %v394, %v393
      %v417 = vpack.c.b16 %v396, %v395
      %v418 = vpack.c.b16 %v398, %v397
      %v419 = vpack.c.b16 %v400, %v399
      %v420 = vpack.c.b16 %v402, %v401
      %v421 = vpack.c.b16 %v404, %v403
      %v422 = vpack.c.b16 %v406, %v405
      %v455 = vunpack.c.l.b16 %v315
      %v456 = vunpack.c.h.b16 %v315
      %v457 = vunpack.c.l.b16 %v316
      %v458 = vunpack.c.h.b16 %v316
      %v459 = vunpack.c.l.b16 %v317
      %v460 = vunpack.c.h.b16 %v317
      %v461 = vunpack.c.l.b16 %v318
      %v462 = vunpack.c.h.b16 %v318
      %v463 = vunpack.c.l.b16 %v319
      %v464 = vunpack.c.h.b16 %v319
      %v465 = vunpack.c.l.b16 %v320
      %v466 = vunpack.c.h.b16 %v320
      %v467 = vunpack.c.l.b16 %v321
      %v468 = vunpack.c.h.b16 %v321
      %v469 = vunpack.c.l.b16 %v322
      %v470 = vunpack.c.h.b16 %v322
      %v471 = vunpack.c.l.b16 %v323
      %v472 = vunpack.c.h.b16 %v323
      %v473 = vunpack.c.l.b16 %v324
      %v474 = vunpack.c.h.b16 %v324
      %v475 = vunpack.c.l.b16 %v325
      %v476 = vunpack.c.h.b16 %v325
      %v477 = vunpack.c.l.b16 %v326
      %v478 = vunpack.c.h.b16 %v326
      %v479 = vunpack.c.l.b16 %v327
      %v480 = vunpack.c.h.b16 %v327
      %v481 = vunpack.c.l.b16 %v328
      %v482 = vunpack.c.h.b16 %v328
      %v483 = vunpack.c.l.b16 %v329
      %v484 = vunpack.c.h.b16 %v329
      %v485 = vunpack.c.l.b16 %v330
      %v486 = vunpack.c.h.b16 %v330
      %v487 = vpack.c.b16 %v457, %v455
      %v488 = vpack.c.b16 %v458, %v456
      %v489 = vpack.c.b16 %v461, %v459
      %v490 = vpack.c.b16 %v462, %v460
      %v491 = vpack.c.b16 %v465, %v463
      %v492 = vpack.c.b16 %v466, %v464
      %v493 = vpack.c.b16 %v469, %v467
      %v494 = vpack.c.b16 %v470, %v468
      %v495 = vpack.c.b16 %v473, %v471
      %v496 = vpack.c.b16 %v474, %v472
      %v497 = vpack.c.b16 %v477, %v475
      %v498 = vpack.c.b16 %v478, %v476
      %v499 = vpack.c.b16 %v481, %v479
      %v500 = vpack.c.b16 %v482, %v480
      %v501 = vpack.c.b16 %v485, %v483
      %v502 = vpack.c.b16 %v486, %v484
      %519 = vmatprep.subr.bf16.mxu0 %v502
      %520 = vmatpush1.bf16.msra.mxu0 %v501
      %521 = vmatprep.subr.bf16.mxu0 %v500
      %522 = vmatpush1.bf16.msra.mxu0 %v499
      %523 = vmatprep.subr.bf16.mxu0 %v498
      %524 = vmatpush1.bf16.msra.mxu0 %v497
      %525 = vmatprep.subr.bf16.mxu0 %v496
      %526 = vmatpush1.bf16.msra.mxu0 %v495
      %527 = vmatprep.subr.bf16.mxu0 %v494
      %528 = vmatpush1.bf16.msra.mxu0 %v493
      %529 = vmatprep.subr.bf16.mxu0 %v492
      %530 = vmatpush1.bf16.msra.mxu0 %v491
      %531 = vmatprep.subr.bf16.mxu0 %v490
      %532 = vmatpush1.bf16.msra.mxu0 %v489
      %533 = vmatprep.subr.bf16.mxu0 %v488
      %534 = vmatpush1.bf16.msra.mxu0 %v487
      %535 = vmatprep.subr.bf16.mxu0 0
      %536 = vmatpush2.bf16.msra.mxu0 0
      %537 = vmatprep.subr.bf16.mxu0 0
      %538 = vmatpush2.bf16.msra.mxu0 0
      %539 = vmatprep.subr.bf16.mxu0 0
      %540 = vmatpush2.bf16.msra.mxu0 0
      %541 = vmatprep.subr.bf16.mxu0 0
      %542 = vmatpush2.bf16.msra.mxu0 0
      %543 = vmatprep.subr.bf16.mxu0 0
      %544 = vmatpush2.bf16.msra.mxu0 0
      %545 = vmatprep.subr.bf16.mxu0 0
      %546 = vmatpush2.bf16.msra.mxu0 0
      %547 = vmatprep.subr.bf16.mxu0 0
      %548 = vmatpush2.bf16.msra.mxu0 0
      %549 = vmatprep.subr.bf16.mxu0 0
      %550 = vmatpush2.bf16.msra.mxu0 0
      %551 = vmatprep.mubr.bf16.mxu0 0
      %552 = vmatmul.mubr.bf16.gmra.mxu0 %v407
      %v553 = vpop.f32.mrf.mxu0
      %v554 = vadd.f32 %v336, %v553
      %v555 = vpop.f32.mrf.mxu0
      %v556 = vadd.f32 %v340, %v555
      %v557 = vpop.f32.mrf.mxu0
      %v558 = vadd.f32 %v336, %v557
      %v559 = vpop.f32.mrf.mxu0
      %v560 = vadd.f32 %v340, %v559
      %561 = vmatprep.mubr.bf16.mxu0 0
      %562 = vmatmul.mubr.bf16.gmra.mxu0 %v408
      %v563 = vpop.f32.mrf.mxu0
      %v564 = vadd.f32 %v336, %v563
      %v565 = vpop.f32.mrf.mxu0
      %v566 = vadd.f32 %v340, %v565
      %v567 = vpop.f32.mrf.mxu0
      %v568 = vadd.f32 %v336, %v567
      %v569 = vpop.f32.mrf.mxu0
      %v570 = vadd.f32 %v340, %v569
      %571 = vmatprep.mubr.bf16.mxu0 0
      %572 = vmatmul.mubr.bf16.gmra.mxu0 %v409
      %v573 = vpop.f32.mrf.mxu0
      %v574 = vadd.f32 %v336, %v573
      %v575 = vpop.f32.mrf.mxu0
      %v576 = vadd.f32 %v340, %v575
      %v577 = vpop.f32.mrf.mxu0
      %v578 = vadd.f32 %v336, %v577
      %v579 = vpop.f32.mrf.mxu0
      %v580 = vadd.f32 %v340, %v579
      %581 = vmatprep.mubr.bf16.mxu0 0
      %582 = vmatmul.mubr.bf16.gmra.mxu0 %v410
      %v583 = vpop.f32.mrf.mxu0
      %v584 = vadd.f32 %v336, %v583
      %v585 = vpop.f32.mrf.mxu0
      %v586 = vadd.f32 %v340, %v585
      %v587 = vpop.f32.mrf.mxu0
      %v588 = vadd.f32 %v336, %v587
      %v589 = vpop.f32.mrf.mxu0
      %v590 = vadd.f32 %v340, %v589
      %591 = vmatprep.mubr.bf16.mxu0 0
      %592 = vmatmul.mubr.bf16.gmra.mxu0 %v411
      %v593 = vpop.f32.mrf.mxu0
      %v594 = vadd.f32 %v336, %v593
      %v595 = vpop.f32.mrf.mxu0
      %v596 = vadd.f32 %v340, %v595
      %v597 = vpop.f32.mrf.mxu0
      %v598 = vadd.f32 %v336, %v597
      %v599 = vpop.f32.mrf.mxu0
      %v600 = vadd.f32 %v340, %v599
      %601 = vmatprep.mubr.bf16.mxu0 0
      %602 = vmatmul.mubr.bf16.gmra.mxu0 %v412
      %v603 = vpop.f32.mrf.mxu0
      %v604 = vadd.f32 %v336, %v603
      %v605 = vpop.f32.mrf.mxu0
      %v606 = vadd.f32 %v340, %v605
      %v607 = vpop.f32.mrf.mxu0
      %v608 = vadd.f32 %v336, %v607
      %v609 = vpop.f32.mrf.mxu0
      %v610 = vadd.f32 %v340, %v609
      %611 = vmatprep.mubr.bf16.mxu0 0
      %612 = vmatmul.mubr.bf16.gmra.mxu0 %v413
      %v613 = vpop.f32.mrf.mxu0
      %v614 = vadd.f32 %v336, %v613
      %v615 = vpop.f32.mrf.mxu0
      %v616 = vadd.f32 %v340, %v615
      %v617 = vpop.f32.mrf.mxu0
      %v618 = vadd.f32 %v336, %v617
      %v619 = vpop.f32.mrf.mxu0
      %v620 = vadd.f32 %v340, %v619
      %621 = vmatprep.mubr.bf16.mxu0 0
      %622 = vmatmul.mubr.bf16.gmra.mxu0 %v414
      %v623 = vpop.f32.mrf.mxu0
      %v624 = vadd.f32 %v336, %v623
      %v625 = vpop.f32.mrf.mxu0
      %v626 = vadd.f32 %v340, %v625
      %v627 = vpop.f32.mrf.mxu0
      %v628 = vadd.f32 %v336, %v627
      %v629 = vpop.f32.mrf.mxu0
      %v630 = vadd.f32 %v340, %v629
      %631 = vmatprep.mubr.bf16.mxu0 0
      %632 = vmatmul.mubr.bf16.gmra.mxu0 %v415
      %v633 = vpop.f32.mrf.mxu0
      %v634 = vadd.f32 %v336, %v633
      %v635 = vpop.f32.mrf.mxu0
      %v636 = vadd.f32 %v340, %v635
      %v637 = vpop.f32.mrf.mxu0
      %v638 = vadd.f32 %v336, %v637
      %v639 = vpop.f32.mrf.mxu0
      %v640 = vadd.f32 %v340, %v639
      %641 = vmatprep.mubr.bf16.mxu0 0
      %642 = vmatmul.mubr.bf16.gmra.mxu0 %v416
      %v643 = vpop.f32.mrf.mxu0
      %v644 = vadd.f32 %v336, %v643
      %v645 = vpop.f32.mrf.mxu0
      %v646 = vadd.f32 %v340, %v645
      %v647 = vpop.f32.mrf.mxu0
      %v648 = vadd.f32 %v336, %v647
      %v649 = vpop.f32.mrf.mxu0
      %v650 = vadd.f32 %v340, %v649
      %651 = vmatprep.mubr.bf16.mxu0 0
      %652 = vmatmul.mubr.bf16.gmra.mxu0 %v417
      %v653 = vpop.f32.mrf.mxu0
      %v654 = vadd.f32 %v336, %v653
      %v655 = vpop.f32.mrf.mxu0
      %v656 = vadd.f32 %v340, %v655
      %v657 = vpop.f32.mrf.mxu0
      %v658 = vadd.f32 %v336, %v657
      %v659 = vpop.f32.mrf.mxu0
      %v660 = vadd.f32 %v340, %v659
      %661 = vmatprep.mubr.bf16.mxu0 0
      %662 = vmatmul.mubr.bf16.gmra.mxu0 %v418
      %v663 = vpop.f32.mrf.mxu0
      %v664 = vadd.f32 %v336, %v663
      %v665 = vpop.f32.mrf.mxu0
      %v666 = vadd.f32 %v340, %v665
      %v667 = vpop.f32.mrf.mxu0
      %v668 = vadd.f32 %v336, %v667
      %v669 = vpop.f32.mrf.mxu0
      %v670 = vadd.f32 %v340, %v669
      %671 = vmatprep.mubr.bf16.mxu0 0
      %672 = vmatmul.mubr.bf16.gmra.mxu0 %v419
      %v673 = vpop.f32.mrf.mxu0
      %v674 = vadd.f32 %v336, %v673
      %v675 = vpop.f32.mrf.mxu0
      %v676 = vadd.f32 %v340, %v675
      %v677 = vpop.f32.mrf.mxu0
      %v678 = vadd.f32 %v336, %v677
      %v679 = vpop.f32.mrf.mxu0
      %v680 = vadd.f32 %v340, %v679
      %681 = vmatprep.mubr.bf16.mxu0 0
      %682 = vmatmul.mubr.bf16.gmra.mxu0 %v420
      %v683 = vpop.f32.mrf.mxu0
      %v684 = vadd.f32 %v336, %v683
      %v685 = vpop.f32.mrf.mxu0
      %v686 = vadd.f32 %v340, %v685
      %v687 = vpop.f32.mrf.mxu0
      %v688 = vadd.f32 %v336, %v687
      %v689 = vpop.f32.mrf.mxu0
      %v690 = vadd.f32 %v340, %v689
      %691 = vmatprep.mubr.bf16.mxu0 0
      %692 = vmatmul.mubr.bf16.gmra.mxu0 %v421
      %v693 = vpop.f32.mrf.mxu0
      %v694 = vadd.f32 %v336, %v693
      %v695 = vpop.f32.mrf.mxu0
      %v696 = vadd.f32 %v340, %v695
      %v697 = vpop.f32.mrf.mxu0
      %v698 = vadd.f32 %v336, %v697
      %v699 = vpop.f32.mrf.mxu0
      %v700 = vadd.f32 %v340, %v699
      %701 = vmatprep.mubr.bf16.mxu0 0
      %702 = vmatmul.mubr.bf16.gmra.mxu0 %v422
      %v703 = vpop.f32.mrf.mxu0
      %v704 = vadd.f32 %v336, %v703
      %v705 = vpop.f32.mrf.mxu0
      %v706 = vadd.f32 %v340, %v705
      %v707 = vpop.f32.mrf.mxu0
      %v708 = vadd.f32 %v336, %v707
      %v709 = vpop.f32.mrf.mxu0
      %v710 = vadd.f32 %v340, %v709
      %711 = vdwg.mxu0
      %v712 = vmax.f32 %v554, 0.0
      %v713 = vmax.f32 %v556, 0.0
      %v714 = vmax.f32 %v558, 0.0
      %v715 = vmax.f32 %v560, 0.0
      %v716 = vmax.f32 %v564, 0.0
      %v717 = vmax.f32 %v566, 0.0
      %v718 = vmax.f32 %v568, 0.0
      %v719 = vmax.f32 %v570, 0.0
      %v720 = vmax.f32 %v574, 0.0
      %v721 = vmax.f32 %v576, 0.0
      %v722 = vmax.f32 %v578, 0.0
      %v723 = vmax.f32 %v580, 0.0
      %v724 = vmax.f32 %v584, 0.0
      %v725 = vmax.f32 %v586, 0.0
      %v726 = vmax.f32 %v588, 0.0
      %v727 = vmax.f32 %v590, 0.0
      %v728 = vmax.f32 %v594, 0.0
      %v729 = vmax.f32 %v596, 0.0
      %v730 = vmax.f32 %v598, 0.0
      %v731 = vmax.f32 %v600, 0.0
      %v732 = vmax.f32 %v604, 0.0
      %v733 = vmax.f32 %v606, 0.0
      %v734 = vmax.f32 %v608, 0.0
      %v735 = vmax.f32 %v610, 0.0
      %v736 = vmax.f32 %v614, 0.0
      %v737 = vmax.f32 %v616, 0.0
      %v738 = vmax.f32 %v618, 0.0
      %v739 = vmax.f32 %v620, 0.0
      %v740 = vmax.f32 %v624, 0.0
      %v741 = vmax.f32 %v626, 0.0
      %v742 = vmax.f32 %v628, 0.0
      %v743 = vmax.f32 %v630, 0.0
      %v744 = vmax.f32 %v634, 0.0
      %v745 = vmax.f32 %v636, 0.0
      %v746 = vmax.f32 %v638, 0.0
      %v747 = vmax.f32 %v640, 0.0
      %v748 = vmax.f32 %v644, 0.0
      %v749 = vmax.f32 %v646, 0.0
      %v750 = vmax.f32 %v648, 0.0
      %v751 = vmax.f32 %v650, 0.0
      %v752 = vmax.f32 %v654, 0.0
      %v753 = vmax.f32 %v656, 0.0
      %v754 = vmax.f32 %v658, 0.0
      %v755 = vmax.f32 %v660, 0.0
      %v756 = vmax.f32 %v664, 0.0
      %v757 = vmax.f32 %v666, 0.0
      %v758 = vmax.f32 %v668, 0.0
      %v759 = vmax.f32 %v670, 0.0
      %v760 = vmax.f32 %v674, 0.0
      %v761 = vmax.f32 %v676, 0.0
      %v762 = vmax.f32 %v678, 0.0
      %v763 = vmax.f32 %v680, 0.0
      %v764 = vmax.f32 %v684, 0.0
      %v765 = vmax.f32 %v686, 0.0
      %v766 = vmax.f32 %v688, 0.0
      %v767 = vmax.f32 %v690, 0.0
      %v768 = vmax.f32 %v694, 0.0
      %v769 = vmax.f32 %v696, 0.0
      %v770 = vmax.f32 %v698, 0.0
      %v771 = vmax.f32 %v700, 0.0
      %v772 = vmax.f32 %v704, 0.0
      %v773 = vmax.f32 %v706, 0.0
      %v774 = vmax.f32 %v708, 0.0
      %v775 = vmax.f32 %v710, 0.0
      %v776 = vpack.c.bf16 %v714, %v712
      %v777 = vpack.c.bf16 %v715, %v713
      %v778 = vpack.c.bf16 %v718, %v716
      %v779 = vpack.c.bf16 %v719, %v717
      %v780 = vpack.c.bf16 %v722, %v720
      %v781 = vpack.c.bf16 %v723, %v721
      %v782 = vpack.c.bf16 %v726, %v724
      %v783 = vpack.c.bf16 %v727, %v725
      %v784 = vpack.c.bf16 %v730, %v728
      %v785 = vpack.c.bf16 %v731, %v729
      %v786 = vpack.c.bf16 %v734, %v732
      %v787 = vpack.c.bf16 %v735, %v733
      %v788 = vpack.c.bf16 %v738, %v736
      %v789 = vpack.c.bf16 %v739, %v737
      %v790 = vpack.c.bf16 %v742, %v740
      %v791 = vpack.c.bf16 %v743, %v741
      %v792 = vpack.c.bf16 %v746, %v744
      %v793 = vpack.c.bf16 %v747, %v745
      %v794 = vpack.c.bf16 %v750, %v748
      %v795 = vpack.c.bf16 %v751, %v749
      %v796 = vpack.c.bf16 %v754, %v752
      %v797 = vpack.c.bf16 %v755, %v753
      %v798 = vpack.c.bf16 %v758, %v756
      %v799 = vpack.c.bf16 %v759, %v757
      %v800 = vpack.c.bf16 %v762, %v760
      %v801 = vpack.c.bf16 %v763, %v761
      %v802 = vpack.c.bf16 %v766, %v764
      %v803 = vpack.c.bf16 %v767, %v765
      %v804 = vpack.c.bf16 %v770, %v768
      %v805 = vpack.c.bf16 %v771, %v769
      %v806 = vpack.c.bf16 %v774, %v772
      %v807 = vpack.c.bf16 %v775, %v773
      %v808 = vld [vmem:[%s3] sm:$0xff]
      %v809 = vld [vmem:[%s3 + $0x8] sm:$0xff]
      %v810 = vld [vmem:[%s3 + $0x10] sm:$0xff]
      %v811 = vld [vmem:[%s3 + $0x18] sm:$0xff]
      %v812 = vld [vmem:[%s3 + $0x20] sm:$0xff]
      %v813 = vld [vmem:[%s3 + $0x28] sm:$0xff]
      %v814 = vld [vmem:[%s3 + $0x30] sm:$0xff]
      %v815 = vld [vmem:[%s3 + $0x38] sm:$0xff]
      %v816 = vld [vmem:[%s3 + $0x40] sm:$0xff]
      %v817 = vld [vmem:[%s3 + $0x48] sm:$0xff]
      %v818 = vld [vmem:[%s3 + $0x50] sm:$0xff]
      %v819 = vld [vmem:[%s3 + $0x58] sm:$0xff]
      %v820 = vld [vmem:[%s3 + $0x60] sm:$0xff]
      %v821 = vld [vmem:[%s3 + $0x68] sm:$0xff]
      %v822 = vld [vmem:[%s3 + $0x70] sm:$0xff]
      %v823 = vld [vmem:[%s3 + $0x78] sm:$0xff]
      %v824 = vld [vmem:[%s3 + $0x80] sm:$0xff]
      %v825 = vld [vmem:[%s3 + $0x88] sm:$0xff]
      %v826 = vld [vmem:[%s3 + $0x90] sm:$0xff]
      %v827 = vld [vmem:[%s3 + $0x98] sm:$0xff]
      %v828 = vld [vmem:[%s3 + $0xa0] sm:$0xff]
      %v829 = vld [vmem:[%s3 + $0xa8] sm:$0xff]
      %v830 = vld [vmem:[%s3 + $0xb0] sm:$0xff]
      %v831 = vld [vmem:[%s3 + $0xb8] sm:$0xff]
      %v832 = vld [vmem:[%s3 + $0xc0] sm:$0xff]
      %v833 = vld [vmem:[%s3 + $0xc8] sm:$0xff]
      %v834 = vld [vmem:[%s3 + $0xd0] sm:$0xff]
      %v835 = vld [vmem:[%s3 + $0xd8] sm:$0xff]
      %v836 = vld [vmem:[%s3 + $0xe0] sm:$0xff]
      %v837 = vld [vmem:[%s3 + $0xe8] sm:$0xff]
      %v838 = vld [vmem:[%s3 + $0xf0] sm:$0xff]
      %v839 = vld [vmem:[%s3 + $0xf8] sm:$0xff]
      %v840 = vld [vmem:[%s3 + $0x100] sm:$0xff]
      %v841 = vld [vmem:[%s3 + $0x108] sm:$0xff]
      %v842 = vld [vmem:[%s3 + $0x110] sm:$0xff]
      %v843 = vld [vmem:[%s3 + $0x118] sm:$0xff]
      %v844 = vld [vmem:[%s3 + $0x120] sm:$0xff]
      %v845 = vld [vmem:[%s3 + $0x128] sm:$0xff]
      %v846 = vld [vmem:[%s3 + $0x130] sm:$0xff]
      %v847 = vld [vmem:[%s3 + $0x138] sm:$0xff]
      %v848 = vld [vmem:[%s3 + $0x140] sm:$0xff]
      %v849 = vld [vmem:[%s3 + $0x148] sm:$0xff]
      %v850 = vld [vmem:[%s3 + $0x150] sm:$0xff]
      %v851 = vld [vmem:[%s3 + $0x158] sm:$0xff]
      %v852 = vld [vmem:[%s3 + $0x160] sm:$0xff]
      %v853 = vld [vmem:[%s3 + $0x168] sm:$0xff]
      %v854 = vld [vmem:[%s3 + $0x170] sm:$0xff]
      %v855 = vld [vmem:[%s3 + $0x178] sm:$0xff]
      %v856 = vld [vmem:[%s3 + $0x180] sm:$0xff]
      %v857 = vld [vmem:[%s3 + $0x188] sm:$0xff]
      %v858 = vld [vmem:[%s3 + $0x190] sm:$0xff]
      %v859 = vld [vmem:[%s3 + $0x198] sm:$0xff]
      %v860 = vld [vmem:[%s3 + $0x1a0] sm:$0xff]
      %v861 = vld [vmem:[%s3 + $0x1a8] sm:$0xff]
      %v862 = vld [vmem:[%s3 + $0x1b0] sm:$0xff]
      %v863 = vld [vmem:[%s3 + $0x1b8] sm:$0xff]
      %v864 = vld [vmem:[%s3 + $0x1c0] sm:$0xff]
      %v865 = vld [vmem:[%s3 + $0x1c8] sm:$0xff]
      %v866 = vld [vmem:[%s3 + $0x1d0] sm:$0xff]
      %v867 = vld [vmem:[%s3 + $0x1d8] sm:$0xff]
      %v868 = vld [vmem:[%s3 + $0x1e0] sm:$0xff]
      %v869 = vld [vmem:[%s3 + $0x1e8] sm:$0xff]
      %v870 = vld [vmem:[%s3 + $0x1f0] sm:$0xff]
      %v871 = vld [vmem:[%s3 + $0x1f8] sm:$0xff]
      %v872 = vld [vmem:[%s4] sm:$0xf]
      %v874 = vlaneseq
      %v875 = vshrl.u32 %v874, 7
      %v876 = vsub.s32 0, %v875
      %v877 = vrot.slane %v872, %v876
      %v878 = vlaneseq
      %v879 = vshrl.u32 %v878, 7
      %v880 = vsub.s32 1, %v879
      %v881 = vrot.slane %v872, %v880
      %v882 = vlaneseq
      %v883 = vshrl.u32 %v882, 7
      %v884 = vsub.s32 2, %v883
      %v885 = vrot.slane %v872, %v884
      %v886 = vlaneseq
      %v887 = vshrl.u32 %v886, 7
      %v888 = vsub.s32 3, %v887
      %v889 = vrot.slane %v872, %v888
      %v958 = vunpack.c.l.b16 %v808
      %v959 = vunpack.c.h.b16 %v808
      %v960 = vunpack.c.l.b16 %v809
      %v961 = vunpack.c.h.b16 %v809
      %v962 = vunpack.c.l.b16 %v810
      %v963 = vunpack.c.h.b16 %v810
      %v964 = vunpack.c.l.b16 %v811
      %v965 = vunpack.c.h.b16 %v811
      %v966 = vunpack.c.l.b16 %v812
      %v967 = vunpack.c.h.b16 %v812
      %v968 = vunpack.c.l.b16 %v813
      %v969 = vunpack.c.h.b16 %v813
      %v970 = vunpack.c.l.b16 %v814
      %v971 = vunpack.c.h.b16 %v814
      %v972 = vunpack.c.l.b16 %v815
      %v973 = vunpack.c.h.b16 %v815
      %v974 = vunpack.c.l.b16 %v816
      %v975 = vunpack.c.h.b16 %v816
      %v976 = vunpack.c.l.b16 %v817
      %v977 = vunpack.c.h.b16 %v817
      %v978 = vunpack.c.l.b16 %v818
      %v979 = vunpack.c.h.b16 %v818
      %v980 = vunpack.c.l.b16 %v819
      %v981 = vunpack.c.h.b16 %v819
      %v982 = vunpack.c.l.b16 %v820
      %v983 = vunpack.c.h.b16 %v820
      %v984 = vunpack.c.l.b16 %v821
      %v985 = vunpack.c.h.b16 %v821
      %v986 = vunpack.c.l.b16 %v822
      %v987 = vunpack.c.h.b16 %v822
      %v988 = vunpack.c.l.b16 %v823
      %v989 = vunpack.c.h.b16 %v823
      %v990 = vunpack.c.l.b16 %v824
      %v991 = vunpack.c.h.b16 %v824
      %v992 = vunpack.c.l.b16 %v825
      %v993 = vunpack.c.h.b16 %v825
      %v994 = vunpack.c.l.b16 %v826
      %v995 = vunpack.c.h.b16 %v826
      %v996 = vunpack.c.l.b16 %v827
      %v997 = vunpack.c.h.b16 %v827
      %v998 = vunpack.c.l.b16 %v828
      %v999 = vunpack.c.h.b16 %v828
      %v1000 = vunpack.c.l.b16 %v829
      %v1001 = vunpack.c.h.b16 %v829
      %v1002 = vunpack.c.l.b16 %v830
      %v1003 = vunpack.c.h.b16 %v830
      %v1004 = vunpack.c.l.b16 %v831
      %v1005 = vunpack.c.h.b16 %v831
      %v1006 = vunpack.c.l.b16 %v832
      %v1007 = vunpack.c.h.b16 %v832
      %v1008 = vunpack.c.l.b16 %v833
      %v1009 = vunpack.c.h.b16 %v833
      %v1010 = vunpack.c.l.b16 %v834
      %v1011 = vunpack.c.h.b16 %v834
      %v1012 = vunpack.c.l.b16 %v835
      %v1013 = vunpack.c.h.b16 %v835
      %v1014 = vunpack.c.l.b16 %v836
      %v1015 = vunpack.c.h.b16 %v836
      %v1016 = vunpack.c.l.b16 %v837
      %v1017 = vunpack.c.h.b16 %v837
      %v1018 = vunpack.c.l.b16 %v838
      %v1019 = vunpack.c.h.b16 %v838
      %v1020 = vunpack.c.l.b16 %v839
      %v1021 = vunpack.c.h.b16 %v839
      %v1022 = vunpack.c.l.b16 %v840
      %v1023 = vunpack.c.h.b16 %v840
      %v1024 = vunpack.c.l.b16 %v841
      %v1025 = vunpack.c.h.b16 %v841
      %v1026 = vunpack.c.l.b16 %v842
      %v1027 = vunpack.c.h.b16 %v842
      %v1028 = vunpack.c.l.b16 %v843
      %v1029 = vunpack.c.h.b16 %v843
      %v1030 = vunpack.c.l.b16 %v844
      %v1031 = vunpack.c.h.b16 %v844
      %v1032 = vunpack.c.l.b16 %v845
      %v1033 = vunpack.c.h.b16 %v845
      %v1034 = vunpack.c.l.b16 %v846
      %v1035 = vunpack.c.h.b16 %v846
      %v1036 = vunpack.c.l.b16 %v847
      %v1037 = vunpack.c.h.b16 %v847
      %v1038 = vunpack.c.l.b16 %v848
      %v1039 = vunpack.c.h.b16 %v848
      %v1040 = vunpack.c.l.b16 %v849
      %v1041 = vunpack.c.h.b16 %v849
      %v1042 = vunpack.c.l.b16 %v850
      %v1043 = vunpack.c.h.b16 %v850
      %v1044 = vunpack.c.l.b16 %v851
      %v1045 = vunpack.c.h.b16 %v851
      %v1046 = vunpack.c.l.b16 %v852
      %v1047 = vunpack.c.h.b16 %v852
      %v1048 = vunpack.c.l.b16 %v853
      %v1049 = vunpack.c.h.b16 %v853
      %v1050 = vunpack.c.l.b16 %v854
      %v1051 = vunpack.c.h.b16 %v854
      %v1052 = vunpack.c.l.b16 %v855
      %v1053 = vunpack.c.h.b16 %v855
      %v1054 = vunpack.c.l.b16 %v856
      %v1055 = vunpack.c.h.b16 %v856
      %v1056 = vunpack.c.l.b16 %v857
      %v1057 = vunpack.c.h.b16 %v857
      %v1058 = vunpack.c.l.b16 %v858
      %v1059 = vunpack.c.h.b16 %v858
      %v1060 = vunpack.c.l.b16 %v859
      %v1061 = vunpack.c.h.b16 %v859
      %v1062 = vunpack.c.l.b16 %v860
      %v1063 = vunpack.c.h.b16 %v860
      %v1064 = vunpack.c.l.b16 %v861
      %v1065 = vunpack.c.h.b16 %v861
      %v1066 = vunpack.c.l.b16 %v862
      %v1067 = vunpack.c.h.b16 %v862
      %v1068 = vunpack.c.l.b16 %v863
      %v1069 = vunpack.c.h.b16 %v863
      %v1070 = vunpack.c.l.b16 %v864
      %v1071 = vunpack.c.h.b16 %v864
      %v1072 = vunpack.c.l.b16 %v865
      %v1073 = vunpack.c.h.b16 %v865
      %v1074 = vunpack.c.l.b16 %v866
      %v1075 = vunpack.c.h.b16 %v866
      %v1076 = vunpack.c.l.b16 %v867
      %v1077 = vunpack.c.h.b16 %v867
      %v1078 = vunpack.c.l.b16 %v868
      %v1079 = vunpack.c.h.b16 %v868
      %v1080 = vunpack.c.l.b16 %v869
      %v1081 = vunpack.c.h.b16 %v869
      %v1082 = vunpack.c.l.b16 %v870
      %v1083 = vunpack.c.h.b16 %v870
      %v1084 = vunpack.c.l.b16 %v871
      %v1085 = vunpack.c.h.b16 %v871
      %v1086 = vpack.c.b16 %v962, %v958
      %v1087 = vpack.c.b16 %v963, %v959
      %v1088 = vpack.c.b16 %v964, %v960
      %v1089 = vpack.c.b16 %v965, %v961
      %v1090 = vpack.c.b16 %v970, %v966
      %v1091 = vpack.c.b16 %v971, %v967
      %v1092 = vpack.c.b16 %v972, %v968
      %v1093 = vpack.c.b16 %v973, %v969
      %v1094 = vpack.c.b16 %v978, %v974
      %v1095 = vpack.c.b16 %v979, %v975
      %v1096 = vpack.c.b16 %v980, %v976
      %v1097 = vpack.c.b16 %v981, %v977
      %v1098 = vpack.c.b16 %v986, %v982
      %v1099 = vpack.c.b16 %v987, %v983
      %v1100 = vpack.c.b16 %v988, %v984
      %v1101 = vpack.c.b16 %v989, %v985
      %v1102 = vpack.c.b16 %v994, %v990
      %v1103 = vpack.c.b16 %v995, %v991
      %v1104 = vpack.c.b16 %v996, %v992
      %v1105 = vpack.c.b16 %v997, %v993
      %v1106 = vpack.c.b16 %v1002, %v998
      %v1107 = vpack.c.b16 %v1003, %v999
      %v1108 = vpack.c.b16 %v1004, %v1000
      %v1109 = vpack.c.b16 %v1005, %v1001
      %v1110 = vpack.c.b16 %v1010, %v1006
      %v1111 = vpack.c.b16 %v1011, %v1007
      %v1112 = vpack.c.b16 %v1012, %v1008
      %v1113 = vpack.c.b16 %v1013, %v1009
      %v1114 = vpack.c.b16 %v1018, %v1014
      %v1115 = vpack.c.b16 %v1019, %v1015
      %v1116 = vpack.c.b16 %v1020, %v1016
      %v1117 = vpack.c.b16 %v1021, %v1017
      %v1118 = vpack.c.b16 %v1026, %v1022
      %v1119 = vpack.c.b16 %v1027, %v1023
      %v1120 = vpack.c.b16 %v1028, %v1024
      %v1121 = vpack.c.b16 %v1029, %v1025
      %v1122 = vpack.c.b16 %v1034, %v1030
      %v1123 = vpack.c.b16 %v1035, %v1031
      %v1124 = vpack.c.b16 %v1036, %v1032
      %v1125 = vpack.c.b16 %v1037, %v1033
      %v1126 = vpack.c.b16 %v1042, %v1038
      %v1127 = vpack.c.b16 %v1043, %v1039
      %v1128 = vpack.c.b16 %v1044, %v1040
      %v1129 = vpack.c.b16 %v1045, %v1041
      %v1130 = vpack.c.b16 %v1050, %v1046
      %v1131 = vpack.c.b16 %v1051, %v1047
      %v1132 = vpack.c.b16 %v1052, %v1048
      %v1133 = vpack.c.b16 %v1053, %v1049
      %v1134 = vpack.c.b16 %v1058, %v1054
      %v1135 = vpack.c.b16 %v1059, %v1055
      %v1136 = vpack.c.b16 %v1060, %v1056
      %v1137 = vpack.c.b16 %v1061, %v1057
      %v1138 = vpack.c.b16 %v1066, %v1062
      %v1139 = vpack.c.b16 %v1067, %v1063
      %v1140 = vpack.c.b16 %v1068, %v1064
      %v1141 = vpack.c.b16 %v1069, %v1065
      %v1142 = vpack.c.b16 %v1074, %v1070
      %v1143 = vpack.c.b16 %v1075, %v1071
      %v1144 = vpack.c.b16 %v1076, %v1072
      %v1145 = vpack.c.b16 %v1077, %v1073
      %v1146 = vpack.c.b16 %v1082, %v1078
      %v1147 = vpack.c.b16 %v1083, %v1079
      %v1148 = vpack.c.b16 %v1084, %v1080
      %v1149 = vpack.c.b16 %v1085, %v1081
      %1214 = vmatprep.subr.bf16.mxu0 %v1115
      %1215 = vmatpush1.bf16.msra.mxu0 %v1114
      %1216 = vmatprep.subr.bf16.mxu0 %v1111
      %1217 = vmatpush1.bf16.msra.mxu0 %v1110
      %1218 = vmatprep.subr.bf16.mxu0 %v1107
      %1219 = vmatpush1.bf16.msra.mxu0 %v1106
      %1220 = vmatprep.subr.bf16.mxu0 %v1103
      %1221 = vmatpush1.bf16.msra.mxu0 %v1102
      %1222 = vmatprep.subr.bf16.mxu0 %v1099
      %1223 = vmatpush1.bf16.msra.mxu0 %v1098
      %1224 = vmatprep.subr.bf16.mxu0 %v1095
      %1225 = vmatpush1.bf16.msra.mxu0 %v1094
      %1226 = vmatprep.subr.bf16.mxu0 %v1091
      %1227 = vmatpush1.bf16.msra.mxu0 %v1090
      %1228 = vmatprep.subr.bf16.mxu0 %v1087
      %1229 = vmatpush1.bf16.msra.mxu0 %v1086
      %1230 = vmatprep.subr.bf16.mxu0 %v1147
      %1231 = vmatpush2.bf16.msra.mxu0 %v1146
      %1232 = vmatprep.subr.bf16.mxu0 %v1143
      %1233 = vmatpush2.bf16.msra.mxu0 %v1142
      %1234 = vmatprep.subr.bf16.mxu0 %v1139
      %1235 = vmatpush2.bf16.msra.mxu0 %v1138
      %1236 = vmatprep.subr.bf16.mxu0 %v1135
      %1237 = vmatpush2.bf16.msra.mxu0 %v1134
      %1238 = vmatprep.subr.bf16.mxu0 %v1131
      %1239 = vmatpush2.bf16.msra.mxu0 %v1130
      %1240 = vmatprep.subr.bf16.mxu0 %v1127
      %1241 = vmatpush2.bf16.msra.mxu0 %v1126
      %1242 = vmatprep.subr.bf16.mxu0 %v1123
      %1243 = vmatpush2.bf16.msra.mxu0 %v1122
      %1244 = vmatprep.subr.bf16.mxu0 %v1119
      %1245 = vmatpush2.bf16.msra.mxu0 %v1118
      %1246 = vmatprep.mubr.bf16.mxu0 %v777
      %1247 = vmatmul.mubr.bf16.gmra.mxu0 %v776
      %v1248 = vpop.f32.mrf.mxu0
      %v1249 = vadd.f32 %v877, %v1248
      %v1250 = vpop.f32.mrf.mxu0
      %v1251 = vadd.f32 %v881, %v1250
      %v1252 = vpop.f32.mrf.mxu0
      %v1253 = vadd.f32 %v877, %v1252
      %v1254 = vpop.f32.mrf.mxu0
      %v1255 = vadd.f32 %v881, %v1254
      %1256 = vmatprep.mubr.bf16.mxu0 %v779
      %1257 = vmatmul.mubr.bf16.gmra.mxu0 %v778
      %v1258 = vpop.f32.mrf.mxu0
      %v1259 = vadd.f32 %v877, %v1258
      %v1260 = vpop.f32.mrf.mxu0
      %v1261 = vadd.f32 %v881, %v1260
      %v1262 = vpop.f32.mrf.mxu0
      %v1263 = vadd.f32 %v877, %v1262
      %v1264 = vpop.f32.mrf.mxu0
      %v1265 = vadd.f32 %v881, %v1264
      %1266 = vmatprep.mubr.bf16.mxu0 %v781
      %1267 = vmatmul.mubr.bf16.gmra.mxu0 %v780
      %v1268 = vpop.f32.mrf.mxu0
      %v1269 = vadd.f32 %v877, %v1268
      %v1270 = vpop.f32.mrf.mxu0
      %v1271 = vadd.f32 %v881, %v1270
      %v1272 = vpop.f32.mrf.mxu0
      %v1273 = vadd.f32 %v877, %v1272
      %v1274 = vpop.f32.mrf.mxu0
      %v1275 = vadd.f32 %v881, %v1274
      %1276 = vmatprep.mubr.bf16.mxu0 %v783
      %1277 = vmatmul.mubr.bf16.gmra.mxu0 %v782
      %v1278 = vpop.f32.mrf.mxu0
      %v1279 = vadd.f32 %v877, %v1278
      %v1280 = vpop.f32.mrf.mxu0
      %v1281 = vadd.f32 %v881, %v1280
      %v1282 = vpop.f32.mrf.mxu0
      %v1283 = vadd.f32 %v877, %v1282
      %v1284 = vpop.f32.mrf.mxu0
      %v1285 = vadd.f32 %v881, %v1284
      %1286 = vmatprep.mubr.bf16.mxu0 %v785
      %1287 = vmatmul.mubr.bf16.gmra.mxu0 %v784
      %v1288 = vpop.f32.mrf.mxu0
      %v1289 = vadd.f32 %v877, %v1288
      %v1290 = vpop.f32.mrf.mxu0
      %v1291 = vadd.f32 %v881, %v1290
      %v1292 = vpop.f32.mrf.mxu0
      %v1293 = vadd.f32 %v877, %v1292
      %v1294 = vpop.f32.mrf.mxu0
      %v1295 = vadd.f32 %v881, %v1294
      %1296 = vmatprep.mubr.bf16.mxu0 %v787
      %1297 = vmatmul.mubr.bf16.gmra.mxu0 %v786
      %v1298 = vpop.f32.mrf.mxu0
      %v1299 = vadd.f32 %v877, %v1298
      %v1300 = vpop.f32.mrf.mxu0
      %v1301 = vadd.f32 %v881, %v1300
      %v1302 = vpop.f32.mrf.mxu0
      %v1303 = vadd.f32 %v877, %v1302
      %v1304 = vpop.f32.mrf.mxu0
      %v1305 = vadd.f32 %v881, %v1304
      %1306 = vmatprep.mubr.bf16.mxu0 %v789
      %1307 = vmatmul.mubr.bf16.gmra.mxu0 %v788
      %v1308 = vpop.f32.mrf.mxu0
      %v1309 = vadd.f32 %v877, %v1308
      %v1310 = vpop.f32.mrf.mxu0
      %v1311 = vadd.f32 %v881, %v1310
      %v1312 = vpop.f32.mrf.mxu0
      %v1313 = vadd.f32 %v877, %v1312
      %v1314 = vpop.f32.mrf.mxu0
      %v1315 = vadd.f32 %v881, %v1314
      %1316 = vmatprep.mubr.bf16.mxu0 %v791
      %1317 = vmatmul.mubr.bf16.gmra.mxu0 %v790
      %v1318 = vpop.f32.mrf.mxu0
      %v1319 = vadd.f32 %v877, %v1318
      %v1320 = vpop.f32.mrf.mxu0
      %v1321 = vadd.f32 %v881, %v1320
      %v1322 = vpop.f32.mrf.mxu0
      %v1323 = vadd.f32 %v877, %v1322
      %v1324 = vpop.f32.mrf.mxu0
      %v1325 = vadd.f32 %v881, %v1324
      %1326 = vmatprep.mubr.bf16.mxu0 %v793
      %1327 = vmatmul.mubr.bf16.gmra.mxu0 %v792
      %v1328 = vpop.f32.mrf.mxu0
      %v1329 = vadd.f32 %v877, %v1328
      %v1330 = vpop.f32.mrf.mxu0
      %v1331 = vadd.f32 %v881, %v1330
      %v1332 = vpop.f32.mrf.mxu0
      %v1333 = vadd.f32 %v877, %v1332
      %v1334 = vpop.f32.mrf.mxu0
      %v1335 = vadd.f32 %v881, %v1334
      %1336 = vmatprep.mubr.bf16.mxu0 %v795
      %1337 = vmatmul.mubr.bf16.gmra.mxu0 %v794
      %v1338 = vpop.f32.mrf.mxu0
      %v1339 = vadd.f32 %v877, %v1338
      %v1340 = vpop.f32.mrf.mxu0
      %v1341 = vadd.f32 %v881, %v1340
      %v1342 = vpop.f32.mrf.mxu0
      %v1343 = vadd.f32 %v877, %v1342
      %v1344 = vpop.f32.mrf.mxu0
      %v1345 = vadd.f32 %v881, %v1344
      %1346 = vmatprep.mubr.bf16.mxu0 %v797
      %1347 = vmatmul.mubr.bf16.gmra.mxu0 %v796
      %v1348 = vpop.f32.mrf.mxu0
      %v1349 = vadd.f32 %v877, %v1348
      %v1350 = vpop.f32.mrf.mxu0
      %v1351 = vadd.f32 %v881, %v1350
      %v1352 = vpop.f32.mrf.mxu0
      %v1353 = vadd.f32 %v877, %v1352
      %v1354 = vpop.f32.mrf.mxu0
      %v1355 = vadd.f32 %v881, %v1354
      %1356 = vmatprep.mubr.bf16.mxu0 %v799
      %1357 = vmatmul.mubr.bf16.gmra.mxu0 %v798
      %v1358 = vpop.f32.mrf.mxu0
      %v1359 = vadd.f32 %v877, %v1358
      %v1360 = vpop.f32.mrf.mxu0
      %v1361 = vadd.f32 %v881, %v1360
      %v1362 = vpop.f32.mrf.mxu0
      %v1363 = vadd.f32 %v877, %v1362
      %v1364 = vpop.f32.mrf.mxu0
      %v1365 = vadd.f32 %v881, %v1364
      %1366 = vmatprep.mubr.bf16.mxu0 %v801
      %1367 = vmatmul.mubr.bf16.gmra.mxu0 %v800
      %v1368 = vpop.f32.mrf.mxu0
      %v1369 = vadd.f32 %v877, %v1368
      %v1370 = vpop.f32.mrf.mxu0
      %v1371 = vadd.f32 %v881, %v1370
      %v1372 = vpop.f32.mrf.mxu0
      %v1373 = vadd.f32 %v877, %v1372
      %v1374 = vpop.f32.mrf.mxu0
      %v1375 = vadd.f32 %v881, %v1374
      %1376 = vmatprep.mubr.bf16.mxu0 %v803
      %1377 = vmatmul.mubr.bf16.gmra.mxu0 %v802
      %v1378 = vpop.f32.mrf.mxu0
      %v1379 = vadd.f32 %v877, %v1378
      %v1380 = vpop.f32.mrf.mxu0
      %v1381 = vadd.f32 %v881, %v1380
      %v1382 = vpop.f32.mrf.mxu0
      %v1383 = vadd.f32 %v877, %v1382
      %v1384 = vpop.f32.mrf.mxu0
      %v1385 = vadd.f32 %v881, %v1384
      %1386 = vmatprep.mubr.bf16.mxu0 %v805
      %1387 = vmatmul.mubr.bf16.gmra.mxu0 %v804
      %v1388 = vpop.f32.mrf.mxu0
      %v1389 = vadd.f32 %v877, %v1388
      %v1390 = vpop.f32.mrf.mxu0
      %v1391 = vadd.f32 %v881, %v1390
      %v1392 = vpop.f32.mrf.mxu0
      %v1393 = vadd.f32 %v877, %v1392
      %v1394 = vpop.f32.mrf.mxu0
      %v1395 = vadd.f32 %v881, %v1394
      %1396 = vmatprep.mubr.bf16.mxu0 %v807
      %1397 = vmatmul.mubr.bf16.gmra.mxu0 %v806
      %v1398 = vpop.f32.mrf.mxu0
      %v1399 = vadd.f32 %v877, %v1398
      %v1400 = vpop.f32.mrf.mxu0
      %v1401 = vadd.f32 %v881, %v1400
      %v1402 = vpop.f32.mrf.mxu0
      %v1403 = vadd.f32 %v877, %v1402
      %v1404 = vpop.f32.mrf.mxu0
      %v1405 = vadd.f32 %v881, %v1404
      %1406 = vdwg.mxu0
      %1407 = vmatprep.subr.bf16.mxu0 %v1117
      %1408 = vmatpush1.bf16.msra.mxu0 %v1116
      %1409 = vmatprep.subr.bf16.mxu0 %v1113
      %1410 = vmatpush1.bf16.msra.mxu0 %v1112
      %1411 = vmatprep.subr.bf16.mxu0 %v1109
      %1412 = vmatpush1.bf16.msra.mxu0 %v1108
      %1413 = vmatprep.subr.bf16.mxu0 %v1105
      %1414 = vmatpush1.bf16.msra.mxu0 %v1104
      %1415 = vmatprep.subr.bf16.mxu0 %v1101
      %1416 = vmatpush1.bf16.msra.mxu0 %v1100
      %1417 = vmatprep.subr.bf16.mxu0 %v1097
      %1418 = vmatpush1.bf16.msra.mxu0 %v1096
      %1419 = vmatprep.subr.bf16.mxu0 %v1093
      %1420 = vmatpush1.bf16.msra.mxu0 %v1092
      %1421 = vmatprep.subr.bf16.mxu0 %v1089
      %1422 = vmatpush1.bf16.msra.mxu0 %v1088
      %1423 = vmatprep.subr.bf16.mxu0 %v1149
      %1424 = vmatpush2.bf16.msra.mxu0 %v1148
      %1425 = vmatprep.subr.bf16.mxu0 %v1145
      %1426 = vmatpush2.bf16.msra.mxu0 %v1144
      %1427 = vmatprep.subr.bf16.mxu0 %v1141
      %1428 = vmatpush2.bf16.msra.mxu0 %v1140
      %1429 = vmatprep.subr.bf16.mxu0 %v1137
      %1430 = vmatpush2.bf16.msra.mxu0 %v1136
      %1431 = vmatprep.subr.bf16.mxu0 %v1133
      %1432 = vmatpush2.bf16.msra.mxu0 %v1132
      %1433 = vmatprep.subr.bf16.mxu0 %v1129
      %1434 = vmatpush2.bf16.msra.mxu0 %v1128
      %1435 = vmatprep.subr.bf16.mxu0 %v1125
      %1436 = vmatpush2.bf16.msra.mxu0 %v1124
      %1437 = vmatprep.subr.bf16.mxu0 %v1121
      %1438 = vmatpush2.bf16.msra.mxu0 %v1120
      %1439 = vmatprep.mubr.bf16.mxu0 %v777
      %1440 = vmatmul.mubr.bf16.gmra.mxu0 %v776
      %v1441 = vpop.f32.mrf.mxu0
      %v1442 = vadd.f32 %v885, %v1441
      %v1443 = vpop.f32.mrf.mxu0
      %v1444 = vadd.f32 %v889, %v1443
      %v1445 = vpop.f32.mrf.mxu0
      %v1446 = vadd.f32 %v885, %v1445
      %v1447 = vpop.f32.mrf.mxu0
      %v1448 = vadd.f32 %v889, %v1447
      %1449 = vmatprep.mubr.bf16.mxu0 %v779
      %1450 = vmatmul.mubr.bf16.gmra.mxu0 %v778
      %v1451 = vpop.f32.mrf.mxu0
      %v1452 = vadd.f32 %v885, %v1451
      %v1453 = vpop.f32.mrf.mxu0
      %v1454 = vadd.f32 %v889, %v1453
      %v1455 = vpop.f32.mrf.mxu0
      %v1456 = vadd.f32 %v885, %v1455
      %v1457 = vpop.f32.mrf.mxu0
      %v1458 = vadd.f32 %v889, %v1457
      %1459 = vmatprep.mubr.bf16.mxu0 %v781
      %1460 = vmatmul.mubr.bf16.gmra.mxu0 %v780
      %v1461 = vpop.f32.mrf.mxu0
      %v1462 = vadd.f32 %v885, %v1461
      %v1463 = vpop.f32.mrf.mxu0
      %v1464 = vadd.f32 %v889, %v1463
      %v1465 = vpop.f32.mrf.mxu0
      %v1466 = vadd.f32 %v885, %v1465
      %v1467 = vpop.f32.mrf.mxu0
      %v1468 = vadd.f32 %v889, %v1467
      %1469 = vmatprep.mubr.bf16.mxu0 %v783
      %1470 = vmatmul.mubr.bf16.gmra.mxu0 %v782
      %v1471 = vpop.f32.mrf.mxu0
      %v1472 = vadd.f32 %v885, %v1471
      %v1473 = vpop.f32.mrf.mxu0
      %v1474 = vadd.f32 %v889, %v1473
      %v1475 = vpop.f32.mrf.mxu0
      %v1476 = vadd.f32 %v885, %v1475
      %v1477 = vpop.f32.mrf.mxu0
      %v1478 = vadd.f32 %v889, %v1477
      %1479 = vmatprep.mubr.bf16.mxu0 %v785
      %1480 = vmatmul.mubr.bf16.gmra.mxu0 %v784
      %v1481 = vpop.f32.mrf.mxu0
      %v1482 = vadd.f32 %v885, %v1481
      %v1483 = vpop.f32.mrf.mxu0
      %v1484 = vadd.f32 %v889, %v1483
      %v1485 = vpop.f32.mrf.mxu0
      %v1486 = vadd.f32 %v885, %v1485
      %v1487 = vpop.f32.mrf.mxu0
      %v1488 = vadd.f32 %v889, %v1487
      %1489 = vmatprep.mubr.bf16.mxu0 %v787
      %1490 = vmatmul.mubr.bf16.gmra.mxu0 %v786
      %v1491 = vpop.f32.mrf.mxu0
      %v1492 = vadd.f32 %v885, %v1491
      %v1493 = vpop.f32.mrf.mxu0
      %v1494 = vadd.f32 %v889, %v1493
      %v1495 = vpop.f32.mrf.mxu0
      %v1496 = vadd.f32 %v885, %v1495
      %v1497 = vpop.f32.mrf.mxu0
      %v1498 = vadd.f32 %v889, %v1497
      %1499 = vmatprep.mubr.bf16.mxu0 %v789
      %1500 = vmatmul.mubr.bf16.gmra.mxu0 %v788
      %v1501 = vpop.f32.mrf.mxu0
      %v1502 = vadd.f32 %v885, %v1501
      %v1503 = vpop.f32.mrf.mxu0
      %v1504 = vadd.f32 %v889, %v1503
      %v1505 = vpop.f32.mrf.mxu0
      %v1506 = vadd.f32 %v885, %v1505
      %v1507 = vpop.f32.mrf.mxu0
      %v1508 = vadd.f32 %v889, %v1507
      %1509 = vmatprep.mubr.bf16.mxu0 %v791
      %1510 = vmatmul.mubr.bf16.gmra.mxu0 %v790
      %v1511 = vpop.f32.mrf.mxu0
      %v1512 = vadd.f32 %v885, %v1511
      %v1513 = vpop.f32.mrf.mxu0
      %v1514 = vadd.f32 %v889, %v1513
      %v1515 = vpop.f32.mrf.mxu0
      %v1516 = vadd.f32 %v885, %v1515
      %v1517 = vpop.f32.mrf.mxu0
      %v1518 = vadd.f32 %v889, %v1517
      %1519 = vmatprep.mubr.bf16.mxu0 %v793
      %1520 = vmatmul.mubr.bf16.gmra.mxu0 %v792
      %v1521 = vpop.f32.mrf.mxu0
      %v1522 = vadd.f32 %v885, %v1521
      %v1523 = vpop.f32.mrf.mxu0
      %v1524 = vadd.f32 %v889, %v1523
      %v1525 = vpop.f32.mrf.mxu0
      %v1526 = vadd.f32 %v885, %v1525
      %v1527 = vpop.f32.mrf.mxu0
      %v1528 = vadd.f32 %v889, %v1527
      %1529 = vmatprep.mubr.bf16.mxu0 %v795
      %1530 = vmatmul.mubr.bf16.gmra.mxu0 %v794
      %v1531 = vpop.f32.mrf.mxu0
      %v1532 = vadd.f32 %v885, %v1531
      %v1533 = vpop.f32.mrf.mxu0
      %v1534 = vadd.f32 %v889, %v1533
      %v1535 = vpop.f32.mrf.mxu0
      %v1536 = vadd.f32 %v885, %v1535
      %v1537 = vpop.f32.mrf.mxu0
      %v1538 = vadd.f32 %v889, %v1537
      %1539 = vmatprep.mubr.bf16.mxu0 %v797
      %1540 = vmatmul.mubr.bf16.gmra.mxu0 %v796
      %v1541 = vpop.f32.mrf.mxu0
      %v1542 = vadd.f32 %v885, %v1541
      %v1543 = vpop.f32.mrf.mxu0
      %v1544 = vadd.f32 %v889, %v1543
      %v1545 = vpop.f32.mrf.mxu0
      %v1546 = vadd.f32 %v885, %v1545
      %v1547 = vpop.f32.mrf.mxu0
      %v1548 = vadd.f32 %v889, %v1547
      %1549 = vmatprep.mubr.bf16.mxu0 %v799
      %1550 = vmatmul.mubr.bf16.gmra.mxu0 %v798
      %v1551 = vpop.f32.mrf.mxu0
      %v1552 = vadd.f32 %v885, %v1551
      %v1553 = vpop.f32.mrf.mxu0
      %v1554 = vadd.f32 %v889, %v1553
      %v1555 = vpop.f32.mrf.mxu0
      %v1556 = vadd.f32 %v885, %v1555
      %v1557 = vpop.f32.mrf.mxu0
      %v1558 = vadd.f32 %v889, %v1557
      %1559 = vmatprep.mubr.bf16.mxu0 %v801
      %1560 = vmatmul.mubr.bf16.gmra.mxu0 %v800
      %v1561 = vpop.f32.mrf.mxu0
      %v1562 = vadd.f32 %v885, %v1561
      %v1563 = vpop.f32.mrf.mxu0
      %v1564 = vadd.f32 %v889, %v1563
      %v1565 = vpop.f32.mrf.mxu0
      %v1566 = vadd.f32 %v885, %v1565
      %v1567 = vpop.f32.mrf.mxu0
      %v1568 = vadd.f32 %v889, %v1567
      %1569 = vmatprep.mubr.bf16.mxu0 %v803
      %1570 = vmatmul.mubr.bf16.gmra.mxu0 %v802
      %v1571 = vpop.f32.mrf.mxu0
      %v1572 = vadd.f32 %v885, %v1571
      %v1573 = vpop.f32.mrf.mxu0
      %v1574 = vadd.f32 %v889, %v1573
      %v1575 = vpop.f32.mrf.mxu0
      %v1576 = vadd.f32 %v885, %v1575
      %v1577 = vpop.f32.mrf.mxu0
      %v1578 = vadd.f32 %v889, %v1577
      %1579 = vmatprep.mubr.bf16.mxu0 %v805
      %1580 = vmatmul.mubr.bf16.gmra.mxu0 %v804
      %v1581 = vpop.f32.mrf.mxu0
      %v1582 = vadd.f32 %v885, %v1581
      %v1583 = vpop.f32.mrf.mxu0
      %v1584 = vadd.f32 %v889, %v1583
      %v1585 = vpop.f32.mrf.mxu0
      %v1586 = vadd.f32 %v885, %v1585
      %v1587 = vpop.f32.mrf.mxu0
      %v1588 = vadd.f32 %v889, %v1587
      %1589 = vmatprep.mubr.bf16.mxu0 %v807
      %1590 = vmatmul.mubr.bf16.gmra.mxu0 %v806
      %v1591 = vpop.f32.mrf.mxu0
      %v1592 = vadd.f32 %v885, %v1591
      %v1593 = vpop.f32.mrf.mxu0
      %v1594 = vadd.f32 %v889, %v1593
      %v1595 = vpop.f32.mrf.mxu0
      %v1596 = vadd.f32 %v885, %v1595
      %v1597 = vpop.f32.mrf.mxu0
      %v1598 = vadd.f32 %v889, %v1597
      %1599 = vdwg.mxu0
      %v1600 = vmax.f32 %v1249, 0.0
      %v1601 = vmax.f32 %v1251, 0.0
      %v1602 = vmax.f32 %v1442, 0.0
      %v1603 = vmax.f32 %v1444, 0.0
      %v1604 = vmax.f32 %v1253, 0.0
      %v1605 = vmax.f32 %v1255, 0.0
      %v1606 = vmax.f32 %v1446, 0.0
      %v1607 = vmax.f32 %v1448, 0.0
      %v1608 = vmax.f32 %v1259, 0.0
      %v1609 = vmax.f32 %v1261, 0.0
      %v1610 = vmax.f32 %v1452, 0.0
      %v1611 = vmax.f32 %v1454, 0.0
      %v1612 = vmax.f32 %v1263, 0.0
      %v1613 = vmax.f32 %v1265, 0.0
      %v1614 = vmax.f32 %v1456, 0.0
      %v1615 = vmax.f32 %v1458, 0.0
      %v1616 = vmax.f32 %v1269, 0.0
      %v1617 = vmax.f32 %v1271, 0.0
      %v1618 = vmax.f32 %v1462, 0.0
      %v1619 = vmax.f32 %v1464, 0.0
      %v1620 = vmax.f32 %v1273, 0.0
      %v1621 = vmax.f32 %v1275, 0.0
      %v1622 = vmax.f32 %v1466, 0.0
      %v1623 = vmax.f32 %v1468, 0.0
      %v1624 = vmax.f32 %v1279, 0.0
      %v1625 = vmax.f32 %v1281, 0.0
      %v1626 = vmax.f32 %v1472, 0.0
      %v1627 = vmax.f32 %v1474, 0.0
      %v1628 = vmax.f32 %v1283, 0.0
      %v1629 = vmax.f32 %v1285, 0.0
      %v1630 = vmax.f32 %v1476, 0.0
      %v1631 = vmax.f32 %v1478, 0.0
      %v1632 = vmax.f32 %v1289, 0.0
      %v1633 = vmax.f32 %v1291, 0.0
      %v1634 = vmax.f32 %v1482, 0.0
      %v1635 = vmax.f32 %v1484, 0.0
      %v1636 = vmax.f32 %v1293, 0.0
      %v1637 = vmax.f32 %v1295, 0.0
      %v1638 = vmax.f32 %v1486, 0.0
      %v1639 = vmax.f32 %v1488, 0.0
      %v1640 = vmax.f32 %v1299, 0.0
      %v1641 = vmax.f32 %v1301, 0.0
      %v1642 = vmax.f32 %v1492, 0.0
      %v1643 = vmax.f32 %v1494, 0.0
      %v1644 = vmax.f32 %v1303, 0.0
      %v1645 = vmax.f32 %v1305, 0.0
      %v1646 = vmax.f32 %v1496, 0.0
      %v1647 = vmax.f32 %v1498, 0.0
      %v1648 = vmax.f32 %v1309, 0.0
      %v1649 = vmax.f32 %v1311, 0.0
      %v1650 = vmax.f32 %v1502, 0.0
      %v1651 = vmax.f32 %v1504, 0.0
      %v1652 = vmax.f32 %v1313, 0.0
      %v1653 = vmax.f32 %v1315, 0.0
      %v1654 = vmax.f32 %v1506, 0.0
      %v1655 = vmax.f32 %v1508, 0.0
      %v1656 = vmax.f32 %v1319, 0.0
      %v1657 = vmax.f32 %v1321, 0.0
      %v1658 = vmax.f32 %v1512, 0.0
      %v1659 = vmax.f32 %v1514, 0.0
      %v1660 = vmax.f32 %v1323, 0.0
      %v1661 = vmax.f32 %v1325, 0.0
      %v1662 = vmax.f32 %v1516, 0.0
      %v1663 = vmax.f32 %v1518, 0.0
      %v1664 = vmax.f32 %v1329, 0.0
      %v1665 = vmax.f32 %v1331, 0.0
      %v1666 = vmax.f32 %v1522, 0.0
      %v1667 = vmax.f32 %v1524, 0.0
      %v1668 = vmax.f32 %v1333, 0.0
      %v1669 = vmax.f32 %v1335, 0.0
      %v1670 = vmax.f32 %v1526, 0.0
      %v1671 = vmax.f32 %v1528, 0.0
      %v1672 = vmax.f32 %v1339, 0.0
      %v1673 = vmax.f32 %v1341, 0.0
      %v1674 = vmax.f32 %v1532, 0.0
      %v1675 = vmax.f32 %v1534, 0.0
      %v1676 = vmax.f32 %v1343, 0.0
      %v1677 = vmax.f32 %v1345, 0.0
      %v1678 = vmax.f32 %v1536, 0.0
      %v1679 = vmax.f32 %v1538, 0.0
      %v1680 = vmax.f32 %v1349, 0.0
      %v1681 = vmax.f32 %v1351, 0.0
      %v1682 = vmax.f32 %v1542, 0.0
      %v1683 = vmax.f32 %v1544, 0.0
      %v1684 = vmax.f32 %v1353, 0.0
      %v1685 = vmax.f32 %v1355, 0.0
      %v1686 = vmax.f32 %v1546, 0.0
      %v1687 = vmax.f32 %v1548, 0.0
      %v1688 = vmax.f32 %v1359, 0.0
      %v1689 = vmax.f32 %v1361, 0.0
      %v1690 = vmax.f32 %v1552, 0.0
      %v1691 = vmax.f32 %v1554, 0.0
      %v1692 = vmax.f32 %v1363, 0.0
      %v1693 = vmax.f32 %v1365, 0.0
      %v1694 = vmax.f32 %v1556, 0.0
      %v1695 = vmax.f32 %v1558, 0.0
      %v1696 = vmax.f32 %v1369, 0.0
      %v1697 = vmax.f32 %v1371, 0.0
      %v1698 = vmax.f32 %v1562, 0.0
      %v1699 = vmax.f32 %v1564, 0.0
      %v1700 = vmax.f32 %v1373, 0.0
      %v1701 = vmax.f32 %v1375, 0.0
      %v1702 = vmax.f32 %v1566, 0.0
      %v1703 = vmax.f32 %v1568, 0.0
      %v1704 = vmax.f32 %v1379, 0.0
      %v1705 = vmax.f32 %v1381, 0.0
      %v1706 = vmax.f32 %v1572, 0.0
      %v1707 = vmax.f32 %v1574, 0.0
      %v1708 = vmax.f32 %v1383, 0.0
      %v1709 = vmax.f32 %v1385, 0.0
      %v1710 = vmax.f32 %v1576, 0.0
      %v1711 = vmax.f32 %v1578, 0.0
      %v1712 = vmax.f32 %v1389, 0.0
      %v1713 = vmax.f32 %v1391, 0.0
      %v1714 = vmax.f32 %v1582, 0.0
      %v1715 = vmax.f32 %v1584, 0.0
      %v1716 = vmax.f32 %v1393, 0.0
      %v1717 = vmax.f32 %v1395, 0.0
      %v1718 = vmax.f32 %v1586, 0.0
      %v1719 = vmax.f32 %v1588, 0.0
      %v1720 = vmax.f32 %v1399, 0.0
      %v1721 = vmax.f32 %v1401, 0.0
      %v1722 = vmax.f32 %v1592, 0.0
      %v1723 = vmax.f32 %v1594, 0.0
      %v1724 = vmax.f32 %v1403, 0.0
      %v1725 = vmax.f32 %v1405, 0.0
      %v1726 = vmax.f32 %v1596, 0.0
      %v1727 = vmax.f32 %v1598, 0.0
      %v1728 = vpack.c.bf16 %v1604, %v1600
      %v1729 = vpack.c.bf16 %v1605, %v1601
      %v1730 = vpack.c.bf16 %v1606, %v1602
      %v1731 = vpack.c.bf16 %v1607, %v1603
      %v1732 = vpack.c.bf16 %v1612, %v1608
      %v1733 = vpack.c.bf16 %v1613, %v1609
      %v1734 = vpack.c.bf16 %v1614, %v1610
      %v1735 = vpack.c.bf16 %v1615, %v1611
      %v1736 = vpack.c.bf16 %v1620, %v1616
      %v1737 = vpack.c.bf16 %v1621, %v1617
      %v1738 = vpack.c.bf16 %v1622, %v1618
      %v1739 = vpack.c.bf16 %v1623, %v1619
      %v1740 = vpack.c.bf16 %v1628, %v1624
      %v1741 = vpack.c.bf16 %v1629, %v1625
      %v1742 = vpack.c.bf16 %v1630, %v1626
      %v1743 = vpack.c.bf16 %v1631, %v1627
      %v1744 = vpack.c.bf16 %v1636, %v1632
      %v1745 = vpack.c.bf16 %v1637, %v1633
      %v1746 = vpack.c.bf16 %v1638, %v1634
      %v1747 = vpack.c.bf16 %v1639, %v1635
      %v1748 = vpack.c.bf16 %v1644, %v1640
      %v1749 = vpack.c.bf16 %v1645, %v1641
      %v1750 = vpack.c.bf16 %v1646, %v1642
      %v1751 = vpack.c.bf16 %v1647, %v1643
      %v1752 = vpack.c.bf16 %v1652, %v1648
      %v1753 = vpack.c.bf16 %v1653, %v1649
      %v1754 = vpack.c.bf16 %v1654, %v1650
      %v1755 = vpack.c.bf16 %v1655, %v1651
      %v1756 = vpack.c.bf16 %v1660, %v1656
      %v1757 = vpack.c.bf16 %v1661, %v1657
      %v1758 = vpack.c.bf16 %v1662, %v1658
      %v1759 = vpack.c.bf16 %v1663, %v1659
      %v1760 = vpack.c.bf16 %v1668, %v1664
      %v1761 = vpack.c.bf16 %v1669, %v1665
      %v1762 = vpack.c.bf16 %v1670, %v1666
      %v1763 = vpack.c.bf16 %v1671, %v1667
      %v1764 = vpack.c.bf16 %v1676, %v1672
      %v1765 = vpack.c.bf16 %v1677, %v1673
      %v1766 = vpack.c.bf16 %v1678, %v1674
      %v1767 = vpack.c.bf16 %v1679, %v1675
      %v1768 = vpack.c.bf16 %v1684, %v1680
      %v1769 = vpack.c.bf16 %v1685, %v1681
      %v1770 = vpack.c.bf16 %v1686, %v1682
      %v1771 = vpack.c.bf16 %v1687, %v1683
      %v1772 = vpack.c.bf16 %v1692, %v1688
      %v1773 = vpack.c.bf16 %v1693, %v1689
      %v1774 = vpack.c.bf16 %v1694, %v1690
      %v1775 = vpack.c.bf16 %v1695, %v1691
      %v1776 = vpack.c.bf16 %v1700, %v1696
      %v1777 = vpack.c.bf16 %v1701, %v1697
      %v1778 = vpack.c.bf16 %v1702, %v1698
      %v1779 = vpack.c.bf16 %v1703, %v1699
      %v1780 = vpack.c.bf16 %v1708, %v1704
      %v1781 = vpack.c.bf16 %v1709, %v1705
      %v1782 = vpack.c.bf16 %v1710, %v1706
      %v1783 = vpack.c.bf16 %v1711, %v1707
      %v1784 = vpack.c.bf16 %v1716, %v1712
      %v1785 = vpack.c.bf16 %v1717, %v1713
      %v1786 = vpack.c.bf16 %v1718, %v1714
      %v1787 = vpack.c.bf16 %v1719, %v1715
      %v1788 = vpack.c.bf16 %v1724, %v1720
      %v1789 = vpack.c.bf16 %v1725, %v1721
      %v1790 = vpack.c.bf16 %v1726, %v1722
      %v1791 = vpack.c.bf16 %v1727, %v1723
      %v1792 = vld [vmem:[%s5] sm:$0xf]
      %v1793 = vld [vmem:[%s5 + $0x4] sm:$0xf]
      %v1794 = vld [vmem:[%s5 + $0x8] sm:$0xf]
      %v1795 = vld [vmem:[%s5 + $0xc] sm:$0xf]
      %v1796 = vld [vmem:[%s5 + $0x10] sm:$0xf]
      %v1797 = vld [vmem:[%s5 + $0x14] sm:$0xf]
      %v1798 = vld [vmem:[%s5 + $0x18] sm:$0xf]
      %v1799 = vld [vmem:[%s5 + $0x1c] sm:$0xf]
      %v1800 = vld [vmem:[%s5 + $0x20] sm:$0xf]
      %v1801 = vld [vmem:[%s5 + $0x24] sm:$0xf]
      %v1802 = vld [vmem:[%s5 + $0x28] sm:$0xf]
      %v1803 = vld [vmem:[%s5 + $0x2c] sm:$0xf]
      %v1804 = vld [vmem:[%s5 + $0x30] sm:$0xf]
      %v1805 = vld [vmem:[%s5 + $0x34] sm:$0xf]
      %v1806 = vld [vmem:[%s5 + $0x38] sm:$0xf]
      %v1807 = vld [vmem:[%s5 + $0x3c] sm:$0xf]
      %v1808 = vld [vmem:[%s5 + $0x40] sm:$0xf]
      %v1809 = vld [vmem:[%s5 + $0x44] sm:$0xf]
      %v1810 = vld [vmem:[%s5 + $0x48] sm:$0xf]
      %v1811 = vld [vmem:[%s5 + $0x4c] sm:$0xf]
      %v1812 = vld [vmem:[%s5 + $0x50] sm:$0xf]
      %v1813 = vld [vmem:[%s5 + $0x54] sm:$0xf]
      %v1814 = vld [vmem:[%s5 + $0x58] sm:$0xf]
      %v1815 = vld [vmem:[%s5 + $0x5c] sm:$0xf]
      %v1816 = vld [vmem:[%s5 + $0x60] sm:$0xf]
      %v1817 = vld [vmem:[%s5 + $0x64] sm:$0xf]
      %v1818 = vld [vmem:[%s5 + $0x68] sm:$0xf]
      %v1819 = vld [vmem:[%s5 + $0x6c] sm:$0xf]
      %v1820 = vld [vmem:[%s5 + $0x70] sm:$0xf]
      %v1821 = vld [vmem:[%s5 + $0x74] sm:$0xf]
      %v1822 = vld [vmem:[%s5 + $0x78] sm:$0xf]
      %v1823 = vld [vmem:[%s5 + $0x7c] sm:$0xf]
      %v1824 = vld [vmem:[%s5 + $0x80] sm:$0xf]
      %v1825 = vld [vmem:[%s5 + $0x84] sm:$0xf]
      %v1826 = vld [vmem:[%s5 + $0x88] sm:$0xf]
      %v1827 = vld [vmem:[%s5 + $0x8c] sm:$0xf]
      %v1828 = vld [vmem:[%s5 + $0x90] sm:$0xf]
      %v1829 = vld [vmem:[%s5 + $0x94] sm:$0xf]
      %v1830 = vld [vmem:[%s5 + $0x98] sm:$0xf]
      %v1831 = vld [vmem:[%s5 + $0x9c] sm:$0xf]
      %v1832 = vld [vmem:[%s5 + $0xa0] sm:$0xf]
      %v1833 = vld [vmem:[%s5 + $0xa4] sm:$0xf]
      %v1834 = vld [vmem:[%s5 + $0xa8] sm:$0xf]
      %v1835 = vld [vmem:[%s5 + $0xac] sm:$0xf]
      %v1836 = vld [vmem:[%s5 + $0xb0] sm:$0xf]
      %v1837 = vld [vmem:[%s5 + $0xb4] sm:$0xf]
      %v1838 = vld [vmem:[%s5 + $0xb8] sm:$0xf]
      %v1839 = vld [vmem:[%s5 + $0xbc] sm:$0xf]
      %v1840 = vld [vmem:[%s5 + $0xc0] sm:$0xf]
      %v1841 = vld [vmem:[%s5 + $0xc4] sm:$0xf]
      %v1842 = vld [vmem:[%s5 + $0xc8] sm:$0xf]
      %v1843 = vld [vmem:[%s5 + $0xcc] sm:$0xf]
      %v1844 = vld [vmem:[%s5 + $0xd0] sm:$0xf]
      %v1845 = vld [vmem:[%s5 + $0xd4] sm:$0xf]
      %v1846 = vld [vmem:[%s5 + $0xd8] sm:$0xf]
      %v1847 = vld [vmem:[%s5 + $0xdc] sm:$0xf]
      %v1848 = vld [vmem:[%s5 + $0xe0] sm:$0xf]
      %v1849 = vld [vmem:[%s5 + $0xe4] sm:$0xf]
      %v1850 = vld [vmem:[%s5 + $0xe8] sm:$0xf]
      %v1851 = vld [vmem:[%s5 + $0xec] sm:$0xf]
      %v1852 = vld [vmem:[%s5 + $0xf0] sm:$0xf]
      %v1853 = vld [vmem:[%s5 + $0xf4] sm:$0xf]
      %v1854 = vld [vmem:[%s5 + $0xf8] sm:$0xf]
      %v1855 = vld [vmem:[%s5 + $0xfc] sm:$0xf]
      %v1856 = vld [vmem:[%s6] sm:$0x1]
      %v1858 = vlaneseq
      %v1859 = vshrl.u32 %v1858, 7
      %v1860 = vsub.s32 0, %v1859
      %v1861 = vrot.slane %v1856, %v1860
      %v1927 = vunpack.c.l.b16 %v1792
      %v1928 = vunpack.c.l.b16 %v1793
      %v1929 = vunpack.c.l.b16 %v1794
      %v1930 = vunpack.c.l.b16 %v1795
      %v1931 = vunpack.c.l.b16 %v1796
      %v1932 = vunpack.c.l.b16 %v1797
      %v1933 = vunpack.c.l.b16 %v1798
      %v1934 = vunpack.c.l.b16 %v1799
      %v1935 = vunpack.c.l.b16 %v1800
      %v1936 = vunpack.c.l.b16 %v1801
      %v1937 = vunpack.c.l.b16 %v1802
      %v1938 = vunpack.c.l.b16 %v1803
      %v1939 = vunpack.c.l.b16 %v1804
      %v1940 = vunpack.c.l.b16 %v1805
      %v1941 = vunpack.c.l.b16 %v1806
      %v1942 = vunpack.c.l.b16 %v1807
      %v1943 = vunpack.c.l.b16 %v1808
      %v1944 = vunpack.c.l.b16 %v1809
      %v1945 = vunpack.c.l.b16 %v1810
      %v1946 = vunpack.c.l.b16 %v1811
      %v1947 = vunpack.c.l.b16 %v1812
      %v1948 = vunpack.c.l.b16 %v1813
      %v1949 = vunpack.c.l.b16 %v1814
      %v1950 = vunpack.c.l.b16 %v1815
      %v1951 = vunpack.c.l.b16 %v1816
      %v1952 = vunpack.c.l.b16 %v1817
      %v1953 = vunpack.c.l.b16 %v1818
      %v1954 = vunpack.c.l.b16 %v1819
      %v1955 = vunpack.c.l.b16 %v1820
      %v1956 = vunpack.c.l.b16 %v1821
      %v1957 = vunpack.c.l.b16 %v1822
      %v1958 = vunpack.c.l.b16 %v1823
      %v1959 = vunpack.c.l.b16 %v1824
      %v1960 = vunpack.c.l.b16 %v1825
      %v1961 = vunpack.c.l.b16 %v1826
      %v1962 = vunpack.c.l.b16 %v1827
      %v1963 = vunpack.c.l.b16 %v1828
      %v1964 = vunpack.c.l.b16 %v1829
      %v1965 = vunpack.c.l.b16 %v1830
      %v1966 = vunpack.c.l.b16 %v1831
      %v1967 = vunpack.c.l.b16 %v1832
      %v1968 = vunpack.c.l.b16 %v1833
      %v1969 = vunpack.c.l.b16 %v1834
      %v1970 = vunpack.c.l.b16 %v1835
      %v1971 = vunpack.c.l.b16 %v1836
      %v1972 = vunpack.c.l.b16 %v1837
      %v1973 = vunpack.c.l.b16 %v1838
      %v1974 = vunpack.c.l.b16 %v1839
      %v1975 = vunpack.c.l.b16 %v1840
      %v1976 = vunpack.c.l.b16 %v1841
      %v1977 = vunpack.c.l.b16 %v1842
      %v1978 = vunpack.c.l.b16 %v1843
      %v1979 = vunpack.c.l.b16 %v1844
      %v1980 = vunpack.c.l.b16 %v1845
      %v1981 = vunpack.c.l.b16 %v1846
      %v1982 = vunpack.c.l.b16 %v1847
      %v1983 = vunpack.c.l.b16 %v1848
      %v1984 = vunpack.c.l.b16 %v1849
      %v1985 = vunpack.c.l.b16 %v1850
      %v1986 = vunpack.c.l.b16 %v1851
      %v1987 = vunpack.c.l.b16 %v1852
      %v1988 = vunpack.c.l.b16 %v1853
      %v1989 = vunpack.c.l.b16 %v1854
      %v1990 = vunpack.c.l.b16 %v1855
      %v1991 = vpack.c.b16 %v1928, %v1927
      %v1992 = vpack.c.b16 %v1930, %v1929
      %v1993 = vpack.c.b16 %v1932, %v1931
      %v1994 = vpack.c.b16 %v1934, %v1933
      %v1995 = vpack.c.b16 %v1936, %v1935
      %v1996 = vpack.c.b16 %v1938, %v1937
      %v1997 = vpack.c.b16 %v1940, %v1939
      %v1998 = vpack.c.b16 %v1942, %v1941
      %v1999 = vpack.c.b16 %v1944, %v1943
      %v2000 = vpack.c.b16 %v1946, %v1945
      %v2001 = vpack.c.b16 %v1948, %v1947
      %v2002 = vpack.c.b16 %v1950, %v1949
      %v2003 = vpack.c.b16 %v1952, %v1951
      %v2004 = vpack.c.b16 %v1954, %v1953
      %v2005 = vpack.c.b16 %v1956, %v1955
      %v2006 = vpack.c.b16 %v1958, %v1957
      %v2007 = vpack.c.b16 %v1960, %v1959
      %v2008 = vpack.c.b16 %v1962, %v1961
      %v2009 = vpack.c.b16 %v1964, %v1963
      %v2010 = vpack.c.b16 %v1966, %v1965
      %v2011 = vpack.c.b16 %v1968, %v1967
      %v2012 = vpack.c.b16 %v1970, %v1969
      %v2013 = vpack.c.b16 %v1972, %v1971
      %v2014 = vpack.c.b16 %v1974, %v1973
      %v2015 = vpack.c.b16 %v1976, %v1975
      %v2016 = vpack.c.b16 %v1978, %v1977
      %v2017 = vpack.c.b16 %v1980, %v1979
      %v2018 = vpack.c.b16 %v1982, %v1981
      %v2019 = vpack.c.b16 %v1984, %v1983
      %v2020 = vpack.c.b16 %v1986, %v1985
      %v2021 = vpack.c.b16 %v1988, %v1987
      %v2022 = vpack.c.b16 %v1990, %v1989
      %2055 = vmatprep.subr.bf16.mxu0 0
      %2056 = vmatpush1.bf16.msra.mxu0 %v1998
      %2057 = vmatprep.subr.bf16.mxu0 0
      %2058 = vmatpush1.bf16.msra.mxu0 %v1997
      %2059 = vmatprep.subr.bf16.mxu0 0
      %2060 = vmatpush1.bf16.msra.mxu0 %v1996
      %2061 = vmatprep.subr.bf16.mxu0 0
      %2062 = vmatpush1.bf16.msra.mxu0 %v1995
      %2063 = vmatprep.subr.bf16.mxu0 0
      %2064 = vmatpush1.bf16.msra.mxu0 %v1994
      %2065 = vmatprep.subr.bf16.mxu0 0
      %2066 = vmatpush1.bf16.msra.mxu0 %v1993
      %2067 = vmatprep.subr.bf16.mxu0 0
      %2068 = vmatpush1.bf16.msra.mxu0 %v1992
      %2069 = vmatprep.subr.bf16.mxu0 0
      %2070 = vmatpush1.bf16.msra.mxu0 %v1991
      %2071 = vmatprep.subr.bf16.mxu0 0
      %2072 = vmatpush2.bf16.msra.mxu0 %v2006
      %2073 = vmatprep.subr.bf16.mxu0 0
      %2074 = vmatpush2.bf16.msra.mxu0 %v2005
      %2075 = vmatprep.subr.bf16.mxu0 0
      %2076 = vmatpush2.bf16.msra.mxu0 %v2004
      %2077 = vmatprep.subr.bf16.mxu0 0
      %2078 = vmatpush2.bf16.msra.mxu0 %v2003
      %2079 = vmatprep.subr.bf16.mxu0 0
      %2080 = vmatpush2.bf16.msra.mxu0 %v2002
      %2081 = vmatprep.subr.bf16.mxu0 0
      %2082 = vmatpush2.bf16.msra.mxu0 %v2001
      %2083 = vmatprep.subr.bf16.mxu0 0
      %2084 = vmatpush2.bf16.msra.mxu0 %v2000
      %2085 = vmatprep.subr.bf16.mxu0 0
      %2086 = vmatpush2.bf16.msra.mxu0 %v1999
      %2087 = vmatprep.mubr.bf16.mxu0 %v1729
      %2088 = vmatmul.mubr.bf16.gmra.mxu0 %v1728
      %v2089 = vpop.f32.mrf.mxu0
      %v2090 = vadd.f32 %v1861, %v2089
      %v2091 = vpop.f32.mrf.mxu0
      %v2092 = vpop.f32.mrf.mxu0
      %v2093 = vadd.f32 %v1861, %v2092
      %v2094 = vpop.f32.mrf.mxu0
      %2095 = vmatprep.mubr.bf16.mxu0 %v1733
      %2096 = vmatmul.mubr.bf16.gmra.mxu0 %v1732
      %v2097 = vpop.f32.mrf.mxu0
      %v2098 = vadd.f32 %v1861, %v2097
      %v2099 = vpop.f32.mrf.mxu0
      %v2100 = vpop.f32.mrf.mxu0
      %v2101 = vadd.f32 %v1861, %v2100
      %v2102 = vpop.f32.mrf.mxu0
      %2103 = vmatprep.mubr.bf16.mxu0 %v1737
      %2104 = vmatmul.mubr.bf16.gmra.mxu0 %v1736
      %v2105 = vpop.f32.mrf.mxu0
      %v2106 = vadd.f32 %v1861, %v2105
      %v2107 = vpop.f32.mrf.mxu0
      %v2108 = vpop.f32.mrf.mxu0
      %v2109 = vadd.f32 %v1861, %v2108
      %v2110 = vpop.f32.mrf.mxu0
      %2111 = vmatprep.mubr.bf16.mxu0 %v1741
      %2112 = vmatmul.mubr.bf16.gmra.mxu0 %v1740
      %v2113 = vpop.f32.mrf.mxu0
      %v2114 = vadd.f32 %v1861, %v2113
      %v2115 = vpop.f32.mrf.mxu0
      %v2116 = vpop.f32.mrf.mxu0
      %v2117 = vadd.f32 %v1861, %v2116
      %v2118 = vpop.f32.mrf.mxu0
      %2119 = vmatprep.mubr.bf16.mxu0 %v1745
      %2120 = vmatmul.mubr.bf16.gmra.mxu0 %v1744
      %v2121 = vpop.f32.mrf.mxu0
      %v2122 = vadd.f32 %v1861, %v2121
      %v2123 = vpop.f32.mrf.mxu0
      %v2124 = vpop.f32.mrf.mxu0
      %v2125 = vadd.f32 %v1861, %v2124
      %v2126 = vpop.f32.mrf.mxu0
      %2127 = vmatprep.mubr.bf16.mxu0 %v1749
      %2128 = vmatmul.mubr.bf16.gmra.mxu0 %v1748
      %v2129 = vpop.f32.mrf.mxu0
      %v2130 = vadd.f32 %v1861, %v2129
      %v2131 = vpop.f32.mrf.mxu0
      %v2132 = vpop.f32.mrf.mxu0
      %v2133 = vadd.f32 %v1861, %v2132
      %v2134 = vpop.f32.mrf.mxu0
      %2135 = vmatprep.mubr.bf16.mxu0 %v1753
      %2136 = vmatmul.mubr.bf16.gmra.mxu0 %v1752
      %v2137 = vpop.f32.mrf.mxu0
      %v2138 = vadd.f32 %v1861, %v2137
      %v2139 = vpop.f32.mrf.mxu0
      %v2140 = vpop.f32.mrf.mxu0
      %v2141 = vadd.f32 %v1861, %v2140
      %v2142 = vpop.f32.mrf.mxu0
      %2143 = vmatprep.mubr.bf16.mxu0 %v1757
      %2144 = vmatmul.mubr.bf16.gmra.mxu0 %v1756
      %v2145 = vpop.f32.mrf.mxu0
      %v2146 = vadd.f32 %v1861, %v2145
      %v2147 = vpop.f32.mrf.mxu0
      %v2148 = vpop.f32.mrf.mxu0
      %v2149 = vadd.f32 %v1861, %v2148
      %v2150 = vpop.f32.mrf.mxu0
      %2151 = vmatprep.mubr.bf16.mxu0 %v1761
      %2152 = vmatmul.mubr.bf16.gmra.mxu0 %v1760
      %v2153 = vpop.f32.mrf.mxu0
      %v2154 = vadd.f32 %v1861, %v2153
      %v2155 = vpop.f32.mrf.mxu0
      %v2156 = vpop.f32.mrf.mxu0
      %v2157 = vadd.f32 %v1861, %v2156
      %v2158 = vpop.f32.mrf.mxu0
      %2159 = vmatprep.mubr.bf16.mxu0 %v1765
      %2160 = vmatmul.mubr.bf16.gmra.mxu0 %v1764
      %v2161 = vpop.f32.mrf.mxu0
      %v2162 = vadd.f32 %v1861, %v2161
      %v2163 = vpop.f32.mrf.mxu0
      %v2164 = vpop.f32.mrf.mxu0
      %v2165 = vadd.f32 %v1861, %v2164
      %v2166 = vpop.f32.mrf.mxu0
      %2167 = vmatprep.mubr.bf16.mxu0 %v1769
      %2168 = vmatmul.mubr.bf16.gmra.mxu0 %v1768
      %v2169 = vpop.f32.mrf.mxu0
      %v2170 = vadd.f32 %v1861, %v2169
      %v2171 = vpop.f32.mrf.mxu0
      %v2172 = vpop.f32.mrf.mxu0
      %v2173 = vadd.f32 %v1861, %v2172
      %v2174 = vpop.f32.mrf.mxu0
      %2175 = vmatprep.mubr.bf16.mxu0 %v1773
      %2176 = vmatmul.mubr.bf16.gmra.mxu0 %v1772
      %v2177 = vpop.f32.mrf.mxu0
      %v2178 = vadd.f32 %v1861, %v2177
      %v2179 = vpop.f32.mrf.mxu0
      %v2180 = vpop.f32.mrf.mxu0
      %v2181 = vadd.f32 %v1861, %v2180
      %v2182 = vpop.f32.mrf.mxu0
      %2183 = vmatprep.mubr.bf16.mxu0 %v1777
      %2184 = vmatmul.mubr.bf16.gmra.mxu0 %v1776
      %v2185 = vpop.f32.mrf.mxu0
      %v2186 = vadd.f32 %v1861, %v2185
      %v2187 = vpop.f32.mrf.mxu0
      %v2188 = vpop.f32.mrf.mxu0
      %v2189 = vadd.f32 %v1861, %v2188
      %v2190 = vpop.f32.mrf.mxu0
      %2191 = vmatprep.mubr.bf16.mxu0 %v1781
      %2192 = vmatmul.mubr.bf16.gmra.mxu0 %v1780
      %v2193 = vpop.f32.mrf.mxu0
      %v2194 = vadd.f32 %v1861, %v2193
      %v2195 = vpop.f32.mrf.mxu0
      %v2196 = vpop.f32.mrf.mxu0
      %v2197 = vadd.f32 %v1861, %v2196
      %v2198 = vpop.f32.mrf.mxu0
      %2199 = vmatprep.mubr.bf16.mxu0 %v1785
      %2200 = vmatmul.mubr.bf16.gmra.mxu0 %v1784
      %v2201 = vpop.f32.mrf.mxu0
      %v2202 = vadd.f32 %v1861, %v2201
      %v2203 = vpop.f32.mrf.mxu0
      %v2204 = vpop.f32.mrf.mxu0
      %v2205 = vadd.f32 %v1861, %v2204
      %v2206 = vpop.f32.mrf.mxu0
      %2207 = vmatprep.mubr.bf16.mxu0 %v1789
      %2208 = vmatmul.mubr.bf16.gmra.mxu0 %v1788
      %v2209 = vpop.f32.mrf.mxu0
      %v2210 = vadd.f32 %v1861, %v2209
      %v2211 = vpop.f32.mrf.mxu0
      %v2212 = vpop.f32.mrf.mxu0
      %v2213 = vadd.f32 %v1861, %v2212
      %v2214 = vpop.f32.mrf.mxu0
      %2215 = vdwg.mxu0
      %2216 = vmatprep.subr.bf16.mxu0 0
      %2217 = vmatpush1.bf16.msra.mxu0 %v2014
      %2218 = vmatprep.subr.bf16.mxu0 0
      %2219 = vmatpush1.bf16.msra.mxu0 %v2013
      %2220 = vmatprep.subr.bf16.mxu0 0
      %2221 = vmatpush1.bf16.msra.mxu0 %v2012
      %2222 = vmatprep.subr.bf16.mxu0 0
      %2223 = vmatpush1.bf16.msra.mxu0 %v2011
      %2224 = vmatprep.subr.bf16.mxu0 0
      %2225 = vmatpush1.bf16.msra.mxu0 %v2010
      %2226 = vmatprep.subr.bf16.mxu0 0
      %2227 = vmatpush1.bf16.msra.mxu0 %v2009
      %2228 = vmatprep.subr.bf16.mxu0 0
      %2229 = vmatpush1.bf16.msra.mxu0 %v2008
      %2230 = vmatprep.subr.bf16.mxu0 0
      %2231 = vmatpush1.bf16.msra.mxu0 %v2007
      %2232 = vmatprep.subr.bf16.mxu0 0
      %2233 = vmatpush2.bf16.msra.mxu0 %v2022
      %2234 = vmatprep.subr.bf16.mxu0 0
      %2235 = vmatpush2.bf16.msra.mxu0 %v2021
      %2236 = vmatprep.subr.bf16.mxu0 0
      %2237 = vmatpush2.bf16.msra.mxu0 %v2020
      %2238 = vmatprep.subr.bf16.mxu0 0
      %2239 = vmatpush2.bf16.msra.mxu0 %v2019
      %2240 = vmatprep.subr.bf16.mxu0 0
      %2241 = vmatpush2.bf16.msra.mxu0 %v2018
      %2242 = vmatprep.subr.bf16.mxu0 0
      %2243 = vmatpush2.bf16.msra.mxu0 %v2017
      %2244 = vmatprep.subr.bf16.mxu0 0
      %2245 = vmatpush2.bf16.msra.mxu0 %v2016
      %2246 = vmatprep.subr.bf16.mxu0 0
      %2247 = vmatpush2.bf16.msra.mxu0 %v2015
      %2248 = vmatprep.mubr.bf16.mxu0 %v1731
      %2249 = vmatmul.mubr.bf16.gmra.mxu0 %v1730
      %v2250 = vpop.f32.mrf.mxu0
      %v2251 = vadd.f32 %v2090, %v2250
      %v2252 = vpop.f32.mrf.mxu0
      %v2253 = vpop.f32.mrf.mxu0
      %v2254 = vadd.f32 %v2093, %v2253
      %v2255 = vpop.f32.mrf.mxu0
      %2256 = vmatprep.mubr.bf16.mxu0 %v1735
      %2257 = vmatmul.mubr.bf16.gmra.mxu0 %v1734
      %v2258 = vpop.f32.mrf.mxu0
      %v2259 = vadd.f32 %v2098, %v2258
      %v2260 = vpop.f32.mrf.mxu0
      %v2261 = vpop.f32.mrf.mxu0
      %v2262 = vadd.f32 %v2101, %v2261
      %v2263 = vpop.f32.mrf.mxu0
      %2264 = vmatprep.mubr.bf16.mxu0 %v1739
      %2265 = vmatmul.mubr.bf16.gmra.mxu0 %v1738
      %v2266 = vpop.f32.mrf.mxu0
      %v2267 = vadd.f32 %v2106, %v2266
      %v2268 = vpop.f32.mrf.mxu0
      %v2269 = vpop.f32.mrf.mxu0
      %v2270 = vadd.f32 %v2109, %v2269
      %v2271 = vpop.f32.mrf.mxu0
      %2272 = vmatprep.mubr.bf16.mxu0 %v1743
      %2273 = vmatmul.mubr.bf16.gmra.mxu0 %v1742
      %v2274 = vpop.f32.mrf.mxu0
      %v2275 = vadd.f32 %v2114, %v2274
      %v2276 = vpop.f32.mrf.mxu0
      %v2277 = vpop.f32.mrf.mxu0
      %v2278 = vadd.f32 %v2117, %v2277
      %v2279 = vpop.f32.mrf.mxu0
      %2280 = vmatprep.mubr.bf16.mxu0 %v1747
      %2281 = vmatmul.mubr.bf16.gmra.mxu0 %v1746
      %v2282 = vpop.f32.mrf.mxu0
      %v2283 = vadd.f32 %v2122, %v2282
      %v2284 = vpop.f32.mrf.mxu0
      %v2285 = vpop.f32.mrf.mxu0
      %v2286 = vadd.f32 %v2125, %v2285
      %v2287 = vpop.f32.mrf.mxu0
      %2288 = vmatprep.mubr.bf16.mxu0 %v1751
      %2289 = vmatmul.mubr.bf16.gmra.mxu0 %v1750
      %v2290 = vpop.f32.mrf.mxu0
      %v2291 = vadd.f32 %v2130, %v2290
      %v2292 = vpop.f32.mrf.mxu0
      %v2293 = vpop.f32.mrf.mxu0
      %v2294 = vadd.f32 %v2133, %v2293
      %v2295 = vpop.f32.mrf.mxu0
      %2296 = vmatprep.mubr.bf16.mxu0 %v1755
      %2297 = vmatmul.mubr.bf16.gmra.mxu0 %v1754
      %v2298 = vpop.f32.mrf.mxu0
      %v2299 = vadd.f32 %v2138, %v2298
      %v2300 = vpop.f32.mrf.mxu0
      %v2301 = vpop.f32.mrf.mxu0
      %v2302 = vadd.f32 %v2141, %v2301
      %v2303 = vpop.f32.mrf.mxu0
      %2304 = vmatprep.mubr.bf16.mxu0 %v1759
      %2305 = vmatmul.mubr.bf16.gmra.mxu0 %v1758
      %v2306 = vpop.f32.mrf.mxu0
      %v2307 = vadd.f32 %v2146, %v2306
      %v2308 = vpop.f32.mrf.mxu0
      %v2309 = vpop.f32.mrf.mxu0
      %v2310 = vadd.f32 %v2149, %v2309
      %v2311 = vpop.f32.mrf.mxu0
      %2312 = vmatprep.mubr.bf16.mxu0 %v1763
      %2313 = vmatmul.mubr.bf16.gmra.mxu0 %v1762
      %v2314 = vpop.f32.mrf.mxu0
      %v2315 = vadd.f32 %v2154, %v2314
      %v2316 = vpop.f32.mrf.mxu0
      %v2317 = vpop.f32.mrf.mxu0
      %v2318 = vadd.f32 %v2157, %v2317
      %v2319 = vpop.f32.mrf.mxu0
      %2320 = vmatprep.mubr.bf16.mxu0 %v1767
      %2321 = vmatmul.mubr.bf16.gmra.mxu0 %v1766
      %v2322 = vpop.f32.mrf.mxu0
      %v2323 = vadd.f32 %v2162, %v2322
      %v2324 = vpop.f32.mrf.mxu0
      %v2325 = vpop.f32.mrf.mxu0
      %v2326 = vadd.f32 %v2165, %v2325
      %v2327 = vpop.f32.mrf.mxu0
      %2328 = vmatprep.mubr.bf16.mxu0 %v1771
      %2329 = vmatmul.mubr.bf16.gmra.mxu0 %v1770
      %v2330 = vpop.f32.mrf.mxu0
      %v2331 = vadd.f32 %v2170, %v2330
      %v2332 = vpop.f32.mrf.mxu0
      %v2333 = vpop.f32.mrf.mxu0
      %v2334 = vadd.f32 %v2173, %v2333
      %v2335 = vpop.f32.mrf.mxu0
      %2336 = vmatprep.mubr.bf16.mxu0 %v1775
      %2337 = vmatmul.mubr.bf16.gmra.mxu0 %v1774
      %v2338 = vpop.f32.mrf.mxu0
      %v2339 = vadd.f32 %v2178, %v2338
      %v2340 = vpop.f32.mrf.mxu0
      %v2341 = vpop.f32.mrf.mxu0
      %v2342 = vadd.f32 %v2181, %v2341
      %v2343 = vpop.f32.mrf.mxu0
      %2344 = vmatprep.mubr.bf16.mxu0 %v1779
      %2345 = vmatmul.mubr.bf16.gmra.mxu0 %v1778
      %v2346 = vpop.f32.mrf.mxu0
      %v2347 = vadd.f32 %v2186, %v2346
      %v2348 = vpop.f32.mrf.mxu0
      %v2349 = vpop.f32.mrf.mxu0
      %v2350 = vadd.f32 %v2189, %v2349
      %v2351 = vpop.f32.mrf.mxu0
      %2352 = vmatprep.mubr.bf16.mxu0 %v1783
      %2353 = vmatmul.mubr.bf16.gmra.mxu0 %v1782
      %v2354 = vpop.f32.mrf.mxu0
      %v2355 = vadd.f32 %v2194, %v2354
      %v2356 = vpop.f32.mrf.mxu0
      %v2357 = vpop.f32.mrf.mxu0
      %v2358 = vadd.f32 %v2197, %v2357
      %v2359 = vpop.f32.mrf.mxu0
      %2360 = vmatprep.mubr.bf16.mxu0 %v1787
      %2361 = vmatmul.mubr.bf16.gmra.mxu0 %v1786
      %v2362 = vpop.f32.mrf.mxu0
      %v2363 = vadd.f32 %v2202, %v2362
      %v2364 = vpop.f32.mrf.mxu0
      %v2365 = vpop.f32.mrf.mxu0
      %v2366 = vadd.f32 %v2205, %v2365
      %v2367 = vpop.f32.mrf.mxu0
      %2368 = vmatprep.mubr.bf16.mxu0 %v1791
      %2369 = vmatmul.mubr.bf16.gmra.mxu0 %v1790
      %v2370 = vpop.f32.mrf.mxu0
      %v2371 = vadd.f32 %v2210, %v2370
      %v2372 = vpop.f32.mrf.mxu0
      %v2373 = vpop.f32.mrf.mxu0
      %v2374 = vadd.f32 %v2213, %v2373
      %v2375 = vpop.f32.mrf.mxu0
      %2376 = vdwg.mxu0
      %v2377 = vmax.f32 %v2251, 0.0
      %v2378 = vmax.f32 %v2254, 0.0
      %v2379 = vmax.f32 %v2259, 0.0
      %v2380 = vmax.f32 %v2262, 0.0
      %v2381 = vmax.f32 %v2267, 0.0
      %v2382 = vmax.f32 %v2270, 0.0
      %v2383 = vmax.f32 %v2275, 0.0
      %v2384 = vmax.f32 %v2278, 0.0
      %v2385 = vmax.f32 %v2283, 0.0
      %v2386 = vmax.f32 %v2286, 0.0
      %v2387 = vmax.f32 %v2291, 0.0
      %v2388 = vmax.f32 %v2294, 0.0
      %v2389 = vmax.f32 %v2299, 0.0
      %v2390 = vmax.f32 %v2302, 0.0
      %v2391 = vmax.f32 %v2307, 0.0
      %v2392 = vmax.f32 %v2310, 0.0
      %v2393 = vmax.f32 %v2315, 0.0
      %v2394 = vmax.f32 %v2318, 0.0
      %v2395 = vmax.f32 %v2323, 0.0
      %v2396 = vmax.f32 %v2326, 0.0
      %v2397 = vmax.f32 %v2331, 0.0
      %v2398 = vmax.f32 %v2334, 0.0
      %v2399 = vmax.f32 %v2339, 0.0
      %v2400 = vmax.f32 %v2342, 0.0
      %v2401 = vmax.f32 %v2347, 0.0
      %v2402 = vmax.f32 %v2350, 0.0
      %v2403 = vmax.f32 %v2355, 0.0
      %v2404 = vmax.f32 %v2358, 0.0
      %v2405 = vmax.f32 %v2363, 0.0
      %v2406 = vmax.f32 %v2366, 0.0
      %v2407 = vmax.f32 %v2371, 0.0
      %v2408 = vmax.f32 %v2374, 0.0
      %vm2409 = vcmask 523264
      %2410 = vst.msk [vmem:[%s280] sm:$0xff] %vm2409, %v2377
      %2411 = vst.msk [vmem:[%s280 + $0x8] sm:$0xff] %vm2409, %v2378
      %2412 = vst.msk [vmem:[%s280 + $0x10] sm:$0xff] %vm2409, %v2379
      %2413 = vst.msk [vmem:[%s280 + $0x18] sm:$0xff] %vm2409, %v2380
      %2414 = vst.msk [vmem:[%s280 + $0x20] sm:$0xff] %vm2409, %v2381
      %2415 = vst.msk [vmem:[%s280 + $0x28] sm:$0xff] %vm2409, %v2382
      %2416 = vst.msk [vmem:[%s280 + $0x30] sm:$0xff] %vm2409, %v2383
      %2417 = vst.msk [vmem:[%s280 + $0x38] sm:$0xff] %vm2409, %v2384
      %2418 = vst.msk [vmem:[%s280 + $0x40] sm:$0xff] %vm2409, %v2385
      %2419 = vst.msk [vmem:[%s280 + $0x48] sm:$0xff] %vm2409, %v2386
      %2420 = vst.msk [vmem:[%s280 + $0x50] sm:$0xff] %vm2409, %v2387
      %2421 = vst.msk [vmem:[%s280 + $0x58] sm:$0xff] %vm2409, %v2388
      %2422 = vst.msk [vmem:[%s280 + $0x60] sm:$0xff] %vm2409, %v2389
      %2423 = vst.msk [vmem:[%s280 + $0x68] sm:$0xff] %vm2409, %v2390
      %2424 = vst.msk [vmem:[%s280 + $0x70] sm:$0xff] %vm2409, %v2391
      %2425 = vst.msk [vmem:[%s280 + $0x78] sm:$0xff] %vm2409, %v2392
      %2426 = vst.msk [vmem:[%s280 + $0x80] sm:$0xff] %vm2409, %v2393
      %2427 = vst.msk [vmem:[%s280 + $0x88] sm:$0xff] %vm2409, %v2394
      %2428 = vst.msk [vmem:[%s280 + $0x90] sm:$0xff] %vm2409, %v2395
      %2429 = vst.msk [vmem:[%s280 + $0x98] sm:$0xff] %vm2409, %v2396
      %2430 = vst.msk [vmem:[%s280 + $0xa0] sm:$0xff] %vm2409, %v2397
      %2431 = vst.msk [vmem:[%s280 + $0xa8] sm:$0xff] %vm2409, %v2398
      %2432 = vst.msk [vmem:[%s280 + $0xb0] sm:$0xff] %vm2409, %v2399
      %2433 = vst.msk [vmem:[%s280 + $0xb8] sm:$0xff] %vm2409, %v2400
      %2434 = vst.msk [vmem:[%s280 + $0xc0] sm:$0xff] %vm2409, %v2401
      %2435 = vst.msk [vmem:[%s280 + $0xc8] sm:$0xff] %vm2409, %v2402
      %2436 = vst.msk [vmem:[%s280 + $0xd0] sm:$0xff] %vm2409, %v2403
      %2437 = vst.msk [vmem:[%s280 + $0xd8] sm:$0xff] %vm2409, %v2404
      %2438 = vst.msk [vmem:[%s280 + $0xe0] sm:$0xff] %vm2409, %v2405
      %2439 = vst.msk [vmem:[%s280 + $0xe8] sm:$0xff] %vm2409, %v2406
      %2440 = vst.msk [vmem:[%s280 + $0xf0] sm:$0xff] %vm2409, %v2407
      %2441 = vst.msk [vmem:[%s280 + $0xf8] sm:$0xff] %vm2409, %v2408
      %s2442 = smul.u32 32, %s18
      %p2443 = scmp.lt.s32.totalorder %s2442, 255
      %s2444 = scalar_select %p2443, %s2442, 255
      %s2445 = smul.addr %s2444, 8
      %s2446 = scalar_lea.vmem %s7, %s2445
      // Predicated region
      $region49: #{variational_decoder_forward.3} parent=47 // pred_check
        %p2447 = pneg %p188
      $region50: #{variational_decoder_forward.3} parent=47 // pred_check_branch
        %2449 = sbr.rel (%p2447) target = $region52
      $region51: #{variational_decoder_forward.3} parent=47 // pred_region
        %s2450 = smul.u32 32, %s18
      $region52: #{variational_decoder_forward.3} parent=47 // pred_fallthru
        _
    $region48: #{variational_decoder_forward.3} parent=5 // pred_fallthru
      _
    %p2451 = scmp.le.s32.totalorder 2, %s13
    // Predicated region
    $region53: #{variational_decoder_forward.3} parent=5 // pred_check
      %p2452 = pneg %p2451
    $region54: #{variational_decoder_forward.3} parent=5 // pred_check_branch
      %2454 = sbr.rel (%p2452) target = $region56
    $region55: #{variational_decoder_forward.3} parent=5 // pred_region
      %s2455 = ssub.s32 %s13, 2
      // Predicated region
      $region57: #{variational_decoder_forward.3} parent=55 // pred_check
        %p2456 = pneg %p194
      $region58: #{variational_decoder_forward.3} parent=55 // pred_check_branch
        %2458 = sbr.rel (%p2456) target = $region60
      $region59: #{variational_decoder_forward.3} parent=55 // pred_region
        %s2459 = smul.u32 32, %s19
        %p2460 = scmp.lt.s32.totalorder %s2459, 255
        %s2461 = scalar_select %p2460, %s2459, 255
        %s2462 = smul.addr %s2461, 8
        %s2463 = scalar_lea.vmem %s7, %s2462
      $region60: #{variational_decoder_forward.3} parent=55 // pred_fallthru
        _
    $region56: #{variational_decoder_forward.3} parent=5 // pred_fallthru
      _
  $region6: #{variational_decoder_forward.3} parent=0 // loop_footer
    %s17 = sadd.s32 1, %s13
  $region7: #{variational_decoder_forward.3} parent=0 // loop_footer_branch
    %12 = sbr.rel target = $region3
  $region8: #{variational_decoder_forward.3} parent=0 // loop_exit
    _

// kernel: variational_decoder_forward.2
$region0: #{variational_decoder_forward.2}
  #allocation0 [shape = 'u32[]', space=smem, size = 0x4, offset = 0x4, fixed_abs, tag = 'smem constant byte address 0x4 - core index']
  #allocation1 [shape = 'u32[144,128]{1,0:T(1,128)}', space=vmem, size = 0x12000, scoped, tag = 'internal scratch']
  %s0 = inlined_call_operand.hbm [shape: f32[2,8], index: 0, kind: input, shape index: {}]
  %s1 = inlined_call_operand.hbm [shape: f32[8,16], index: 1, kind: input, shape index: {}]
  %s2 = inlined_call_operand.hbm [shape: f32[1,16], index: 2, kind: input, shape index: {}]
  %s3 = inlined_call_operand.hbm [shape: bf16[16,131072], index: 3, kind: input, shape index: {}]
  %s4 = inlined_call_operand.hbm [shape: f32[1,131072], index: 4, kind: input, shape index: {}]
  %s5 = inlined_call_operand.vmem [shape: bf16[2,131072], index: 5, kind: output, shape index: {}]
  %s6 = sld [smem:[#allocation0]]
  $region73: #{variational_decoder_forward.2} parent=0
    _
  %s8 = ssub.s32 1, %s6
  %s9 = scalar_select 0, %s8, %s6
  $region1: #{variational_decoder_forward.2} parent=0
    #allocation2 [shape = 'u8[1024]{0}', space=vmem, size = 0x400, scoped, tag = 'input window, operand 0, single buffered']
    #allocation3 [shape = 's32[2]{0}', space=sflag, size = 0x8, scoped, tag = 'scoped memory for variational_decoder_forward.2']
    #allocation4 [shape = 'u8[4096]{0}', space=vmem, size = 0x1000, scoped, tag = 'input window, operand 1, single buffered']
    #allocation5 [shape = 's32[1]{0}', space=sflag, size = 0x4, scoped, tag = 'scoped memory for variational_decoder_forward.2']
    #allocation6 [shape = 'u8[512]{0}', space=vmem, size = 0x400, scoped, tag = 'input window, operand 2, single buffered']
    #allocation7 [shape = 'u8[1048576]{0}', space=vmem, size = 0x100000, scoped, tag = 'input window, operand 3']
    #allocation8 [shape = 's32[2]{0}', space=sflag, size = 0x8, scoped, tag = 'scoped memory for variational_decoder_forward.2']
    #allocation9 [shape = 'u8[131072]{0}', space=vmem, size = 0x20000, scoped, tag = 'input window, operand 4']
    %10 = vsyncpa [#allocation3], 0
    %11 = vsyncpa [#allocation5], 0
    %12 = vsyncpa [#allocation8], 0
    %s13 = scalar_lea.sflag [#allocation8], 1
    %14 = vsyncpa %s13, 0
    loop: start=0, step=1, limit=10
    $region2: #{variational_decoder_forward.2} parent=1 // loop_pre_header
      _
    $region3: #{variational_decoder_forward.2} parent=1 // loop_header
      %s16 = sphi 0, %s20
      %p17 = scmp.ge.s32.totalorder %s16, 10
      %s24 = sphi 0, %s24
      %s26 = sphi 0, %s24
      %s27 = sphi 0, %s26
      %s41 = sphi 0, %s27
      %s45 = sphi 0, %s45
      %s47 = sphi 0, %s45
      %s48 = sphi 0, %s47
      %s62 = sphi 0, %s48
      %s66 = sphi 0, %s66
      %s68 = sphi 0, %s66
      %s69 = sphi 0, %s68
      %s83 = sphi 0, %s69
      %s89 = sphi 0, %s91
      %s92 = sphi 0, %s89
      %s93 = sphi 0, %s92
      %s109 = sphi 0, %s93
      %s115 = sphi 0, %s117
      %s118 = sphi 0, %s115
      %s119 = sphi 0, %s118
      %s135 = sphi 0, %s119
      %s141 = sphi 0, %s143
      %s144 = sphi 0, %s141
      %s145 = sphi 0, %s144
      %s161 = sphi 0, %s145
    $region4: #{variational_decoder_forward.2} parent=1 // loop_header_branch
      %19 = sbr.rel (%p17) target = $region8
    $region5: #{variational_decoder_forward.2} parent=1 // loop_body
      %s21 = ssub.s32 %s16, 1
      %s22 = ssub.s32 %s16, 2
      %s23 = sadd.s32 %s16, 1
      %s25 = sadd.s32 %s24, 1
      %p28 = scmp.eq.s32.totalorder %s16, 7
      %p29 = scmp.ne.s32.totalorder %s24, %s26
      %p30 = scmp.eq.s32.totalorder %s16, 0
      %p31 = por %p29, %p30
      %p32 = scmp.ne.s32.totalorder %s24, %s26
      %p33 = scmp.eq.s32.totalorder %s21, 7
      %p34 = por %p32, %p33
      %p35 = scmp.ne.s32.totalorder %s26, %s27
      %p36 = scmp.eq.s32.totalorder %s21, 0
      %p37 = por %p35, %p36
      %p38 = scmp.ne.s32.totalorder %s26, %s27
      %p39 = scmp.eq.s32.totalorder %s22, 7
      %p40 = por %p38, %p39
      %p42 = scmp.ne.s32.totalorder %s27, %s41
      %p43 = scmp.eq.s32.totalorder %s22, 0
      %p44 = por %p42, %p43
      %s46 = sadd.s32 %s45, 1
      %p49 = scmp.eq.s32.totalorder %s16, 7
      %p50 = scmp.ne.s32.totalorder %s45, %s47
      %p51 = scmp.eq.s32.totalorder %s16, 0
      %p52 = por %p50, %p51
      %p53 = scmp.ne.s32.totalorder %s45, %s47
      %p54 = scmp.eq.s32.totalorder %s21, 7
      %p55 = por %p53, %p54
      %p56 = scmp.ne.s32.totalorder %s47, %s48
      %p57 = scmp.eq.s32.totalorder %s21, 0
      %p58 = por %p56, %p57
      %p59 = scmp.ne.s32.totalorder %s47, %s48
      %p60 = scmp.eq.s32.totalorder %s22, 7
      %p61 = por %p59, %p60
      %p63 = scmp.ne.s32.totalorder %s48, %s62
      %p64 = scmp.eq.s32.totalorder %s22, 0
      %p65 = por %p63, %p64
      %s67 = sadd.s32 %s66, 1
      %p70 = scmp.eq.s32.totalorder %s16, 7
      %p71 = scmp.ne.s32.totalorder %s66, %s68
      %p72 = scmp.eq.s32.totalorder %s16, 0
      %p73 = por %p71, %p72
      %p74 = scmp.ne.s32.totalorder %s66, %s68
      %p75 = scmp.eq.s32.totalorder %s21, 7
      %p76 = por %p74, %p75
      %p77 = scmp.ne.s32.totalorder %s68, %s69
      %p78 = scmp.eq.s32.totalorder %s21, 0
      %p79 = por %p77, %p78
      %p80 = scmp.ne.s32.totalorder %s68, %s69
      %p81 = scmp.eq.s32.totalorder %s22, 7
      %p82 = por %p80, %p81
      %p84 = scmp.ne.s32.totalorder %s69, %s83
      %p85 = scmp.eq.s32.totalorder %s22, 0
      %p86 = por %p84, %p85
      %s87 = ssub.s32 %s16, %s23
      %p88 = scmp.eq.s32.totalorder %s87, 0
      %s90 = sadd.s32 %s89, 1
      %s91 = scalar_select %p88, %s89, %s90
      %p94 = pneg %p88
      %p95 = scmp.eq.s32.totalorder %s16, 7
      %p96 = por %p94, %p95
      %p97 = scmp.ne.s32.totalorder %s89, %s92
      %p98 = scmp.eq.s32.totalorder %s16, 0
      %p99 = por %p97, %p98
      %p100 = scmp.ne.s32.totalorder %s89, %s92
      %p101 = scmp.eq.s32.totalorder %s21, 7
      %p102 = por %p100, %p101
      %p103 = scmp.ne.s32.totalorder %s92, %s93
      %p104 = scmp.eq.s32.totalorder %s21, 0
      %p105 = por %p103, %p104
      %p106 = scmp.ne.s32.totalorder %s92, %s93
      %p107 = scmp.eq.s32.totalorder %s22, 7
      %p108 = por %p106, %p107
      %p110 = scmp.ne.s32.totalorder %s93, %s109
      %p111 = scmp.eq.s32.totalorder %s22, 0
      %p112 = por %p110, %p111
      %s113 = ssub.s32 %s16, %s23
      %p114 = scmp.eq.s32.totalorder %s113, 0
      %s116 = sadd.s32 %s115, 1
      %s117 = scalar_select %p114, %s115, %s116
      %p120 = pneg %p114
      %p121 = scmp.eq.s32.totalorder %s16, 7
      %p122 = por %p120, %p121
      %p123 = scmp.ne.s32.totalorder %s115, %s118
      %p124 = scmp.eq.s32.totalorder %s16, 0
      %p125 = por %p123, %p124
      %p126 = scmp.ne.s32.totalorder %s115, %s118
      %p127 = scmp.eq.s32.totalorder %s21, 7
      %p128 = por %p126, %p127
      %p129 = scmp.ne.s32.totalorder %s118, %s119
      %p130 = scmp.eq.s32.totalorder %s21, 0
      %p131 = por %p129, %p130
      %p132 = scmp.ne.s32.totalorder %s118, %s119
      %p133 = scmp.eq.s32.totalorder %s22, 7
      %p134 = por %p132, %p133
      %p136 = scmp.ne.s32.totalorder %s119, %s135
      %p137 = scmp.eq.s32.totalorder %s22, 0
      %p138 = por %p136, %p137
      %s139 = ssub.s32 %s16, %s23
      %p140 = scmp.eq.s32.totalorder %s139, 0
      %s142 = sadd.s32 %s141, 1
      %s143 = scalar_select %p140, %s141, %s142
      %p146 = pneg %p140
      %p147 = scmp.eq.s32.totalorder %s16, 7
      %p148 = por %p146, %p147
      %p149 = scmp.ne.s32.totalorder %s141, %s144
      %p150 = scmp.eq.s32.totalorder %s16, 0
      %p151 = por %p149, %p150
      %p152 = scmp.ne.s32.totalorder %s141, %s144
      %p153 = scmp.eq.s32.totalorder %s21, 7
      %p154 = por %p152, %p153
      %p155 = scmp.ne.s32.totalorder %s144, %s145
      %p156 = scmp.eq.s32.totalorder %s21, 0
      %p157 = por %p155, %p156
      %p158 = scmp.ne.s32.totalorder %s144, %s145
      %p159 = scmp.eq.s32.totalorder %s22, 7
      %p160 = por %p158, %p159
      %p162 = scmp.ne.s32.totalorder %s145, %s161
      %p163 = scmp.eq.s32.totalorder %s22, 0
      %p164 = por %p162, %p163
      %p165 = scmp.le.s32.totalorder 1, %s16
      %p166 = scmp.lt.s32.totalorder %s16, 9
      %p167 = pnand %p165, %p166
      %p168 = pneg %p167
      // Predicated region
      $region9: #{variational_decoder_forward.2} parent=5 // pred_check
        _
      $region10: #{variational_decoder_forward.2} parent=5 // pred_check_branch
        %170 = sbr.rel (%p167) target = $region12
      $region11: #{variational_decoder_forward.2} parent=5 // pred_region
        %s171 = ssub.s32 %s16, 1
        // Predicated region
        $region13: #{variational_decoder_forward.2} parent=11 // pred_check
          %p172 = pneg %p37
        $region14: #{variational_decoder_forward.2} parent=11 // pred_check_branch
          %174 = sbr.rel (%p172) target = $region16
        $region15: #{variational_decoder_forward.2} parent=11 // pred_region
          %s176 = ssub.s32 32, 32
          %177 = vsyncadd [#allocation3], %s176
          %s179 = sshll.u32 [#allocation2], 4
          %s180 = int_to_ptr.vmem [resolvable:$true] %s179
          %182 = dma.hbm_to_vmem [thread:$0]  %s0, 32, %s180, [#allocation3]
        $region16: #{variational_decoder_forward.2} parent=11 // pred_fallthru
          _
        // Predicated region
        $region17: #{variational_decoder_forward.2} parent=11 // pred_check
          %p183 = pneg %p58
        $region18: #{variational_decoder_forward.2} parent=11 // pred_check_branch
          %185 = sbr.rel (%p183) target = $region20
        $region19: #{variational_decoder_forward.2} parent=11 // pred_region
          %s187 = ssub.s32 128, 128
          %188 = vsyncadd [#allocation5], %s187
          %s190 = sshll.u32 [#allocation4], 4
          %s191 = int_to_ptr.vmem [resolvable:$true] %s190
          %193 = dma.hbm_to_vmem [thread:$0]  %s1, 128, %s191, [#allocation5]
        $region20: #{variational_decoder_forward.2} parent=11 // pred_fallthru
          _
        // Predicated region
        $region21: #{variational_decoder_forward.2} parent=11 // pred_check
          %p194 = pneg %p79
        $region22: #{variational_decoder_forward.2} parent=11 // pred_check_branch
          %196 = sbr.rel (%p194) target = $region24
        $region23: #{variational_decoder_forward.2} parent=11 // pred_region
          %s198 = ssub.s32 16, 16
          %199 = vsyncadd [#allocation5], %s198
          %s201 = sshll.u32 [#allocation6], 4
          %s202 = int_to_ptr.vmem [resolvable:$true] %s201
          %204 = dma.hbm_to_vmem [thread:$0]  %s2, 16, %s202, [#allocation5]
        $region24: #{variational_decoder_forward.2} parent=11 // pred_fallthru
          _
      $region12: #{variational_decoder_forward.2} parent=5 // pred_fallthru
        _
      %p205 = scmp.lt.s32.totalorder %s16, 8
      // Predicated region
      $region25: #{variational_decoder_forward.2} parent=5 // pred_check
        %p206 = pneg %p205
      $region26: #{variational_decoder_forward.2} parent=5 // pred_check_branch
        %208 = sbr.rel (%p206) target = $region28
      $region27: #{variational_decoder_forward.2} parent=5 // pred_region
        // Predicated region
        $region29: #{variational_decoder_forward.2} parent=27 // pred_check
          %p209 = pneg %p99
        $region30: #{variational_decoder_forward.2} parent=27 // pred_check_branch
          %211 = sbr.rel (%p209) target = $region32
        $region31: #{variational_decoder_forward.2} parent=27 // pred_region
          %s212 = sand.u32 %s16, 1
          %s213 = scalar_lea.sflag [#allocation8], %s212
          %s214 = sand.u32 %s89, 1
          %s215 = smul.addr %s214, 1024
          %s216 = scalar_lea.vmem [#allocation7], %s215
          %s217 = smul.u32 128, %s16
          %s219 = ssub.s32 16384, 16384
          %220 = vsyncadd %s213, %s219
          %s221 = smul.addr %s217, 64
          %s222 = scalar_lea.hbm %s3, %s221
          %s223 = sshll.u32 %s216, 4
          %s224 = int_to_ptr.vmem [resolvable:$true] %s223
          %229 = dma.hbm_to_vmem [thread:$0]  %s222, 16384, %s224, %s213, 65536, 8192, 512
        $region32: #{variational_decoder_forward.2} parent=27 // pred_fallthru
          _
        // Predicated region
        $region33: #{variational_decoder_forward.2} parent=27 // pred_check
          %p230 = pneg %p125
        $region34: #{variational_decoder_forward.2} parent=27 // pred_check_branch
          %232 = sbr.rel (%p230) target = $region36
        $region35: #{variational_decoder_forward.2} parent=27 // pred_region
          %s233 = sand.u32 %s16, 1
          %s234 = scalar_lea.sflag [#allocation8], %s233
          %s235 = sand.u32 %s115, 1
          %s236 = smul.addr %s235, 128
          %s237 = scalar_lea.vmem [#allocation9], %s236
          %s238 = smul.u32 128, %s16
          %s240 = ssub.s32 2048, 2048
          %241 = vsyncadd %s234, %s240
          %s242 = smul.addr %s238, 16
          %s243 = scalar_lea.hbm %s4, %s242
          %s245 = sshll.u32 %s237, 4
          %s246 = int_to_ptr.vmem [resolvable:$true] %s245
          %248 = dma.hbm_to_vmem [thread:$0]  %s243, 2048, %s246, %s234
        $region36: #{variational_decoder_forward.2} parent=27 // pred_fallthru
          _
      $region28: #{variational_decoder_forward.2} parent=5 // pred_fallthru
        _
      %p249 = scmp.le.s32.totalorder 1, %s16
      %p250 = scmp.lt.s32.totalorder %s16, 9
      %p251 = pnand %p249, %p250
      %p252 = pneg %p251
      // Predicated region
      $region37: #{variational_decoder_forward.2} parent=5 // pred_check
        _
      $region38: #{variational_decoder_forward.2} parent=5 // pred_check_branch
        %254 = sbr.rel (%p251) target = $region40
      $region39: #{variational_decoder_forward.2} parent=5 // pred_region
        %s255 = ssub.s32 %s16, 1
        // Predicated region
        $region41: #{variational_decoder_forward.2} parent=39 // pred_check
          %p256 = pneg %p37
        $region42: #{variational_decoder_forward.2} parent=39 // pred_check_branch
          %258 = sbr.rel (%p256) target = $region44
        $region43: #{variational_decoder_forward.2} parent=39 // pred_region
          %259 = dma.done [#allocation3], 32
        $region44: #{variational_decoder_forward.2} parent=39 // pred_fallthru
          _
        // Predicated region
        $region45: #{variational_decoder_forward.2} parent=39 // pred_check
          %p260 = pneg %p58
        $region46: #{variational_decoder_forward.2} parent=39 // pred_check_branch
          %262 = sbr.rel (%p260) target = $region48
        $region47: #{variational_decoder_forward.2} parent=39 // pred_region
          %263 = dma.done [#allocation5], 128
        $region48: #{variational_decoder_forward.2} parent=39 // pred_fallthru
          _
        // Predicated region
        $region49: #{variational_decoder_forward.2} parent=39 // pred_check
          %p264 = pneg %p79
        $region50: #{variational_decoder_forward.2} parent=39 // pred_check_branch
          %266 = sbr.rel (%p264) target = $region52
        $region51: #{variational_decoder_forward.2} parent=39 // pred_region
          %267 = dma.done [#allocation5], 16
        $region52: #{variational_decoder_forward.2} parent=39 // pred_fallthru
          _
        %s268 = sand.u32 %s21, 1
        %s269 = scalar_lea.sflag [#allocation8], %s268
        %s270 = sand.u32 %s92, 1
        %s271 = smul.addr %s270, 1024
        %s272 = scalar_lea.vmem [#allocation7], %s271
        // Predicated region
        $region53: #{variational_decoder_forward.2} parent=39 // pred_check
          %p273 = pneg %p105
        $region54: #{variational_decoder_forward.2} parent=39 // pred_check_branch
          %275 = sbr.rel (%p273) target = $region56
        $region55: #{variational_decoder_forward.2} parent=39 // pred_region
          %276 = dma.done %s269, 16384
        $region56: #{variational_decoder_forward.2} parent=39 // pred_fallthru
          _
        %s277 = sand.u32 %s21, 1
        %s278 = scalar_lea.sflag [#allocation8], %s277
        %s279 = sand.u32 %s118, 1
        %s280 = smul.addr %s279, 128
        %s281 = scalar_lea.vmem [#allocation9], %s280
        // Predicated region
        $region57: #{variational_decoder_forward.2} parent=39 // pred_check
          %p282 = pneg %p131
        $region58: #{variational_decoder_forward.2} parent=39 // pred_check_branch
          %284 = sbr.rel (%p282) target = $region60
        $region59: #{variational_decoder_forward.2} parent=39 // pred_region
          %285 = dma.done %s278, 2048
        $region60: #{variational_decoder_forward.2} parent=39 // pred_fallthru
          _
        %p286 = pneg %p37
        %p287 = pneg %p34
        %p288 = pneg %p58
        %p289 = pneg %p55
        %p290 = pneg %p79
        %p291 = pneg %p76
        %s292 = sand.u32 %s21, 1
        %s293 = scalar_lea.sflag [#allocation8], %s292
        %s294 = sand.u32 %s92, 1
        %s295 = smul.addr %s294, 1024
        %s296 = scalar_lea.vmem [#allocation7], %s295
        %p297 = pneg %p105
        %p298 = pneg %p102
        %s299 = sand.u32 %s21, 1
        %s300 = scalar_lea.sflag [#allocation8], %s299
        %s301 = sand.u32 %s118, 1
        %s302 = smul.addr %s301, 128
        %s303 = scalar_lea.vmem [#allocation9], %s302
        %p304 = pneg %p131
        %p305 = pneg %p128
        %p306 = pneg %p157
        %p307 = pneg %p154
        %s308 = smul.u32 128, %s21
        %p309 = scmp.lt.s32.totalorder %s308, 1023
        %s310 = scalar_select %p309, %s308, 1023
        %s311 = scalar_lea.vmem %s5, %s310
        %s312 = smul.u32 128, %s21
        %s313 = smul.u32 128, %s21
        %s314 = smul.u32 128, %s21
        %p315 = scmp.lt.s32.totalorder %s314, 1023
        %s316 = scalar_select %p315, %s314, 1023
        %s317 = scalar_lea.vmem %s5, %s316
        %s318 = smul.u32 128, %s21
        %v320 = vld [vmem:[#allocation2] sm:$0x3]
        %v321 = vld [vmem:[#allocation4] sm:$0xff]
        %v322 = vld [vmem:[#allocation6] sm:$0x1]
        %v324 = vlaneseq
        %v325 = vshrl.u32 %v324, 7
        %v326 = vsub.s32 0, %v325
        %v327 = vrot.slane %v322, %v326
        %vm329 = vcmask 64512
        %v331 = vsel %vm329, %v320, 0
        %333 = vmatprep.subr.mxu0 0.0
        %334 = vmatpush1.msra.mxu0 0.0
        %335 = vmatprep.subr.mxu0 0.0
        %336 = vmatpush1.msra.mxu0 0.0
        %337 = vmatprep.subr.mxu0 0.0
        %338 = vmatpush1.msra.mxu0 0.0
        %339 = vmatprep.subr.mxu0 0.0
        %340 = vmatpush1.msra.mxu0 0.0
        %341 = vmatprep.subr.mxu0 0.0
        %342 = vmatpush1.msra.mxu0 0.0
        %343 = vmatprep.subr.mxu0 0.0
        %344 = vmatpush1.msra.mxu0 0.0
        %345 = vmatprep.subr.mxu0 0.0
        %346 = vmatpush1.msra.mxu0 0.0
        %347 = vmatprep.subr.mxu0 0.0
        %348 = vmatpush1.msra.mxu0 0.0
        %349 = vmatprep.subr.mxu0 0.0
        %350 = vmatpush1.msra.mxu0 0.0
        %351 = vmatprep.subr.mxu0 0.0
        %352 = vmatpush1.msra.mxu0 0.0
        %353 = vmatprep.subr.mxu0 0.0
        %354 = vmatpush1.msra.mxu0 0.0
        %355 = vmatprep.subr.mxu0 0.0
        %356 = vmatpush1.msra.mxu0 0.0
        %357 = vmatprep.subr.mxu0 0.0
        %358 = vmatpush1.msra.mxu0 0.0
        %359 = vmatprep.subr.mxu0 0.0
        %360 = vmatpush1.msra.mxu0 0.0
        %361 = vmatprep.subr.mxu0 0.0
        %362 = vmatpush1.msra.mxu0 0.0
        %363 = vmatprep.subr.mxu0 0.0
        %364 = vmatpush1.msra.mxu0 %v321
        %365 = vmatprep.subr.mxu0 0.0
        %366 = vmatpush2.msra.mxu0 0.0
        %367 = vmatprep.subr.mxu0 0.0
        %368 = vmatpush2.msra.mxu0 0.0
        %369 = vmatprep.subr.mxu0 0.0
        %370 = vmatpush2.msra.mxu0 0.0
        %371 = vmatprep.subr.mxu0 0.0
        %372 = vmatpush2.msra.mxu0 0.0
        %373 = vmatprep.subr.mxu0 0.0
        %374 = vmatpush2.msra.mxu0 0.0
        %375 = vmatprep.subr.mxu0 0.0
        %376 = vmatpush2.msra.mxu0 0.0
        %377 = vmatprep.subr.mxu0 0.0
        %378 = vmatpush2.msra.mxu0 0.0
        %379 = vmatprep.subr.mxu0 0.0
        %380 = vmatpush2.msra.mxu0 0.0
        %381 = vmatprep.subr.mxu0 0.0
        %382 = vmatpush2.msra.mxu0 0.0
        %383 = vmatprep.subr.mxu0 0.0
        %384 = vmatpush2.msra.mxu0 0.0
        %385 = vmatprep.subr.mxu0 0.0
        %386 = vmatpush2.msra.mxu0 0.0
        %387 = vmatprep.subr.mxu0 0.0
        %388 = vmatpush2.msra.mxu0 0.0
        %389 = vmatprep.subr.mxu0 0.0
        %390 = vmatpush2.msra.mxu0 0.0
        %391 = vmatprep.subr.mxu0 0.0
        %392 = vmatpush2.msra.mxu0 0.0
        %393 = vmatprep.subr.mxu0 0.0
        %394 = vmatpush2.msra.mxu0 0.0
        %395 = vmatprep.subr.mxu0 0.0
        %396 = vmatpush2.msra.mxu0 0.0
        %397 = vmatprep.mubr.f32.mxu0 0.0
        %398 = vmatmul.mubr.f32.gmra.mxu0 %v331
        %v399 = vpop.f32.mrf.mxu0
        %v400 = vadd.f32 %v327, %v399
        %v401 = vpop.f32.mrf.mxu0
        %402 = vdwg.mxu0
        %v403 = vmax.f32 %v400, 0.0
        %v404 = vpack.c.bf16 %v403, %v403
        %v405 = vld [vmem:[%s272] sm:$0xff]
        %v406 = vld [vmem:[%s272 + $0x8] sm:$0xff]
        %v407 = vld [vmem:[%s272 + $0x10] sm:$0xff]
        %v408 = vld [vmem:[%s272 + $0x18] sm:$0xff]
        %v409 = vld [vmem:[%s272 + $0x20] sm:$0xff]
        %v410 = vld [vmem:[%s272 + $0x28] sm:$0xff]
        %v411 = vld [vmem:[%s272 + $0x30] sm:$0xff]
        %v412 = vld [vmem:[%s272 + $0x38] sm:$0xff]
        %v413 = vld [vmem:[%s272 + $0x40] sm:$0xff]
        %v414 = vld [vmem:[%s272 + $0x48] sm:$0xff]
        %v415 = vld [vmem:[%s272 + $0x50] sm:$0xff]
        %v416 = vld [vmem:[%s272 + $0x58] sm:$0xff]
        %v417 = vld [vmem:[%s272 + $0x60] sm:$0xff]
        %v418 = vld [vmem:[%s272 + $0x68] sm:$0xff]
        %v419 = vld [vmem:[%s272 + $0x70] sm:$0xff]
        %v420 = vld [vmem:[%s272 + $0x78] sm:$0xff]
        %v421 = vld [vmem:[%s272 + $0x80] sm:$0xff]
        %v422 = vld [vmem:[%s272 + $0x88] sm:$0xff]
        %v423 = vld [vmem:[%s272 + $0x90] sm:$0xff]
        %v424 = vld [vmem:[%s272 + $0x98] sm:$0xff]
        %v425 = vld [vmem:[%s272 + $0xa0] sm:$0xff]
        %v426 = vld [vmem:[%s272 + $0xa8] sm:$0xff]
        %v427 = vld [vmem:[%s272 + $0xb0] sm:$0xff]
        %v428 = vld [vmem:[%s272 + $0xb8] sm:$0xff]
        %v429 = vld [vmem:[%s272 + $0xc0] sm:$0xff]
        %v430 = vld [vmem:[%s272 + $0xc8] sm:$0xff]
        %v431 = vld [vmem:[%s272 + $0xd0] sm:$0xff]
        %v432 = vld [vmem:[%s272 + $0xd8] sm:$0xff]
        %v433 = vld [vmem:[%s272 + $0xe0] sm:$0xff]
        %v434 = vld [vmem:[%s272 + $0xe8] sm:$0xff]
        %v435 = vld [vmem:[%s272 + $0xf0] sm:$0xff]
        %v436 = vld [vmem:[%s272 + $0xf8] sm:$0xff]
        %v437 = vld [vmem:[%s272 + $0x100] sm:$0xff]
        %v438 = vld [vmem:[%s272 + $0x108] sm:$0xff]
        %v439 = vld [vmem:[%s272 + $0x110] sm:$0xff]
        %v440 = vld [vmem:[%s272 + $0x118] sm:$0xff]
        %v441 = vld [vmem:[%s272 + $0x120] sm:$0xff]
        %v442 = vld [vmem:[%s272 + $0x128] sm:$0xff]
        %v443 = vld [vmem:[%s272 + $0x130] sm:$0xff]
        %v444 = vld [vmem:[%s272 + $0x138] sm:$0xff]
        %v445 = vld [vmem:[%s272 + $0x140] sm:$0xff]
        %v446 = vld [vmem:[%s272 + $0x148] sm:$0xff]
        %v447 = vld [vmem:[%s272 + $0x150] sm:$0xff]
        %v448 = vld [vmem:[%s272 + $0x158] sm:$0xff]
        %v449 = vld [vmem:[%s272 + $0x160] sm:$0xff]
        %v450 = vld [vmem:[%s272 + $0x168] sm:$0xff]
        %v451 = vld [vmem:[%s272 + $0x170] sm:$0xff]
        %v452 = vld [vmem:[%s272 + $0x178] sm:$0xff]
        %v453 = vld [vmem:[%s272 + $0x180] sm:$0xff]
        %v454 = vld [vmem:[%s272 + $0x188] sm:$0xff]
        %v455 = vld [vmem:[%s272 + $0x190] sm:$0xff]
        %v456 = vld [vmem:[%s272 + $0x198] sm:$0xff]
        %v457 = vld [vmem:[%s272 + $0x1a0] sm:$0xff]
        %v458 = vld [vmem:[%s272 + $0x1a8] sm:$0xff]
        %v459 = vld [vmem:[%s272 + $0x1b0] sm:$0xff]
        %v460 = vld [vmem:[%s272 + $0x1b8] sm:$0xff]
        %v461 = vld [vmem:[%s272 + $0x1c0] sm:$0xff]
        %v462 = vld [vmem:[%s272 + $0x1c8] sm:$0xff]
        %v463 = vld [vmem:[%s272 + $0x1d0] sm:$0xff]
        %v464 = vld [vmem:[%s272 + $0x1d8] sm:$0xff]
        %v465 = vld [vmem:[%s272 + $0x1e0] sm:$0xff]
        %v466 = vld [vmem:[%s272 + $0x1e8] sm:$0xff]
        %v467 = vld [vmem:[%s272 + $0x1f0] sm:$0xff]
        %v468 = vld [vmem:[%s272 + $0x1f8] sm:$0xff]
        %v469 = vld [vmem:[%s272 + $0x200] sm:$0xff]
        %v470 = vld [vmem:[%s272 + $0x208] sm:$0xff]
        %v471 = vld [vmem:[%s272 + $0x210] sm:$0xff]
        %v472 = vld [vmem:[%s272 + $0x218] sm:$0xff]
        %v473 = vld [vmem:[%s272 + $0x220] sm:$0xff]
        %v474 = vld [vmem:[%s272 + $0x228] sm:$0xff]
        %v475 = vld [vmem:[%s272 + $0x230] sm:$0xff]
        %v476 = vld [vmem:[%s272 + $0x238] sm:$0xff]
        %v477 = vld [vmem:[%s272 + $0x240] sm:$0xff]
        %v478 = vld [vmem:[%s272 + $0x248] sm:$0xff]
        %v479 = vld [vmem:[%s272 + $0x250] sm:$0xff]
        %v480 = vld [vmem:[%s272 + $0x258] sm:$0xff]
        %v481 = vld [vmem:[%s272 + $0x260] sm:$0xff]
        %v482 = vld [vmem:[%s272 + $0x268] sm:$0xff]
        %v483 = vld [vmem:[%s272 + $0x270] sm:$0xff]
        %v484 = vld [vmem:[%s272 + $0x278] sm:$0xff]
        %v485 = vld [vmem:[%s272 + $0x280] sm:$0xff]
        %v486 = vld [vmem:[%s272 + $0x288] sm:$0xff]
        %v487 = vld [vmem:[%s272 + $0x290] sm:$0xff]
        %v488 = vld [vmem:[%s272 + $0x298] sm:$0xff]
        %v489 = vld [vmem:[%s272 + $0x2a0] sm:$0xff]
        %v490 = vld [vmem:[%s272 + $0x2a8] sm:$0xff]
        %v491 = vld [vmem:[%s272 + $0x2b0] sm:$0xff]
        %v492 = vld [vmem:[%s272 + $0x2b8] sm:$0xff]
        %v493 = vld [vmem:[%s272 + $0x2c0] sm:$0xff]
        %v494 = vld [vmem:[%s272 + $0x2c8] sm:$0xff]
        %v495 = vld [vmem:[%s272 + $0x2d0] sm:$0xff]
        %v496 = vld [vmem:[%s272 + $0x2d8] sm:$0xff]
        %v497 = vld [vmem:[%s272 + $0x2e0] sm:$0xff]
        %v498 = vld [vmem:[%s272 + $0x2e8] sm:$0xff]
        %v499 = vld [vmem:[%s272 + $0x2f0] sm:$0xff]
        %v500 = vld [vmem:[%s272 + $0x2f8] sm:$0xff]
        %v501 = vld [vmem:[%s272 + $0x300] sm:$0xff]
        %v502 = vld [vmem:[%s272 + $0x308] sm:$0xff]
        %v503 = vld [vmem:[%s272 + $0x310] sm:$0xff]
        %v504 = vld [vmem:[%s272 + $0x318] sm:$0xff]
        %v505 = vld [vmem:[%s272 + $0x320] sm:$0xff]
        %v506 = vld [vmem:[%s272 + $0x328] sm:$0xff]
        %v507 = vld [vmem:[%s272 + $0x330] sm:$0xff]
        %v508 = vld [vmem:[%s272 + $0x338] sm:$0xff]
        %v509 = vld [vmem:[%s272 + $0x340] sm:$0xff]
        %v510 = vld [vmem:[%s272 + $0x348] sm:$0xff]
        %v511 = vld [vmem:[%s272 + $0x350] sm:$0xff]
        %v512 = vld [vmem:[%s272 + $0x358] sm:$0xff]
        %v513 = vld [vmem:[%s272 + $0x360] sm:$0xff]
        %v514 = vld [vmem:[%s272 + $0x368] sm:$0xff]
        %v515 = vld [vmem:[%s272 + $0x370] sm:$0xff]
        %v516 = vld [vmem:[%s272 + $0x378] sm:$0xff]
        %v517 = vld [vmem:[%s272 + $0x380] sm:$0xff]
        %v518 = vld [vmem:[%s272 + $0x388] sm:$0xff]
        %v519 = vld [vmem:[%s272 + $0x390] sm:$0xff]
        %v520 = vld [vmem:[%s272 + $0x398] sm:$0xff]
        %v521 = vld [vmem:[%s272 + $0x3a0] sm:$0xff]
        %v522 = vld [vmem:[%s272 + $0x3a8] sm:$0xff]
        %v523 = vld [vmem:[%s272 + $0x3b0] sm:$0xff]
        %v524 = vld [vmem:[%s272 + $0x3b8] sm:$0xff]
        %v525 = vld [vmem:[%s272 + $0x3c0] sm:$0xff]
        %v526 = vld [vmem:[%s272 + $0x3c8] sm:$0xff]
        %v527 = vld [vmem:[%s272 + $0x3d0] sm:$0xff]
        %v528 = vld [vmem:[%s272 + $0x3d8] sm:$0xff]
        %v529 = vld [vmem:[%s272 + $0x3e0] sm:$0xff]
        %v530 = vld [vmem:[%s272 + $0x3e8] sm:$0xff]
        %v531 = vld [vmem:[%s272 + $0x3f0] sm:$0xff]
        %v532 = vld [vmem:[%s272 + $0x3f8] sm:$0xff]
        %v533 = vld [vmem:[%s281] sm:$0xff]
        %v534 = vld [vmem:[%s281 + $0x8] sm:$0xff]
        %v535 = vld [vmem:[%s281 + $0x10] sm:$0xff]
        %v536 = vld [vmem:[%s281 + $0x18] sm:$0xff]
        %v537 = vld [vmem:[%s281 + $0x20] sm:$0xff]
        %v538 = vld [vmem:[%s281 + $0x28] sm:$0xff]
        %v539 = vld [vmem:[%s281 + $0x30] sm:$0xff]
        %v540 = vld [vmem:[%s281 + $0x38] sm:$0xff]
        %v541 = vld [vmem:[%s281 + $0x40] sm:$0xff]
        %v542 = vld [vmem:[%s281 + $0x48] sm:$0xff]
        %v543 = vld [vmem:[%s281 + $0x50] sm:$0xff]
        %v544 = vld [vmem:[%s281 + $0x58] sm:$0xff]
        %v545 = vld [vmem:[%s281 + $0x60] sm:$0xff]
        %v546 = vld [vmem:[%s281 + $0x68] sm:$0xff]
        %v547 = vld [vmem:[%s281 + $0x70] sm:$0xff]
        %v548 = vld [vmem:[%s281 + $0x78] sm:$0xff]
        %v565 = vlaneseq
        %v566 = vshrl.u32 %v565, 7
        %v567 = vsub.s32 0, %v566
        %v568 = vrot.slane %v533, %v567
        %v569 = vlaneseq
        %v570 = vshrl.u32 %v569, 7
        %v571 = vsub.s32 1, %v570
        %v572 = vrot.slane %v533, %v571
        %v573 = vlaneseq
        %v574 = vshrl.u32 %v573, 7
        %v575 = vsub.s32 2, %v574
        %v576 = vrot.slane %v533, %v575
        %v577 = vlaneseq
        %v578 = vshrl.u32 %v577, 7
        %v579 = vsub.s32 3, %v578
        %v580 = vrot.slane %v533, %v579
        %v581 = vlaneseq
        %v582 = vshrl.u32 %v581, 7
        %v583 = vsub.s32 4, %v582
        %v584 = vrot.slane %v533, %v583
        %v585 = vlaneseq
        %v586 = vshrl.u32 %v585, 7
        %v587 = vsub.s32 5, %v586
        %v588 = vrot.slane %v533, %v587
        %v589 = vlaneseq
        %v590 = vshrl.u32 %v589, 7
        %v591 = vsub.s32 6, %v590
        %v592 = vrot.slane %v533, %v591
        %v593 = vlaneseq
        %v594 = vshrl.u32 %v593, 7
        %v595 = vsub.s32 7, %v594
        %v596 = vrot.slane %v533, %v595
        %v597 = vlaneseq
        %v598 = vshrl.u32 %v597, 7
        %v599 = vsub.s32 0, %v598
        %v600 = vrot.slane %v534, %v599
        %v601 = vlaneseq
        %v602 = vshrl.u32 %v601, 7
        %v603 = vsub.s32 1, %v602
        %v604 = vrot.slane %v534, %v603
        %v605 = vlaneseq
        %v606 = vshrl.u32 %v605, 7
        %v607 = vsub.s32 2, %v606
        %v608 = vrot.slane %v534, %v607
        %v609 = vlaneseq
        %v610 = vshrl.u32 %v609, 7
        %v611 = vsub.s32 3, %v610
        %v612 = vrot.slane %v534, %v611
        %v613 = vlaneseq
        %v614 = vshrl.u32 %v613, 7
        %v615 = vsub.s32 4, %v614
        %v616 = vrot.slane %v534, %v615
        %v617 = vlaneseq
        %v618 = vshrl.u32 %v617, 7
        %v619 = vsub.s32 5, %v618
        %v620 = vrot.slane %v534, %v619
        %v621 = vlaneseq
        %v622 = vshrl.u32 %v621, 7
        %v623 = vsub.s32 6, %v622
        %v624 = vrot.slane %v534, %v623
        %v625 = vlaneseq
        %v626 = vshrl.u32 %v625, 7
        %v627 = vsub.s32 7, %v626
        %v628 = vrot.slane %v534, %v627
        %v629 = vlaneseq
        %v630 = vshrl.u32 %v629, 7
        %v631 = vsub.s32 0, %v630
        %v632 = vrot.slane %v535, %v631
        %v633 = vlaneseq
        %v634 = vshrl.u32 %v633, 7
        %v635 = vsub.s32 1, %v634
        %v636 = vrot.slane %v535, %v635
        %v637 = vlaneseq
        %v638 = vshrl.u32 %v637, 7
        %v639 = vsub.s32 2, %v638
        %v640 = vrot.slane %v535, %v639
        %v641 = vlaneseq
        %v642 = vshrl.u32 %v641, 7
        %v643 = vsub.s32 3, %v642
        %v644 = vrot.slane %v535, %v643
        %v645 = vlaneseq
        %v646 = vshrl.u32 %v645, 7
        %v647 = vsub.s32 4, %v646
        %v648 = vrot.slane %v535, %v647
        %v649 = vlaneseq
        %v650 = vshrl.u32 %v649, 7
        %v651 = vsub.s32 5, %v650
        %v652 = vrot.slane %v535, %v651
        %v653 = vlaneseq
        %v654 = vshrl.u32 %v653, 7
        %v655 = vsub.s32 6, %v654
        %v656 = vrot.slane %v535, %v655
        %v657 = vlaneseq
        %v658 = vshrl.u32 %v657, 7
        %v659 = vsub.s32 7, %v658
        %v660 = vrot.slane %v535, %v659
        %v661 = vlaneseq
        %v662 = vshrl.u32 %v661, 7
        %v663 = vsub.s32 0, %v662
        %v664 = vrot.slane %v536, %v663
        %v665 = vlaneseq
        %v666 = vshrl.u32 %v665, 7
        %v667 = vsub.s32 1, %v666
        %v668 = vrot.slane %v536, %v667
        %v669 = vlaneseq
        %v670 = vshrl.u32 %v669, 7
        %v671 = vsub.s32 2, %v670
        %v672 = vrot.slane %v536, %v671
        %v673 = vlaneseq
        %v674 = vshrl.u32 %v673, 7
        %v675 = vsub.s32 3, %v674
        %v676 = vrot.slane %v536, %v675
        %v677 = vlaneseq
        %v678 = vshrl.u32 %v677, 7
        %v679 = vsub.s32 4, %v678
        %v680 = vrot.slane %v536, %v679
        %v681 = vlaneseq
        %v682 = vshrl.u32 %v681, 7
        %v683 = vsub.s32 5, %v682
        %v684 = vrot.slane %v536, %v683
        %v685 = vlaneseq
        %v686 = vshrl.u32 %v685, 7
        %v687 = vsub.s32 6, %v686
        %v688 = vrot.slane %v536, %v687
        %v689 = vlaneseq
        %v690 = vshrl.u32 %v689, 7
        %v691 = vsub.s32 7, %v690
        %v692 = vrot.slane %v536, %v691
        %v693 = vlaneseq
        %v694 = vshrl.u32 %v693, 7
        %v695 = vsub.s32 0, %v694
        %v696 = vrot.slane %v537, %v695
        %v697 = vlaneseq
        %v698 = vshrl.u32 %v697, 7
        %v699 = vsub.s32 1, %v698
        %v700 = vrot.slane %v537, %v699
        %v701 = vlaneseq
        %v702 = vshrl.u32 %v701, 7
        %v703 = vsub.s32 2, %v702
        %v704 = vrot.slane %v537, %v703
        %v705 = vlaneseq
        %v706 = vshrl.u32 %v705, 7
        %v707 = vsub.s32 3, %v706
        %v708 = vrot.slane %v537, %v707
        %v709 = vlaneseq
        %v710 = vshrl.u32 %v709, 7
        %v711 = vsub.s32 4, %v710
        %v712 = vrot.slane %v537, %v711
        %v713 = vlaneseq
        %v714 = vshrl.u32 %v713, 7
        %v715 = vsub.s32 5, %v714
        %v716 = vrot.slane %v537, %v715
        %v717 = vlaneseq
        %v718 = vshrl.u32 %v717, 7
        %v719 = vsub.s32 6, %v718
        %v720 = vrot.slane %v537, %v719
        %v721 = vlaneseq
        %v722 = vshrl.u32 %v721, 7
        %v723 = vsub.s32 7, %v722
        %v724 = vrot.slane %v537, %v723
        %v725 = vlaneseq
        %v726 = vshrl.u32 %v725, 7
        %v727 = vsub.s32 0, %v726
        %v728 = vrot.slane %v538, %v727
        %v729 = vlaneseq
        %v730 = vshrl.u32 %v729, 7
        %v731 = vsub.s32 1, %v730
        %v732 = vrot.slane %v538, %v731
        %v733 = vlaneseq
        %v734 = vshrl.u32 %v733, 7
        %v735 = vsub.s32 2, %v734
        %v736 = vrot.slane %v538, %v735
        %v737 = vlaneseq
        %v738 = vshrl.u32 %v737, 7
        %v739 = vsub.s32 3, %v738
        %v740 = vrot.slane %v538, %v739
        %v741 = vlaneseq
        %v742 = vshrl.u32 %v741, 7
        %v743 = vsub.s32 4, %v742
        %v744 = vrot.slane %v538, %v743
        %v745 = vlaneseq
        %v746 = vshrl.u32 %v745, 7
        %v747 = vsub.s32 5, %v746
        %v748 = vrot.slane %v538, %v747
        %v749 = vlaneseq
        %v750 = vshrl.u32 %v749, 7
        %v751 = vsub.s32 6, %v750
        %v752 = vrot.slane %v538, %v751
        %v753 = vlaneseq
        %v754 = vshrl.u32 %v753, 7
        %v755 = vsub.s32 7, %v754
        %v756 = vrot.slane %v538, %v755
        %v757 = vlaneseq
        %v758 = vshrl.u32 %v757, 7
        %v759 = vsub.s32 0, %v758
        %v760 = vrot.slane %v539, %v759
        %v761 = vlaneseq
        %v762 = vshrl.u32 %v761, 7
        %v763 = vsub.s32 1, %v762
        %v764 = vrot.slane %v539, %v763
        %v765 = vlaneseq
        %v766 = vshrl.u32 %v765, 7
        %v767 = vsub.s32 2, %v766
        %v768 = vrot.slane %v539, %v767
        %v769 = vlaneseq
        %v770 = vshrl.u32 %v769, 7
        %v771 = vsub.s32 3, %v770
        %v772 = vrot.slane %v539, %v771
        %v773 = vlaneseq
        %v774 = vshrl.u32 %v773, 7
        %v775 = vsub.s32 4, %v774
        %v776 = vrot.slane %v539, %v775
        %v777 = vlaneseq
        %v778 = vshrl.u32 %v777, 7
        %v779 = vsub.s32 5, %v778
        %v780 = vrot.slane %v539, %v779
        %v781 = vlaneseq
        %v782 = vshrl.u32 %v781, 7
        %v783 = vsub.s32 6, %v782
        %v784 = vrot.slane %v539, %v783
        %v785 = vlaneseq
        %v786 = vshrl.u32 %v785, 7
        %v787 = vsub.s32 7, %v786
        %v788 = vrot.slane %v539, %v787
        %v789 = vlaneseq
        %v790 = vshrl.u32 %v789, 7
        %v791 = vsub.s32 0, %v790
        %v792 = vrot.slane %v540, %v791
        %v793 = vlaneseq
        %v794 = vshrl.u32 %v793, 7
        %v795 = vsub.s32 1, %v794
        %v796 = vrot.slane %v540, %v795
        %v797 = vlaneseq
        %v798 = vshrl.u32 %v797, 7
        %v799 = vsub.s32 2, %v798
        %v800 = vrot.slane %v540, %v799
        %v801 = vlaneseq
        %v802 = vshrl.u32 %v801, 7
        %v803 = vsub.s32 3, %v802
        %v804 = vrot.slane %v540, %v803
        %v805 = vlaneseq
        %v806 = vshrl.u32 %v805, 7
        %v807 = vsub.s32 4, %v806
        %v808 = vrot.slane %v540, %v807
        %v809 = vlaneseq
        %v810 = vshrl.u32 %v809, 7
        %v811 = vsub.s32 5, %v810
        %v812 = vrot.slane %v540, %v811
        %v813 = vlaneseq
        %v814 = vshrl.u32 %v813, 7
        %v815 = vsub.s32 6, %v814
        %v816 = vrot.slane %v540, %v815
        %v817 = vlaneseq
        %v818 = vshrl.u32 %v817, 7
        %v819 = vsub.s32 7, %v818
        %v820 = vrot.slane %v540, %v819
        %v821 = vlaneseq
        %v822 = vshrl.u32 %v821, 7
        %v823 = vsub.s32 0, %v822
        %v824 = vrot.slane %v541, %v823
        %v825 = vlaneseq
        %v826 = vshrl.u32 %v825, 7
        %v827 = vsub.s32 1, %v826
        %v828 = vrot.slane %v541, %v827
        %v829 = vlaneseq
        %v830 = vshrl.u32 %v829, 7
        %v831 = vsub.s32 2, %v830
        %v832 = vrot.slane %v541, %v831
        %v833 = vlaneseq
        %v834 = vshrl.u32 %v833, 7
        %v835 = vsub.s32 3, %v834
        %v836 = vrot.slane %v541, %v835
        %v837 = vlaneseq
        %v838 = vshrl.u32 %v837, 7
        %v839 = vsub.s32 4, %v838
        %v840 = vrot.slane %v541, %v839
        %v841 = vlaneseq
        %v842 = vshrl.u32 %v841, 7
        %v843 = vsub.s32 5, %v842
        %v844 = vrot.slane %v541, %v843
        %v845 = vlaneseq
        %v846 = vshrl.u32 %v845, 7
        %v847 = vsub.s32 6, %v846
        %v848 = vrot.slane %v541, %v847
        %v849 = vlaneseq
        %v850 = vshrl.u32 %v849, 7
        %v851 = vsub.s32 7, %v850
        %v852 = vrot.slane %v541, %v851
        %v853 = vlaneseq
        %v854 = vshrl.u32 %v853, 7
        %v855 = vsub.s32 0, %v854
        %v856 = vrot.slane %v542, %v855
        %v857 = vlaneseq
        %v858 = vshrl.u32 %v857, 7
        %v859 = vsub.s32 1, %v858
        %v860 = vrot.slane %v542, %v859
        %v861 = vlaneseq
        %v862 = vshrl.u32 %v861, 7
        %v863 = vsub.s32 2, %v862
        %v864 = vrot.slane %v542, %v863
        %v865 = vlaneseq
        %v866 = vshrl.u32 %v865, 7
        %v867 = vsub.s32 3, %v866
        %v868 = vrot.slane %v542, %v867
        %v869 = vlaneseq
        %v870 = vshrl.u32 %v869, 7
        %v871 = vsub.s32 4, %v870
        %v872 = vrot.slane %v542, %v871
        %v873 = vlaneseq
        %v874 = vshrl.u32 %v873, 7
        %v875 = vsub.s32 5, %v874
        %v876 = vrot.slane %v542, %v875
        %v877 = vlaneseq
        %v878 = vshrl.u32 %v877, 7
        %v879 = vsub.s32 6, %v878
        %v880 = vrot.slane %v542, %v879
        %v881 = vlaneseq
        %v882 = vshrl.u32 %v881, 7
        %v883 = vsub.s32 7, %v882
        %v884 = vrot.slane %v542, %v883
        %v885 = vlaneseq
        %v886 = vshrl.u32 %v885, 7
        %v887 = vsub.s32 0, %v886
        %v888 = vrot.slane %v543, %v887
        %v889 = vlaneseq
        %v890 = vshrl.u32 %v889, 7
        %v891 = vsub.s32 1, %v890
        %v892 = vrot.slane %v543, %v891
        %v893 = vlaneseq
        %v894 = vshrl.u32 %v893, 7
        %v895 = vsub.s32 2, %v894
        %v896 = vrot.slane %v543, %v895
        %v897 = vlaneseq
        %v898 = vshrl.u32 %v897, 7
        %v899 = vsub.s32 3, %v898
        %v900 = vrot.slane %v543, %v899
        %v901 = vlaneseq
        %v902 = vshrl.u32 %v901, 7
        %v903 = vsub.s32 4, %v902
        %v904 = vrot.slane %v543, %v903
        %v905 = vlaneseq
        %v906 = vshrl.u32 %v905, 7
        %v907 = vsub.s32 5, %v906
        %v908 = vrot.slane %v543, %v907
        %v909 = vlaneseq
        %v910 = vshrl.u32 %v909, 7
        %v911 = vsub.s32 6, %v910
        %v912 = vrot.slane %v543, %v911
        %v913 = vlaneseq
        %v914 = vshrl.u32 %v913, 7
        %v915 = vsub.s32 7, %v914
        %v916 = vrot.slane %v543, %v915
        %v917 = vlaneseq
        %v918 = vshrl.u32 %v917, 7
        %v919 = vsub.s32 0, %v918
        %v920 = vrot.slane %v544, %v919
        %v921 = vlaneseq
        %v922 = vshrl.u32 %v921, 7
        %v923 = vsub.s32 1, %v922
        %v924 = vrot.slane %v544, %v923
        %v925 = vlaneseq
        %v926 = vshrl.u32 %v925, 7
        %v927 = vsub.s32 2, %v926
        %v928 = vrot.slane %v544, %v927
        %v929 = vlaneseq
        %v930 = vshrl.u32 %v929, 7
        %v931 = vsub.s32 3, %v930
        %v932 = vrot.slane %v544, %v931
        %v933 = vlaneseq
        %v934 = vshrl.u32 %v933, 7
        %v935 = vsub.s32 4, %v934
        %v936 = vrot.slane %v544, %v935
        %v937 = vlaneseq
        %v938 = vshrl.u32 %v937, 7
        %v939 = vsub.s32 5, %v938
        %v940 = vrot.slane %v544, %v939
        %v941 = vlaneseq
        %v942 = vshrl.u32 %v941, 7
        %v943 = vsub.s32 6, %v942
        %v944 = vrot.slane %v544, %v943
        %v945 = vlaneseq
        %v946 = vshrl.u32 %v945, 7
        %v947 = vsub.s32 7, %v946
        %v948 = vrot.slane %v544, %v947
        %v949 = vlaneseq
        %v950 = vshrl.u32 %v949, 7
        %v951 = vsub.s32 0, %v950
        %v952 = vrot.slane %v545, %v951
        %v953 = vlaneseq
        %v954 = vshrl.u32 %v953, 7
        %v955 = vsub.s32 1, %v954
        %v956 = vrot.slane %v545, %v955
        %v957 = vlaneseq
        %v958 = vshrl.u32 %v957, 7
        %v959 = vsub.s32 2, %v958
        %v960 = vrot.slane %v545, %v959
        %v961 = vlaneseq
        %v962 = vshrl.u32 %v961, 7
        %v963 = vsub.s32 3, %v962
        %v964 = vrot.slane %v545, %v963
        %v965 = vlaneseq
        %v966 = vshrl.u32 %v965, 7
        %v967 = vsub.s32 4, %v966
        %v968 = vrot.slane %v545, %v967
        %v969 = vlaneseq
        %v970 = vshrl.u32 %v969, 7
        %v971 = vsub.s32 5, %v970
        %v972 = vrot.slane %v545, %v971
        %v973 = vlaneseq
        %v974 = vshrl.u32 %v973, 7
        %v975 = vsub.s32 6, %v974
        %v976 = vrot.slane %v545, %v975
        %v977 = vlaneseq
        %v978 = vshrl.u32 %v977, 7
        %v979 = vsub.s32 7, %v978
        %v980 = vrot.slane %v545, %v979
        %v981 = vlaneseq
        %v982 = vshrl.u32 %v981, 7
        %v983 = vsub.s32 0, %v982
        %v984 = vrot.slane %v546, %v983
        %v985 = vlaneseq
        %v986 = vshrl.u32 %v985, 7
        %v987 = vsub.s32 1, %v986
        %v988 = vrot.slane %v546, %v987
        %v989 = vlaneseq
        %v990 = vshrl.u32 %v989, 7
        %v991 = vsub.s32 2, %v990
        %v992 = vrot.slane %v546, %v991
        %v993 = vlaneseq
        %v994 = vshrl.u32 %v993, 7
        %v995 = vsub.s32 3, %v994
        %v996 = vrot.slane %v546, %v995
        %v997 = vlaneseq
        %v998 = vshrl.u32 %v997, 7
        %v999 = vsub.s32 4, %v998
        %v1000 = vrot.slane %v546, %v999
        %v1001 = vlaneseq
        %v1002 = vshrl.u32 %v1001, 7
        %v1003 = vsub.s32 5, %v1002
        %v1004 = vrot.slane %v546, %v1003
        %v1005 = vlaneseq
        %v1006 = vshrl.u32 %v1005, 7
        %v1007 = vsub.s32 6, %v1006
        %v1008 = vrot.slane %v546, %v1007
        %v1009 = vlaneseq
        %v1010 = vshrl.u32 %v1009, 7
        %v1011 = vsub.s32 7, %v1010
        %v1012 = vrot.slane %v546, %v1011
        %v1013 = vlaneseq
        %v1014 = vshrl.u32 %v1013, 7
        %v1015 = vsub.s32 0, %v1014
        %v1016 = vrot.slane %v547, %v1015
        %v1017 = vlaneseq
        %v1018 = vshrl.u32 %v1017, 7
        %v1019 = vsub.s32 1, %v1018
        %v1020 = vrot.slane %v547, %v1019
        %v1021 = vlaneseq
        %v1022 = vshrl.u32 %v1021, 7
        %v1023 = vsub.s32 2, %v1022
        %v1024 = vrot.slane %v547, %v1023
        %v1025 = vlaneseq
        %v1026 = vshrl.u32 %v1025, 7
        %v1027 = vsub.s32 3, %v1026
        %v1028 = vrot.slane %v547, %v1027
        %v1029 = vlaneseq
        %v1030 = vshrl.u32 %v1029, 7
        %v1031 = vsub.s32 4, %v1030
        %v1032 = vrot.slane %v547, %v1031
        %v1033 = vlaneseq
        %v1034 = vshrl.u32 %v1033, 7
        %v1035 = vsub.s32 5, %v1034
        %v1036 = vrot.slane %v547, %v1035
        %v1037 = vlaneseq
        %v1038 = vshrl.u32 %v1037, 7
        %v1039 = vsub.s32 6, %v1038
        %v1040 = vrot.slane %v547, %v1039
        %v1041 = vlaneseq
        %v1042 = vshrl.u32 %v1041, 7
        %v1043 = vsub.s32 7, %v1042
        %v1044 = vrot.slane %v547, %v1043
        %v1045 = vlaneseq
        %v1046 = vshrl.u32 %v1045, 7
        %v1047 = vsub.s32 0, %v1046
        %v1048 = vrot.slane %v548, %v1047
        %v1049 = vlaneseq
        %v1050 = vshrl.u32 %v1049, 7
        %v1051 = vsub.s32 1, %v1050
        %v1052 = vrot.slane %v548, %v1051
        %v1053 = vlaneseq
        %v1054 = vshrl.u32 %v1053, 7
        %v1055 = vsub.s32 2, %v1054
        %v1056 = vrot.slane %v548, %v1055
        %v1057 = vlaneseq
        %v1058 = vshrl.u32 %v1057, 7
        %v1059 = vsub.s32 3, %v1058
        %v1060 = vrot.slane %v548, %v1059
        %v1061 = vlaneseq
        %v1062 = vshrl.u32 %v1061, 7
        %v1063 = vsub.s32 4, %v1062
        %v1064 = vrot.slane %v548, %v1063
        %v1065 = vlaneseq
        %v1066 = vshrl.u32 %v1065, 7
        %v1067 = vsub.s32 5, %v1066
        %v1068 = vrot.slane %v548, %v1067
        %v1069 = vlaneseq
        %v1070 = vshrl.u32 %v1069, 7
        %v1071 = vsub.s32 6, %v1070
        %v1072 = vrot.slane %v548, %v1071
        %v1073 = vlaneseq
        %v1074 = vshrl.u32 %v1073, 7
        %v1075 = vsub.s32 7, %v1074
        %v1076 = vrot.slane %v548, %v1075
        %v1333 = vunpack.c.l.b16 %v405
        %v1334 = vunpack.c.h.b16 %v405
        %v1335 = vunpack.c.l.b16 %v406
        %v1336 = vunpack.c.h.b16 %v406
        %v1337 = vunpack.c.l.b16 %v407
        %v1338 = vunpack.c.h.b16 %v407
        %v1339 = vunpack.c.l.b16 %v408
        %v1340 = vunpack.c.h.b16 %v408
        %v1341 = vunpack.c.l.b16 %v409
        %v1342 = vunpack.c.h.b16 %v409
        %v1343 = vunpack.c.l.b16 %v410
        %v1344 = vunpack.c.h.b16 %v410
        %v1345 = vunpack.c.l.b16 %v411
        %v1346 = vunpack.c.h.b16 %v411
        %v1347 = vunpack.c.l.b16 %v412
        %v1348 = vunpack.c.h.b16 %v412
        %v1349 = vunpack.c.l.b16 %v413
        %v1350 = vunpack.c.h.b16 %v413
        %v1351 = vunpack.c.l.b16 %v414
        %v1352 = vunpack.c.h.b16 %v414
        %v1353 = vunpack.c.l.b16 %v415
        %v1354 = vunpack.c.h.b16 %v415
        %v1355 = vunpack.c.l.b16 %v416
        %v1356 = vunpack.c.h.b16 %v416
        %v1357 = vunpack.c.l.b16 %v417
        %v1358 = vunpack.c.h.b16 %v417
        %v1359 = vunpack.c.l.b16 %v418
        %v1360 = vunpack.c.h.b16 %v418
        %v1361 = vunpack.c.l.b16 %v419
        %v1362 = vunpack.c.h.b16 %v419
        %v1363 = vunpack.c.l.b16 %v420
        %v1364 = vunpack.c.h.b16 %v420
        %v1365 = vunpack.c.l.b16 %v421
        %v1366 = vunpack.c.h.b16 %v421
        %v1367 = vunpack.c.l.b16 %v422
        %v1368 = vunpack.c.h.b16 %v422
        %v1369 = vunpack.c.l.b16 %v423
        %v1370 = vunpack.c.h.b16 %v423
        %v1371 = vunpack.c.l.b16 %v424
        %v1372 = vunpack.c.h.b16 %v424
        %v1373 = vunpack.c.l.b16 %v425
        %v1374 = vunpack.c.h.b16 %v425
        %v1375 = vunpack.c.l.b16 %v426
        %v1376 = vunpack.c.h.b16 %v426
        %v1377 = vunpack.c.l.b16 %v427
        %v1378 = vunpack.c.h.b16 %v427
        %v1379 = vunpack.c.l.b16 %v428
        %v1380 = vunpack.c.h.b16 %v428
        %v1381 = vunpack.c.l.b16 %v429
        %v1382 = vunpack.c.h.b16 %v429
        %v1383 = vunpack.c.l.b16 %v430
        %v1384 = vunpack.c.h.b16 %v430
        %v1385 = vunpack.c.l.b16 %v431
        %v1386 = vunpack.c.h.b16 %v431
        %v1387 = vunpack.c.l.b16 %v432
        %v1388 = vunpack.c.h.b16 %v432
        %v1389 = vunpack.c.l.b16 %v433
        %v1390 = vunpack.c.h.b16 %v433
        %v1391 = vunpack.c.l.b16 %v434
        %v1392 = vunpack.c.h.b16 %v434
        %v1393 = vunpack.c.l.b16 %v435
        %v1394 = vunpack.c.h.b16 %v435
        %v1395 = vunpack.c.l.b16 %v436
        %v1396 = vunpack.c.h.b16 %v436
        %v1397 = vunpack.c.l.b16 %v437
        %v1398 = vunpack.c.h.b16 %v437
        %v1399 = vunpack.c.l.b16 %v438
        %v1400 = vunpack.c.h.b16 %v438
        %v1401 = vunpack.c.l.b16 %v439
        %v1402 = vunpack.c.h.b16 %v439
        %v1403 = vunpack.c.l.b16 %v440
        %v1404 = vunpack.c.h.b16 %v440
        %v1405 = vunpack.c.l.b16 %v441
        %v1406 = vunpack.c.h.b16 %v441
        %v1407 = vunpack.c.l.b16 %v442
        %v1408 = vunpack.c.h.b16 %v442
        %v1409 = vunpack.c.l.b16 %v443
        %v1410 = vunpack.c.h.b16 %v443
        %v1411 = vunpack.c.l.b16 %v444
        %v1412 = vunpack.c.h.b16 %v444
        %v1413 = vunpack.c.l.b16 %v445
        %v1414 = vunpack.c.h.b16 %v445
        %v1415 = vunpack.c.l.b16 %v446
        %v1416 = vunpack.c.h.b16 %v446
        %v1417 = vunpack.c.l.b16 %v447
        %v1418 = vunpack.c.h.b16 %v447
        %v1419 = vunpack.c.l.b16 %v448
        %v1420 = vunpack.c.h.b16 %v448
        %v1421 = vunpack.c.l.b16 %v449
        %v1422 = vunpack.c.h.b16 %v449
        %v1423 = vunpack.c.l.b16 %v450
        %v1424 = vunpack.c.h.b16 %v450
        %v1425 = vunpack.c.l.b16 %v451
        %v1426 = vunpack.c.h.b16 %v451
        %v1427 = vunpack.c.l.b16 %v452
        %v1428 = vunpack.c.h.b16 %v452
        %v1429 = vunpack.c.l.b16 %v453
        %v1430 = vunpack.c.h.b16 %v453
        %v1431 = vunpack.c.l.b16 %v454
        %v1432 = vunpack.c.h.b16 %v454
        %v1433 = vunpack.c.l.b16 %v455
        %v1434 = vunpack.c.h.b16 %v455
        %v1435 = vunpack.c.l.b16 %v456
        %v1436 = vunpack.c.h.b16 %v456
        %v1437 = vunpack.c.l.b16 %v457
        %v1438 = vunpack.c.h.b16 %v457
        %v1439 = vunpack.c.l.b16 %v458
        %v1440 = vunpack.c.h.b16 %v458
        %v1441 = vunpack.c.l.b16 %v459
        %v1442 = vunpack.c.h.b16 %v459
        %v1443 = vunpack.c.l.b16 %v460
        %v1444 = vunpack.c.h.b16 %v460
        %v1445 = vunpack.c.l.b16 %v461
        %v1446 = vunpack.c.h.b16 %v461
        %v1447 = vunpack.c.l.b16 %v462
        %v1448 = vunpack.c.h.b16 %v462
        %v1449 = vunpack.c.l.b16 %v463
        %v1450 = vunpack.c.h.b16 %v463
        %v1451 = vunpack.c.l.b16 %v464
        %v1452 = vunpack.c.h.b16 %v464
        %v1453 = vunpack.c.l.b16 %v465
        %v1454 = vunpack.c.h.b16 %v465
        %v1455 = vunpack.c.l.b16 %v466
        %v1456 = vunpack.c.h.b16 %v466
        %v1457 = vunpack.c.l.b16 %v467
        %v1458 = vunpack.c.h.b16 %v467
        %v1459 = vunpack.c.l.b16 %v468
        %v1460 = vunpack.c.h.b16 %v468
        %v1461 = vunpack.c.l.b16 %v469
        %v1462 = vunpack.c.h.b16 %v469
        %v1463 = vunpack.c.l.b16 %v470
        %v1464 = vunpack.c.h.b16 %v470
        %v1465 = vunpack.c.l.b16 %v471
        %v1466 = vunpack.c.h.b16 %v471
        %v1467 = vunpack.c.l.b16 %v472
        %v1468 = vunpack.c.h.b16 %v472
        %v1469 = vunpack.c.l.b16 %v473
        %v1470 = vunpack.c.h.b16 %v473
        %v1471 = vunpack.c.l.b16 %v474
        %v1472 = vunpack.c.h.b16 %v474
        %v1473 = vunpack.c.l.b16 %v475
        %v1474 = vunpack.c.h.b16 %v475
        %v1475 = vunpack.c.l.b16 %v476
        %v1476 = vunpack.c.h.b16 %v476
        %v1477 = vunpack.c.l.b16 %v477
        %v1478 = vunpack.c.h.b16 %v477
        %v1479 = vunpack.c.l.b16 %v478
        %v1480 = vunpack.c.h.b16 %v478
        %v1481 = vunpack.c.l.b16 %v479
        %v1482 = vunpack.c.h.b16 %v479
        %v1483 = vunpack.c.l.b16 %v480
        %v1484 = vunpack.c.h.b16 %v480
        %v1485 = vunpack.c.l.b16 %v481
        %v1486 = vunpack.c.h.b16 %v481
        %v1487 = vunpack.c.l.b16 %v482
        %v1488 = vunpack.c.h.b16 %v482
        %v1489 = vunpack.c.l.b16 %v483
        %v1490 = vunpack.c.h.b16 %v483
        %v1491 = vunpack.c.l.b16 %v484
        %v1492 = vunpack.c.h.b16 %v484
        %v1493 = vunpack.c.l.b16 %v485
        %v1494 = vunpack.c.h.b16 %v485
        %v1495 = vunpack.c.l.b16 %v486
        %v1496 = vunpack.c.h.b16 %v486
        %v1497 = vunpack.c.l.b16 %v487
        %v1498 = vunpack.c.h.b16 %v487
        %v1499 = vunpack.c.l.b16 %v488
        %v1500 = vunpack.c.h.b16 %v488
        %v1501 = vunpack.c.l.b16 %v489
        %v1502 = vunpack.c.h.b16 %v489
        %v1503 = vunpack.c.l.b16 %v490
        %v1504 = vunpack.c.h.b16 %v490
        %v1505 = vunpack.c.l.b16 %v491
        %v1506 = vunpack.c.h.b16 %v491
        %v1507 = vunpack.c.l.b16 %v492
        %v1508 = vunpack.c.h.b16 %v492
        %v1509 = vunpack.c.l.b16 %v493
        %v1510 = vunpack.c.h.b16 %v493
        %v1511 = vunpack.c.l.b16 %v494
        %v1512 = vunpack.c.h.b16 %v494
        %v1513 = vunpack.c.l.b16 %v495
        %v1514 = vunpack.c.h.b16 %v495
        %v1515 = vunpack.c.l.b16 %v496
        %v1516 = vunpack.c.h.b16 %v496
        %v1517 = vunpack.c.l.b16 %v497
        %v1518 = vunpack.c.h.b16 %v497
        %v1519 = vunpack.c.l.b16 %v498
        %v1520 = vunpack.c.h.b16 %v498
        %v1521 = vunpack.c.l.b16 %v499
        %v1522 = vunpack.c.h.b16 %v499
        %v1523 = vunpack.c.l.b16 %v500
        %v1524 = vunpack.c.h.b16 %v500
        %v1525 = vunpack.c.l.b16 %v501
        %v1526 = vunpack.c.h.b16 %v501
        %v1527 = vunpack.c.l.b16 %v502
        %v1528 = vunpack.c.h.b16 %v502
        %v1529 = vunpack.c.l.b16 %v503
        %v1530 = vunpack.c.h.b16 %v503
        %v1531 = vunpack.c.l.b16 %v504
        %v1532 = vunpack.c.h.b16 %v504
        %v1533 = vunpack.c.l.b16 %v505
        %v1534 = vunpack.c.h.b16 %v505
        %v1535 = vunpack.c.l.b16 %v506
        %v1536 = vunpack.c.h.b16 %v506
        %v1537 = vunpack.c.l.b16 %v507
        %v1538 = vunpack.c.h.b16 %v507
        %v1539 = vunpack.c.l.b16 %v508
        %v1540 = vunpack.c.h.b16 %v508
        %v1541 = vunpack.c.l.b16 %v509
        %v1542 = vunpack.c.h.b16 %v509
        %v1543 = vunpack.c.l.b16 %v510
        %v1544 = vunpack.c.h.b16 %v510
        %v1545 = vunpack.c.l.b16 %v511
        %v1546 = vunpack.c.h.b16 %v511
        %v1547 = vunpack.c.l.b16 %v512
        %v1548 = vunpack.c.h.b16 %v512
        %v1549 = vunpack.c.l.b16 %v513
        %v1550 = vunpack.c.h.b16 %v513
        %v1551 = vunpack.c.l.b16 %v514
        %v1552 = vunpack.c.h.b16 %v514
        %v1553 = vunpack.c.l.b16 %v515
        %v1554 = vunpack.c.h.b16 %v515
        %v1555 = vunpack.c.l.b16 %v516
        %v1556 = vunpack.c.h.b16 %v516
        %v1557 = vunpack.c.l.b16 %v517
        %v1558 = vunpack.c.h.b16 %v517
        %v1559 = vunpack.c.l.b16 %v518
        %v1560 = vunpack.c.h.b16 %v518
        %v1561 = vunpack.c.l.b16 %v519
        %v1562 = vunpack.c.h.b16 %v519
        %v1563 = vunpack.c.l.b16 %v520
        %v1564 = vunpack.c.h.b16 %v520
        %v1565 = vunpack.c.l.b16 %v521
        %v1566 = vunpack.c.h.b16 %v521
        %v1567 = vunpack.c.l.b16 %v522
        %v1568 = vunpack.c.h.b16 %v522
        %v1569 = vunpack.c.l.b16 %v523
        %v1570 = vunpack.c.h.b16 %v523
        %v1571 = vunpack.c.l.b16 %v524
        %v1572 = vunpack.c.h.b16 %v524
        %v1573 = vunpack.c.l.b16 %v525
        %v1574 = vunpack.c.h.b16 %v525
        %v1575 = vunpack.c.l.b16 %v526
        %v1576 = vunpack.c.h.b16 %v526
        %v1577 = vunpack.c.l.b16 %v527
        %v1578 = vunpack.c.h.b16 %v527
        %v1579 = vunpack.c.l.b16 %v528
        %v1580 = vunpack.c.h.b16 %v528
        %v1581 = vunpack.c.l.b16 %v529
        %v1582 = vunpack.c.h.b16 %v529
        %v1583 = vunpack.c.l.b16 %v530
        %v1584 = vunpack.c.h.b16 %v530
        %v1585 = vunpack.c.l.b16 %v531
        %v1586 = vunpack.c.h.b16 %v531
        %v1587 = vunpack.c.l.b16 %v532
        %v1588 = vunpack.c.h.b16 %v532
        %v1589 = vpack.c.b16 %v1461, %v1333
        %v1590 = vpack.c.b16 %v1462, %v1334
        %v1591 = vpack.c.b16 %v1463, %v1335
        %v1592 = vpack.c.b16 %v1464, %v1336
        %v1593 = vpack.c.b16 %v1465, %v1337
        %v1594 = vpack.c.b16 %v1466, %v1338
        %v1595 = vpack.c.b16 %v1467, %v1339
        %v1596 = vpack.c.b16 %v1468, %v1340
        %v1597 = vpack.c.b16 %v1469, %v1341
        %v1598 = vpack.c.b16 %v1470, %v1342
        %v1599 = vpack.c.b16 %v1471, %v1343
        %v1600 = vpack.c.b16 %v1472, %v1344
        %v1601 = vpack.c.b16 %v1473, %v1345
        %v1602 = vpack.c.b16 %v1474, %v1346
        %v1603 = vpack.c.b16 %v1475, %v1347
        %v1604 = vpack.c.b16 %v1476, %v1348
        %v1605 = vpack.c.b16 %v1477, %v1349
        %v1606 = vpack.c.b16 %v1478, %v1350
        %v1607 = vpack.c.b16 %v1479, %v1351
        %v1608 = vpack.c.b16 %v1480, %v1352
        %v1609 = vpack.c.b16 %v1481, %v1353
        %v1610 = vpack.c.b16 %v1482, %v1354
        %v1611 = vpack.c.b16 %v1483, %v1355
        %v1612 = vpack.c.b16 %v1484, %v1356
        %v1613 = vpack.c.b16 %v1485, %v1357
        %v1614 = vpack.c.b16 %v1486, %v1358
        %v1615 = vpack.c.b16 %v1487, %v1359
        %v1616 = vpack.c.b16 %v1488, %v1360
        %v1617 = vpack.c.b16 %v1489, %v1361
        %v1618 = vpack.c.b16 %v1490, %v1362
        %v1619 = vpack.c.b16 %v1491, %v1363
        %v1620 = vpack.c.b16 %v1492, %v1364
        %v1621 = vpack.c.b16 %v1493, %v1365
        %v1622 = vpack.c.b16 %v1494, %v1366
        %v1623 = vpack.c.b16 %v1495, %v1367
        %v1624 = vpack.c.b16 %v1496, %v1368
        %v1625 = vpack.c.b16 %v1497, %v1369
        %v1626 = vpack.c.b16 %v1498, %v1370
        %v1627 = vpack.c.b16 %v1499, %v1371
        %v1628 = vpack.c.b16 %v1500, %v1372
        %v1629 = vpack.c.b16 %v1501, %v1373
        %v1630 = vpack.c.b16 %v1502, %v1374
        %v1631 = vpack.c.b16 %v1503, %v1375
        %v1632 = vpack.c.b16 %v1504, %v1376
        %v1633 = vpack.c.b16 %v1505, %v1377
        %v1634 = vpack.c.b16 %v1506, %v1378
        %v1635 = vpack.c.b16 %v1507, %v1379
        %v1636 = vpack.c.b16 %v1508, %v1380
        %v1637 = vpack.c.b16 %v1509, %v1381
        %v1638 = vpack.c.b16 %v1510, %v1382
        %v1639 = vpack.c.b16 %v1511, %v1383
        %v1640 = vpack.c.b16 %v1512, %v1384
        %v1641 = vpack.c.b16 %v1513, %v1385
        %v1642 = vpack.c.b16 %v1514, %v1386
        %v1643 = vpack.c.b16 %v1515, %v1387
        %v1644 = vpack.c.b16 %v1516, %v1388
        %v1645 = vpack.c.b16 %v1517, %v1389
        %v1646 = vpack.c.b16 %v1518, %v1390
        %v1647 = vpack.c.b16 %v1519, %v1391
        %v1648 = vpack.c.b16 %v1520, %v1392
        %v1649 = vpack.c.b16 %v1521, %v1393
        %v1650 = vpack.c.b16 %v1522, %v1394
        %v1651 = vpack.c.b16 %v1523, %v1395
        %v1652 = vpack.c.b16 %v1524, %v1396
        %v1653 = vpack.c.b16 %v1525, %v1397
        %v1654 = vpack.c.b16 %v1526, %v1398
        %v1655 = vpack.c.b16 %v1527, %v1399
        %v1656 = vpack.c.b16 %v1528, %v1400
        %v1657 = vpack.c.b16 %v1529, %v1401
        %v1658 = vpack.c.b16 %v1530, %v1402
        %v1659 = vpack.c.b16 %v1531, %v1403
        %v1660 = vpack.c.b16 %v1532, %v1404
        %v1661 = vpack.c.b16 %v1533, %v1405
        %v1662 = vpack.c.b16 %v1534, %v1406
        %v1663 = vpack.c.b16 %v1535, %v1407
        %v1664 = vpack.c.b16 %v1536, %v1408
        %v1665 = vpack.c.b16 %v1537, %v1409
        %v1666 = vpack.c.b16 %v1538, %v1410
        %v1667 = vpack.c.b16 %v1539, %v1411
        %v1668 = vpack.c.b16 %v1540, %v1412
        %v1669 = vpack.c.b16 %v1541, %v1413
        %v1670 = vpack.c.b16 %v1542, %v1414
        %v1671 = vpack.c.b16 %v1543, %v1415
        %v1672 = vpack.c.b16 %v1544, %v1416
        %v1673 = vpack.c.b16 %v1545, %v1417
        %v1674 = vpack.c.b16 %v1546, %v1418
        %v1675 = vpack.c.b16 %v1547, %v1419
        %v1676 = vpack.c.b16 %v1548, %v1420
        %v1677 = vpack.c.b16 %v1549, %v1421
        %v1678 = vpack.c.b16 %v1550, %v1422
        %v1679 = vpack.c.b16 %v1551, %v1423
        %v1680 = vpack.c.b16 %v1552, %v1424
        %v1681 = vpack.c.b16 %v1553, %v1425
        %v1682 = vpack.c.b16 %v1554, %v1426
        %v1683 = vpack.c.b16 %v1555, %v1427
        %v1684 = vpack.c.b16 %v1556, %v1428
        %v1685 = vpack.c.b16 %v1557, %v1429
        %v1686 = vpack.c.b16 %v1558, %v1430
        %v1687 = vpack.c.b16 %v1559, %v1431
        %v1688 = vpack.c.b16 %v1560, %v1432
        %v1689 = vpack.c.b16 %v1561, %v1433
        %v1690 = vpack.c.b16 %v1562, %v1434
        %v1691 = vpack.c.b16 %v1563, %v1435
        %v1692 = vpack.c.b16 %v1564, %v1436
        %v1693 = vpack.c.b16 %v1565, %v1437
        %v1694 = vpack.c.b16 %v1566, %v1438
        %v1695 = vpack.c.b16 %v1567, %v1439
        %v1696 = vpack.c.b16 %v1568, %v1440
        %v1697 = vpack.c.b16 %v1569, %v1441
        %v1698 = vpack.c.b16 %v1570, %v1442
        %v1699 = vpack.c.b16 %v1571, %v1443
        %v1700 = vpack.c.b16 %v1572, %v1444
        %v1701 = vpack.c.b16 %v1573, %v1445
        %v1702 = vpack.c.b16 %v1574, %v1446
        %v1703 = vpack.c.b16 %v1575, %v1447
        %v1704 = vpack.c.b16 %v1576, %v1448
        %v1705 = vpack.c.b16 %v1577, %v1449
        %v1706 = vpack.c.b16 %v1578, %v1450
        %v1707 = vpack.c.b16 %v1579, %v1451
        %v1708 = vpack.c.b16 %v1580, %v1452
        %v1709 = vpack.c.b16 %v1581, %v1453
        %v1710 = vpack.c.b16 %v1582, %v1454
        %v1711 = vpack.c.b16 %v1583, %v1455
        %v1712 = vpack.c.b16 %v1584, %v1456
        %v1713 = vpack.c.b16 %v1585, %v1457
        %v1714 = vpack.c.b16 %v1586, %v1458
        %v1715 = vpack.c.b16 %v1587, %v1459
        %v1716 = vpack.c.b16 %v1588, %v1460
        %vm1845 = vcmask 130048
        %v1847 = vsel %vm1845, %v404, 0
        %1849 = vmatprep.subr.bf16.mxu0 0
        %1850 = vmatpush1.bf16.msra.mxu0 0
        %1851 = vmatprep.subr.bf16.mxu0 0
        %1852 = vmatpush1.bf16.msra.mxu0 0
        %1853 = vmatprep.subr.bf16.mxu0 0
        %1854 = vmatpush1.bf16.msra.mxu0 0
        %1855 = vmatprep.subr.bf16.mxu0 0
        %1856 = vmatpush1.bf16.msra.mxu0 0
        %1857 = vmatprep.subr.bf16.mxu0 0
        %1858 = vmatpush1.bf16.msra.mxu0 0
        %1859 = vmatprep.subr.bf16.mxu0 0
        %1860 = vmatpush1.bf16.msra.mxu0 0
        %1861 = vmatprep.subr.bf16.mxu0 0
        %1862 = vmatpush1.bf16.msra.mxu0 0
        %1863 = vmatprep.subr.bf16.mxu0 %v1590
        %1864 = vmatpush1.bf16.msra.mxu0 %v1589
        %1865 = vmatprep.subr.bf16.mxu0 0
        %1866 = vmatpush2.bf16.msra.mxu0 0
        %1867 = vmatprep.subr.bf16.mxu0 0
        %1868 = vmatpush2.bf16.msra.mxu0 0
        %1869 = vmatprep.subr.bf16.mxu0 0
        %1870 = vmatpush2.bf16.msra.mxu0 0
        %1871 = vmatprep.subr.bf16.mxu0 0
        %1872 = vmatpush2.bf16.msra.mxu0 0
        %1873 = vmatprep.subr.bf16.mxu0 0
        %1874 = vmatpush2.bf16.msra.mxu0 0
        %1875 = vmatprep.subr.bf16.mxu0 0
        %1876 = vmatpush2.bf16.msra.mxu0 0
        %1877 = vmatprep.subr.bf16.mxu0 0
        %1878 = vmatpush2.bf16.msra.mxu0 0
        %1879 = vmatprep.subr.bf16.mxu0 0
        %1880 = vmatpush2.bf16.msra.mxu0 0
        %1881 = vmatprep.mubr.bf16.mxu0 0
        %1882 = vmatmul.mubr.bf16.gmra.mxu0 %v1847
        %v1883 = vpop.f32.mrf.mxu0
        %v1884 = vadd.f32 %v568, %v1883
        %v1885 = vpop.f32.mrf.mxu0
        %v1886 = vadd.f32 %v572, %v1885
        %v1887 = vpop.f32.mrf.mxu0
        %v1888 = vpop.f32.mrf.mxu0
        %1889 = vdwg.mxu0
        %1890 = vmatprep.subr.bf16.mxu0 0
        %1891 = vmatpush1.bf16.msra.mxu0 0
        %1892 = vmatprep.subr.bf16.mxu0 0
        %1893 = vmatpush1.bf16.msra.mxu0 0
        %1894 = vmatprep.subr.bf16.mxu0 0
        %1895 = vmatpush1.bf16.msra.mxu0 0
        %1896 = vmatprep.subr.bf16.mxu0 0
        %1897 = vmatpush1.bf16.msra.mxu0 0
        %1898 = vmatprep.subr.bf16.mxu0 0
        %1899 = vmatpush1.bf16.msra.mxu0 0
        %1900 = vmatprep.subr.bf16.mxu0 0
        %1901 = vmatpush1.bf16.msra.mxu0 0
        %1902 = vmatprep.subr.bf16.mxu0 0
        %1903 = vmatpush1.bf16.msra.mxu0 0
        %1904 = vmatprep.subr.bf16.mxu0 %v1592
        %1905 = vmatpush1.bf16.msra.mxu0 %v1591
        %1906 = vmatprep.subr.bf16.mxu0 0
        %1907 = vmatpush2.bf16.msra.mxu0 0
        %1908 = vmatprep.subr.bf16.mxu0 0
        %1909 = vmatpush2.bf16.msra.mxu0 0
        %1910 = vmatprep.subr.bf16.mxu0 0
        %1911 = vmatpush2.bf16.msra.mxu0 0
        %1912 = vmatprep.subr.bf16.mxu0 0
        %1913 = vmatpush2.bf16.msra.mxu0 0
        %1914 = vmatprep.subr.bf16.mxu0 0
        %1915 = vmatpush2.bf16.msra.mxu0 0
        %1916 = vmatprep.subr.bf16.mxu0 0
        %1917 = vmatpush2.bf16.msra.mxu0 0
        %1918 = vmatprep.subr.bf16.mxu0 0
        %1919 = vmatpush2.bf16.msra.mxu0 0
        %1920 = vmatprep.subr.bf16.mxu0 0
        %1921 = vmatpush2.bf16.msra.mxu0 0
        %1922 = vmatprep.mubr.bf16.mxu0 0
        %1923 = vmatmul.mubr.bf16.gmra.mxu0 %v1847
        %v1924 = vpop.f32.mrf.mxu0
        %v1925 = vadd.f32 %v576, %v1924
        %v1926 = vpop.f32.mrf.mxu0
        %v1927 = vadd.f32 %v580, %v1926
        %v1928 = vpop.f32.mrf.mxu0
        %v1929 = vpop.f32.mrf.mxu0
        %1930 = vdwg.mxu0
        %1931 = vmatprep.subr.bf16.mxu0 0
        %1932 = vmatpush1.bf16.msra.mxu0 0
        %1933 = vmatprep.subr.bf16.mxu0 0
        %1934 = vmatpush1.bf16.msra.mxu0 0
        %1935 = vmatprep.subr.bf16.mxu0 0
        %1936 = vmatpush1.bf16.msra.mxu0 0
        %1937 = vmatprep.subr.bf16.mxu0 0
        %1938 = vmatpush1.bf16.msra.mxu0 0
        %1939 = vmatprep.subr.bf16.mxu0 0
        %1940 = vmatpush1.bf16.msra.mxu0 0
        %1941 = vmatprep.subr.bf16.mxu0 0
        %1942 = vmatpush1.bf16.msra.mxu0 0
        %1943 = vmatprep.subr.bf16.mxu0 0
        %1944 = vmatpush1.bf16.msra.mxu0 0
        %1945 = vmatprep.subr.bf16.mxu0 %v1594
        %1946 = vmatpush1.bf16.msra.mxu0 %v1593
        %1947 = vmatprep.subr.bf16.mxu0 0
        %1948 = vmatpush2.bf16.msra.mxu0 0
        %1949 = vmatprep.subr.bf16.mxu0 0
        %1950 = vmatpush2.bf16.msra.mxu0 0
        %1951 = vmatprep.subr.bf16.mxu0 0
        %1952 = vmatpush2.bf16.msra.mxu0 0
        %1953 = vmatprep.subr.bf16.mxu0 0
        %1954 = vmatpush2.bf16.msra.mxu0 0
        %1955 = vmatprep.subr.bf16.mxu0 0
        %1956 = vmatpush2.bf16.msra.mxu0 0
        %1957 = vmatprep.subr.bf16.mxu0 0
        %1958 = vmatpush2.bf16.msra.mxu0 0
        %1959 = vmatprep.subr.bf16.mxu0 0
        %1960 = vmatpush2.bf16.msra.mxu0 0
        %1961 = vmatprep.subr.bf16.mxu0 0
        %1962 = vmatpush2.bf16.msra.mxu0 0
        %1963 = vmatprep.mubr.bf16.mxu0 0
        %1964 = vmatmul.mubr.bf16.gmra.mxu0 %v1847
        %v1965 = vpop.f32.mrf.mxu0
        %v1966 = vadd.f32 %v584, %v1965
        %v1967 = vpop.f32.mrf.mxu0
        %v1968 = vadd.f32 %v588, %v1967
        %v1969 = vpop.f32.mrf.mxu0
        %v1970 = vpop.f32.mrf.mxu0
        %1971 = vdwg.mxu0
        %1972 = vmatprep.subr.bf16.mxu0 0
        %1973 = vmatpush1.bf16.msra.mxu0 0
        %1974 = vmatprep.subr.bf16.mxu0 0
        %1975 = vmatpush1.bf16.msra.mxu0 0
        %1976 = vmatprep.subr.bf16.mxu0 0
        %1977 = vmatpush1.bf16.msra.mxu0 0
        %1978 = vmatprep.subr.bf16.mxu0 0
        %1979 = vmatpush1.bf16.msra.mxu0 0
        %1980 = vmatprep.subr.bf16.mxu0 0
        %1981 = vmatpush1.bf16.msra.mxu0 0
        %1982 = vmatprep.subr.bf16.mxu0 0
        %1983 = vmatpush1.bf16.msra.mxu0 0
        %1984 = vmatprep.subr.bf16.mxu0 0
        %1985 = vmatpush1.bf16.msra.mxu0 0
        %1986 = vmatprep.subr.bf16.mxu0 %v1596
        %1987 = vmatpush1.bf16.msra.mxu0 %v1595
        %1988 = vmatprep.subr.bf16.mxu0 0
        %1989 = vmatpush2.bf16.msra.mxu0 0
        %1990 = vmatprep.subr.bf16.mxu0 0
        %1991 = vmatpush2.bf16.msra.mxu0 0
        %1992 = vmatprep.subr.bf16.mxu0 0
        %1993 = vmatpush2.bf16.msra.mxu0 0
        %1994 = vmatprep.subr.bf16.mxu0 0
        %1995 = vmatpush2.bf16.msra.mxu0 0
        %1996 = vmatprep.subr.bf16.mxu0 0
        %1997 = vmatpush2.bf16.msra.mxu0 0
        %1998 = vmatprep.subr.bf16.mxu0 0
        %1999 = vmatpush2.bf16.msra.mxu0 0
        %2000 = vmatprep.subr.bf16.mxu0 0
        %2001 = vmatpush2.bf16.msra.mxu0 0
        %2002 = vmatprep.subr.bf16.mxu0 0
        %2003 = vmatpush2.bf16.msra.mxu0 0
        %2004 = vmatprep.mubr.bf16.mxu0 0
        %2005 = vmatmul.mubr.bf16.gmra.mxu0 %v1847
        %v2006 = vpop.f32.mrf.mxu0
        %v2007 = vadd.f32 %v592, %v2006
        %v2008 = vpop.f32.mrf.mxu0
        %v2009 = vadd.f32 %v596, %v2008
        %v2010 = vpop.f32.mrf.mxu0
        %v2011 = vpop.f32.mrf.mxu0
        %2012 = vdwg.mxu0
        %2013 = vmatprep.subr.bf16.mxu0 0
        %2014 = vmatpush1.bf16.msra.mxu0 0
        %2015 = vmatprep.subr.bf16.mxu0 0
        %2016 = vmatpush1.bf16.msra.mxu0 0
        %2017 = vmatprep.subr.bf16.mxu0 0
        %2018 = vmatpush1.bf16.msra.mxu0 0
        %2019 = vmatprep.subr.bf16.mxu0 0
        %2020 = vmatpush1.bf16.msra.mxu0 0
        %2021 = vmatprep.subr.bf16.mxu0 0
        %2022 = vmatpush1.bf16.msra.mxu0 0
        %2023 = vmatprep.subr.bf16.mxu0 0
        %2024 = vmatpush1.bf16.msra.mxu0 0
        %2025 = vmatprep.subr.bf16.mxu0 0
        %2026 = vmatpush1.bf16.msra.mxu0 0
        %2027 = vmatprep.subr.bf16.mxu0 %v1598
        %2028 = vmatpush1.bf16.msra.mxu0 %v1597
        %2029 = vmatprep.subr.bf16.mxu0 0
        %2030 = vmatpush2.bf16.msra.mxu0 0
        %2031 = vmatprep.subr.bf16.mxu0 0
        %2032 = vmatpush2.bf16.msra.mxu0 0
        %2033 = vmatprep.subr.bf16.mxu0 0
        %2034 = vmatpush2.bf16.msra.mxu0 0
        %2035 = vmatprep.subr.bf16.mxu0 0
        %2036 = vmatpush2.bf16.msra.mxu0 0
        %2037 = vmatprep.subr.bf16.mxu0 0
        %2038 = vmatpush2.bf16.msra.mxu0 0
        %2039 = vmatprep.subr.bf16.mxu0 0
        %2040 = vmatpush2.bf16.msra.mxu0 0
        %2041 = vmatprep.subr.bf16.mxu0 0
        %2042 = vmatpush2.bf16.msra.mxu0 0
        %2043 = vmatprep.subr.bf16.mxu0 0
        %2044 = vmatpush2.bf16.msra.mxu0 0
        %2045 = vmatprep.mubr.bf16.mxu0 0
        %2046 = vmatmul.mubr.bf16.gmra.mxu0 %v1847
        %v2047 = vpop.f32.mrf.mxu0
        %v2048 = vadd.f32 %v600, %v2047
        %v2049 = vpop.f32.mrf.mxu0
        %v2050 = vadd.f32 %v604, %v2049
        %v2051 = vpop.f32.mrf.mxu0
        %v2052 = vpop.f32.mrf.mxu0
        %2053 = vdwg.mxu0
        %2054 = vmatprep.subr.bf16.mxu0 0
        %2055 = vmatpush1.bf16.msra.mxu0 0
        %2056 = vmatprep.subr.bf16.mxu0 0
        %2057 = vmatpush1.bf16.msra.mxu0 0
        %2058 = vmatprep.subr.bf16.mxu0 0
        %2059 = vmatpush1.bf16.msra.mxu0 0
        %2060 = vmatprep.subr.bf16.mxu0 0
        %2061 = vmatpush1.bf16.msra.mxu0 0
        %2062 = vmatprep.subr.bf16.mxu0 0
        %2063 = vmatpush1.bf16.msra.mxu0 0
        %2064 = vmatprep.subr.bf16.mxu0 0
        %2065 = vmatpush1.bf16.msra.mxu0 0
        %2066 = vmatprep.subr.bf16.mxu0 0
        %2067 = vmatpush1.bf16.msra.mxu0 0
        %2068 = vmatprep.subr.bf16.mxu0 %v1600
        %2069 = vmatpush1.bf16.msra.mxu0 %v1599
        %2070 = vmatprep.subr.bf16.mxu0 0
        %2071 = vmatpush2.bf16.msra.mxu0 0
        %2072 = vmatprep.subr.bf16.mxu0 0
        %2073 = vmatpush2.bf16.msra.mxu0 0
        %2074 = vmatprep.subr.bf16.mxu0 0
        %2075 = vmatpush2.bf16.msra.mxu0 0
        %2076 = vmatprep.subr.bf16.mxu0 0
        %2077 = vmatpush2.bf16.msra.mxu0 0
        %2078 = vmatprep.subr.bf16.mxu0 0
        %2079 = vmatpush2.bf16.msra.mxu0 0
        %2080 = vmatprep.subr.bf16.mxu0 0
        %2081 = vmatpush2.bf16.msra.mxu0 0
        %2082 = vmatprep.subr.bf16.mxu0 0
        %2083 = vmatpush2.bf16.msra.mxu0 0
        %2084 = vmatprep.subr.bf16.mxu0 0
        %2085 = vmatpush2.bf16.msra.mxu0 0
        %2086 = vmatprep.mubr.bf16.mxu0 0
        %2087 = vmatmul.mubr.bf16.gmra.mxu0 %v1847
        %v2088 = vpop.f32.mrf.mxu0
        %v2089 = vadd.f32 %v608, %v2088
        %v2090 = vpop.f32.mrf.mxu0
        %v2091 = vadd.f32 %v612, %v2090
        %v2092 = vpop.f32.mrf.mxu0
        %v2093 = vpop.f32.mrf.mxu0
        %2094 = vdwg.mxu0
        %2095 = vmatprep.subr.bf16.mxu0 0
        %2096 = vmatpush1.bf16.msra.mxu0 0
        %2097 = vmatprep.subr.bf16.mxu0 0
        %2098 = vmatpush1.bf16.msra.mxu0 0
        %2099 = vmatprep.subr.bf16.mxu0 0
        %2100 = vmatpush1.bf16.msra.mxu0 0
        %2101 = vmatprep.subr.bf16.mxu0 0
        %2102 = vmatpush1.bf16.msra.mxu0 0
        %2103 = vmatprep.subr.bf16.mxu0 0
        %2104 = vmatpush1.bf16.msra.mxu0 0
        %2105 = vmatprep.subr.bf16.mxu0 0
        %2106 = vmatpush1.bf16.msra.mxu0 0
        %2107 = vmatprep.subr.bf16.mxu0 0
        %2108 = vmatpush1.bf16.msra.mxu0 0
        %2109 = vmatprep.subr.bf16.mxu0 %v1602
        %2110 = vmatpush1.bf16.msra.mxu0 %v1601
        %2111 = vmatprep.subr.bf16.mxu0 0
        %2112 = vmatpush2.bf16.msra.mxu0 0
        %2113 = vmatprep.subr.bf16.mxu0 0
        %2114 = vmatpush2.bf16.msra.mxu0 0
        %2115 = vmatprep.subr.bf16.mxu0 0
        %2116 = vmatpush2.bf16.msra.mxu0 0
        %2117 = vmatprep.subr.bf16.mxu0 0
        %2118 = vmatpush2.bf16.msra.mxu0 0
        %2119 = vmatprep.subr.bf16.mxu0 0
        %2120 = vmatpush2.bf16.msra.mxu0 0
        %2121 = vmatprep.subr.bf16.mxu0 0
        %2122 = vmatpush2.bf16.msra.mxu0 0
        %2123 = vmatprep.subr.bf16.mxu0 0
        %2124 = vmatpush2.bf16.msra.mxu0 0
        %2125 = vmatprep.subr.bf16.mxu0 0
        %2126 = vmatpush2.bf16.msra.mxu0 0
        %2127 = vmatprep.mubr.bf16.mxu0 0
        %2128 = vmatmul.mubr.bf16.gmra.mxu0 %v1847
        %v2129 = vpop.f32.mrf.mxu0
        %v2130 = vadd.f32 %v616, %v2129
        %v2131 = vpop.f32.mrf.mxu0
        %v2132 = vadd.f32 %v620, %v2131
        %v2133 = vpop.f32.mrf.mxu0
        %v2134 = vpop.f32.mrf.mxu0
        %2135 = vdwg.mxu0
        %2136 = vmatprep.subr.bf16.mxu0 0
        %2137 = vmatpush1.bf16.msra.mxu0 0
        %2138 = vmatprep.subr.bf16.mxu0 0
        %2139 = vmatpush1.bf16.msra.mxu0 0
        %2140 = vmatprep.subr.bf16.mxu0 0
        %2141 = vmatpush1.bf16.msra.mxu0 0
        %2142 = vmatprep.subr.bf16.mxu0 0
        %2143 = vmatpush1.bf16.msra.mxu0 0
        %2144 = vmatprep.subr.bf16.mxu0 0
        %2145 = vmatpush1.bf16.msra.mxu0 0
        %2146 = vmatprep.subr.bf16.mxu0 0
        %2147 = vmatpush1.bf16.msra.mxu0 0
        %2148 = vmatprep.subr.bf16.mxu0 0
        %2149 = vmatpush1.bf16.msra.mxu0 0
        %2150 = vmatprep.subr.bf16.mxu0 %v1604
        %2151 = vmatpush1.bf16.msra.mxu0 %v1603
        %2152 = vmatprep.subr.bf16.mxu0 0
        %2153 = vmatpush2.bf16.msra.mxu0 0
        %2154 = vmatprep.subr.bf16.mxu0 0
        %2155 = vmatpush2.bf16.msra.mxu0 0
        %2156 = vmatprep.subr.bf16.mxu0 0
        %2157 = vmatpush2.bf16.msra.mxu0 0
        %2158 = vmatprep.subr.bf16.mxu0 0
        %2159 = vmatpush2.bf16.msra.mxu0 0
        %2160 = vmatprep.subr.bf16.mxu0 0
        %2161 = vmatpush2.bf16.msra.mxu0 0
        %2162 = vmatprep.subr.bf16.mxu0 0
        %2163 = vmatpush2.bf16.msra.mxu0 0
        %2164 = vmatprep.subr.bf16.mxu0 0
        %2165 = vmatpush2.bf16.msra.mxu0 0
        %2166 = vmatprep.subr.bf16.mxu0 0
        %2167 = vmatpush2.bf16.msra.mxu0 0
        %2168 = vmatprep.mubr.bf16.mxu0 0
        %2169 = vmatmul.mubr.bf16.gmra.mxu0 %v1847
        %v2170 = vpop.f32.mrf.mxu0
        %v2171 = vadd.f32 %v624, %v2170
        %v2172 = vpop.f32.mrf.mxu0
        %v2173 = vadd.f32 %v628, %v2172
        %v2174 = vpop.f32.mrf.mxu0
        %v2175 = vpop.f32.mrf.mxu0
        %2176 = vdwg.mxu0
        %2177 = vmatprep.subr.bf16.mxu0 0
        %2178 = vmatpush1.bf16.msra.mxu0 0
        %2179 = vmatprep.subr.bf16.mxu0 0
        %2180 = vmatpush1.bf16.msra.mxu0 0
        %2181 = vmatprep.subr.bf16.mxu0 0
        %2182 = vmatpush1.bf16.msra.mxu0 0
        %2183 = vmatprep.subr.bf16.mxu0 0
        %2184 = vmatpush1.bf16.msra.mxu0 0
        %2185 = vmatprep.subr.bf16.mxu0 0
        %2186 = vmatpush1.bf16.msra.mxu0 0
        %2187 = vmatprep.subr.bf16.mxu0 0
        %2188 = vmatpush1.bf16.msra.mxu0 0
        %2189 = vmatprep.subr.bf16.mxu0 0
        %2190 = vmatpush1.bf16.msra.mxu0 0
        %2191 = vmatprep.subr.bf16.mxu0 %v1606
        %2192 = vmatpush1.bf16.msra.mxu0 %v1605
        %2193 = vmatprep.subr.bf16.mxu0 0
        %2194 = vmatpush2.bf16.msra.mxu0 0
        %2195 = vmatprep.subr.bf16.mxu0 0
        %2196 = vmatpush2.bf16.msra.mxu0 0
        %2197 = vmatprep.subr.bf16.mxu0 0
        %2198 = vmatpush2.bf16.msra.mxu0 0
        %2199 = vmatprep.subr.bf16.mxu0 0
        %2200 = vmatpush2.bf16.msra.mxu0 0
        %2201 = vmatprep.subr.bf16.mxu0 0
        %2202 = vmatpush2.bf16.msra.mxu0 0
        %2203 = vmatprep.subr.bf16.mxu0 0
        %2204 = vmatpush2.bf16.msra.mxu0 0
        %2205 = vmatprep.subr.bf16.mxu0 0
        %2206 = vmatpush2.bf16.msra.mxu0 0
        %2207 = vmatprep.subr.bf16.mxu0 0
        %2208 = vmatpush2.bf16.msra.mxu0 0
        %2209 = vmatprep.mubr.bf16.mxu0 0
        %2210 = vmatmul.mubr.bf16.gmra.mxu0 %v1847
        %v2211 = vpop.f32.mrf.mxu0
        %v2212 = vadd.f32 %v632, %v2211
        %v2213 = vpop.f32.mrf.mxu0
        %v2214 = vadd.f32 %v636, %v2213
        %v2215 = vpop.f32.mrf.mxu0
        %v2216 = vpop.f32.mrf.mxu0
        %2217 = vdwg.mxu0
        %2218 = vmatprep.subr.bf16.mxu0 0
        %2219 = vmatpush1.bf16.msra.mxu0 0
        %2220 = vmatprep.subr.bf16.mxu0 0
        %2221 = vmatpush1.bf16.msra.mxu0 0
        %2222 = vmatprep.subr.bf16.mxu0 0
        %2223 = vmatpush1.bf16.msra.mxu0 0
        %2224 = vmatprep.subr.bf16.mxu0 0
        %2225 = vmatpush1.bf16.msra.mxu0 0
        %2226 = vmatprep.subr.bf16.mxu0 0
        %2227 = vmatpush1.bf16.msra.mxu0 0
        %2228 = vmatprep.subr.bf16.mxu0 0
        %2229 = vmatpush1.bf16.msra.mxu0 0
        %2230 = vmatprep.subr.bf16.mxu0 0
        %2231 = vmatpush1.bf16.msra.mxu0 0
        %2232 = vmatprep.subr.bf16.mxu0 %v1608
        %2233 = vmatpush1.bf16.msra.mxu0 %v1607
        %2234 = vmatprep.subr.bf16.mxu0 0
        %2235 = vmatpush2.bf16.msra.mxu0 0
        %2236 = vmatprep.subr.bf16.mxu0 0
        %2237 = vmatpush2.bf16.msra.mxu0 0
        %2238 = vmatprep.subr.bf16.mxu0 0
        %2239 = vmatpush2.bf16.msra.mxu0 0
        %2240 = vmatprep.subr.bf16.mxu0 0
        %2241 = vmatpush2.bf16.msra.mxu0 0
        %2242 = vmatprep.subr.bf16.mxu0 0
        %2243 = vmatpush2.bf16.msra.mxu0 0
        %2244 = vmatprep.subr.bf16.mxu0 0
        %2245 = vmatpush2.bf16.msra.mxu0 0
        %2246 = vmatprep.subr.bf16.mxu0 0
        %2247 = vmatpush2.bf16.msra.mxu0 0
        %2248 = vmatprep.subr.bf16.mxu0 0
        %2249 = vmatpush2.bf16.msra.mxu0 0
        %2250 = vmatprep.mubr.bf16.mxu0 0
        %2251 = vmatmul.mubr.bf16.gmra.mxu0 %v1847
        %v2252 = vpop.f32.mrf.mxu0
        %v2253 = vadd.f32 %v640, %v2252
        %v2254 = vpop.f32.mrf.mxu0
        %v2255 = vadd.f32 %v644, %v2254
        %v2256 = vpop.f32.mrf.mxu0
        %v2257 = vpop.f32.mrf.mxu0
        %2258 = vdwg.mxu0
        %2259 = vmatprep.subr.bf16.mxu0 0
        %2260 = vmatpush1.bf16.msra.mxu0 0
        %2261 = vmatprep.subr.bf16.mxu0 0
        %2262 = vmatpush1.bf16.msra.mxu0 0
        %2263 = vmatprep.subr.bf16.mxu0 0
        %2264 = vmatpush1.bf16.msra.mxu0 0
        %2265 = vmatprep.subr.bf16.mxu0 0
        %2266 = vmatpush1.bf16.msra.mxu0 0
        %2267 = vmatprep.subr.bf16.mxu0 0
        %2268 = vmatpush1.bf16.msra.mxu0 0
        %2269 = vmatprep.subr.bf16.mxu0 0
        %2270 = vmatpush1.bf16.msra.mxu0 0
        %2271 = vmatprep.subr.bf16.mxu0 0
        %2272 = vmatpush1.bf16.msra.mxu0 0
        %2273 = vmatprep.subr.bf16.mxu0 %v1610
        %2274 = vmatpush1.bf16.msra.mxu0 %v1609
        %2275 = vmatprep.subr.bf16.mxu0 0
        %2276 = vmatpush2.bf16.msra.mxu0 0
        %2277 = vmatprep.subr.bf16.mxu0 0
        %2278 = vmatpush2.bf16.msra.mxu0 0
        %2279 = vmatprep.subr.bf16.mxu0 0
        %2280 = vmatpush2.bf16.msra.mxu0 0
        %2281 = vmatprep.subr.bf16.mxu0 0
        %2282 = vmatpush2.bf16.msra.mxu0 0
        %2283 = vmatprep.subr.bf16.mxu0 0
        %2284 = vmatpush2.bf16.msra.mxu0 0
        %2285 = vmatprep.subr.bf16.mxu0 0
        %2286 = vmatpush2.bf16.msra.mxu0 0
        %2287 = vmatprep.subr.bf16.mxu0 0
        %2288 = vmatpush2.bf16.msra.mxu0 0
        %2289 = vmatprep.subr.bf16.mxu0 0
        %2290 = vmatpush2.bf16.msra.mxu0 0
        %2291 = vmatprep.mubr.bf16.mxu0 0
        %2292 = vmatmul.mubr.bf16.gmra.mxu0 %v1847
        %v2293 = vpop.f32.mrf.mxu0
        %v2294 = vadd.f32 %v648, %v2293
        %v2295 = vpop.f32.mrf.mxu0
        %v2296 = vadd.f32 %v652, %v2295
        %v2297 = vpop.f32.mrf.mxu0
        %v2298 = vpop.f32.mrf.mxu0
        %2299 = vdwg.mxu0
        %2300 = vmatprep.subr.bf16.mxu0 0
        %2301 = vmatpush1.bf16.msra.mxu0 0
        %2302 = vmatprep.subr.bf16.mxu0 0
        %2303 = vmatpush1.bf16.msra.mxu0 0
        %2304 = vmatprep.subr.bf16.mxu0 0
        %2305 = vmatpush1.bf16.msra.mxu0 0
        %2306 = vmatprep.subr.bf16.mxu0 0
        %2307 = vmatpush1.bf16.msra.mxu0 0
        %2308 = vmatprep.subr.bf16.mxu0 0
        %2309 = vmatpush1.bf16.msra.mxu0 0
        %2310 = vmatprep.subr.bf16.mxu0 0
        %2311 = vmatpush1.bf16.msra.mxu0 0
        %2312 = vmatprep.subr.bf16.mxu0 0
        %2313 = vmatpush1.bf16.msra.mxu0 0
        %2314 = vmatprep.subr.bf16.mxu0 %v1612
        %2315 = vmatpush1.bf16.msra.mxu0 %v1611
        %2316 = vmatprep.subr.bf16.mxu0 0
        %2317 = vmatpush2.bf16.msra.mxu0 0
        %2318 = vmatprep.subr.bf16.mxu0 0
        %2319 = vmatpush2.bf16.msra.mxu0 0
        %2320 = vmatprep.subr.bf16.mxu0 0
        %2321 = vmatpush2.bf16.msra.mxu0 0
        %2322 = vmatprep.subr.bf16.mxu0 0
        %2323 = vmatpush2.bf16.msra.mxu0 0
        %2324 = vmatprep.subr.bf16.mxu0 0
        %2325 = vmatpush2.bf16.msra.mxu0 0
        %2326 = vmatprep.subr.bf16.mxu0 0
        %2327 = vmatpush2.bf16.msra.mxu0 0
        %2328 = vmatprep.subr.bf16.mxu0 0
        %2329 = vmatpush2.bf16.msra.mxu0 0
        %2330 = vmatprep.subr.bf16.mxu0 0
        %2331 = vmatpush2.bf16.msra.mxu0 0
        %2332 = vmatprep.mubr.bf16.mxu0 0
        %2333 = vmatmul.mubr.bf16.gmra.mxu0 %v1847
        %v2334 = vpop.f32.mrf.mxu0
        %v2335 = vadd.f32 %v656, %v2334
        %v2336 = vpop.f32.mrf.mxu0
        %v2337 = vadd.f32 %v660, %v2336
        %v2338 = vpop.f32.mrf.mxu0
        %v2339 = vpop.f32.mrf.mxu0
        %2340 = vdwg.mxu0
        %2341 = vmatprep.subr.bf16.mxu0 0
        %2342 = vmatpush1.bf16.msra.mxu0 0
        %2343 = vmatprep.subr.bf16.mxu0 0
        %2344 = vmatpush1.bf16.msra.mxu0 0
        %2345 = vmatprep.subr.bf16.mxu0 0
        %2346 = vmatpush1.bf16.msra.mxu0 0
        %2347 = vmatprep.subr.bf16.mxu0 0
        %2348 = vmatpush1.bf16.msra.mxu0 0
        %2349 = vmatprep.subr.bf16.mxu0 0
        %2350 = vmatpush1.bf16.msra.mxu0 0
        %2351 = vmatprep.subr.bf16.mxu0 0
        %2352 = vmatpush1.bf16.msra.mxu0 0
        %2353 = vmatprep.subr.bf16.mxu0 0
        %2354 = vmatpush1.bf16.msra.mxu0 0
        %2355 = vmatprep.subr.bf16.mxu0 %v1614
        %2356 = vmatpush1.bf16.msra.mxu0 %v1613
        %2357 = vmatprep.subr.bf16.mxu0 0
        %2358 = vmatpush2.bf16.msra.mxu0 0
        %2359 = vmatprep.subr.bf16.mxu0 0
        %2360 = vmatpush2.bf16.msra.mxu0 0
        %2361 = vmatprep.subr.bf16.mxu0 0
        %2362 = vmatpush2.bf16.msra.mxu0 0
        %2363 = vmatprep.subr.bf16.mxu0 0
        %2364 = vmatpush2.bf16.msra.mxu0 0
        %2365 = vmatprep.subr.bf16.mxu0 0
        %2366 = vmatpush2.bf16.msra.mxu0 0
        %2367 = vmatprep.subr.bf16.mxu0 0
        %2368 = vmatpush2.bf16.msra.mxu0 0
        %2369 = vmatprep.subr.bf16.mxu0 0
        %2370 = vmatpush2.bf16.msra.mxu0 0
        %2371 = vmatprep.subr.bf16.mxu0 0
        %2372 = vmatpush2.bf16.msra.mxu0 0
        %2373 = vmatprep.mubr.bf16.mxu0 0
        %2374 = vmatmul.mubr.bf16.gmra.mxu0 %v1847
        %v2375 = vpop.f32.mrf.mxu0
        %v2376 = vadd.f32 %v664, %v2375
        %v2377 = vpop.f32.mrf.mxu0
        %v2378 = vadd.f32 %v668, %v2377
        %v2379 = vpop.f32.mrf.mxu0
        %v2380 = vpop.f32.mrf.mxu0
        %2381 = vdwg.mxu0
        %2382 = vmatprep.subr.bf16.mxu0 0
        %2383 = vmatpush1.bf16.msra.mxu0 0
        %2384 = vmatprep.subr.bf16.mxu0 0
        %2385 = vmatpush1.bf16.msra.mxu0 0
        %2386 = vmatprep.subr.bf16.mxu0 0
        %2387 = vmatpush1.bf16.msra.mxu0 0
        %2388 = vmatprep.subr.bf16.mxu0 0
        %2389 = vmatpush1.bf16.msra.mxu0 0
        %2390 = vmatprep.subr.bf16.mxu0 0
        %2391 = vmatpush1.bf16.msra.mxu0 0
        %2392 = vmatprep.subr.bf16.mxu0 0
        %2393 = vmatpush1.bf16.msra.mxu0 0
        %2394 = vmatprep.subr.bf16.mxu0 0
        %2395 = vmatpush1.bf16.msra.mxu0 0
        %2396 = vmatprep.subr.bf16.mxu0 %v1616
        %2397 = vmatpush1.bf16.msra.mxu0 %v1615
        %2398 = vmatprep.subr.bf16.mxu0 0
        %2399 = vmatpush2.bf16.msra.mxu0 0
        %2400 = vmatprep.subr.bf16.mxu0 0
        %2401 = vmatpush2.bf16.msra.mxu0 0
        %2402 = vmatprep.subr.bf16.mxu0 0
        %2403 = vmatpush2.bf16.msra.mxu0 0
        %2404 = vmatprep.subr.bf16.mxu0 0
        %2405 = vmatpush2.bf16.msra.mxu0 0
        %2406 = vmatprep.subr.bf16.mxu0 0
        %2407 = vmatpush2.bf16.msra.mxu0 0
        %2408 = vmatprep.subr.bf16.mxu0 0
        %2409 = vmatpush2.bf16.msra.mxu0 0
        %2410 = vmatprep.subr.bf16.mxu0 0
        %2411 = vmatpush2.bf16.msra.mxu0 0
        %2412 = vmatprep.subr.bf16.mxu0 0
        %2413 = vmatpush2.bf16.msra.mxu0 0
        %2414 = vmatprep.mubr.bf16.mxu0 0
        %2415 = vmatmul.mubr.bf16.gmra.mxu0 %v1847
        %v2416 = vpop.f32.mrf.mxu0
        %v2417 = vadd.f32 %v672, %v2416
        %v2418 = vpop.f32.mrf.mxu0
        %v2419 = vadd.f32 %v676, %v2418
        %v2420 = vpop.f32.mrf.mxu0
        %v2421 = vpop.f32.mrf.mxu0
        %2422 = vdwg.mxu0
        %2423 = vmatprep.subr.bf16.mxu0 0
        %2424 = vmatpush1.bf16.msra.mxu0 0
        %2425 = vmatprep.subr.bf16.mxu0 0
        %2426 = vmatpush1.bf16.msra.mxu0 0
        %2427 = vmatprep.subr.bf16.mxu0 0
        %2428 = vmatpush1.bf16.msra.mxu0 0
        %2429 = vmatprep.subr.bf16.mxu0 0
        %2430 = vmatpush1.bf16.msra.mxu0 0
        %2431 = vmatprep.subr.bf16.mxu0 0
        %2432 = vmatpush1.bf16.msra.mxu0 0
        %2433 = vmatprep.subr.bf16.mxu0 0
        %2434 = vmatpush1.bf16.msra.mxu0 0
        %2435 = vmatprep.subr.bf16.mxu0 0
        %2436 = vmatpush1.bf16.msra.mxu0 0
        %2437 = vmatprep.subr.bf16.mxu0 %v1618
        %2438 = vmatpush1.bf16.msra.mxu0 %v1617
        %2439 = vmatprep.subr.bf16.mxu0 0
        %2440 = vmatpush2.bf16.msra.mxu0 0
        %2441 = vmatprep.subr.bf16.mxu0 0
        %2442 = vmatpush2.bf16.msra.mxu0 0
        %2443 = vmatprep.subr.bf16.mxu0 0
        %2444 = vmatpush2.bf16.msra.mxu0 0
        %2445 = vmatprep.subr.bf16.mxu0 0
        %2446 = vmatpush2.bf16.msra.mxu0 0
        %2447 = vmatprep.subr.bf16.mxu0 0
        %2448 = vmatpush2.bf16.msra.mxu0 0
        %2449 = vmatprep.subr.bf16.mxu0 0
        %2450 = vmatpush2.bf16.msra.mxu0 0
        %2451 = vmatprep.subr.bf16.mxu0 0
        %2452 = vmatpush2.bf16.msra.mxu0 0
        %2453 = vmatprep.subr.bf16.mxu0 0
        %2454 = vmatpush2.bf16.msra.mxu0 0
        %2455 = vmatprep.mubr.bf16.mxu0 0
        %2456 = vmatmul.mubr.bf16.gmra.mxu0 %v1847
        %v2457 = vpop.f32.mrf.mxu0
        %v2458 = vadd.f32 %v680, %v2457
        %v2459 = vpop.f32.mrf.mxu0
        %v2460 = vadd.f32 %v684, %v2459
        %v2461 = vpop.f32.mrf.mxu0
        %v2462 = vpop.f32.mrf.mxu0
        %2463 = vdwg.mxu0
        %2464 = vmatprep.subr.bf16.mxu0 0
        %2465 = vmatpush1.bf16.msra.mxu0 0
        %2466 = vmatprep.subr.bf16.mxu0 0
        %2467 = vmatpush1.bf16.msra.mxu0 0
        %2468 = vmatprep.subr.bf16.mxu0 0
        %2469 = vmatpush1.bf16.msra.mxu0 0
        %2470 = vmatprep.subr.bf16.mxu0 0
        %2471 = vmatpush1.bf16.msra.mxu0 0
        %2472 = vmatprep.subr.bf16.mxu0 0
        %2473 = vmatpush1.bf16.msra.mxu0 0
        %2474 = vmatprep.subr.bf16.mxu0 0
        %2475 = vmatpush1.bf16.msra.mxu0 0
        %2476 = vmatprep.subr.bf16.mxu0 0
        %2477 = vmatpush1.bf16.msra.mxu0 0
        %2478 = vmatprep.subr.bf16.mxu0 %v1620
        %2479 = vmatpush1.bf16.msra.mxu0 %v1619
        %2480 = vmatprep.subr.bf16.mxu0 0
        %2481 = vmatpush2.bf16.msra.mxu0 0
        %2482 = vmatprep.subr.bf16.mxu0 0
        %2483 = vmatpush2.bf16.msra.mxu0 0
        %2484 = vmatprep.subr.bf16.mxu0 0
        %2485 = vmatpush2.bf16.msra.mxu0 0
        %2486 = vmatprep.subr.bf16.mxu0 0
        %2487 = vmatpush2.bf16.msra.mxu0 0
        %2488 = vmatprep.subr.bf16.mxu0 0
        %2489 = vmatpush2.bf16.msra.mxu0 0
        %2490 = vmatprep.subr.bf16.mxu0 0
        %2491 = vmatpush2.bf16.msra.mxu0 0
        %2492 = vmatprep.subr.bf16.mxu0 0
        %2493 = vmatpush2.bf16.msra.mxu0 0
        %2494 = vmatprep.subr.bf16.mxu0 0
        %2495 = vmatpush2.bf16.msra.mxu0 0
        %2496 = vmatprep.mubr.bf16.mxu0 0
        %2497 = vmatmul.mubr.bf16.gmra.mxu0 %v1847
        %v2498 = vpop.f32.mrf.mxu0
        %v2499 = vadd.f32 %v688, %v2498
        %v2500 = vpop.f32.mrf.mxu0
        %v2501 = vadd.f32 %v692, %v2500
        %v2502 = vpop.f32.mrf.mxu0
        %v2503 = vpop.f32.mrf.mxu0
        %2504 = vdwg.mxu0
        %2505 = vmatprep.subr.bf16.mxu0 0
        %2506 = vmatpush1.bf16.msra.mxu0 0
        %2507 = vmatprep.subr.bf16.mxu0 0
        %2508 = vmatpush1.bf16.msra.mxu0 0
        %2509 = vmatprep.subr.bf16.mxu0 0
        %2510 = vmatpush1.bf16.msra.mxu0 0
        %2511 = vmatprep.subr.bf16.mxu0 0
        %2512 = vmatpush1.bf16.msra.mxu0 0
        %2513 = vmatprep.subr.bf16.mxu0 0
        %2514 = vmatpush1.bf16.msra.mxu0 0
        %2515 = vmatprep.subr.bf16.mxu0 0
        %2516 = vmatpush1.bf16.msra.mxu0 0
        %2517 = vmatprep.subr.bf16.mxu0 0
        %2518 = vmatpush1.bf16.msra.mxu0 0
        %2519 = vmatprep.subr.bf16.mxu0 %v1622
        %2520 = vmatpush1.bf16.msra.mxu0 %v1621
        %2521 = vmatprep.subr.bf16.mxu0 0
        %2522 = vmatpush2.bf16.msra.mxu0 0
        %2523 = vmatprep.subr.bf16.mxu0 0
        %2524 = vmatpush2.bf16.msra.mxu0 0
        %2525 = vmatprep.subr.bf16.mxu0 0
        %2526 = vmatpush2.bf16.msra.mxu0 0
        %2527 = vmatprep.subr.bf16.mxu0 0
        %2528 = vmatpush2.bf16.msra.mxu0 0
        %2529 = vmatprep.subr.bf16.mxu0 0
        %2530 = vmatpush2.bf16.msra.mxu0 0
        %2531 = vmatprep.subr.bf16.mxu0 0
        %2532 = vmatpush2.bf16.msra.mxu0 0
        %2533 = vmatprep.subr.bf16.mxu0 0
        %2534 = vmatpush2.bf16.msra.mxu0 0
        %2535 = vmatprep.subr.bf16.mxu0 0
        %2536 = vmatpush2.bf16.msra.mxu0 0
        %2537 = vmatprep.mubr.bf16.mxu0 0
        %2538 = vmatmul.mubr.bf16.gmra.mxu0 %v1847
        %v2539 = vpop.f32.mrf.mxu0
        %v2540 = vadd.f32 %v696, %v2539
        %v2541 = vpop.f32.mrf.mxu0
        %v2542 = vadd.f32 %v700, %v2541
        %v2543 = vpop.f32.mrf.mxu0
        %v2544 = vpop.f32.mrf.mxu0
        %2545 = vdwg.mxu0
        %2546 = vmatprep.subr.bf16.mxu0 0
        %2547 = vmatpush1.bf16.msra.mxu0 0
        %2548 = vmatprep.subr.bf16.mxu0 0
        %2549 = vmatpush1.bf16.msra.mxu0 0
        %2550 = vmatprep.subr.bf16.mxu0 0
        %2551 = vmatpush1.bf16.msra.mxu0 0
        %2552 = vmatprep.subr.bf16.mxu0 0
        %2553 = vmatpush1.bf16.msra.mxu0 0
        %2554 = vmatprep.subr.bf16.mxu0 0
        %2555 = vmatpush1.bf16.msra.mxu0 0
        %2556 = vmatprep.subr.bf16.mxu0 0
        %2557 = vmatpush1.bf16.msra.mxu0 0
        %2558 = vmatprep.subr.bf16.mxu0 0
        %2559 = vmatpush1.bf16.msra.mxu0 0
        %2560 = vmatprep.subr.bf16.mxu0 %v1624
        %2561 = vmatpush1.bf16.msra.mxu0 %v1623
        %2562 = vmatprep.subr.bf16.mxu0 0
        %2563 = vmatpush2.bf16.msra.mxu0 0
        %2564 = vmatprep.subr.bf16.mxu0 0
        %2565 = vmatpush2.bf16.msra.mxu0 0
        %2566 = vmatprep.subr.bf16.mxu0 0
        %2567 = vmatpush2.bf16.msra.mxu0 0
        %2568 = vmatprep.subr.bf16.mxu0 0
        %2569 = vmatpush2.bf16.msra.mxu0 0
        %2570 = vmatprep.subr.bf16.mxu0 0
        %2571 = vmatpush2.bf16.msra.mxu0 0
        %2572 = vmatprep.subr.bf16.mxu0 0
        %2573 = vmatpush2.bf16.msra.mxu0 0
        %2574 = vmatprep.subr.bf16.mxu0 0
        %2575 = vmatpush2.bf16.msra.mxu0 0
        %2576 = vmatprep.subr.bf16.mxu0 0
        %2577 = vmatpush2.bf16.msra.mxu0 0
        %2578 = vmatprep.mubr.bf16.mxu0 0
        %2579 = vmatmul.mubr.bf16.gmra.mxu0 %v1847
        %v2580 = vpop.f32.mrf.mxu0
        %v2581 = vadd.f32 %v704, %v2580
        %v2582 = vpop.f32.mrf.mxu0
        %v2583 = vadd.f32 %v708, %v2582
        %v2584 = vpop.f32.mrf.mxu0
        %v2585 = vpop.f32.mrf.mxu0
        %2586 = vdwg.mxu0
        %2587 = vmatprep.subr.bf16.mxu0 0
        %2588 = vmatpush1.bf16.msra.mxu0 0
        %2589 = vmatprep.subr.bf16.mxu0 0
        %2590 = vmatpush1.bf16.msra.mxu0 0
        %2591 = vmatprep.subr.bf16.mxu0 0
        %2592 = vmatpush1.bf16.msra.mxu0 0
        %2593 = vmatprep.subr.bf16.mxu0 0
        %2594 = vmatpush1.bf16.msra.mxu0 0
        %2595 = vmatprep.subr.bf16.mxu0 0
        %2596 = vmatpush1.bf16.msra.mxu0 0
        %2597 = vmatprep.subr.bf16.mxu0 0
        %2598 = vmatpush1.bf16.msra.mxu0 0
        %2599 = vmatprep.subr.bf16.mxu0 0
        %2600 = vmatpush1.bf16.msra.mxu0 0
        %2601 = vmatprep.subr.bf16.mxu0 %v1626
        %2602 = vmatpush1.bf16.msra.mxu0 %v1625
        %2603 = vmatprep.subr.bf16.mxu0 0
        %2604 = vmatpush2.bf16.msra.mxu0 0
        %2605 = vmatprep.subr.bf16.mxu0 0
        %2606 = vmatpush2.bf16.msra.mxu0 0
        %2607 = vmatprep.subr.bf16.mxu0 0
        %2608 = vmatpush2.bf16.msra.mxu0 0
        %2609 = vmatprep.subr.bf16.mxu0 0
        %2610 = vmatpush2.bf16.msra.mxu0 0
        %2611 = vmatprep.subr.bf16.mxu0 0
        %2612 = vmatpush2.bf16.msra.mxu0 0
        %2613 = vmatprep.subr.bf16.mxu0 0
        %2614 = vmatpush2.bf16.msra.mxu0 0
        %2615 = vmatprep.subr.bf16.mxu0 0
        %2616 = vmatpush2.bf16.msra.mxu0 0
        %2617 = vmatprep.subr.bf16.mxu0 0
        %2618 = vmatpush2.bf16.msra.mxu0 0
        %2619 = vmatprep.mubr.bf16.mxu0 0
        %2620 = vmatmul.mubr.bf16.gmra.mxu0 %v1847
        %v2621 = vpop.f32.mrf.mxu0
        %v2622 = vadd.f32 %v712, %v2621
        %v2623 = vpop.f32.mrf.mxu0
        %v2624 = vadd.f32 %v716, %v2623
        %v2625 = vpop.f32.mrf.mxu0
        %v2626 = vpop.f32.mrf.mxu0
        %2627 = vdwg.mxu0
        %2628 = vmatprep.subr.bf16.mxu0 0
        %2629 = vmatpush1.bf16.msra.mxu0 0
        %2630 = vmatprep.subr.bf16.mxu0 0
        %2631 = vmatpush1.bf16.msra.mxu0 0
        %2632 = vmatprep.subr.bf16.mxu0 0
        %2633 = vmatpush1.bf16.msra.mxu0 0
        %2634 = vmatprep.subr.bf16.mxu0 0
        %2635 = vmatpush1.bf16.msra.mxu0 0
        %2636 = vmatprep.subr.bf16.mxu0 0
        %2637 = vmatpush1.bf16.msra.mxu0 0
        %2638 = vmatprep.subr.bf16.mxu0 0
        %2639 = vmatpush1.bf16.msra.mxu0 0
        %2640 = vmatprep.subr.bf16.mxu0 0
        %2641 = vmatpush1.bf16.msra.mxu0 0
        %2642 = vmatprep.subr.bf16.mxu0 %v1628
        %2643 = vmatpush1.bf16.msra.mxu0 %v1627
        %2644 = vmatprep.subr.bf16.mxu0 0
        %2645 = vmatpush2.bf16.msra.mxu0 0
        %2646 = vmatprep.subr.bf16.mxu0 0
        %2647 = vmatpush2.bf16.msra.mxu0 0
        %2648 = vmatprep.subr.bf16.mxu0 0
        %2649 = vmatpush2.bf16.msra.mxu0 0
        %2650 = vmatprep.subr.bf16.mxu0 0
        %2651 = vmatpush2.bf16.msra.mxu0 0
        %2652 = vmatprep.subr.bf16.mxu0 0
        %2653 = vmatpush2.bf16.msra.mxu0 0
        %2654 = vmatprep.subr.bf16.mxu0 0
        %2655 = vmatpush2.bf16.msra.mxu0 0
        %2656 = vmatprep.subr.bf16.mxu0 0
        %2657 = vmatpush2.bf16.msra.mxu0 0
        %2658 = vmatprep.subr.bf16.mxu0 0
        %2659 = vmatpush2.bf16.msra.mxu0 0
        %2660 = vmatprep.mubr.bf16.mxu0 0
        %2661 = vmatmul.mubr.bf16.gmra.mxu0 %v1847
        %v2662 = vpop.f32.mrf.mxu0
        %v2663 = vadd.f32 %v720, %v2662
        %v2664 = vpop.f32.mrf.mxu0
        %v2665 = vadd.f32 %v724, %v2664
        %v2666 = vpop.f32.mrf.mxu0
        %v2667 = vpop.f32.mrf.mxu0
        %2668 = vdwg.mxu0
        %2669 = vmatprep.subr.bf16.mxu0 0
        %2670 = vmatpush1.bf16.msra.mxu0 0
        %2671 = vmatprep.subr.bf16.mxu0 0
        %2672 = vmatpush1.bf16.msra.mxu0 0
        %2673 = vmatprep.subr.bf16.mxu0 0
        %2674 = vmatpush1.bf16.msra.mxu0 0
        %2675 = vmatprep.subr.bf16.mxu0 0
        %2676 = vmatpush1.bf16.msra.mxu0 0
        %2677 = vmatprep.subr.bf16.mxu0 0
        %2678 = vmatpush1.bf16.msra.mxu0 0
        %2679 = vmatprep.subr.bf16.mxu0 0
        %2680 = vmatpush1.bf16.msra.mxu0 0
        %2681 = vmatprep.subr.bf16.mxu0 0
        %2682 = vmatpush1.bf16.msra.mxu0 0
        %2683 = vmatprep.subr.bf16.mxu0 %v1630
        %2684 = vmatpush1.bf16.msra.mxu0 %v1629
        %2685 = vmatprep.subr.bf16.mxu0 0
        %2686 = vmatpush2.bf16.msra.mxu0 0
        %2687 = vmatprep.subr.bf16.mxu0 0
        %2688 = vmatpush2.bf16.msra.mxu0 0
        %2689 = vmatprep.subr.bf16.mxu0 0
        %2690 = vmatpush2.bf16.msra.mxu0 0
        %2691 = vmatprep.subr.bf16.mxu0 0
        %2692 = vmatpush2.bf16.msra.mxu0 0
        %2693 = vmatprep.subr.bf16.mxu0 0
        %2694 = vmatpush2.bf16.msra.mxu0 0
        %2695 = vmatprep.subr.bf16.mxu0 0
        %2696 = vmatpush2.bf16.msra.mxu0 0
        %2697 = vmatprep.subr.bf16.mxu0 0
        %2698 = vmatpush2.bf16.msra.mxu0 0
        %2699 = vmatprep.subr.bf16.mxu0 0
        %2700 = vmatpush2.bf16.msra.mxu0 0
        %2701 = vmatprep.mubr.bf16.mxu0 0
        %2702 = vmatmul.mubr.bf16.gmra.mxu0 %v1847
        %v2703 = vpop.f32.mrf.mxu0
        %v2704 = vadd.f32 %v728, %v2703
        %v2705 = vpop.f32.mrf.mxu0
        %v2706 = vadd.f32 %v732, %v2705
        %v2707 = vpop.f32.mrf.mxu0
        %v2708 = vpop.f32.mrf.mxu0
        %2709 = vdwg.mxu0
        %2710 = vmatprep.subr.bf16.mxu0 0
        %2711 = vmatpush1.bf16.msra.mxu0 0
        %2712 = vmatprep.subr.bf16.mxu0 0
        %2713 = vmatpush1.bf16.msra.mxu0 0
        %2714 = vmatprep.subr.bf16.mxu0 0
        %2715 = vmatpush1.bf16.msra.mxu0 0
        %2716 = vmatprep.subr.bf16.mxu0 0
        %2717 = vmatpush1.bf16.msra.mxu0 0
        %2718 = vmatprep.subr.bf16.mxu0 0
        %2719 = vmatpush1.bf16.msra.mxu0 0
        %2720 = vmatprep.subr.bf16.mxu0 0
        %2721 = vmatpush1.bf16.msra.mxu0 0
        %2722 = vmatprep.subr.bf16.mxu0 0
        %2723 = vmatpush1.bf16.msra.mxu0 0
        %2724 = vmatprep.subr.bf16.mxu0 %v1632
        %2725 = vmatpush1.bf16.msra.mxu0 %v1631
        %2726 = vmatprep.subr.bf16.mxu0 0
        %2727 = vmatpush2.bf16.msra.mxu0 0
        %2728 = vmatprep.subr.bf16.mxu0 0
        %2729 = vmatpush2.bf16.msra.mxu0 0
        %2730 = vmatprep.subr.bf16.mxu0 0
        %2731 = vmatpush2.bf16.msra.mxu0 0
        %2732 = vmatprep.subr.bf16.mxu0 0
        %2733 = vmatpush2.bf16.msra.mxu0 0
        %2734 = vmatprep.subr.bf16.mxu0 0
        %2735 = vmatpush2.bf16.msra.mxu0 0
        %2736 = vmatprep.subr.bf16.mxu0 0
        %2737 = vmatpush2.bf16.msra.mxu0 0
        %2738 = vmatprep.subr.bf16.mxu0 0
        %2739 = vmatpush2.bf16.msra.mxu0 0
        %2740 = vmatprep.subr.bf16.mxu0 0
        %2741 = vmatpush2.bf16.msra.mxu0 0
        %2742 = vmatprep.mubr.bf16.mxu0 0
        %2743 = vmatmul.mubr.bf16.gmra.mxu0 %v1847
        %v2744 = vpop.f32.mrf.mxu0
        %v2745 = vadd.f32 %v736, %v2744
        %v2746 = vpop.f32.mrf.mxu0
        %v2747 = vadd.f32 %v740, %v2746
        %v2748 = vpop.f32.mrf.mxu0
        %v2749 = vpop.f32.mrf.mxu0
        %2750 = vdwg.mxu0
        %2751 = vmatprep.subr.bf16.mxu0 0
        %2752 = vmatpush1.bf16.msra.mxu0 0
        %2753 = vmatprep.subr.bf16.mxu0 0
        %2754 = vmatpush1.bf16.msra.mxu0 0
        %2755 = vmatprep.subr.bf16.mxu0 0
        %2756 = vmatpush1.bf16.msra.mxu0 0
        %2757 = vmatprep.subr.bf16.mxu0 0
        %2758 = vmatpush1.bf16.msra.mxu0 0
        %2759 = vmatprep.subr.bf16.mxu0 0
        %2760 = vmatpush1.bf16.msra.mxu0 0
        %2761 = vmatprep.subr.bf16.mxu0 0
        %2762 = vmatpush1.bf16.msra.mxu0 0
        %2763 = vmatprep.subr.bf16.mxu0 0
        %2764 = vmatpush1.bf16.msra.mxu0 0
        %2765 = vmatprep.subr.bf16.mxu0 %v1634
        %2766 = vmatpush1.bf16.msra.mxu0 %v1633
        %2767 = vmatprep.subr.bf16.mxu0 0
        %2768 = vmatpush2.bf16.msra.mxu0 0
        %2769 = vmatprep.subr.bf16.mxu0 0
        %2770 = vmatpush2.bf16.msra.mxu0 0
        %2771 = vmatprep.subr.bf16.mxu0 0
        %2772 = vmatpush2.bf16.msra.mxu0 0
        %2773 = vmatprep.subr.bf16.mxu0 0
        %2774 = vmatpush2.bf16.msra.mxu0 0
        %2775 = vmatprep.subr.bf16.mxu0 0
        %2776 = vmatpush2.bf16.msra.mxu0 0
        %2777 = vmatprep.subr.bf16.mxu0 0
        %2778 = vmatpush2.bf16.msra.mxu0 0
        %2779 = vmatprep.subr.bf16.mxu0 0
        %2780 = vmatpush2.bf16.msra.mxu0 0
        %2781 = vmatprep.subr.bf16.mxu0 0
        %2782 = vmatpush2.bf16.msra.mxu0 0
        %2783 = vmatprep.mubr.bf16.mxu0 0
        %2784 = vmatmul.mubr.bf16.gmra.mxu0 %v1847
        %v2785 = vpop.f32.mrf.mxu0
        %v2786 = vadd.f32 %v744, %v2785
        %v2787 = vpop.f32.mrf.mxu0
        %v2788 = vadd.f32 %v748, %v2787
        %v2789 = vpop.f32.mrf.mxu0
        %v2790 = vpop.f32.mrf.mxu0
        %2791 = vdwg.mxu0
        %2792 = vmatprep.subr.bf16.mxu0 0
        %2793 = vmatpush1.bf16.msra.mxu0 0
        %2794 = vmatprep.subr.bf16.mxu0 0
        %2795 = vmatpush1.bf16.msra.mxu0 0
        %2796 = vmatprep.subr.bf16.mxu0 0
        %2797 = vmatpush1.bf16.msra.mxu0 0
        %2798 = vmatprep.subr.bf16.mxu0 0
        %2799 = vmatpush1.bf16.msra.mxu0 0
        %2800 = vmatprep.subr.bf16.mxu0 0
        %2801 = vmatpush1.bf16.msra.mxu0 0
        %2802 = vmatprep.subr.bf16.mxu0 0
        %2803 = vmatpush1.bf16.msra.mxu0 0
        %2804 = vmatprep.subr.bf16.mxu0 0
        %2805 = vmatpush1.bf16.msra.mxu0 0
        %2806 = vmatprep.subr.bf16.mxu0 %v1636
        %2807 = vmatpush1.bf16.msra.mxu0 %v1635
        %2808 = vmatprep.subr.bf16.mxu0 0
        %2809 = vmatpush2.bf16.msra.mxu0 0
        %2810 = vmatprep.subr.bf16.mxu0 0
        %2811 = vmatpush2.bf16.msra.mxu0 0
        %2812 = vmatprep.subr.bf16.mxu0 0
        %2813 = vmatpush2.bf16.msra.mxu0 0
        %2814 = vmatprep.subr.bf16.mxu0 0
        %2815 = vmatpush2.bf16.msra.mxu0 0
        %2816 = vmatprep.subr.bf16.mxu0 0
        %2817 = vmatpush2.bf16.msra.mxu0 0
        %2818 = vmatprep.subr.bf16.mxu0 0
        %2819 = vmatpush2.bf16.msra.mxu0 0
        %2820 = vmatprep.subr.bf16.mxu0 0
        %2821 = vmatpush2.bf16.msra.mxu0 0
        %2822 = vmatprep.subr.bf16.mxu0 0
        %2823 = vmatpush2.bf16.msra.mxu0 0
        %2824 = vmatprep.mubr.bf16.mxu0 0
        %2825 = vmatmul.mubr.bf16.gmra.mxu0 %v1847
        %v2826 = vpop.f32.mrf.mxu0
        %v2827 = vadd.f32 %v752, %v2826
        %v2828 = vpop.f32.mrf.mxu0
        %v2829 = vadd.f32 %v756, %v2828
        %v2830 = vpop.f32.mrf.mxu0
        %v2831 = vpop.f32.mrf.mxu0
        %2832 = vdwg.mxu0
        %2833 = vmatprep.subr.bf16.mxu0 0
        %2834 = vmatpush1.bf16.msra.mxu0 0
        %2835 = vmatprep.subr.bf16.mxu0 0
        %2836 = vmatpush1.bf16.msra.mxu0 0
        %2837 = vmatprep.subr.bf16.mxu0 0
        %2838 = vmatpush1.bf16.msra.mxu0 0
        %2839 = vmatprep.subr.bf16.mxu0 0
        %2840 = vmatpush1.bf16.msra.mxu0 0
        %2841 = vmatprep.subr.bf16.mxu0 0
        %2842 = vmatpush1.bf16.msra.mxu0 0
        %2843 = vmatprep.subr.bf16.mxu0 0
        %2844 = vmatpush1.bf16.msra.mxu0 0
        %2845 = vmatprep.subr.bf16.mxu0 0
        %2846 = vmatpush1.bf16.msra.mxu0 0
        %2847 = vmatprep.subr.bf16.mxu0 %v1638
        %2848 = vmatpush1.bf16.msra.mxu0 %v1637
        %2849 = vmatprep.subr.bf16.mxu0 0
        %2850 = vmatpush2.bf16.msra.mxu0 0
        %2851 = vmatprep.subr.bf16.mxu0 0
        %2852 = vmatpush2.bf16.msra.mxu0 0
        %2853 = vmatprep.subr.bf16.mxu0 0
        %2854 = vmatpush2.bf16.msra.mxu0 0
        %2855 = vmatprep.subr.bf16.mxu0 0
        %2856 = vmatpush2.bf16.msra.mxu0 0
        %2857 = vmatprep.subr.bf16.mxu0 0
        %2858 = vmatpush2.bf16.msra.mxu0 0
        %2859 = vmatprep.subr.bf16.mxu0 0
        %2860 = vmatpush2.bf16.msra.mxu0 0
        %2861 = vmatprep.subr.bf16.mxu0 0
        %2862 = vmatpush2.bf16.msra.mxu0 0
        %2863 = vmatprep.subr.bf16.mxu0 0
        %2864 = vmatpush2.bf16.msra.mxu0 0
        %2865 = vmatprep.mubr.bf16.mxu0 0
        %2866 = vmatmul.mubr.bf16.gmra.mxu0 %v1847
        %v2867 = vpop.f32.mrf.mxu0
        %v2868 = vadd.f32 %v760, %v2867
        %v2869 = vpop.f32.mrf.mxu0
        %v2870 = vadd.f32 %v764, %v2869
        %v2871 = vpop.f32.mrf.mxu0
        %v2872 = vpop.f32.mrf.mxu0
        %2873 = vdwg.mxu0
        %2874 = vmatprep.subr.bf16.mxu0 0
        %2875 = vmatpush1.bf16.msra.mxu0 0
        %2876 = vmatprep.subr.bf16.mxu0 0
        %2877 = vmatpush1.bf16.msra.mxu0 0
        %2878 = vmatprep.subr.bf16.mxu0 0
        %2879 = vmatpush1.bf16.msra.mxu0 0
        %2880 = vmatprep.subr.bf16.mxu0 0
        %2881 = vmatpush1.bf16.msra.mxu0 0
        %2882 = vmatprep.subr.bf16.mxu0 0
        %2883 = vmatpush1.bf16.msra.mxu0 0
        %2884 = vmatprep.subr.bf16.mxu0 0
        %2885 = vmatpush1.bf16.msra.mxu0 0
        %2886 = vmatprep.subr.bf16.mxu0 0
        %2887 = vmatpush1.bf16.msra.mxu0 0
        %2888 = vmatprep.subr.bf16.mxu0 %v1640
        %2889 = vmatpush1.bf16.msra.mxu0 %v1639
        %2890 = vmatprep.subr.bf16.mxu0 0
        %2891 = vmatpush2.bf16.msra.mxu0 0
        %2892 = vmatprep.subr.bf16.mxu0 0
        %2893 = vmatpush2.bf16.msra.mxu0 0
        %2894 = vmatprep.subr.bf16.mxu0 0
        %2895 = vmatpush2.bf16.msra.mxu0 0
        %2896 = vmatprep.subr.bf16.mxu0 0
        %2897 = vmatpush2.bf16.msra.mxu0 0
        %2898 = vmatprep.subr.bf16.mxu0 0
        %2899 = vmatpush2.bf16.msra.mxu0 0
        %2900 = vmatprep.subr.bf16.mxu0 0
        %2901 = vmatpush2.bf16.msra.mxu0 0
        %2902 = vmatprep.subr.bf16.mxu0 0
        %2903 = vmatpush2.bf16.msra.mxu0 0
        %2904 = vmatprep.subr.bf16.mxu0 0
        %2905 = vmatpush2.bf16.msra.mxu0 0
        %2906 = vmatprep.mubr.bf16.mxu0 0
        %2907 = vmatmul.mubr.bf16.gmra.mxu0 %v1847
        %v2908 = vpop.f32.mrf.mxu0
        %v2909 = vadd.f32 %v768, %v2908
        %v2910 = vpop.f32.mrf.mxu0
        %v2911 = vadd.f32 %v772, %v2910
        %v2912 = vpop.f32.mrf.mxu0
        %v2913 = vpop.f32.mrf.mxu0
        %2914 = vdwg.mxu0
        %2915 = vmatprep.subr.bf16.mxu0 0
        %2916 = vmatpush1.bf16.msra.mxu0 0
        %2917 = vmatprep.subr.bf16.mxu0 0
        %2918 = vmatpush1.bf16.msra.mxu0 0
        %2919 = vmatprep.subr.bf16.mxu0 0
        %2920 = vmatpush1.bf16.msra.mxu0 0
        %2921 = vmatprep.subr.bf16.mxu0 0
        %2922 = vmatpush1.bf16.msra.mxu0 0
        %2923 = vmatprep.subr.bf16.mxu0 0
        %2924 = vmatpush1.bf16.msra.mxu0 0
        %2925 = vmatprep.subr.bf16.mxu0 0
        %2926 = vmatpush1.bf16.msra.mxu0 0
        %2927 = vmatprep.subr.bf16.mxu0 0
        %2928 = vmatpush1.bf16.msra.mxu0 0
        %2929 = vmatprep.subr.bf16.mxu0 %v1642
        %2930 = vmatpush1.bf16.msra.mxu0 %v1641
        %2931 = vmatprep.subr.bf16.mxu0 0
        %2932 = vmatpush2.bf16.msra.mxu0 0
        %2933 = vmatprep.subr.bf16.mxu0 0
        %2934 = vmatpush2.bf16.msra.mxu0 0
        %2935 = vmatprep.subr.bf16.mxu0 0
        %2936 = vmatpush2.bf16.msra.mxu0 0
        %2937 = vmatprep.subr.bf16.mxu0 0
        %2938 = vmatpush2.bf16.msra.mxu0 0
        %2939 = vmatprep.subr.bf16.mxu0 0
        %2940 = vmatpush2.bf16.msra.mxu0 0
        %2941 = vmatprep.subr.bf16.mxu0 0
        %2942 = vmatpush2.bf16.msra.mxu0 0
        %2943 = vmatprep.subr.bf16.mxu0 0
        %2944 = vmatpush2.bf16.msra.mxu0 0
        %2945 = vmatprep.subr.bf16.mxu0 0
        %2946 = vmatpush2.bf16.msra.mxu0 0
        %2947 = vmatprep.mubr.bf16.mxu0 0
        %2948 = vmatmul.mubr.bf16.gmra.mxu0 %v1847
        %v2949 = vpop.f32.mrf.mxu0
        %v2950 = vadd.f32 %v776, %v2949
        %v2951 = vpop.f32.mrf.mxu0
        %v2952 = vadd.f32 %v780, %v2951
        %v2953 = vpop.f32.mrf.mxu0
        %v2954 = vpop.f32.mrf.mxu0
        %2955 = vdwg.mxu0
        %2956 = vmatprep.subr.bf16.mxu0 0
        %2957 = vmatpush1.bf16.msra.mxu0 0
        %2958 = vmatprep.subr.bf16.mxu0 0
        %2959 = vmatpush1.bf16.msra.mxu0 0
        %2960 = vmatprep.subr.bf16.mxu0 0
        %2961 = vmatpush1.bf16.msra.mxu0 0
        %2962 = vmatprep.subr.bf16.mxu0 0
        %2963 = vmatpush1.bf16.msra.mxu0 0
        %2964 = vmatprep.subr.bf16.mxu0 0
        %2965 = vmatpush1.bf16.msra.mxu0 0
        %2966 = vmatprep.subr.bf16.mxu0 0
        %2967 = vmatpush1.bf16.msra.mxu0 0
        %2968 = vmatprep.subr.bf16.mxu0 0
        %2969 = vmatpush1.bf16.msra.mxu0 0
        %2970 = vmatprep.subr.bf16.mxu0 %v1644
        %2971 = vmatpush1.bf16.msra.mxu0 %v1643
        %2972 = vmatprep.subr.bf16.mxu0 0
        %2973 = vmatpush2.bf16.msra.mxu0 0
        %2974 = vmatprep.subr.bf16.mxu0 0
        %2975 = vmatpush2.bf16.msra.mxu0 0
        %2976 = vmatprep.subr.bf16.mxu0 0
        %2977 = vmatpush2.bf16.msra.mxu0 0
        %2978 = vmatprep.subr.bf16.mxu0 0
        %2979 = vmatpush2.bf16.msra.mxu0 0
        %2980 = vmatprep.subr.bf16.mxu0 0
        %2981 = vmatpush2.bf16.msra.mxu0 0
        %2982 = vmatprep.subr.bf16.mxu0 0
        %2983 = vmatpush2.bf16.msra.mxu0 0
        %2984 = vmatprep.subr.bf16.mxu0 0
        %2985 = vmatpush2.bf16.msra.mxu0 0
        %2986 = vmatprep.subr.bf16.mxu0 0
        %2987 = vmatpush2.bf16.msra.mxu0 0
        %2988 = vmatprep.mubr.bf16.mxu0 0
        %2989 = vmatmul.mubr.bf16.gmra.mxu0 %v1847
        %v2990 = vpop.f32.mrf.mxu0
        %v2991 = vadd.f32 %v784, %v2990
        %v2992 = vpop.f32.mrf.mxu0
        %v2993 = vadd.f32 %v788, %v2992
        %v2994 = vpop.f32.mrf.mxu0
        %v2995 = vpop.f32.mrf.mxu0
        %2996 = vdwg.mxu0
        %2997 = vmatprep.subr.bf16.mxu0 0
        %2998 = vmatpush1.bf16.msra.mxu0 0
        %2999 = vmatprep.subr.bf16.mxu0 0
        %3000 = vmatpush1.bf16.msra.mxu0 0
        %3001 = vmatprep.subr.bf16.mxu0 0
        %3002 = vmatpush1.bf16.msra.mxu0 0
        %3003 = vmatprep.subr.bf16.mxu0 0
        %3004 = vmatpush1.bf16.msra.mxu0 0
        %3005 = vmatprep.subr.bf16.mxu0 0
        %3006 = vmatpush1.bf16.msra.mxu0 0
        %3007 = vmatprep.subr.bf16.mxu0 0
        %3008 = vmatpush1.bf16.msra.mxu0 0
        %3009 = vmatprep.subr.bf16.mxu0 0
        %3010 = vmatpush1.bf16.msra.mxu0 0
        %3011 = vmatprep.subr.bf16.mxu0 %v1646
        %3012 = vmatpush1.bf16.msra.mxu0 %v1645
        %3013 = vmatprep.subr.bf16.mxu0 0
        %3014 = vmatpush2.bf16.msra.mxu0 0
        %3015 = vmatprep.subr.bf16.mxu0 0
        %3016 = vmatpush2.bf16.msra.mxu0 0
        %3017 = vmatprep.subr.bf16.mxu0 0
        %3018 = vmatpush2.bf16.msra.mxu0 0
        %3019 = vmatprep.subr.bf16.mxu0 0
        %3020 = vmatpush2.bf16.msra.mxu0 0
        %3021 = vmatprep.subr.bf16.mxu0 0
        %3022 = vmatpush2.bf16.msra.mxu0 0
        %3023 = vmatprep.subr.bf16.mxu0 0
        %3024 = vmatpush2.bf16.msra.mxu0 0
        %3025 = vmatprep.subr.bf16.mxu0 0
        %3026 = vmatpush2.bf16.msra.mxu0 0
        %3027 = vmatprep.subr.bf16.mxu0 0
        %3028 = vmatpush2.bf16.msra.mxu0 0
        %3029 = vmatprep.mubr.bf16.mxu0 0
        %3030 = vmatmul.mubr.bf16.gmra.mxu0 %v1847
        %v3031 = vpop.f32.mrf.mxu0
        %v3032 = vadd.f32 %v792, %v3031
        %v3033 = vpop.f32.mrf.mxu0
        %v3034 = vadd.f32 %v796, %v3033
        %v3035 = vpop.f32.mrf.mxu0
        %v3036 = vpop.f32.mrf.mxu0
        %3037 = vdwg.mxu0
        %3038 = vmatprep.subr.bf16.mxu0 0
        %3039 = vmatpush1.bf16.msra.mxu0 0
        %3040 = vmatprep.subr.bf16.mxu0 0
        %3041 = vmatpush1.bf16.msra.mxu0 0
        %3042 = vmatprep.subr.bf16.mxu0 0
        %3043 = vmatpush1.bf16.msra.mxu0 0
        %3044 = vmatprep.subr.bf16.mxu0 0
        %3045 = vmatpush1.bf16.msra.mxu0 0
        %3046 = vmatprep.subr.bf16.mxu0 0
        %3047 = vmatpush1.bf16.msra.mxu0 0
        %3048 = vmatprep.subr.bf16.mxu0 0
        %3049 = vmatpush1.bf16.msra.mxu0 0
        %3050 = vmatprep.subr.bf16.mxu0 0
        %3051 = vmatpush1.bf16.msra.mxu0 0
        %3052 = vmatprep.subr.bf16.mxu0 %v1648
        %3053 = vmatpush1.bf16.msra.mxu0 %v1647
        %3054 = vmatprep.subr.bf16.mxu0 0
        %3055 = vmatpush2.bf16.msra.mxu0 0
        %3056 = vmatprep.subr.bf16.mxu0 0
        %3057 = vmatpush2.bf16.msra.mxu0 0
        %3058 = vmatprep.subr.bf16.mxu0 0
        %3059 = vmatpush2.bf16.msra.mxu0 0
        %3060 = vmatprep.subr.bf16.mxu0 0
        %3061 = vmatpush2.bf16.msra.mxu0 0
        %3062 = vmatprep.subr.bf16.mxu0 0
        %3063 = vmatpush2.bf16.msra.mxu0 0
        %3064 = vmatprep.subr.bf16.mxu0 0
        %3065 = vmatpush2.bf16.msra.mxu0 0
        %3066 = vmatprep.subr.bf16.mxu0 0
        %3067 = vmatpush2.bf16.msra.mxu0 0
        %3068 = vmatprep.subr.bf16.mxu0 0
        %3069 = vmatpush2.bf16.msra.mxu0 0
        %3070 = vmatprep.mubr.bf16.mxu0 0
        %3071 = vmatmul.mubr.bf16.gmra.mxu0 %v1847
        %v3072 = vpop.f32.mrf.mxu0
        %v3073 = vadd.f32 %v800, %v3072
        %v3074 = vpop.f32.mrf.mxu0
        %v3075 = vadd.f32 %v804, %v3074
        %v3076 = vpop.f32.mrf.mxu0
        %v3077 = vpop.f32.mrf.mxu0
        %3078 = vdwg.mxu0
        %3079 = vmatprep.subr.bf16.mxu0 0
        %3080 = vmatpush1.bf16.msra.mxu0 0
        %3081 = vmatprep.subr.bf16.mxu0 0
        %3082 = vmatpush1.bf16.msra.mxu0 0
        %3083 = vmatprep.subr.bf16.mxu0 0
        %3084 = vmatpush1.bf16.msra.mxu0 0
        %3085 = vmatprep.subr.bf16.mxu0 0
        %3086 = vmatpush1.bf16.msra.mxu0 0
        %3087 = vmatprep.subr.bf16.mxu0 0
        %3088 = vmatpush1.bf16.msra.mxu0 0
        %3089 = vmatprep.subr.bf16.mxu0 0
        %3090 = vmatpush1.bf16.msra.mxu0 0
        %3091 = vmatprep.subr.bf16.mxu0 0
        %3092 = vmatpush1.bf16.msra.mxu0 0
        %3093 = vmatprep.subr.bf16.mxu0 %v1650
        %3094 = vmatpush1.bf16.msra.mxu0 %v1649
        %3095 = vmatprep.subr.bf16.mxu0 0
        %3096 = vmatpush2.bf16.msra.mxu0 0
        %3097 = vmatprep.subr.bf16.mxu0 0
        %3098 = vmatpush2.bf16.msra.mxu0 0
        %3099 = vmatprep.subr.bf16.mxu0 0
        %3100 = vmatpush2.bf16.msra.mxu0 0
        %3101 = vmatprep.subr.bf16.mxu0 0
        %3102 = vmatpush2.bf16.msra.mxu0 0
        %3103 = vmatprep.subr.bf16.mxu0 0
        %3104 = vmatpush2.bf16.msra.mxu0 0
        %3105 = vmatprep.subr.bf16.mxu0 0
        %3106 = vmatpush2.bf16.msra.mxu0 0
        %3107 = vmatprep.subr.bf16.mxu0 0
        %3108 = vmatpush2.bf16.msra.mxu0 0
        %3109 = vmatprep.subr.bf16.mxu0 0
        %3110 = vmatpush2.bf16.msra.mxu0 0
        %3111 = vmatprep.mubr.bf16.mxu0 0
        %3112 = vmatmul.mubr.bf16.gmra.mxu0 %v1847
        %v3113 = vpop.f32.mrf.mxu0
        %v3114 = vadd.f32 %v808, %v3113
        %v3115 = vpop.f32.mrf.mxu0
        %v3116 = vadd.f32 %v812, %v3115
        %v3117 = vpop.f32.mrf.mxu0
        %v3118 = vpop.f32.mrf.mxu0
        %3119 = vdwg.mxu0
        %3120 = vmatprep.subr.bf16.mxu0 0
        %3121 = vmatpush1.bf16.msra.mxu0 0
        %3122 = vmatprep.subr.bf16.mxu0 0
        %3123 = vmatpush1.bf16.msra.mxu0 0
        %3124 = vmatprep.subr.bf16.mxu0 0
        %3125 = vmatpush1.bf16.msra.mxu0 0
        %3126 = vmatprep.subr.bf16.mxu0 0
        %3127 = vmatpush1.bf16.msra.mxu0 0
        %3128 = vmatprep.subr.bf16.mxu0 0
        %3129 = vmatpush1.bf16.msra.mxu0 0
        %3130 = vmatprep.subr.bf16.mxu0 0
        %3131 = vmatpush1.bf16.msra.mxu0 0
        %3132 = vmatprep.subr.bf16.mxu0 0
        %3133 = vmatpush1.bf16.msra.mxu0 0
        %3134 = vmatprep.subr.bf16.mxu0 %v1652
        %3135 = vmatpush1.bf16.msra.mxu0 %v1651
        %3136 = vmatprep.subr.bf16.mxu0 0
        %3137 = vmatpush2.bf16.msra.mxu0 0
        %3138 = vmatprep.subr.bf16.mxu0 0
        %3139 = vmatpush2.bf16.msra.mxu0 0
        %3140 = vmatprep.subr.bf16.mxu0 0
        %3141 = vmatpush2.bf16.msra.mxu0 0
        %3142 = vmatprep.subr.bf16.mxu0 0
        %3143 = vmatpush2.bf16.msra.mxu0 0
        %3144 = vmatprep.subr.bf16.mxu0 0
        %3145 = vmatpush2.bf16.msra.mxu0 0
        %3146 = vmatprep.subr.bf16.mxu0 0
        %3147 = vmatpush2.bf16.msra.mxu0 0
        %3148 = vmatprep.subr.bf16.mxu0 0
        %3149 = vmatpush2.bf16.msra.mxu0 0
        %3150 = vmatprep.subr.bf16.mxu0 0
        %3151 = vmatpush2.bf16.msra.mxu0 0
        %3152 = vmatprep.mubr.bf16.mxu0 0
        %3153 = vmatmul.mubr.bf16.gmra.mxu0 %v1847
        %v3154 = vpop.f32.mrf.mxu0
        %v3155 = vadd.f32 %v816, %v3154
        %v3156 = vpop.f32.mrf.mxu0
        %v3157 = vadd.f32 %v820, %v3156
        %v3158 = vpop.f32.mrf.mxu0
        %v3159 = vpop.f32.mrf.mxu0
        %3160 = vdwg.mxu0
        %3161 = vmatprep.subr.bf16.mxu0 0
        %3162 = vmatpush1.bf16.msra.mxu0 0
        %3163 = vmatprep.subr.bf16.mxu0 0
        %3164 = vmatpush1.bf16.msra.mxu0 0
        %3165 = vmatprep.subr.bf16.mxu0 0
        %3166 = vmatpush1.bf16.msra.mxu0 0
        %3167 = vmatprep.subr.bf16.mxu0 0
        %3168 = vmatpush1.bf16.msra.mxu0 0
        %3169 = vmatprep.subr.bf16.mxu0 0
        %3170 = vmatpush1.bf16.msra.mxu0 0
        %3171 = vmatprep.subr.bf16.mxu0 0
        %3172 = vmatpush1.bf16.msra.mxu0 0
        %3173 = vmatprep.subr.bf16.mxu0 0
        %3174 = vmatpush1.bf16.msra.mxu0 0
        %3175 = vmatprep.subr.bf16.mxu0 %v1654
        %3176 = vmatpush1.bf16.msra.mxu0 %v1653
        %3177 = vmatprep.subr.bf16.mxu0 0
        %3178 = vmatpush2.bf16.msra.mxu0 0
        %3179 = vmatprep.subr.bf16.mxu0 0
        %3180 = vmatpush2.bf16.msra.mxu0 0
        %3181 = vmatprep.subr.bf16.mxu0 0
        %3182 = vmatpush2.bf16.msra.mxu0 0
        %3183 = vmatprep.subr.bf16.mxu0 0
        %3184 = vmatpush2.bf16.msra.mxu0 0
        %3185 = vmatprep.subr.bf16.mxu0 0
        %3186 = vmatpush2.bf16.msra.mxu0 0
        %3187 = vmatprep.subr.bf16.mxu0 0
        %3188 = vmatpush2.bf16.msra.mxu0 0
        %3189 = vmatprep.subr.bf16.mxu0 0
        %3190 = vmatpush2.bf16.msra.mxu0 0
        %3191 = vmatprep.subr.bf16.mxu0 0
        %3192 = vmatpush2.bf16.msra.mxu0 0
        %3193 = vmatprep.mubr.bf16.mxu0 0
        %3194 = vmatmul.mubr.bf16.gmra.mxu0 %v1847
        %v3195 = vpop.f32.mrf.mxu0
        %v3196 = vadd.f32 %v824, %v3195
        %v3197 = vpop.f32.mrf.mxu0
        %v3198 = vadd.f32 %v828, %v3197
        %v3199 = vpop.f32.mrf.mxu0
        %v3200 = vpop.f32.mrf.mxu0
        %3201 = vdwg.mxu0
        %3202 = vmatprep.subr.bf16.mxu0 0
        %3203 = vmatpush1.bf16.msra.mxu0 0
        %3204 = vmatprep.subr.bf16.mxu0 0
        %3205 = vmatpush1.bf16.msra.mxu0 0
        %3206 = vmatprep.subr.bf16.mxu0 0
        %3207 = vmatpush1.bf16.msra.mxu0 0
        %3208 = vmatprep.subr.bf16.mxu0 0
        %3209 = vmatpush1.bf16.msra.mxu0 0
        %3210 = vmatprep.subr.bf16.mxu0 0
        %3211 = vmatpush1.bf16.msra.mxu0 0
        %3212 = vmatprep.subr.bf16.mxu0 0
        %3213 = vmatpush1.bf16.msra.mxu0 0
        %3214 = vmatprep.subr.bf16.mxu0 0
        %3215 = vmatpush1.bf16.msra.mxu0 0
        %3216 = vmatprep.subr.bf16.mxu0 %v1656
        %3217 = vmatpush1.bf16.msra.mxu0 %v1655
        %3218 = vmatprep.subr.bf16.mxu0 0
        %3219 = vmatpush2.bf16.msra.mxu0 0
        %3220 = vmatprep.subr.bf16.mxu0 0
        %3221 = vmatpush2.bf16.msra.mxu0 0
        %3222 = vmatprep.subr.bf16.mxu0 0
        %3223 = vmatpush2.bf16.msra.mxu0 0
        %3224 = vmatprep.subr.bf16.mxu0 0
        %3225 = vmatpush2.bf16.msra.mxu0 0
        %3226 = vmatprep.subr.bf16.mxu0 0
        %3227 = vmatpush2.bf16.msra.mxu0 0
        %3228 = vmatprep.subr.bf16.mxu0 0
        %3229 = vmatpush2.bf16.msra.mxu0 0
        %3230 = vmatprep.subr.bf16.mxu0 0
        %3231 = vmatpush2.bf16.msra.mxu0 0
        %3232 = vmatprep.subr.bf16.mxu0 0
        %3233 = vmatpush2.bf16.msra.mxu0 0
        %3234 = vmatprep.mubr.bf16.mxu0 0
        %3235 = vmatmul.mubr.bf16.gmra.mxu0 %v1847
        %v3236 = vpop.f32.mrf.mxu0
        %v3237 = vadd.f32 %v832, %v3236
        %v3238 = vpop.f32.mrf.mxu0
        %v3239 = vadd.f32 %v836, %v3238
        %v3240 = vpop.f32.mrf.mxu0
        %v3241 = vpop.f32.mrf.mxu0
        %3242 = vdwg.mxu0
        %3243 = vmatprep.subr.bf16.mxu0 0
        %3244 = vmatpush1.bf16.msra.mxu0 0
        %3245 = vmatprep.subr.bf16.mxu0 0
        %3246 = vmatpush1.bf16.msra.mxu0 0
        %3247 = vmatprep.subr.bf16.mxu0 0
        %3248 = vmatpush1.bf16.msra.mxu0 0
        %3249 = vmatprep.subr.bf16.mxu0 0
        %3250 = vmatpush1.bf16.msra.mxu0 0
        %3251 = vmatprep.subr.bf16.mxu0 0
        %3252 = vmatpush1.bf16.msra.mxu0 0
        %3253 = vmatprep.subr.bf16.mxu0 0
        %3254 = vmatpush1.bf16.msra.mxu0 0
        %3255 = vmatprep.subr.bf16.mxu0 0
        %3256 = vmatpush1.bf16.msra.mxu0 0
        %3257 = vmatprep.subr.bf16.mxu0 %v1658
        %3258 = vmatpush1.bf16.msra.mxu0 %v1657
        %3259 = vmatprep.subr.bf16.mxu0 0
        %3260 = vmatpush2.bf16.msra.mxu0 0
        %3261 = vmatprep.subr.bf16.mxu0 0
        %3262 = vmatpush2.bf16.msra.mxu0 0
        %3263 = vmatprep.subr.bf16.mxu0 0
        %3264 = vmatpush2.bf16.msra.mxu0 0
        %3265 = vmatprep.subr.bf16.mxu0 0
        %3266 = vmatpush2.bf16.msra.mxu0 0
        %3267 = vmatprep.subr.bf16.mxu0 0
        %3268 = vmatpush2.bf16.msra.mxu0 0
        %3269 = vmatprep.subr.bf16.mxu0 0
        %3270 = vmatpush2.bf16.msra.mxu0 0
        %3271 = vmatprep.subr.bf16.mxu0 0
        %3272 = vmatpush2.bf16.msra.mxu0 0
        %3273 = vmatprep.subr.bf16.mxu0 0
        %3274 = vmatpush2.bf16.msra.mxu0 0
        %3275 = vmatprep.mubr.bf16.mxu0 0
        %3276 = vmatmul.mubr.bf16.gmra.mxu0 %v1847
        %v3277 = vpop.f32.mrf.mxu0
        %v3278 = vadd.f32 %v840, %v3277
        %v3279 = vpop.f32.mrf.mxu0
        %v3280 = vadd.f32 %v844, %v3279
        %v3281 = vpop.f32.mrf.mxu0
        %v3282 = vpop.f32.mrf.mxu0
        %3283 = vdwg.mxu0
        %3284 = vmatprep.subr.bf16.mxu0 0
        %3285 = vmatpush1.bf16.msra.mxu0 0
        %3286 = vmatprep.subr.bf16.mxu0 0
        %3287 = vmatpush1.bf16.msra.mxu0 0
        %3288 = vmatprep.subr.bf16.mxu0 0
        %3289 = vmatpush1.bf16.msra.mxu0 0
        %3290 = vmatprep.subr.bf16.mxu0 0
        %3291 = vmatpush1.bf16.msra.mxu0 0
        %3292 = vmatprep.subr.bf16.mxu0 0
        %3293 = vmatpush1.bf16.msra.mxu0 0
        %3294 = vmatprep.subr.bf16.mxu0 0
        %3295 = vmatpush1.bf16.msra.mxu0 0
        %3296 = vmatprep.subr.bf16.mxu0 0
        %3297 = vmatpush1.bf16.msra.mxu0 0
        %3298 = vmatprep.subr.bf16.mxu0 %v1660
        %3299 = vmatpush1.bf16.msra.mxu0 %v1659
        %3300 = vmatprep.subr.bf16.mxu0 0
        %3301 = vmatpush2.bf16.msra.mxu0 0
        %3302 = vmatprep.subr.bf16.mxu0 0
        %3303 = vmatpush2.bf16.msra.mxu0 0
        %3304 = vmatprep.subr.bf16.mxu0 0
        %3305 = vmatpush2.bf16.msra.mxu0 0
        %3306 = vmatprep.subr.bf16.mxu0 0
        %3307 = vmatpush2.bf16.msra.mxu0 0
        %3308 = vmatprep.subr.bf16.mxu0 0
        %3309 = vmatpush2.bf16.msra.mxu0 0
        %3310 = vmatprep.subr.bf16.mxu0 0
        %3311 = vmatpush2.bf16.msra.mxu0 0
        %3312 = vmatprep.subr.bf16.mxu0 0
        %3313 = vmatpush2.bf16.msra.mxu0 0
        %3314 = vmatprep.subr.bf16.mxu0 0
        %3315 = vmatpush2.bf16.msra.mxu0 0
        %3316 = vmatprep.mubr.bf16.mxu0 0
        %3317 = vmatmul.mubr.bf16.gmra.mxu0 %v1847
        %v3318 = vpop.f32.mrf.mxu0
        %v3319 = vadd.f32 %v848, %v3318
        %v3320 = vpop.f32.mrf.mxu0
        %v3321 = vadd.f32 %v852, %v3320
        %v3322 = vpop.f32.mrf.mxu0
        %v3323 = vpop.f32.mrf.mxu0
        %3324 = vdwg.mxu0
        %3325 = vmatprep.subr.bf16.mxu0 0
        %3326 = vmatpush1.bf16.msra.mxu0 0
        %3327 = vmatprep.subr.bf16.mxu0 0
        %3328 = vmatpush1.bf16.msra.mxu0 0
        %3329 = vmatprep.subr.bf16.mxu0 0
        %3330 = vmatpush1.bf16.msra.mxu0 0
        %3331 = vmatprep.subr.bf16.mxu0 0
        %3332 = vmatpush1.bf16.msra.mxu0 0
        %3333 = vmatprep.subr.bf16.mxu0 0
        %3334 = vmatpush1.bf16.msra.mxu0 0
        %3335 = vmatprep.subr.bf16.mxu0 0
        %3336 = vmatpush1.bf16.msra.mxu0 0
        %3337 = vmatprep.subr.bf16.mxu0 0
        %3338 = vmatpush1.bf16.msra.mxu0 0
        %3339 = vmatprep.subr.bf16.mxu0 %v1662
        %3340 = vmatpush1.bf16.msra.mxu0 %v1661
        %3341 = vmatprep.subr.bf16.mxu0 0
        %3342 = vmatpush2.bf16.msra.mxu0 0
        %3343 = vmatprep.subr.bf16.mxu0 0
        %3344 = vmatpush2.bf16.msra.mxu0 0
        %3345 = vmatprep.subr.bf16.mxu0 0
        %3346 = vmatpush2.bf16.msra.mxu0 0
        %3347 = vmatprep.subr.bf16.mxu0 0
        %3348 = vmatpush2.bf16.msra.mxu0 0
        %3349 = vmatprep.subr.bf16.mxu0 0
        %3350 = vmatpush2.bf16.msra.mxu0 0
        %3351 = vmatprep.subr.bf16.mxu0 0
        %3352 = vmatpush2.bf16.msra.mxu0 0
        %3353 = vmatprep.subr.bf16.mxu0 0
        %3354 = vmatpush2.bf16.msra.mxu0 0
        %3355 = vmatprep.subr.bf16.mxu0 0
        %3356 = vmatpush2.bf16.msra.mxu0 0
        %3357 = vmatprep.mubr.bf16.mxu0 0
        %3358 = vmatmul.mubr.bf16.gmra.mxu0 %v1847
        %v3359 = vpop.f32.mrf.mxu0
        %v3360 = vadd.f32 %v856, %v3359
        %v3361 = vpop.f32.mrf.mxu0
        %v3362 = vadd.f32 %v860, %v3361
        %v3363 = vpop.f32.mrf.mxu0
        %v3364 = vpop.f32.mrf.mxu0
        %3365 = vdwg.mxu0
        %3366 = vmatprep.subr.bf16.mxu0 0
        %3367 = vmatpush1.bf16.msra.mxu0 0
        %3368 = vmatprep.subr.bf16.mxu0 0
        %3369 = vmatpush1.bf16.msra.mxu0 0
        %3370 = vmatprep.subr.bf16.mxu0 0
        %3371 = vmatpush1.bf16.msra.mxu0 0
        %3372 = vmatprep.subr.bf16.mxu0 0
        %3373 = vmatpush1.bf16.msra.mxu0 0
        %3374 = vmatprep.subr.bf16.mxu0 0
        %3375 = vmatpush1.bf16.msra.mxu0 0
        %3376 = vmatprep.subr.bf16.mxu0 0
        %3377 = vmatpush1.bf16.msra.mxu0 0
        %3378 = vmatprep.subr.bf16.mxu0 0
        %3379 = vmatpush1.bf16.msra.mxu0 0
        %3380 = vmatprep.subr.bf16.mxu0 %v1664
        %3381 = vmatpush1.bf16.msra.mxu0 %v1663
        %3382 = vmatprep.subr.bf16.mxu0 0
        %3383 = vmatpush2.bf16.msra.mxu0 0
        %3384 = vmatprep.subr.bf16.mxu0 0
        %3385 = vmatpush2.bf16.msra.mxu0 0
        %3386 = vmatprep.subr.bf16.mxu0 0
        %3387 = vmatpush2.bf16.msra.mxu0 0
        %3388 = vmatprep.subr.bf16.mxu0 0
        %3389 = vmatpush2.bf16.msra.mxu0 0
        %3390 = vmatprep.subr.bf16.mxu0 0
        %3391 = vmatpush2.bf16.msra.mxu0 0
        %3392 = vmatprep.subr.bf16.mxu0 0
        %3393 = vmatpush2.bf16.msra.mxu0 0
        %3394 = vmatprep.subr.bf16.mxu0 0
        %3395 = vmatpush2.bf16.msra.mxu0 0
        %3396 = vmatprep.subr.bf16.mxu0 0
        %3397 = vmatpush2.bf16.msra.mxu0 0
        %3398 = vmatprep.mubr.bf16.mxu0 0
        %3399 = vmatmul.mubr.bf16.gmra.mxu0 %v1847
        %v3400 = vpop.f32.mrf.mxu0
        %v3401 = vadd.f32 %v864, %v3400
        %v3402 = vpop.f32.mrf.mxu0
        %v3403 = vadd.f32 %v868, %v3402
        %v3404 = vpop.f32.mrf.mxu0
        %v3405 = vpop.f32.mrf.mxu0
        %3406 = vdwg.mxu0
        %3407 = vmatprep.subr.bf16.mxu0 0
        %3408 = vmatpush1.bf16.msra.mxu0 0
        %3409 = vmatprep.subr.bf16.mxu0 0
        %3410 = vmatpush1.bf16.msra.mxu0 0
        %3411 = vmatprep.subr.bf16.mxu0 0
        %3412 = vmatpush1.bf16.msra.mxu0 0
        %3413 = vmatprep.subr.bf16.mxu0 0
        %3414 = vmatpush1.bf16.msra.mxu0 0
        %3415 = vmatprep.subr.bf16.mxu0 0
        %3416 = vmatpush1.bf16.msra.mxu0 0
        %3417 = vmatprep.subr.bf16.mxu0 0
        %3418 = vmatpush1.bf16.msra.mxu0 0
        %3419 = vmatprep.subr.bf16.mxu0 0
        %3420 = vmatpush1.bf16.msra.mxu0 0
        %3421 = vmatprep.subr.bf16.mxu0 %v1666
        %3422 = vmatpush1.bf16.msra.mxu0 %v1665
        %3423 = vmatprep.subr.bf16.mxu0 0
        %3424 = vmatpush2.bf16.msra.mxu0 0
        %3425 = vmatprep.subr.bf16.mxu0 0
        %3426 = vmatpush2.bf16.msra.mxu0 0
        %3427 = vmatprep.subr.bf16.mxu0 0
        %3428 = vmatpush2.bf16.msra.mxu0 0
        %3429 = vmatprep.subr.bf16.mxu0 0
        %3430 = vmatpush2.bf16.msra.mxu0 0
        %3431 = vmatprep.subr.bf16.mxu0 0
        %3432 = vmatpush2.bf16.msra.mxu0 0
        %3433 = vmatprep.subr.bf16.mxu0 0
        %3434 = vmatpush2.bf16.msra.mxu0 0
        %3435 = vmatprep.subr.bf16.mxu0 0
        %3436 = vmatpush2.bf16.msra.mxu0 0
        %3437 = vmatprep.subr.bf16.mxu0 0
        %3438 = vmatpush2.bf16.msra.mxu0 0
        %3439 = vmatprep.mubr.bf16.mxu0 0
        %3440 = vmatmul.mubr.bf16.gmra.mxu0 %v1847
        %v3441 = vpop.f32.mrf.mxu0
        %v3442 = vadd.f32 %v872, %v3441
        %v3443 = vpop.f32.mrf.mxu0
        %v3444 = vadd.f32 %v876, %v3443
        %v3445 = vpop.f32.mrf.mxu0
        %v3446 = vpop.f32.mrf.mxu0
        %3447 = vdwg.mxu0
        %3448 = vmatprep.subr.bf16.mxu0 0
        %3449 = vmatpush1.bf16.msra.mxu0 0
        %3450 = vmatprep.subr.bf16.mxu0 0
        %3451 = vmatpush1.bf16.msra.mxu0 0
        %3452 = vmatprep.subr.bf16.mxu0 0
        %3453 = vmatpush1.bf16.msra.mxu0 0
        %3454 = vmatprep.subr.bf16.mxu0 0
        %3455 = vmatpush1.bf16.msra.mxu0 0
        %3456 = vmatprep.subr.bf16.mxu0 0
        %3457 = vmatpush1.bf16.msra.mxu0 0
        %3458 = vmatprep.subr.bf16.mxu0 0
        %3459 = vmatpush1.bf16.msra.mxu0 0
        %3460 = vmatprep.subr.bf16.mxu0 0
        %3461 = vmatpush1.bf16.msra.mxu0 0
        %3462 = vmatprep.subr.bf16.mxu0 %v1668
        %3463 = vmatpush1.bf16.msra.mxu0 %v1667
        %3464 = vmatprep.subr.bf16.mxu0 0
        %3465 = vmatpush2.bf16.msra.mxu0 0
        %3466 = vmatprep.subr.bf16.mxu0 0
        %3467 = vmatpush2.bf16.msra.mxu0 0
        %3468 = vmatprep.subr.bf16.mxu0 0
        %3469 = vmatpush2.bf16.msra.mxu0 0
        %3470 = vmatprep.subr.bf16.mxu0 0
        %3471 = vmatpush2.bf16.msra.mxu0 0
        %3472 = vmatprep.subr.bf16.mxu0 0
        %3473 = vmatpush2.bf16.msra.mxu0 0
        %3474 = vmatprep.subr.bf16.mxu0 0
        %3475 = vmatpush2.bf16.msra.mxu0 0
        %3476 = vmatprep.subr.bf16.mxu0 0
        %3477 = vmatpush2.bf16.msra.mxu0 0
        %3478 = vmatprep.subr.bf16.mxu0 0
        %3479 = vmatpush2.bf16.msra.mxu0 0
        %3480 = vmatprep.mubr.bf16.mxu0 0
        %3481 = vmatmul.mubr.bf16.gmra.mxu0 %v1847
        %v3482 = vpop.f32.mrf.mxu0
        %v3483 = vadd.f32 %v880, %v3482
        %v3484 = vpop.f32.mrf.mxu0
        %v3485 = vadd.f32 %v884, %v3484
        %v3486 = vpop.f32.mrf.mxu0
        %v3487 = vpop.f32.mrf.mxu0
        %3488 = vdwg.mxu0
        %3489 = vmatprep.subr.bf16.mxu0 0
        %3490 = vmatpush1.bf16.msra.mxu0 0
        %3491 = vmatprep.subr.bf16.mxu0 0
        %3492 = vmatpush1.bf16.msra.mxu0 0
        %3493 = vmatprep.subr.bf16.mxu0 0
        %3494 = vmatpush1.bf16.msra.mxu0 0
        %3495 = vmatprep.subr.bf16.mxu0 0
        %3496 = vmatpush1.bf16.msra.mxu0 0
        %3497 = vmatprep.subr.bf16.mxu0 0
        %3498 = vmatpush1.bf16.msra.mxu0 0
        %3499 = vmatprep.subr.bf16.mxu0 0
        %3500 = vmatpush1.bf16.msra.mxu0 0
        %3501 = vmatprep.subr.bf16.mxu0 0
        %3502 = vmatpush1.bf16.msra.mxu0 0
        %3503 = vmatprep.subr.bf16.mxu0 %v1670
        %3504 = vmatpush1.bf16.msra.mxu0 %v1669
        %3505 = vmatprep.subr.bf16.mxu0 0
        %3506 = vmatpush2.bf16.msra.mxu0 0
        %3507 = vmatprep.subr.bf16.mxu0 0
        %3508 = vmatpush2.bf16.msra.mxu0 0
        %3509 = vmatprep.subr.bf16.mxu0 0
        %3510 = vmatpush2.bf16.msra.mxu0 0
        %3511 = vmatprep.subr.bf16.mxu0 0
        %3512 = vmatpush2.bf16.msra.mxu0 0
        %3513 = vmatprep.subr.bf16.mxu0 0
        %3514 = vmatpush2.bf16.msra.mxu0 0
        %3515 = vmatprep.subr.bf16.mxu0 0
        %3516 = vmatpush2.bf16.msra.mxu0 0
        %3517 = vmatprep.subr.bf16.mxu0 0
        %3518 = vmatpush2.bf16.msra.mxu0 0
        %3519 = vmatprep.subr.bf16.mxu0 0
        %3520 = vmatpush2.bf16.msra.mxu0 0
        %3521 = vmatprep.mubr.bf16.mxu0 0
        %3522 = vmatmul.mubr.bf16.gmra.mxu0 %v1847
        %v3523 = vpop.f32.mrf.mxu0
        %v3524 = vadd.f32 %v888, %v3523
        %v3525 = vpop.f32.mrf.mxu0
        %v3526 = vadd.f32 %v892, %v3525
        %v3527 = vpop.f32.mrf.mxu0
        %v3528 = vpop.f32.mrf.mxu0
        %3529 = vdwg.mxu0
        %3530 = vmatprep.subr.bf16.mxu0 0
        %3531 = vmatpush1.bf16.msra.mxu0 0
        %3532 = vmatprep.subr.bf16.mxu0 0
        %3533 = vmatpush1.bf16.msra.mxu0 0
        %3534 = vmatprep.subr.bf16.mxu0 0
        %3535 = vmatpush1.bf16.msra.mxu0 0
        %3536 = vmatprep.subr.bf16.mxu0 0
        %3537 = vmatpush1.bf16.msra.mxu0 0
        %3538 = vmatprep.subr.bf16.mxu0 0
        %3539 = vmatpush1.bf16.msra.mxu0 0
        %3540 = vmatprep.subr.bf16.mxu0 0
        %3541 = vmatpush1.bf16.msra.mxu0 0
        %3542 = vmatprep.subr.bf16.mxu0 0
        %3543 = vmatpush1.bf16.msra.mxu0 0
        %3544 = vmatprep.subr.bf16.mxu0 %v1672
        %3545 = vmatpush1.bf16.msra.mxu0 %v1671
        %3546 = vmatprep.subr.bf16.mxu0 0
        %3547 = vmatpush2.bf16.msra.mxu0 0
        %3548 = vmatprep.subr.bf16.mxu0 0
        %3549 = vmatpush2.bf16.msra.mxu0 0
        %3550 = vmatprep.subr.bf16.mxu0 0
        %3551 = vmatpush2.bf16.msra.mxu0 0
        %3552 = vmatprep.subr.bf16.mxu0 0
        %3553 = vmatpush2.bf16.msra.mxu0 0
        %3554 = vmatprep.subr.bf16.mxu0 0
        %3555 = vmatpush2.bf16.msra.mxu0 0
        %3556 = vmatprep.subr.bf16.mxu0 0
        %3557 = vmatpush2.bf16.msra.mxu0 0
        %3558 = vmatprep.subr.bf16.mxu0 0
        %3559 = vmatpush2.bf16.msra.mxu0 0
        %3560 = vmatprep.subr.bf16.mxu0 0
        %3561 = vmatpush2.bf16.msra.mxu0 0
        %3562 = vmatprep.mubr.bf16.mxu0 0
        %3563 = vmatmul.mubr.bf16.gmra.mxu0 %v1847
        %v3564 = vpop.f32.mrf.mxu0
        %v3565 = vadd.f32 %v896, %v3564
        %v3566 = vpop.f32.mrf.mxu0
        %v3567 = vadd.f32 %v900, %v3566
        %v3568 = vpop.f32.mrf.mxu0
        %v3569 = vpop.f32.mrf.mxu0
        %3570 = vdwg.mxu0
        %3571 = vmatprep.subr.bf16.mxu0 0
        %3572 = vmatpush1.bf16.msra.mxu0 0
        %3573 = vmatprep.subr.bf16.mxu0 0
        %3574 = vmatpush1.bf16.msra.mxu0 0
        %3575 = vmatprep.subr.bf16.mxu0 0
        %3576 = vmatpush1.bf16.msra.mxu0 0
        %3577 = vmatprep.subr.bf16.mxu0 0
        %3578 = vmatpush1.bf16.msra.mxu0 0
        %3579 = vmatprep.subr.bf16.mxu0 0
        %3580 = vmatpush1.bf16.msra.mxu0 0
        %3581 = vmatprep.subr.bf16.mxu0 0
        %3582 = vmatpush1.bf16.msra.mxu0 0
        %3583 = vmatprep.subr.bf16.mxu0 0
        %3584 = vmatpush1.bf16.msra.mxu0 0
        %3585 = vmatprep.subr.bf16.mxu0 %v1674
        %3586 = vmatpush1.bf16.msra.mxu0 %v1673
        %3587 = vmatprep.subr.bf16.mxu0 0
        %3588 = vmatpush2.bf16.msra.mxu0 0
        %3589 = vmatprep.subr.bf16.mxu0 0
        %3590 = vmatpush2.bf16.msra.mxu0 0
        %3591 = vmatprep.subr.bf16.mxu0 0
        %3592 = vmatpush2.bf16.msra.mxu0 0
        %3593 = vmatprep.subr.bf16.mxu0 0
        %3594 = vmatpush2.bf16.msra.mxu0 0
        %3595 = vmatprep.subr.bf16.mxu0 0
        %3596 = vmatpush2.bf16.msra.mxu0 0
        %3597 = vmatprep.subr.bf16.mxu0 0
        %3598 = vmatpush2.bf16.msra.mxu0 0
        %3599 = vmatprep.subr.bf16.mxu0 0
        %3600 = vmatpush2.bf16.msra.mxu0 0
        %3601 = vmatprep.subr.bf16.mxu0 0
        %3602 = vmatpush2.bf16.msra.mxu0 0
        %3603 = vmatprep.mubr.bf16.mxu0 0
        %3604 = vmatmul.mubr.bf16.gmra.mxu0 %v1847
        %v3605 = vpop.f32.mrf.mxu0
        %v3606 = vadd.f32 %v904, %v3605
        %v3607 = vpop.f32.mrf.mxu0
        %v3608 = vadd.f32 %v908, %v3607
        %v3609 = vpop.f32.mrf.mxu0
        %v3610 = vpop.f32.mrf.mxu0
        %3611 = vdwg.mxu0
        %3612 = vmatprep.subr.bf16.mxu0 0
        %3613 = vmatpush1.bf16.msra.mxu0 0
        %3614 = vmatprep.subr.bf16.mxu0 0
        %3615 = vmatpush1.bf16.msra.mxu0 0
        %3616 = vmatprep.subr.bf16.mxu0 0
        %3617 = vmatpush1.bf16.msra.mxu0 0
        %3618 = vmatprep.subr.bf16.mxu0 0
        %3619 = vmatpush1.bf16.msra.mxu0 0
        %3620 = vmatprep.subr.bf16.mxu0 0
        %3621 = vmatpush1.bf16.msra.mxu0 0
        %3622 = vmatprep.subr.bf16.mxu0 0
        %3623 = vmatpush1.bf16.msra.mxu0 0
        %3624 = vmatprep.subr.bf16.mxu0 0
        %3625 = vmatpush1.bf16.msra.mxu0 0
        %3626 = vmatprep.subr.bf16.mxu0 %v1676
        %3627 = vmatpush1.bf16.msra.mxu0 %v1675
        %3628 = vmatprep.subr.bf16.mxu0 0
        %3629 = vmatpush2.bf16.msra.mxu0 0
        %3630 = vmatprep.subr.bf16.mxu0 0
        %3631 = vmatpush2.bf16.msra.mxu0 0
        %3632 = vmatprep.subr.bf16.mxu0 0
        %3633 = vmatpush2.bf16.msra.mxu0 0
        %3634 = vmatprep.subr.bf16.mxu0 0
        %3635 = vmatpush2.bf16.msra.mxu0 0
        %3636 = vmatprep.subr.bf16.mxu0 0
        %3637 = vmatpush2.bf16.msra.mxu0 0
        %3638 = vmatprep.subr.bf16.mxu0 0
        %3639 = vmatpush2.bf16.msra.mxu0 0
        %3640 = vmatprep.subr.bf16.mxu0 0
        %3641 = vmatpush2.bf16.msra.mxu0 0
        %3642 = vmatprep.subr.bf16.mxu0 0
        %3643 = vmatpush2.bf16.msra.mxu0 0
        %3644 = vmatprep.mubr.bf16.mxu0 0
        %3645 = vmatmul.mubr.bf16.gmra.mxu0 %v1847
        %v3646 = vpop.f32.mrf.mxu0
        %v3647 = vadd.f32 %v912, %v3646
        %v3648 = vpop.f32.mrf.mxu0
        %v3649 = vadd.f32 %v916, %v3648
        %v3650 = vpop.f32.mrf.mxu0
        %v3651 = vpop.f32.mrf.mxu0
        %3652 = vdwg.mxu0
        %3653 = vmatprep.subr.bf16.mxu0 0
        %3654 = vmatpush1.bf16.msra.mxu0 0
        %3655 = vmatprep.subr.bf16.mxu0 0
        %3656 = vmatpush1.bf16.msra.mxu0 0
        %3657 = vmatprep.subr.bf16.mxu0 0
        %3658 = vmatpush1.bf16.msra.mxu0 0
        %3659 = vmatprep.subr.bf16.mxu0 0
        %3660 = vmatpush1.bf16.msra.mxu0 0
        %3661 = vmatprep.subr.bf16.mxu0 0
        %3662 = vmatpush1.bf16.msra.mxu0 0
        %3663 = vmatprep.subr.bf16.mxu0 0
        %3664 = vmatpush1.bf16.msra.mxu0 0
        %3665 = vmatprep.subr.bf16.mxu0 0
        %3666 = vmatpush1.bf16.msra.mxu0 0
        %3667 = vmatprep.subr.bf16.mxu0 %v1678
        %3668 = vmatpush1.bf16.msra.mxu0 %v1677
        %3669 = vmatprep.subr.bf16.mxu0 0
        %3670 = vmatpush2.bf16.msra.mxu0 0
        %3671 = vmatprep.subr.bf16.mxu0 0
        %3672 = vmatpush2.bf16.msra.mxu0 0
        %3673 = vmatprep.subr.bf16.mxu0 0
        %3674 = vmatpush2.bf16.msra.mxu0 0
        %3675 = vmatprep.subr.bf16.mxu0 0
        %3676 = vmatpush2.bf16.msra.mxu0 0
        %3677 = vmatprep.subr.bf16.mxu0 0
        %3678 = vmatpush2.bf16.msra.mxu0 0
        %3679 = vmatprep.subr.bf16.mxu0 0
        %3680 = vmatpush2.bf16.msra.mxu0 0
        %3681 = vmatprep.subr.bf16.mxu0 0
        %3682 = vmatpush2.bf16.msra.mxu0 0
        %3683 = vmatprep.subr.bf16.mxu0 0
        %3684 = vmatpush2.bf16.msra.mxu0 0
        %3685 = vmatprep.mubr.bf16.mxu0 0
        %3686 = vmatmul.mubr.bf16.gmra.mxu0 %v1847
        %v3687 = vpop.f32.mrf.mxu0
        %v3688 = vadd.f32 %v920, %v3687
        %v3689 = vpop.f32.mrf.mxu0
        %v3690 = vadd.f32 %v924, %v3689
        %v3691 = vpop.f32.mrf.mxu0
        %v3692 = vpop.f32.mrf.mxu0
        %3693 = vdwg.mxu0
        %3694 = vmatprep.subr.bf16.mxu0 0
        %3695 = vmatpush1.bf16.msra.mxu0 0
        %3696 = vmatprep.subr.bf16.mxu0 0
        %3697 = vmatpush1.bf16.msra.mxu0 0
        %3698 = vmatprep.subr.bf16.mxu0 0
        %3699 = vmatpush1.bf16.msra.mxu0 0
        %3700 = vmatprep.subr.bf16.mxu0 0
        %3701 = vmatpush1.bf16.msra.mxu0 0
        %3702 = vmatprep.subr.bf16.mxu0 0
        %3703 = vmatpush1.bf16.msra.mxu0 0
        %3704 = vmatprep.subr.bf16.mxu0 0
        %3705 = vmatpush1.bf16.msra.mxu0 0
        %3706 = vmatprep.subr.bf16.mxu0 0
        %3707 = vmatpush1.bf16.msra.mxu0 0
        %3708 = vmatprep.subr.bf16.mxu0 %v1680
        %3709 = vmatpush1.bf16.msra.mxu0 %v1679
        %3710 = vmatprep.subr.bf16.mxu0 0
        %3711 = vmatpush2.bf16.msra.mxu0 0
        %3712 = vmatprep.subr.bf16.mxu0 0
        %3713 = vmatpush2.bf16.msra.mxu0 0
        %3714 = vmatprep.subr.bf16.mxu0 0
        %3715 = vmatpush2.bf16.msra.mxu0 0
        %3716 = vmatprep.subr.bf16.mxu0 0
        %3717 = vmatpush2.bf16.msra.mxu0 0
        %3718 = vmatprep.subr.bf16.mxu0 0
        %3719 = vmatpush2.bf16.msra.mxu0 0
        %3720 = vmatprep.subr.bf16.mxu0 0
        %3721 = vmatpush2.bf16.msra.mxu0 0
        %3722 = vmatprep.subr.bf16.mxu0 0
        %3723 = vmatpush2.bf16.msra.mxu0 0
        %3724 = vmatprep.subr.bf16.mxu0 0
        %3725 = vmatpush2.bf16.msra.mxu0 0
        %3726 = vmatprep.mubr.bf16.mxu0 0
        %3727 = vmatmul.mubr.bf16.gmra.mxu0 %v1847
        %v3728 = vpop.f32.mrf.mxu0
        %v3729 = vadd.f32 %v928, %v3728
        %v3730 = vpop.f32.mrf.mxu0
        %v3731 = vadd.f32 %v932, %v3730
        %v3732 = vpop.f32.mrf.mxu0
        %v3733 = vpop.f32.mrf.mxu0
        %3734 = vdwg.mxu0
        %3735 = vmatprep.subr.bf16.mxu0 0
        %3736 = vmatpush1.bf16.msra.mxu0 0
        %3737 = vmatprep.subr.bf16.mxu0 0
        %3738 = vmatpush1.bf16.msra.mxu0 0
        %3739 = vmatprep.subr.bf16.mxu0 0
        %3740 = vmatpush1.bf16.msra.mxu0 0
        %3741 = vmatprep.subr.bf16.mxu0 0
        %3742 = vmatpush1.bf16.msra.mxu0 0
        %3743 = vmatprep.subr.bf16.mxu0 0
        %3744 = vmatpush1.bf16.msra.mxu0 0
        %3745 = vmatprep.subr.bf16.mxu0 0
        %3746 = vmatpush1.bf16.msra.mxu0 0
        %3747 = vmatprep.subr.bf16.mxu0 0
        %3748 = vmatpush1.bf16.msra.mxu0 0
        %3749 = vmatprep.subr.bf16.mxu0 %v1682
        %3750 = vmatpush1.bf16.msra.mxu0 %v1681
        %3751 = vmatprep.subr.bf16.mxu0 0
        %3752 = vmatpush2.bf16.msra.mxu0 0
        %3753 = vmatprep.subr.bf16.mxu0 0
        %3754 = vmatpush2.bf16.msra.mxu0 0
        %3755 = vmatprep.subr.bf16.mxu0 0
        %3756 = vmatpush2.bf16.msra.mxu0 0
        %3757 = vmatprep.subr.bf16.mxu0 0
        %3758 = vmatpush2.bf16.msra.mxu0 0
        %3759 = vmatprep.subr.bf16.mxu0 0
        %3760 = vmatpush2.bf16.msra.mxu0 0
        %3761 = vmatprep.subr.bf16.mxu0 0
        %3762 = vmatpush2.bf16.msra.mxu0 0
        %3763 = vmatprep.subr.bf16.mxu0 0
        %3764 = vmatpush2.bf16.msra.mxu0 0
        %3765 = vmatprep.subr.bf16.mxu0 0
        %3766 = vmatpush2.bf16.msra.mxu0 0
        %3767 = vmatprep.mubr.bf16.mxu0 0
        %3768 = vmatmul.mubr.bf16.gmra.mxu0 %v1847
        %v3769 = vpop.f32.mrf.mxu0
        %v3770 = vadd.f32 %v936, %v3769
        %v3771 = vpop.f32.mrf.mxu0
        %v3772 = vadd.f32 %v940, %v3771
        %v3773 = vpop.f32.mrf.mxu0
        %v3774 = vpop.f32.mrf.mxu0
        %3775 = vdwg.mxu0
        %3776 = vmatprep.subr.bf16.mxu0 0
        %3777 = vmatpush1.bf16.msra.mxu0 0
        %3778 = vmatprep.subr.bf16.mxu0 0
        %3779 = vmatpush1.bf16.msra.mxu0 0
        %3780 = vmatprep.subr.bf16.mxu0 0
        %3781 = vmatpush1.bf16.msra.mxu0 0
        %3782 = vmatprep.subr.bf16.mxu0 0
        %3783 = vmatpush1.bf16.msra.mxu0 0
        %3784 = vmatprep.subr.bf16.mxu0 0
        %3785 = vmatpush1.bf16.msra.mxu0 0
        %3786 = vmatprep.subr.bf16.mxu0 0
        %3787 = vmatpush1.bf16.msra.mxu0 0
        %3788 = vmatprep.subr.bf16.mxu0 0
        %3789 = vmatpush1.bf16.msra.mxu0 0
        %3790 = vmatprep.subr.bf16.mxu0 %v1684
        %3791 = vmatpush1.bf16.msra.mxu0 %v1683
        %3792 = vmatprep.subr.bf16.mxu0 0
        %3793 = vmatpush2.bf16.msra.mxu0 0
        %3794 = vmatprep.subr.bf16.mxu0 0
        %3795 = vmatpush2.bf16.msra.mxu0 0
        %3796 = vmatprep.subr.bf16.mxu0 0
        %3797 = vmatpush2.bf16.msra.mxu0 0
        %3798 = vmatprep.subr.bf16.mxu0 0
        %3799 = vmatpush2.bf16.msra.mxu0 0
        %3800 = vmatprep.subr.bf16.mxu0 0
        %3801 = vmatpush2.bf16.msra.mxu0 0
        %3802 = vmatprep.subr.bf16.mxu0 0
        %3803 = vmatpush2.bf16.msra.mxu0 0
        %3804 = vmatprep.subr.bf16.mxu0 0
        %3805 = vmatpush2.bf16.msra.mxu0 0
        %3806 = vmatprep.subr.bf16.mxu0 0
        %3807 = vmatpush2.bf16.msra.mxu0 0
        %3808 = vmatprep.mubr.bf16.mxu0 0
        %3809 = vmatmul.mubr.bf16.gmra.mxu0 %v1847
        %v3810 = vpop.f32.mrf.mxu0
        %v3811 = vadd.f32 %v944, %v3810
        %v3812 = vpop.f32.mrf.mxu0
        %v3813 = vadd.f32 %v948, %v3812
        %v3814 = vpop.f32.mrf.mxu0
        %v3815 = vpop.f32.mrf.mxu0
        %3816 = vdwg.mxu0
        %3817 = vmatprep.subr.bf16.mxu0 0
        %3818 = vmatpush1.bf16.msra.mxu0 0
        %3819 = vmatprep.subr.bf16.mxu0 0
        %3820 = vmatpush1.bf16.msra.mxu0 0
        %3821 = vmatprep.subr.bf16.mxu0 0
        %3822 = vmatpush1.bf16.msra.mxu0 0
        %3823 = vmatprep.subr.bf16.mxu0 0
        %3824 = vmatpush1.bf16.msra.mxu0 0
        %3825 = vmatprep.subr.bf16.mxu0 0
        %3826 = vmatpush1.bf16.msra.mxu0 0
        %3827 = vmatprep.subr.bf16.mxu0 0
        %3828 = vmatpush1.bf16.msra.mxu0 0
        %3829 = vmatprep.subr.bf16.mxu0 0
        %3830 = vmatpush1.bf16.msra.mxu0 0
        %3831 = vmatprep.subr.bf16.mxu0 %v1686
        %3832 = vmatpush1.bf16.msra.mxu0 %v1685
        %3833 = vmatprep.subr.bf16.mxu0 0
        %3834 = vmatpush2.bf16.msra.mxu0 0
        %3835 = vmatprep.subr.bf16.mxu0 0
        %3836 = vmatpush2.bf16.msra.mxu0 0
        %3837 = vmatprep.subr.bf16.mxu0 0
        %3838 = vmatpush2.bf16.msra.mxu0 0
        %3839 = vmatprep.subr.bf16.mxu0 0
        %3840 = vmatpush2.bf16.msra.mxu0 0
        %3841 = vmatprep.subr.bf16.mxu0 0
        %3842 = vmatpush2.bf16.msra.mxu0 0
        %3843 = vmatprep.subr.bf16.mxu0 0
        %3844 = vmatpush2.bf16.msra.mxu0 0
        %3845 = vmatprep.subr.bf16.mxu0 0
        %3846 = vmatpush2.bf16.msra.mxu0 0
        %3847 = vmatprep.subr.bf16.mxu0 0
        %3848 = vmatpush2.bf16.msra.mxu0 0
        %3849 = vmatprep.mubr.bf16.mxu0 0
        %3850 = vmatmul.mubr.bf16.gmra.mxu0 %v1847
        %v3851 = vpop.f32.mrf.mxu0
        %v3852 = vadd.f32 %v952, %v3851
        %v3853 = vpop.f32.mrf.mxu0
        %v3854 = vadd.f32 %v956, %v3853
        %v3855 = vpop.f32.mrf.mxu0
        %v3856 = vpop.f32.mrf.mxu0
        %3857 = vdwg.mxu0
        %3858 = vmatprep.subr.bf16.mxu0 0
        %3859 = vmatpush1.bf16.msra.mxu0 0
        %3860 = vmatprep.subr.bf16.mxu0 0
        %3861 = vmatpush1.bf16.msra.mxu0 0
        %3862 = vmatprep.subr.bf16.mxu0 0
        %3863 = vmatpush1.bf16.msra.mxu0 0
        %3864 = vmatprep.subr.bf16.mxu0 0
        %3865 = vmatpush1.bf16.msra.mxu0 0
        %3866 = vmatprep.subr.bf16.mxu0 0
        %3867 = vmatpush1.bf16.msra.mxu0 0
        %3868 = vmatprep.subr.bf16.mxu0 0
        %3869 = vmatpush1.bf16.msra.mxu0 0
        %3870 = vmatprep.subr.bf16.mxu0 0
        %3871 = vmatpush1.bf16.msra.mxu0 0
        %3872 = vmatprep.subr.bf16.mxu0 %v1688
        %3873 = vmatpush1.bf16.msra.mxu0 %v1687
        %3874 = vmatprep.subr.bf16.mxu0 0
        %3875 = vmatpush2.bf16.msra.mxu0 0
        %3876 = vmatprep.subr.bf16.mxu0 0
        %3877 = vmatpush2.bf16.msra.mxu0 0
        %3878 = vmatprep.subr.bf16.mxu0 0
        %3879 = vmatpush2.bf16.msra.mxu0 0
        %3880 = vmatprep.subr.bf16.mxu0 0
        %3881 = vmatpush2.bf16.msra.mxu0 0
        %3882 = vmatprep.subr.bf16.mxu0 0
        %3883 = vmatpush2.bf16.msra.mxu0 0
        %3884 = vmatprep.subr.bf16.mxu0 0
        %3885 = vmatpush2.bf16.msra.mxu0 0
        %3886 = vmatprep.subr.bf16.mxu0 0
        %3887 = vmatpush2.bf16.msra.mxu0 0
        %3888 = vmatprep.subr.bf16.mxu0 0
        %3889 = vmatpush2.bf16.msra.mxu0 0
        %3890 = vmatprep.mubr.bf16.mxu0 0
        %3891 = vmatmul.mubr.bf16.gmra.mxu0 %v1847
        %v3892 = vpop.f32.mrf.mxu0
        %v3893 = vadd.f32 %v960, %v3892
        %v3894 = vpop.f32.mrf.mxu0
        %v3895 = vadd.f32 %v964, %v3894
        %v3896 = vpop.f32.mrf.mxu0
        %v3897 = vpop.f32.mrf.mxu0
        %3898 = vdwg.mxu0
        %3899 = vmatprep.subr.bf16.mxu0 0
        %3900 = vmatpush1.bf16.msra.mxu0 0
        %3901 = vmatprep.subr.bf16.mxu0 0
        %3902 = vmatpush1.bf16.msra.mxu0 0
        %3903 = vmatprep.subr.bf16.mxu0 0
        %3904 = vmatpush1.bf16.msra.mxu0 0
        %3905 = vmatprep.subr.bf16.mxu0 0
        %3906 = vmatpush1.bf16.msra.mxu0 0
        %3907 = vmatprep.subr.bf16.mxu0 0
        %3908 = vmatpush1.bf16.msra.mxu0 0
        %3909 = vmatprep.subr.bf16.mxu0 0
        %3910 = vmatpush1.bf16.msra.mxu0 0
        %3911 = vmatprep.subr.bf16.mxu0 0
        %3912 = vmatpush1.bf16.msra.mxu0 0
        %3913 = vmatprep.subr.bf16.mxu0 %v1690
        %3914 = vmatpush1.bf16.msra.mxu0 %v1689
        %3915 = vmatprep.subr.bf16.mxu0 0
        %3916 = vmatpush2.bf16.msra.mxu0 0
        %3917 = vmatprep.subr.bf16.mxu0 0
        %3918 = vmatpush2.bf16.msra.mxu0 0
        %3919 = vmatprep.subr.bf16.mxu0 0
        %3920 = vmatpush2.bf16.msra.mxu0 0
        %3921 = vmatprep.subr.bf16.mxu0 0
        %3922 = vmatpush2.bf16.msra.mxu0 0
        %3923 = vmatprep.subr.bf16.mxu0 0
        %3924 = vmatpush2.bf16.msra.mxu0 0
        %3925 = vmatprep.subr.bf16.mxu0 0
        %3926 = vmatpush2.bf16.msra.mxu0 0
        %3927 = vmatprep.subr.bf16.mxu0 0
        %3928 = vmatpush2.bf16.msra.mxu0 0
        %3929 = vmatprep.subr.bf16.mxu0 0
        %3930 = vmatpush2.bf16.msra.mxu0 0
        %3931 = vmatprep.mubr.bf16.mxu0 0
        %3932 = vmatmul.mubr.bf16.gmra.mxu0 %v1847
        %v3933 = vpop.f32.mrf.mxu0
        %v3934 = vadd.f32 %v968, %v3933
        %v3935 = vpop.f32.mrf.mxu0
        %v3936 = vadd.f32 %v972, %v3935
        %v3937 = vpop.f32.mrf.mxu0
        %v3938 = vpop.f32.mrf.mxu0
        %3939 = vdwg.mxu0
        %3940 = vmatprep.subr.bf16.mxu0 0
        %3941 = vmatpush1.bf16.msra.mxu0 0
        %3942 = vmatprep.subr.bf16.mxu0 0
        %3943 = vmatpush1.bf16.msra.mxu0 0
        %3944 = vmatprep.subr.bf16.mxu0 0
        %3945 = vmatpush1.bf16.msra.mxu0 0
        %3946 = vmatprep.subr.bf16.mxu0 0
        %3947 = vmatpush1.bf16.msra.mxu0 0
        %3948 = vmatprep.subr.bf16.mxu0 0
        %3949 = vmatpush1.bf16.msra.mxu0 0
        %3950 = vmatprep.subr.bf16.mxu0 0
        %3951 = vmatpush1.bf16.msra.mxu0 0
        %3952 = vmatprep.subr.bf16.mxu0 0
        %3953 = vmatpush1.bf16.msra.mxu0 0
        %3954 = vmatprep.subr.bf16.mxu0 %v1692
        %3955 = vmatpush1.bf16.msra.mxu0 %v1691
        %3956 = vmatprep.subr.bf16.mxu0 0
        %3957 = vmatpush2.bf16.msra.mxu0 0
        %3958 = vmatprep.subr.bf16.mxu0 0
        %3959 = vmatpush2.bf16.msra.mxu0 0
        %3960 = vmatprep.subr.bf16.mxu0 0
        %3961 = vmatpush2.bf16.msra.mxu0 0
        %3962 = vmatprep.subr.bf16.mxu0 0
        %3963 = vmatpush2.bf16.msra.mxu0 0
        %3964 = vmatprep.subr.bf16.mxu0 0
        %3965 = vmatpush2.bf16.msra.mxu0 0
        %3966 = vmatprep.subr.bf16.mxu0 0
        %3967 = vmatpush2.bf16.msra.mxu0 0
        %3968 = vmatprep.subr.bf16.mxu0 0
        %3969 = vmatpush2.bf16.msra.mxu0 0
        %3970 = vmatprep.subr.bf16.mxu0 0
        %3971 = vmatpush2.bf16.msra.mxu0 0
        %3972 = vmatprep.mubr.bf16.mxu0 0
        %3973 = vmatmul.mubr.bf16.gmra.mxu0 %v1847
        %v3974 = vpop.f32.mrf.mxu0
        %v3975 = vadd.f32 %v976, %v3974
        %v3976 = vpop.f32.mrf.mxu0
        %v3977 = vadd.f32 %v980, %v3976
        %v3978 = vpop.f32.mrf.mxu0
        %v3979 = vpop.f32.mrf.mxu0
        %3980 = vdwg.mxu0
        %3981 = vmatprep.subr.bf16.mxu0 0
        %3982 = vmatpush1.bf16.msra.mxu0 0
        %3983 = vmatprep.subr.bf16.mxu0 0
        %3984 = vmatpush1.bf16.msra.mxu0 0
        %3985 = vmatprep.subr.bf16.mxu0 0
        %3986 = vmatpush1.bf16.msra.mxu0 0
        %3987 = vmatprep.subr.bf16.mxu0 0
        %3988 = vmatpush1.bf16.msra.mxu0 0
        %3989 = vmatprep.subr.bf16.mxu0 0
        %3990 = vmatpush1.bf16.msra.mxu0 0
        %3991 = vmatprep.subr.bf16.mxu0 0
        %3992 = vmatpush1.bf16.msra.mxu0 0
        %3993 = vmatprep.subr.bf16.mxu0 0
        %3994 = vmatpush1.bf16.msra.mxu0 0
        %3995 = vmatprep.subr.bf16.mxu0 %v1694
        %3996 = vmatpush1.bf16.msra.mxu0 %v1693
        %3997 = vmatprep.subr.bf16.mxu0 0
        %3998 = vmatpush2.bf16.msra.mxu0 0
        %3999 = vmatprep.subr.bf16.mxu0 0
        %4000 = vmatpush2.bf16.msra.mxu0 0
        %4001 = vmatprep.subr.bf16.mxu0 0
        %4002 = vmatpush2.bf16.msra.mxu0 0
        %4003 = vmatprep.subr.bf16.mxu0 0
        %4004 = vmatpush2.bf16.msra.mxu0 0
        %4005 = vmatprep.subr.bf16.mxu0 0
        %4006 = vmatpush2.bf16.msra.mxu0 0
        %4007 = vmatprep.subr.bf16.mxu0 0
        %4008 = vmatpush2.bf16.msra.mxu0 0
        %4009 = vmatprep.subr.bf16.mxu0 0
        %4010 = vmatpush2.bf16.msra.mxu0 0
        %4011 = vmatprep.subr.bf16.mxu0 0
        %4012 = vmatpush2.bf16.msra.mxu0 0
        %4013 = vmatprep.mubr.bf16.mxu0 0
        %4014 = vmatmul.mubr.bf16.gmra.mxu0 %v1847
        %v4015 = vpop.f32.mrf.mxu0
        %v4016 = vadd.f32 %v984, %v4015
        %v4017 = vpop.f32.mrf.mxu0
        %v4018 = vadd.f32 %v988, %v4017
        %v4019 = vpop.f32.mrf.mxu0
        %v4020 = vpop.f32.mrf.mxu0
        %4021 = vdwg.mxu0
        %4022 = vmatprep.subr.bf16.mxu0 0
        %4023 = vmatpush1.bf16.msra.mxu0 0
        %4024 = vmatprep.subr.bf16.mxu0 0
        %4025 = vmatpush1.bf16.msra.mxu0 0
        %4026 = vmatprep.subr.bf16.mxu0 0
        %4027 = vmatpush1.bf16.msra.mxu0 0
        %4028 = vmatprep.subr.bf16.mxu0 0
        %4029 = vmatpush1.bf16.msra.mxu0 0
        %4030 = vmatprep.subr.bf16.mxu0 0
        %4031 = vmatpush1.bf16.msra.mxu0 0
        %4032 = vmatprep.subr.bf16.mxu0 0
        %4033 = vmatpush1.bf16.msra.mxu0 0
        %4034 = vmatprep.subr.bf16.mxu0 0
        %4035 = vmatpush1.bf16.msra.mxu0 0
        %4036 = vmatprep.subr.bf16.mxu0 %v1696
        %4037 = vmatpush1.bf16.msra.mxu0 %v1695
        %4038 = vmatprep.subr.bf16.mxu0 0
        %4039 = vmatpush2.bf16.msra.mxu0 0
        %4040 = vmatprep.subr.bf16.mxu0 0
        %4041 = vmatpush2.bf16.msra.mxu0 0
        %4042 = vmatprep.subr.bf16.mxu0 0
        %4043 = vmatpush2.bf16.msra.mxu0 0
        %4044 = vmatprep.subr.bf16.mxu0 0
        %4045 = vmatpush2.bf16.msra.mxu0 0
        %4046 = vmatprep.subr.bf16.mxu0 0
        %4047 = vmatpush2.bf16.msra.mxu0 0
        %4048 = vmatprep.subr.bf16.mxu0 0
        %4049 = vmatpush2.bf16.msra.mxu0 0
        %4050 = vmatprep.subr.bf16.mxu0 0
        %4051 = vmatpush2.bf16.msra.mxu0 0
        %4052 = vmatprep.subr.bf16.mxu0 0
        %4053 = vmatpush2.bf16.msra.mxu0 0
        %4054 = vmatprep.mubr.bf16.mxu0 0
        %4055 = vmatmul.mubr.bf16.gmra.mxu0 %v1847
        %v4056 = vpop.f32.mrf.mxu0
        %v4057 = vadd.f32 %v992, %v4056
        %v4058 = vpop.f32.mrf.mxu0
        %v4059 = vadd.f32 %v996, %v4058
        %v4060 = vpop.f32.mrf.mxu0
        %v4061 = vpop.f32.mrf.mxu0
        %4062 = vdwg.mxu0
        %4063 = vmatprep.subr.bf16.mxu0 0
        %4064 = vmatpush1.bf16.msra.mxu0 0
        %4065 = vmatprep.subr.bf16.mxu0 0
        %4066 = vmatpush1.bf16.msra.mxu0 0
        %4067 = vmatprep.subr.bf16.mxu0 0
        %4068 = vmatpush1.bf16.msra.mxu0 0
        %4069 = vmatprep.subr.bf16.mxu0 0
        %4070 = vmatpush1.bf16.msra.mxu0 0
        %4071 = vmatprep.subr.bf16.mxu0 0
        %4072 = vmatpush1.bf16.msra.mxu0 0
        %4073 = vmatprep.subr.bf16.mxu0 0
        %4074 = vmatpush1.bf16.msra.mxu0 0
        %4075 = vmatprep.subr.bf16.mxu0 0
        %4076 = vmatpush1.bf16.msra.mxu0 0
        %4077 = vmatprep.subr.bf16.mxu0 %v1698
        %4078 = vmatpush1.bf16.msra.mxu0 %v1697
        %4079 = vmatprep.subr.bf16.mxu0 0
        %4080 = vmatpush2.bf16.msra.mxu0 0
        %4081 = vmatprep.subr.bf16.mxu0 0
        %4082 = vmatpush2.bf16.msra.mxu0 0
        %4083 = vmatprep.subr.bf16.mxu0 0
        %4084 = vmatpush2.bf16.msra.mxu0 0
        %4085 = vmatprep.subr.bf16.mxu0 0
        %4086 = vmatpush2.bf16.msra.mxu0 0
        %4087 = vmatprep.subr.bf16.mxu0 0
        %4088 = vmatpush2.bf16.msra.mxu0 0
        %4089 = vmatprep.subr.bf16.mxu0 0
        %4090 = vmatpush2.bf16.msra.mxu0 0
        %4091 = vmatprep.subr.bf16.mxu0 0
        %4092 = vmatpush2.bf16.msra.mxu0 0
        %4093 = vmatprep.subr.bf16.mxu0 0
        %4094 = vmatpush2.bf16.msra.mxu0 0
        %4095 = vmatprep.mubr.bf16.mxu0 0
        %4096 = vmatmul.mubr.bf16.gmra.mxu0 %v1847
        %v4097 = vpop.f32.mrf.mxu0
        %v4098 = vadd.f32 %v1000, %v4097
        %v4099 = vpop.f32.mrf.mxu0
        %v4100 = vadd.f32 %v1004, %v4099
        %v4101 = vpop.f32.mrf.mxu0
        %v4102 = vpop.f32.mrf.mxu0
        %4103 = vdwg.mxu0
        %4104 = vmatprep.subr.bf16.mxu0 0
        %4105 = vmatpush1.bf16.msra.mxu0 0
        %4106 = vmatprep.subr.bf16.mxu0 0
        %4107 = vmatpush1.bf16.msra.mxu0 0
        %4108 = vmatprep.subr.bf16.mxu0 0
        %4109 = vmatpush1.bf16.msra.mxu0 0
        %4110 = vmatprep.subr.bf16.mxu0 0
        %4111 = vmatpush1.bf16.msra.mxu0 0
        %4112 = vmatprep.subr.bf16.mxu0 0
        %4113 = vmatpush1.bf16.msra.mxu0 0
        %4114 = vmatprep.subr.bf16.mxu0 0
        %4115 = vmatpush1.bf16.msra.mxu0 0
        %4116 = vmatprep.subr.bf16.mxu0 0
        %4117 = vmatpush1.bf16.msra.mxu0 0
        %4118 = vmatprep.subr.bf16.mxu0 %v1700
        %4119 = vmatpush1.bf16.msra.mxu0 %v1699
        %4120 = vmatprep.subr.bf16.mxu0 0
        %4121 = vmatpush2.bf16.msra.mxu0 0
        %4122 = vmatprep.subr.bf16.mxu0 0
        %4123 = vmatpush2.bf16.msra.mxu0 0
        %4124 = vmatprep.subr.bf16.mxu0 0
        %4125 = vmatpush2.bf16.msra.mxu0 0
        %4126 = vmatprep.subr.bf16.mxu0 0
        %4127 = vmatpush2.bf16.msra.mxu0 0
        %4128 = vmatprep.subr.bf16.mxu0 0
        %4129 = vmatpush2.bf16.msra.mxu0 0
        %4130 = vmatprep.subr.bf16.mxu0 0
        %4131 = vmatpush2.bf16.msra.mxu0 0
        %4132 = vmatprep.subr.bf16.mxu0 0
        %4133 = vmatpush2.bf16.msra.mxu0 0
        %4134 = vmatprep.subr.bf16.mxu0 0
        %4135 = vmatpush2.bf16.msra.mxu0 0
        %4136 = vmatprep.mubr.bf16.mxu0 0
        %4137 = vmatmul.mubr.bf16.gmra.mxu0 %v1847
        %v4138 = vpop.f32.mrf.mxu0
        %v4139 = vadd.f32 %v1008, %v4138
        %v4140 = vpop.f32.mrf.mxu0
        %v4141 = vadd.f32 %v1012, %v4140
        %v4142 = vpop.f32.mrf.mxu0
        %v4143 = vpop.f32.mrf.mxu0
        %4144 = vdwg.mxu0
        %4145 = vmatprep.subr.bf16.mxu0 0
        %4146 = vmatpush1.bf16.msra.mxu0 0
        %4147 = vmatprep.subr.bf16.mxu0 0
        %4148 = vmatpush1.bf16.msra.mxu0 0
        %4149 = vmatprep.subr.bf16.mxu0 0
        %4150 = vmatpush1.bf16.msra.mxu0 0
        %4151 = vmatprep.subr.bf16.mxu0 0
        %4152 = vmatpush1.bf16.msra.mxu0 0
        %4153 = vmatprep.subr.bf16.mxu0 0
        %4154 = vmatpush1.bf16.msra.mxu0 0
        %4155 = vmatprep.subr.bf16.mxu0 0
        %4156 = vmatpush1.bf16.msra.mxu0 0
        %4157 = vmatprep.subr.bf16.mxu0 0
        %4158 = vmatpush1.bf16.msra.mxu0 0
        %4159 = vmatprep.subr.bf16.mxu0 %v1702
        %4160 = vmatpush1.bf16.msra.mxu0 %v1701
        %4161 = vmatprep.subr.bf16.mxu0 0
        %4162 = vmatpush2.bf16.msra.mxu0 0
        %4163 = vmatprep.subr.bf16.mxu0 0
        %4164 = vmatpush2.bf16.msra.mxu0 0
        %4165 = vmatprep.subr.bf16.mxu0 0
        %4166 = vmatpush2.bf16.msra.mxu0 0
        %4167 = vmatprep.subr.bf16.mxu0 0
        %4168 = vmatpush2.bf16.msra.mxu0 0
        %4169 = vmatprep.subr.bf16.mxu0 0
        %4170 = vmatpush2.bf16.msra.mxu0 0
        %4171 = vmatprep.subr.bf16.mxu0 0
        %4172 = vmatpush2.bf16.msra.mxu0 0
        %4173 = vmatprep.subr.bf16.mxu0 0
        %4174 = vmatpush2.bf16.msra.mxu0 0
        %4175 = vmatprep.subr.bf16.mxu0 0
        %4176 = vmatpush2.bf16.msra.mxu0 0
        %4177 = vmatprep.mubr.bf16.mxu0 0
        %4178 = vmatmul.mubr.bf16.gmra.mxu0 %v1847
        %v4179 = vpop.f32.mrf.mxu0
        %v4180 = vadd.f32 %v1016, %v4179
        %v4181 = vpop.f32.mrf.mxu0
        %v4182 = vadd.f32 %v1020, %v4181
        %v4183 = vpop.f32.mrf.mxu0
        %v4184 = vpop.f32.mrf.mxu0
        %4185 = vdwg.mxu0
        %4186 = vmatprep.subr.bf16.mxu0 0
        %4187 = vmatpush1.bf16.msra.mxu0 0
        %4188 = vmatprep.subr.bf16.mxu0 0
        %4189 = vmatpush1.bf16.msra.mxu0 0
        %4190 = vmatprep.subr.bf16.mxu0 0
        %4191 = vmatpush1.bf16.msra.mxu0 0
        %4192 = vmatprep.subr.bf16.mxu0 0
        %4193 = vmatpush1.bf16.msra.mxu0 0
        %4194 = vmatprep.subr.bf16.mxu0 0
        %4195 = vmatpush1.bf16.msra.mxu0 0
        %4196 = vmatprep.subr.bf16.mxu0 0
        %4197 = vmatpush1.bf16.msra.mxu0 0
        %4198 = vmatprep.subr.bf16.mxu0 0
        %4199 = vmatpush1.bf16.msra.mxu0 0
        %4200 = vmatprep.subr.bf16.mxu0 %v1704
        %4201 = vmatpush1.bf16.msra.mxu0 %v1703
        %4202 = vmatprep.subr.bf16.mxu0 0
        %4203 = vmatpush2.bf16.msra.mxu0 0
        %4204 = vmatprep.subr.bf16.mxu0 0
        %4205 = vmatpush2.bf16.msra.mxu0 0
        %4206 = vmatprep.subr.bf16.mxu0 0
        %4207 = vmatpush2.bf16.msra.mxu0 0
        %4208 = vmatprep.subr.bf16.mxu0 0
        %4209 = vmatpush2.bf16.msra.mxu0 0
        %4210 = vmatprep.subr.bf16.mxu0 0
        %4211 = vmatpush2.bf16.msra.mxu0 0
        %4212 = vmatprep.subr.bf16.mxu0 0
        %4213 = vmatpush2.bf16.msra.mxu0 0
        %4214 = vmatprep.subr.bf16.mxu0 0
        %4215 = vmatpush2.bf16.msra.mxu0 0
        %4216 = vmatprep.subr.bf16.mxu0 0
        %4217 = vmatpush2.bf16.msra.mxu0 0
        %4218 = vmatprep.mubr.bf16.mxu0 0
        %4219 = vmatmul.mubr.bf16.gmra.mxu0 %v1847
        %v4220 = vpop.f32.mrf.mxu0
        %v4221 = vadd.f32 %v1024, %v4220
        %v4222 = vpop.f32.mrf.mxu0
        %v4223 = vadd.f32 %v1028, %v4222
        %v4224 = vpop.f32.mrf.mxu0
        %v4225 = vpop.f32.mrf.mxu0
        %4226 = vdwg.mxu0
        %4227 = vmatprep.subr.bf16.mxu0 0
        %4228 = vmatpush1.bf16.msra.mxu0 0
        %4229 = vmatprep.subr.bf16.mxu0 0
        %4230 = vmatpush1.bf16.msra.mxu0 0
        %4231 = vmatprep.subr.bf16.mxu0 0
        %4232 = vmatpush1.bf16.msra.mxu0 0
        %4233 = vmatprep.subr.bf16.mxu0 0
        %4234 = vmatpush1.bf16.msra.mxu0 0
        %4235 = vmatprep.subr.bf16.mxu0 0
        %4236 = vmatpush1.bf16.msra.mxu0 0
        %4237 = vmatprep.subr.bf16.mxu0 0
        %4238 = vmatpush1.bf16.msra.mxu0 0
        %4239 = vmatprep.subr.bf16.mxu0 0
        %4240 = vmatpush1.bf16.msra.mxu0 0
        %4241 = vmatprep.subr.bf16.mxu0 %v1706
        %4242 = vmatpush1.bf16.msra.mxu0 %v1705
        %4243 = vmatprep.subr.bf16.mxu0 0
        %4244 = vmatpush2.bf16.msra.mxu0 0
        %4245 = vmatprep.subr.bf16.mxu0 0
        %4246 = vmatpush2.bf16.msra.mxu0 0
        %4247 = vmatprep.subr.bf16.mxu0 0
        %4248 = vmatpush2.bf16.msra.mxu0 0
        %4249 = vmatprep.subr.bf16.mxu0 0
        %4250 = vmatpush2.bf16.msra.mxu0 0
        %4251 = vmatprep.subr.bf16.mxu0 0
        %4252 = vmatpush2.bf16.msra.mxu0 0
        %4253 = vmatprep.subr.bf16.mxu0 0
        %4254 = vmatpush2.bf16.msra.mxu0 0
        %4255 = vmatprep.subr.bf16.mxu0 0
        %4256 = vmatpush2.bf16.msra.mxu0 0
        %4257 = vmatprep.subr.bf16.mxu0 0
        %4258 = vmatpush2.bf16.msra.mxu0 0
        %4259 = vmatprep.mubr.bf16.mxu0 0
        %4260 = vmatmul.mubr.bf16.gmra.mxu0 %v1847
        %v4261 = vpop.f32.mrf.mxu0
        %v4262 = vadd.f32 %v1032, %v4261
        %v4263 = vpop.f32.mrf.mxu0
        %v4264 = vadd.f32 %v1036, %v4263
        %v4265 = vpop.f32.mrf.mxu0
        %v4266 = vpop.f32.mrf.mxu0
        %4267 = vdwg.mxu0
        %4268 = vmatprep.subr.bf16.mxu0 0
        %4269 = vmatpush1.bf16.msra.mxu0 0
        %4270 = vmatprep.subr.bf16.mxu0 0
        %4271 = vmatpush1.bf16.msra.mxu0 0
        %4272 = vmatprep.subr.bf16.mxu0 0
        %4273 = vmatpush1.bf16.msra.mxu0 0
        %4274 = vmatprep.subr.bf16.mxu0 0
        %4275 = vmatpush1.bf16.msra.mxu0 0
        %4276 = vmatprep.subr.bf16.mxu0 0
        %4277 = vmatpush1.bf16.msra.mxu0 0
        %4278 = vmatprep.subr.bf16.mxu0 0
        %4279 = vmatpush1.bf16.msra.mxu0 0
        %4280 = vmatprep.subr.bf16.mxu0 0
        %4281 = vmatpush1.bf16.msra.mxu0 0
        %4282 = vmatprep.subr.bf16.mxu0 %v1708
        %4283 = vmatpush1.bf16.msra.mxu0 %v1707
        %4284 = vmatprep.subr.bf16.mxu0 0
        %4285 = vmatpush2.bf16.msra.mxu0 0
        %4286 = vmatprep.subr.bf16.mxu0 0
        %4287 = vmatpush2.bf16.msra.mxu0 0
        %4288 = vmatprep.subr.bf16.mxu0 0
        %4289 = vmatpush2.bf16.msra.mxu0 0
        %4290 = vmatprep.subr.bf16.mxu0 0
        %4291 = vmatpush2.bf16.msra.mxu0 0
        %4292 = vmatprep.subr.bf16.mxu0 0
        %4293 = vmatpush2.bf16.msra.mxu0 0
        %4294 = vmatprep.subr.bf16.mxu0 0
        %4295 = vmatpush2.bf16.msra.mxu0 0
        %4296 = vmatprep.subr.bf16.mxu0 0
        %4297 = vmatpush2.bf16.msra.mxu0 0
        %4298 = vmatprep.subr.bf16.mxu0 0
        %4299 = vmatpush2.bf16.msra.mxu0 0
        %4300 = vmatprep.mubr.bf16.mxu0 0
        %4301 = vmatmul.mubr.bf16.gmra.mxu0 %v1847
        %v4302 = vpop.f32.mrf.mxu0
        %v4303 = vadd.f32 %v1040, %v4302
        %v4304 = vpop.f32.mrf.mxu0
        %v4305 = vadd.f32 %v1044, %v4304
        %v4306 = vpop.f32.mrf.mxu0
        %v4307 = vpop.f32.mrf.mxu0
        %4308 = vdwg.mxu0
        %4309 = vmatprep.subr.bf16.mxu0 0
        %4310 = vmatpush1.bf16.msra.mxu0 0
        %4311 = vmatprep.subr.bf16.mxu0 0
        %4312 = vmatpush1.bf16.msra.mxu0 0
        %4313 = vmatprep.subr.bf16.mxu0 0
        %4314 = vmatpush1.bf16.msra.mxu0 0
        %4315 = vmatprep.subr.bf16.mxu0 0
        %4316 = vmatpush1.bf16.msra.mxu0 0
        %4317 = vmatprep.subr.bf16.mxu0 0
        %4318 = vmatpush1.bf16.msra.mxu0 0
        %4319 = vmatprep.subr.bf16.mxu0 0
        %4320 = vmatpush1.bf16.msra.mxu0 0
        %4321 = vmatprep.subr.bf16.mxu0 0
        %4322 = vmatpush1.bf16.msra.mxu0 0
        %4323 = vmatprep.subr.bf16.mxu0 %v1710
        %4324 = vmatpush1.bf16.msra.mxu0 %v1709
        %4325 = vmatprep.subr.bf16.mxu0 0
        %4326 = vmatpush2.bf16.msra.mxu0 0
        %4327 = vmatprep.subr.bf16.mxu0 0
        %4328 = vmatpush2.bf16.msra.mxu0 0
        %4329 = vmatprep.subr.bf16.mxu0 0
        %4330 = vmatpush2.bf16.msra.mxu0 0
        %4331 = vmatprep.subr.bf16.mxu0 0
        %4332 = vmatpush2.bf16.msra.mxu0 0
        %4333 = vmatprep.subr.bf16.mxu0 0
        %4334 = vmatpush2.bf16.msra.mxu0 0
        %4335 = vmatprep.subr.bf16.mxu0 0
        %4336 = vmatpush2.bf16.msra.mxu0 0
        %4337 = vmatprep.subr.bf16.mxu0 0
        %4338 = vmatpush2.bf16.msra.mxu0 0
        %4339 = vmatprep.subr.bf16.mxu0 0
        %4340 = vmatpush2.bf16.msra.mxu0 0
        %4341 = vmatprep.mubr.bf16.mxu0 0
        %4342 = vmatmul.mubr.bf16.gmra.mxu0 %v1847
        %v4343 = vpop.f32.mrf.mxu0
        %v4344 = vadd.f32 %v1048, %v4343
        %v4345 = vpop.f32.mrf.mxu0
        %v4346 = vadd.f32 %v1052, %v4345
        %v4347 = vpop.f32.mrf.mxu0
        %v4348 = vpop.f32.mrf.mxu0
        %4349 = vdwg.mxu0
        %4350 = vmatprep.subr.bf16.mxu0 0
        %4351 = vmatpush1.bf16.msra.mxu0 0
        %4352 = vmatprep.subr.bf16.mxu0 0
        %4353 = vmatpush1.bf16.msra.mxu0 0
        %4354 = vmatprep.subr.bf16.mxu0 0
        %4355 = vmatpush1.bf16.msra.mxu0 0
        %4356 = vmatprep.subr.bf16.mxu0 0
        %4357 = vmatpush1.bf16.msra.mxu0 0
        %4358 = vmatprep.subr.bf16.mxu0 0
        %4359 = vmatpush1.bf16.msra.mxu0 0
        %4360 = vmatprep.subr.bf16.mxu0 0
        %4361 = vmatpush1.bf16.msra.mxu0 0
        %4362 = vmatprep.subr.bf16.mxu0 0
        %4363 = vmatpush1.bf16.msra.mxu0 0
        %4364 = vmatprep.subr.bf16.mxu0 %v1712
        %4365 = vmatpush1.bf16.msra.mxu0 %v1711
        %4366 = vmatprep.subr.bf16.mxu0 0
        %4367 = vmatpush2.bf16.msra.mxu0 0
        %4368 = vmatprep.subr.bf16.mxu0 0
        %4369 = vmatpush2.bf16.msra.mxu0 0
        %4370 = vmatprep.subr.bf16.mxu0 0
        %4371 = vmatpush2.bf16.msra.mxu0 0
        %4372 = vmatprep.subr.bf16.mxu0 0
        %4373 = vmatpush2.bf16.msra.mxu0 0
        %4374 = vmatprep.subr.bf16.mxu0 0
        %4375 = vmatpush2.bf16.msra.mxu0 0
        %4376 = vmatprep.subr.bf16.mxu0 0
        %4377 = vmatpush2.bf16.msra.mxu0 0
        %4378 = vmatprep.subr.bf16.mxu0 0
        %4379 = vmatpush2.bf16.msra.mxu0 0
        %4380 = vmatprep.subr.bf16.mxu0 0
        %4381 = vmatpush2.bf16.msra.mxu0 0
        %4382 = vmatprep.mubr.bf16.mxu0 0
        %4383 = vmatmul.mubr.bf16.gmra.mxu0 %v1847
        %v4384 = vpop.f32.mrf.mxu0
        %v4385 = vadd.f32 %v1056, %v4384
        %v4386 = vpop.f32.mrf.mxu0
        %v4387 = vadd.f32 %v1060, %v4386
        %v4388 = vpop.f32.mrf.mxu0
        %v4389 = vpop.f32.mrf.mxu0
        %4390 = vdwg.mxu0
        %4391 = vmatprep.subr.bf16.mxu0 0
        %4392 = vmatpush1.bf16.msra.mxu0 0
        %4393 = vmatprep.subr.bf16.mxu0 0
        %4394 = vmatpush1.bf16.msra.mxu0 0
        %4395 = vmatprep.subr.bf16.mxu0 0
        %4396 = vmatpush1.bf16.msra.mxu0 0
        %4397 = vmatprep.subr.bf16.mxu0 0
        %4398 = vmatpush1.bf16.msra.mxu0 0
        %4399 = vmatprep.subr.bf16.mxu0 0
        %4400 = vmatpush1.bf16.msra.mxu0 0
        %4401 = vmatprep.subr.bf16.mxu0 0
        %4402 = vmatpush1.bf16.msra.mxu0 0
        %4403 = vmatprep.subr.bf16.mxu0 0
        %4404 = vmatpush1.bf16.msra.mxu0 0
        %4405 = vmatprep.subr.bf16.mxu0 %v1714
        %4406 = vmatpush1.bf16.msra.mxu0 %v1713
        %4407 = vmatprep.subr.bf16.mxu0 0
        %4408 = vmatpush2.bf16.msra.mxu0 0
        %4409 = vmatprep.subr.bf16.mxu0 0
        %4410 = vmatpush2.bf16.msra.mxu0 0
        %4411 = vmatprep.subr.bf16.mxu0 0
        %4412 = vmatpush2.bf16.msra.mxu0 0
        %4413 = vmatprep.subr.bf16.mxu0 0
        %4414 = vmatpush2.bf16.msra.mxu0 0
        %4415 = vmatprep.subr.bf16.mxu0 0
        %4416 = vmatpush2.bf16.msra.mxu0 0
        %4417 = vmatprep.subr.bf16.mxu0 0
        %4418 = vmatpush2.bf16.msra.mxu0 0
        %4419 = vmatprep.subr.bf16.mxu0 0
        %4420 = vmatpush2.bf16.msra.mxu0 0
        %4421 = vmatprep.subr.bf16.mxu0 0
        %4422 = vmatpush2.bf16.msra.mxu0 0
        %4423 = vmatprep.mubr.bf16.mxu0 0
        %4424 = vmatmul.mubr.bf16.gmra.mxu0 %v1847
        %v4425 = vpop.f32.mrf.mxu0
        %v4426 = vadd.f32 %v1064, %v4425
        %v4427 = vpop.f32.mrf.mxu0
        %v4428 = vadd.f32 %v1068, %v4427
        %v4429 = vpop.f32.mrf.mxu0
        %v4430 = vpop.f32.mrf.mxu0
        %4431 = vdwg.mxu0
        %4432 = vmatprep.subr.bf16.mxu0 0
        %4433 = vmatpush1.bf16.msra.mxu0 0
        %4434 = vmatprep.subr.bf16.mxu0 0
        %4435 = vmatpush1.bf16.msra.mxu0 0
        %4436 = vmatprep.subr.bf16.mxu0 0
        %4437 = vmatpush1.bf16.msra.mxu0 0
        %4438 = vmatprep.subr.bf16.mxu0 0
        %4439 = vmatpush1.bf16.msra.mxu0 0
        %4440 = vmatprep.subr.bf16.mxu0 0
        %4441 = vmatpush1.bf16.msra.mxu0 0
        %4442 = vmatprep.subr.bf16.mxu0 0
        %4443 = vmatpush1.bf16.msra.mxu0 0
        %4444 = vmatprep.subr.bf16.mxu0 0
        %4445 = vmatpush1.bf16.msra.mxu0 0
        %4446 = vmatprep.subr.bf16.mxu0 %v1716
        %4447 = vmatpush1.bf16.msra.mxu0 %v1715
        %4448 = vmatprep.subr.bf16.mxu0 0
        %4449 = vmatpush2.bf16.msra.mxu0 0
        %4450 = vmatprep.subr.bf16.mxu0 0
        %4451 = vmatpush2.bf16.msra.mxu0 0
        %4452 = vmatprep.subr.bf16.mxu0 0
        %4453 = vmatpush2.bf16.msra.mxu0 0
        %4454 = vmatprep.subr.bf16.mxu0 0
        %4455 = vmatpush2.bf16.msra.mxu0 0
        %4456 = vmatprep.subr.bf16.mxu0 0
        %4457 = vmatpush2.bf16.msra.mxu0 0
        %4458 = vmatprep.subr.bf16.mxu0 0
        %4459 = vmatpush2.bf16.msra.mxu0 0
        %4460 = vmatprep.subr.bf16.mxu0 0
        %4461 = vmatpush2.bf16.msra.mxu0 0
        %4462 = vmatprep.subr.bf16.mxu0 0
        %4463 = vmatpush2.bf16.msra.mxu0 0
        %4464 = vmatprep.mubr.bf16.mxu0 0
        %4465 = vmatmul.mubr.bf16.gmra.mxu0 %v1847
        %v4466 = vpop.f32.mrf.mxu0
        %v4467 = vadd.f32 %v1072, %v4466
        %v4468 = vpop.f32.mrf.mxu0
        %v4469 = vadd.f32 %v1076, %v4468
        %v4470 = vpop.f32.mrf.mxu0
        %v4471 = vpop.f32.mrf.mxu0
        %4472 = vdwg.mxu0
        %v4473 = vmax.f32 %v1884, 0.0
        %v4474 = vmax.f32 %v1886, 0.0
        %v4475 = vmax.f32 %v1925, 0.0
        %v4476 = vmax.f32 %v1927, 0.0
        %v4477 = vmax.f32 %v1966, 0.0
        %v4478 = vmax.f32 %v1968, 0.0
        %v4479 = vmax.f32 %v2007, 0.0
        %v4480 = vmax.f32 %v2009, 0.0
        %v4481 = vmax.f32 %v2048, 0.0
        %v4482 = vmax.f32 %v2050, 0.0
        %v4483 = vmax.f32 %v2089, 0.0
        %v4484 = vmax.f32 %v2091, 0.0
        %v4485 = vmax.f32 %v2130, 0.0
        %v4486 = vmax.f32 %v2132, 0.0
        %v4487 = vmax.f32 %v2171, 0.0
        %v4488 = vmax.f32 %v2173, 0.0
        %v4489 = vmax.f32 %v2212, 0.0
        %v4490 = vmax.f32 %v2214, 0.0
        %v4491 = vmax.f32 %v2253, 0.0
        %v4492 = vmax.f32 %v2255, 0.0
        %v4493 = vmax.f32 %v2294, 0.0
        %v4494 = vmax.f32 %v2296, 0.0
        %v4495 = vmax.f32 %v2335, 0.0
        %v4496 = vmax.f32 %v2337, 0.0
        %v4497 = vmax.f32 %v2376, 0.0
        %v4498 = vmax.f32 %v2378, 0.0
        %v4499 = vmax.f32 %v2417, 0.0
        %v4500 = vmax.f32 %v2419, 0.0
        %v4501 = vmax.f32 %v2458, 0.0
        %v4502 = vmax.f32 %v2460, 0.0
        %v4503 = vmax.f32 %v2499, 0.0
        %v4504 = vmax.f32 %v2501, 0.0
        %v4505 = vmax.f32 %v2540, 0.0
        %v4506 = vmax.f32 %v2542, 0.0
        %v4507 = vmax.f32 %v2581, 0.0
        %v4508 = vmax.f32 %v2583, 0.0
        %v4509 = vmax.f32 %v2622, 0.0
        %v4510 = vmax.f32 %v2624, 0.0
        %v4511 = vmax.f32 %v2663, 0.0
        %v4512 = vmax.f32 %v2665, 0.0
        %v4513 = vmax.f32 %v2704, 0.0
        %v4514 = vmax.f32 %v2706, 0.0
        %v4515 = vmax.f32 %v2745, 0.0
        %v4516 = vmax.f32 %v2747, 0.0
        %v4517 = vmax.f32 %v2786, 0.0
        %v4518 = vmax.f32 %v2788, 0.0
        %v4519 = vmax.f32 %v2827, 0.0
        %v4520 = vmax.f32 %v2829, 0.0
        %v4521 = vmax.f32 %v2868, 0.0
        %v4522 = vmax.f32 %v2870, 0.0
        %v4523 = vmax.f32 %v2909, 0.0
        %v4524 = vmax.f32 %v2911, 0.0
        %v4525 = vmax.f32 %v2950, 0.0
        %v4526 = vmax.f32 %v2952, 0.0
        %v4527 = vmax.f32 %v2991, 0.0
        %v4528 = vmax.f32 %v2993, 0.0
        %v4529 = vmax.f32 %v3032, 0.0
        %v4530 = vmax.f32 %v3034, 0.0
        %v4531 = vmax.f32 %v3073, 0.0
        %v4532 = vmax.f32 %v3075, 0.0
        %v4533 = vmax.f32 %v3114, 0.0
        %v4534 = vmax.f32 %v3116, 0.0
        %v4535 = vmax.f32 %v3155, 0.0
        %v4536 = vmax.f32 %v3157, 0.0
        %v4537 = vmax.f32 %v3196, 0.0
        %v4538 = vmax.f32 %v3198, 0.0
        %v4539 = vmax.f32 %v3237, 0.0
        %v4540 = vmax.f32 %v3239, 0.0
        %v4541 = vmax.f32 %v3278, 0.0
        %v4542 = vmax.f32 %v3280, 0.0
        %v4543 = vmax.f32 %v3319, 0.0
        %v4544 = vmax.f32 %v3321, 0.0
        %v4545 = vmax.f32 %v3360, 0.0
        %v4546 = vmax.f32 %v3362, 0.0
        %v4547 = vmax.f32 %v3401, 0.0
        %v4548 = vmax.f32 %v3403, 0.0
        %v4549 = vmax.f32 %v3442, 0.0
        %v4550 = vmax.f32 %v3444, 0.0
        %v4551 = vmax.f32 %v3483, 0.0
        %v4552 = vmax.f32 %v3485, 0.0
        %v4553 = vmax.f32 %v3524, 0.0
        %v4554 = vmax.f32 %v3526, 0.0
        %v4555 = vmax.f32 %v3565, 0.0
        %v4556 = vmax.f32 %v3567, 0.0
        %v4557 = vmax.f32 %v3606, 0.0
        %v4558 = vmax.f32 %v3608, 0.0
        %v4559 = vmax.f32 %v3647, 0.0
        %v4560 = vmax.f32 %v3649, 0.0
        %v4561 = vmax.f32 %v3688, 0.0
        %v4562 = vmax.f32 %v3690, 0.0
        %v4563 = vmax.f32 %v3729, 0.0
        %v4564 = vmax.f32 %v3731, 0.0
        %v4565 = vmax.f32 %v3770, 0.0
        %v4566 = vmax.f32 %v3772, 0.0
        %v4567 = vmax.f32 %v3811, 0.0
        %v4568 = vmax.f32 %v3813, 0.0
        %v4569 = vmax.f32 %v3852, 0.0
        %v4570 = vmax.f32 %v3854, 0.0
        %v4571 = vmax.f32 %v3893, 0.0
        %v4572 = vmax.f32 %v3895, 0.0
        %v4573 = vmax.f32 %v3934, 0.0
        %v4574 = vmax.f32 %v3936, 0.0
        %v4575 = vmax.f32 %v3975, 0.0
        %v4576 = vmax.f32 %v3977, 0.0
        %v4577 = vmax.f32 %v4016, 0.0
        %v4578 = vmax.f32 %v4018, 0.0
        %v4579 = vmax.f32 %v4057, 0.0
        %v4580 = vmax.f32 %v4059, 0.0
        %v4581 = vmax.f32 %v4098, 0.0
        %v4582 = vmax.f32 %v4100, 0.0
        %v4583 = vmax.f32 %v4139, 0.0
        %v4584 = vmax.f32 %v4141, 0.0
        %v4585 = vmax.f32 %v4180, 0.0
        %v4586 = vmax.f32 %v4182, 0.0
        %v4587 = vmax.f32 %v4221, 0.0
        %v4588 = vmax.f32 %v4223, 0.0
        %v4589 = vmax.f32 %v4262, 0.0
        %v4590 = vmax.f32 %v4264, 0.0
        %v4591 = vmax.f32 %v4303, 0.0
        %v4592 = vmax.f32 %v4305, 0.0
        %v4593 = vmax.f32 %v4344, 0.0
        %v4594 = vmax.f32 %v4346, 0.0
        %v4595 = vmax.f32 %v4385, 0.0
        %v4596 = vmax.f32 %v4387, 0.0
        %v4597 = vmax.f32 %v4426, 0.0
        %v4598 = vmax.f32 %v4428, 0.0
        %v4599 = vmax.f32 %v4467, 0.0
        %v4600 = vmax.f32 %v4469, 0.0
        %v4601 = vpack.c.bf16 %v4473, %v4473
        %v4602 = vpack.c.bf16 %v4474, %v4474
        %v4603 = vpack.c.bf16 %v4475, %v4475
        %v4604 = vpack.c.bf16 %v4476, %v4476
        %v4605 = vpack.c.bf16 %v4477, %v4477
        %v4606 = vpack.c.bf16 %v4478, %v4478
        %v4607 = vpack.c.bf16 %v4479, %v4479
        %v4608 = vpack.c.bf16 %v4480, %v4480
        %v4609 = vpack.c.bf16 %v4481, %v4481
        %v4610 = vpack.c.bf16 %v4482, %v4482
        %v4611 = vpack.c.bf16 %v4483, %v4483
        %v4612 = vpack.c.bf16 %v4484, %v4484
        %v4613 = vpack.c.bf16 %v4485, %v4485
        %v4614 = vpack.c.bf16 %v4486, %v4486
        %v4615 = vpack.c.bf16 %v4487, %v4487
        %v4616 = vpack.c.bf16 %v4488, %v4488
        %v4617 = vpack.c.bf16 %v4489, %v4489
        %v4618 = vpack.c.bf16 %v4490, %v4490
        %v4619 = vpack.c.bf16 %v4491, %v4491
        %v4620 = vpack.c.bf16 %v4492, %v4492
        %v4621 = vpack.c.bf16 %v4493, %v4493
        %v4622 = vpack.c.bf16 %v4494, %v4494
        %v4623 = vpack.c.bf16 %v4495, %v4495
        %v4624 = vpack.c.bf16 %v4496, %v4496
        %v4625 = vpack.c.bf16 %v4497, %v4497
        %v4626 = vpack.c.bf16 %v4498, %v4498
        %v4627 = vpack.c.bf16 %v4499, %v4499
        %v4628 = vpack.c.bf16 %v4500, %v4500
        %v4629 = vpack.c.bf16 %v4501, %v4501
        %v4630 = vpack.c.bf16 %v4502, %v4502
        %v4631 = vpack.c.bf16 %v4503, %v4503
        %v4632 = vpack.c.bf16 %v4504, %v4504
        %v4633 = vpack.c.bf16 %v4505, %v4505
        %v4634 = vpack.c.bf16 %v4506, %v4506
        %v4635 = vpack.c.bf16 %v4507, %v4507
        %v4636 = vpack.c.bf16 %v4508, %v4508
        %v4637 = vpack.c.bf16 %v4509, %v4509
        %v4638 = vpack.c.bf16 %v4510, %v4510
        %v4639 = vpack.c.bf16 %v4511, %v4511
        %v4640 = vpack.c.bf16 %v4512, %v4512
        %v4641 = vpack.c.bf16 %v4513, %v4513
        %v4642 = vpack.c.bf16 %v4514, %v4514
        %v4643 = vpack.c.bf16 %v4515, %v4515
        %v4644 = vpack.c.bf16 %v4516, %v4516
        %v4645 = vpack.c.bf16 %v4517, %v4517
        %v4646 = vpack.c.bf16 %v4518, %v4518
        %v4647 = vpack.c.bf16 %v4519, %v4519
        %v4648 = vpack.c.bf16 %v4520, %v4520
        %v4649 = vpack.c.bf16 %v4521, %v4521
        %v4650 = vpack.c.bf16 %v4522, %v4522
        %v4651 = vpack.c.bf16 %v4523, %v4523
        %v4652 = vpack.c.bf16 %v4524, %v4524
        %v4653 = vpack.c.bf16 %v4525, %v4525
        %v4654 = vpack.c.bf16 %v4526, %v4526
        %v4655 = vpack.c.bf16 %v4527, %v4527
        %v4656 = vpack.c.bf16 %v4528, %v4528
        %v4657 = vpack.c.bf16 %v4529, %v4529
        %v4658 = vpack.c.bf16 %v4530, %v4530
        %v4659 = vpack.c.bf16 %v4531, %v4531
        %v4660 = vpack.c.bf16 %v4532, %v4532
        %v4661 = vpack.c.bf16 %v4533, %v4533
        %v4662 = vpack.c.bf16 %v4534, %v4534
        %v4663 = vpack.c.bf16 %v4535, %v4535
        %v4664 = vpack.c.bf16 %v4536, %v4536
        %v4665 = vpack.c.bf16 %v4537, %v4537
        %v4666 = vpack.c.bf16 %v4538, %v4538
        %v4667 = vpack.c.bf16 %v4539, %v4539
        %v4668 = vpack.c.bf16 %v4540, %v4540
        %v4669 = vpack.c.bf16 %v4541, %v4541
        %v4670 = vpack.c.bf16 %v4542, %v4542
        %v4671 = vpack.c.bf16 %v4543, %v4543
        %v4672 = vpack.c.bf16 %v4544, %v4544
        %v4673 = vpack.c.bf16 %v4545, %v4545
        %v4674 = vpack.c.bf16 %v4546, %v4546
        %v4675 = vpack.c.bf16 %v4547, %v4547
        %v4676 = vpack.c.bf16 %v4548, %v4548
        %v4677 = vpack.c.bf16 %v4549, %v4549
        %v4678 = vpack.c.bf16 %v4550, %v4550
        %v4679 = vpack.c.bf16 %v4551, %v4551
        %v4680 = vpack.c.bf16 %v4552, %v4552
        %v4681 = vpack.c.bf16 %v4553, %v4553
        %v4682 = vpack.c.bf16 %v4554, %v4554
        %v4683 = vpack.c.bf16 %v4555, %v4555
        %v4684 = vpack.c.bf16 %v4556, %v4556
        %v4685 = vpack.c.bf16 %v4557, %v4557
        %v4686 = vpack.c.bf16 %v4558, %v4558
        %v4687 = vpack.c.bf16 %v4559, %v4559
        %v4688 = vpack.c.bf16 %v4560, %v4560
        %v4689 = vpack.c.bf16 %v4561, %v4561
        %v4690 = vpack.c.bf16 %v4562, %v4562
        %v4691 = vpack.c.bf16 %v4563, %v4563
        %v4692 = vpack.c.bf16 %v4564, %v4564
        %v4693 = vpack.c.bf16 %v4565, %v4565
        %v4694 = vpack.c.bf16 %v4566, %v4566
        %v4695 = vpack.c.bf16 %v4567, %v4567
        %v4696 = vpack.c.bf16 %v4568, %v4568
        %v4697 = vpack.c.bf16 %v4569, %v4569
        %v4698 = vpack.c.bf16 %v4570, %v4570
        %v4699 = vpack.c.bf16 %v4571, %v4571
        %v4700 = vpack.c.bf16 %v4572, %v4572
        %v4701 = vpack.c.bf16 %v4573, %v4573
        %v4702 = vpack.c.bf16 %v4574, %v4574
        %v4703 = vpack.c.bf16 %v4575, %v4575
        %v4704 = vpack.c.bf16 %v4576, %v4576
        %v4705 = vpack.c.bf16 %v4577, %v4577
        %v4706 = vpack.c.bf16 %v4578, %v4578
        %v4707 = vpack.c.bf16 %v4579, %v4579
        %v4708 = vpack.c.bf16 %v4580, %v4580
        %v4709 = vpack.c.bf16 %v4581, %v4581
        %v4710 = vpack.c.bf16 %v4582, %v4582
        %v4711 = vpack.c.bf16 %v4583, %v4583
        %v4712 = vpack.c.bf16 %v4584, %v4584
        %v4713 = vpack.c.bf16 %v4585, %v4585
        %v4714 = vpack.c.bf16 %v4586, %v4586
        %v4715 = vpack.c.bf16 %v4587, %v4587
        %v4716 = vpack.c.bf16 %v4588, %v4588
        %v4717 = vpack.c.bf16 %v4589, %v4589
        %v4718 = vpack.c.bf16 %v4590, %v4590
        %v4719 = vpack.c.bf16 %v4591, %v4591
        %v4720 = vpack.c.bf16 %v4592, %v4592
        %v4721 = vpack.c.bf16 %v4593, %v4593
        %v4722 = vpack.c.bf16 %v4594, %v4594
        %v4723 = vpack.c.bf16 %v4595, %v4595
        %v4724 = vpack.c.bf16 %v4596, %v4596
        %v4725 = vpack.c.bf16 %v4597, %v4597
        %v4726 = vpack.c.bf16 %v4598, %v4598
        %v4727 = vpack.c.bf16 %v4599, %v4599
        %v4728 = vpack.c.bf16 %v4600, %v4600
        %v4857 = vcombine.low %v4601, %v4602
        %v4858 = vcombine.low %v4603, %v4604
        %v4859 = vcombine.low %v4605, %v4606
        %v4860 = vcombine.low %v4607, %v4608
        %v4862 = vunpack.c.l.s4 1966171168
        %v4863 = vunpack.c.0.s8 %v4862
        %v4864 = vlaneseq
        %v4865 = vshrl.u32 %v4864, 7
        %v4866 = vsub.s32 %v4863, %v4865
        %v4867 = vrot.slane %v4857, %v4866
        %v4869 = vunpack.c.l.s4 1966171168
        %v4870 = vunpack.c.0.s8 %v4869
        %v4871 = vlaneseq
        %v4872 = vshrl.u32 %v4871, 7
        %v4873 = vsub.s32 %v4870, %v4872
        %v4874 = vrot.slane %v4858, %v4873
        %v4876 = vunpack.c.l.s4 1966171168
        %v4877 = vunpack.c.0.s8 %v4876
        %v4878 = vlaneseq
        %v4879 = vshrl.u32 %v4878, 7
        %v4880 = vsub.s32 %v4877, %v4879
        %v4881 = vrot.slane %v4859, %v4880
        %v4883 = vunpack.c.l.s4 1966171168
        %v4884 = vunpack.c.0.s8 %v4883
        %v4885 = vlaneseq
        %v4886 = vshrl.u32 %v4885, 7
        %v4887 = vsub.s32 %v4884, %v4886
        %v4888 = vrot.slane %v4860, %v4887
        %v4889 = vcombine.low %v4867, %v4874
        %v4890 = vcombine.low %v4881, %v4888
        %v4892 = vunpack.c.l.s4 1966171168
        %v4893 = vunpack.c.0.s8 %v4892
        %v4894 = vlaneseq
        %v4895 = vshrl.u32 %v4894, 7
        %v4896 = vsub.s32 %v4893, %v4895
        %v4897 = vrot.slane %v4889, %v4896
        %v4899 = vunpack.c.l.s4 1966171168
        %v4900 = vunpack.c.0.s8 %v4899
        %v4901 = vlaneseq
        %v4902 = vshrl.u32 %v4901, 7
        %v4903 = vsub.s32 %v4900, %v4902
        %v4904 = vrot.slane %v4890, %v4903
        %v4905 = vcombine.low %v4897, %v4904
        %v4906 = vcombine.low %v4609, %v4610
        %v4907 = vcombine.low %v4611, %v4612
        %v4908 = vcombine.low %v4613, %v4614
        %v4909 = vcombine.low %v4615, %v4616
        %v4911 = vunpack.c.l.s4 1966171168
        %v4912 = vunpack.c.0.s8 %v4911
        %v4913 = vlaneseq
        %v4914 = vshrl.u32 %v4913, 7
        %v4915 = vsub.s32 %v4912, %v4914
        %v4916 = vrot.slane %v4906, %v4915
        %v4918 = vunpack.c.l.s4 1966171168
        %v4919 = vunpack.c.0.s8 %v4918
        %v4920 = vlaneseq
        %v4921 = vshrl.u32 %v4920, 7
        %v4922 = vsub.s32 %v4919, %v4921
        %v4923 = vrot.slane %v4907, %v4922
        %v4925 = vunpack.c.l.s4 1966171168
        %v4926 = vunpack.c.0.s8 %v4925
        %v4927 = vlaneseq
        %v4928 = vshrl.u32 %v4927, 7
        %v4929 = vsub.s32 %v4926, %v4928
        %v4930 = vrot.slane %v4908, %v4929
        %v4932 = vunpack.c.l.s4 1966171168
        %v4933 = vunpack.c.0.s8 %v4932
        %v4934 = vlaneseq
        %v4935 = vshrl.u32 %v4934, 7
        %v4936 = vsub.s32 %v4933, %v4935
        %v4937 = vrot.slane %v4909, %v4936
        %v4938 = vcombine.low %v4916, %v4923
        %v4939 = vcombine.low %v4930, %v4937
        %v4941 = vunpack.c.l.s4 1966171168
        %v4942 = vunpack.c.0.s8 %v4941
        %v4943 = vlaneseq
        %v4944 = vshrl.u32 %v4943, 7
        %v4945 = vsub.s32 %v4942, %v4944
        %v4946 = vrot.slane %v4938, %v4945
        %v4948 = vunpack.c.l.s4 1966171168
        %v4949 = vunpack.c.0.s8 %v4948
        %v4950 = vlaneseq
        %v4951 = vshrl.u32 %v4950, 7
        %v4952 = vsub.s32 %v4949, %v4951
        %v4953 = vrot.slane %v4939, %v4952
        %v4954 = vcombine.low %v4946, %v4953
        %v4955 = vcombine.low %v4617, %v4618
        %v4956 = vcombine.low %v4619, %v4620
        %v4957 = vcombine.low %v4621, %v4622
        %v4958 = vcombine.low %v4623, %v4624
        %v4960 = vunpack.c.l.s4 1966171168
        %v4961 = vunpack.c.0.s8 %v4960
        %v4962 = vlaneseq
        %v4963 = vshrl.u32 %v4962, 7
        %v4964 = vsub.s32 %v4961, %v4963
        %v4965 = vrot.slane %v4955, %v4964
        %v4967 = vunpack.c.l.s4 1966171168
        %v4968 = vunpack.c.0.s8 %v4967
        %v4969 = vlaneseq
        %v4970 = vshrl.u32 %v4969, 7
        %v4971 = vsub.s32 %v4968, %v4970
        %v4972 = vrot.slane %v4956, %v4971
        %v4974 = vunpack.c.l.s4 1966171168
        %v4975 = vunpack.c.0.s8 %v4974
        %v4976 = vlaneseq
        %v4977 = vshrl.u32 %v4976, 7
        %v4978 = vsub.s32 %v4975, %v4977
        %v4979 = vrot.slane %v4957, %v4978
        %v4981 = vunpack.c.l.s4 1966171168
        %v4982 = vunpack.c.0.s8 %v4981
        %v4983 = vlaneseq
        %v4984 = vshrl.u32 %v4983, 7
        %v4985 = vsub.s32 %v4982, %v4984
        %v4986 = vrot.slane %v4958, %v4985
        %v4987 = vcombine.low %v4965, %v4972
        %v4988 = vcombine.low %v4979, %v4986
        %v4990 = vunpack.c.l.s4 1966171168
        %v4991 = vunpack.c.0.s8 %v4990
        %v4992 = vlaneseq
        %v4993 = vshrl.u32 %v4992, 7
        %v4994 = vsub.s32 %v4991, %v4993
        %v4995 = vrot.slane %v4987, %v4994
        %v4997 = vunpack.c.l.s4 1966171168
        %v4998 = vunpack.c.0.s8 %v4997
        %v4999 = vlaneseq
        %v5000 = vshrl.u32 %v4999, 7
        %v5001 = vsub.s32 %v4998, %v5000
        %v5002 = vrot.slane %v4988, %v5001
        %v5003 = vcombine.low %v4995, %v5002
        %v5004 = vcombine.low %v4625, %v4626
        %v5005 = vcombine.low %v4627, %v4628
        %v5006 = vcombine.low %v4629, %v4630
        %v5007 = vcombine.low %v4631, %v4632
        %v5009 = vunpack.c.l.s4 1966171168
        %v5010 = vunpack.c.0.s8 %v5009
        %v5011 = vlaneseq
        %v5012 = vshrl.u32 %v5011, 7
        %v5013 = vsub.s32 %v5010, %v5012
        %v5014 = vrot.slane %v5004, %v5013
        %v5016 = vunpack.c.l.s4 1966171168
        %v5017 = vunpack.c.0.s8 %v5016
        %v5018 = vlaneseq
        %v5019 = vshrl.u32 %v5018, 7
        %v5020 = vsub.s32 %v5017, %v5019
        %v5021 = vrot.slane %v5005, %v5020
        %v5023 = vunpack.c.l.s4 1966171168
        %v5024 = vunpack.c.0.s8 %v5023
        %v5025 = vlaneseq
        %v5026 = vshrl.u32 %v5025, 7
        %v5027 = vsub.s32 %v5024, %v5026
        %v5028 = vrot.slane %v5006, %v5027
        %v5030 = vunpack.c.l.s4 1966171168
        %v5031 = vunpack.c.0.s8 %v5030
        %v5032 = vlaneseq
        %v5033 = vshrl.u32 %v5032, 7
        %v5034 = vsub.s32 %v5031, %v5033
        %v5035 = vrot.slane %v5007, %v5034
        %v5036 = vcombine.low %v5014, %v5021
        %v5037 = vcombine.low %v5028, %v5035
        %v5039 = vunpack.c.l.s4 1966171168
        %v5040 = vunpack.c.0.s8 %v5039
        %v5041 = vlaneseq
        %v5042 = vshrl.u32 %v5041, 7
        %v5043 = vsub.s32 %v5040, %v5042
        %v5044 = vrot.slane %v5036, %v5043
        %v5046 = vunpack.c.l.s4 1966171168
        %v5047 = vunpack.c.0.s8 %v5046
        %v5048 = vlaneseq
        %v5049 = vshrl.u32 %v5048, 7
        %v5050 = vsub.s32 %v5047, %v5049
        %v5051 = vrot.slane %v5037, %v5050
        %v5052 = vcombine.low %v5044, %v5051
        %v5053 = vcombine.low %v4633, %v4634
        %v5054 = vcombine.low %v4635, %v4636
        %v5055 = vcombine.low %v4637, %v4638
        %v5056 = vcombine.low %v4639, %v4640
        %v5058 = vunpack.c.l.s4 1966171168
        %v5059 = vunpack.c.0.s8 %v5058
        %v5060 = vlaneseq
        %v5061 = vshrl.u32 %v5060, 7
        %v5062 = vsub.s32 %v5059, %v5061
        %v5063 = vrot.slane %v5053, %v5062
        %v5065 = vunpack.c.l.s4 1966171168
        %v5066 = vunpack.c.0.s8 %v5065
        %v5067 = vlaneseq
        %v5068 = vshrl.u32 %v5067, 7
        %v5069 = vsub.s32 %v5066, %v5068
        %v5070 = vrot.slane %v5054, %v5069
        %v5072 = vunpack.c.l.s4 1966171168
        %v5073 = vunpack.c.0.s8 %v5072
        %v5074 = vlaneseq
        %v5075 = vshrl.u32 %v5074, 7
        %v5076 = vsub.s32 %v5073, %v5075
        %v5077 = vrot.slane %v5055, %v5076
        %v5079 = vunpack.c.l.s4 1966171168
        %v5080 = vunpack.c.0.s8 %v5079
        %v5081 = vlaneseq
        %v5082 = vshrl.u32 %v5081, 7
        %v5083 = vsub.s32 %v5080, %v5082
        %v5084 = vrot.slane %v5056, %v5083
        %v5085 = vcombine.low %v5063, %v5070
        %v5086 = vcombine.low %v5077, %v5084
        %v5088 = vunpack.c.l.s4 1966171168
        %v5089 = vunpack.c.0.s8 %v5088
        %v5090 = vlaneseq
        %v5091 = vshrl.u32 %v5090, 7
        %v5092 = vsub.s32 %v5089, %v5091
        %v5093 = vrot.slane %v5085, %v5092
        %v5095 = vunpack.c.l.s4 1966171168
        %v5096 = vunpack.c.0.s8 %v5095
        %v5097 = vlaneseq
        %v5098 = vshrl.u32 %v5097, 7
        %v5099 = vsub.s32 %v5096, %v5098
        %v5100 = vrot.slane %v5086, %v5099
        %v5101 = vcombine.low %v5093, %v5100
        %v5102 = vcombine.low %v4641, %v4642
        %v5103 = vcombine.low %v4643, %v4644
        %v5104 = vcombine.low %v4645, %v4646
        %v5105 = vcombine.low %v4647, %v4648
        %v5107 = vunpack.c.l.s4 1966171168
        %v5108 = vunpack.c.0.s8 %v5107
        %v5109 = vlaneseq
        %v5110 = vshrl.u32 %v5109, 7
        %v5111 = vsub.s32 %v5108, %v5110
        %v5112 = vrot.slane %v5102, %v5111
        %v5114 = vunpack.c.l.s4 1966171168
        %v5115 = vunpack.c.0.s8 %v5114
        %v5116 = vlaneseq
        %v5117 = vshrl.u32 %v5116, 7
        %v5118 = vsub.s32 %v5115, %v5117
        %v5119 = vrot.slane %v5103, %v5118
        %v5121 = vunpack.c.l.s4 1966171168
        %v5122 = vunpack.c.0.s8 %v5121
        %v5123 = vlaneseq
        %v5124 = vshrl.u32 %v5123, 7
        %v5125 = vsub.s32 %v5122, %v5124
        %v5126 = vrot.slane %v5104, %v5125
        %v5128 = vunpack.c.l.s4 1966171168
        %v5129 = vunpack.c.0.s8 %v5128
        %v5130 = vlaneseq
        %v5131 = vshrl.u32 %v5130, 7
        %v5132 = vsub.s32 %v5129, %v5131
        %v5133 = vrot.slane %v5105, %v5132
        %v5134 = vcombine.low %v5112, %v5119
        %v5135 = vcombine.low %v5126, %v5133
        %v5137 = vunpack.c.l.s4 1966171168
        %v5138 = vunpack.c.0.s8 %v5137
        %v5139 = vlaneseq
        %v5140 = vshrl.u32 %v5139, 7
        %v5141 = vsub.s32 %v5138, %v5140
        %v5142 = vrot.slane %v5134, %v5141
        %v5144 = vunpack.c.l.s4 1966171168
        %v5145 = vunpack.c.0.s8 %v5144
        %v5146 = vlaneseq
        %v5147 = vshrl.u32 %v5146, 7
        %v5148 = vsub.s32 %v5145, %v5147
        %v5149 = vrot.slane %v5135, %v5148
        %v5150 = vcombine.low %v5142, %v5149
        %v5151 = vcombine.low %v4649, %v4650
        %v5152 = vcombine.low %v4651, %v4652
        %v5153 = vcombine.low %v4653, %v4654
        %v5154 = vcombine.low %v4655, %v4656
        %v5156 = vunpack.c.l.s4 1966171168
        %v5157 = vunpack.c.0.s8 %v5156
        %v5158 = vlaneseq
        %v5159 = vshrl.u32 %v5158, 7
        %v5160 = vsub.s32 %v5157, %v5159
        %v5161 = vrot.slane %v5151, %v5160
        %v5163 = vunpack.c.l.s4 1966171168
        %v5164 = vunpack.c.0.s8 %v5163
        %v5165 = vlaneseq
        %v5166 = vshrl.u32 %v5165, 7
        %v5167 = vsub.s32 %v5164, %v5166
        %v5168 = vrot.slane %v5152, %v5167
        %v5170 = vunpack.c.l.s4 1966171168
        %v5171 = vunpack.c.0.s8 %v5170
        %v5172 = vlaneseq
        %v5173 = vshrl.u32 %v5172, 7
        %v5174 = vsub.s32 %v5171, %v5173
        %v5175 = vrot.slane %v5153, %v5174
        %v5177 = vunpack.c.l.s4 1966171168
        %v5178 = vunpack.c.0.s8 %v5177
        %v5179 = vlaneseq
        %v5180 = vshrl.u32 %v5179, 7
        %v5181 = vsub.s32 %v5178, %v5180
        %v5182 = vrot.slane %v5154, %v5181
        %v5183 = vcombine.low %v5161, %v5168
        %v5184 = vcombine.low %v5175, %v5182
        %v5186 = vunpack.c.l.s4 1966171168
        %v5187 = vunpack.c.0.s8 %v5186
        %v5188 = vlaneseq
        %v5189 = vshrl.u32 %v5188, 7
        %v5190 = vsub.s32 %v5187, %v5189
        %v5191 = vrot.slane %v5183, %v5190
        %v5193 = vunpack.c.l.s4 1966171168
        %v5194 = vunpack.c.0.s8 %v5193
        %v5195 = vlaneseq
        %v5196 = vshrl.u32 %v5195, 7
        %v5197 = vsub.s32 %v5194, %v5196
        %v5198 = vrot.slane %v5184, %v5197
        %v5199 = vcombine.low %v5191, %v5198
        %v5200 = vcombine.low %v4657, %v4658
        %v5201 = vcombine.low %v4659, %v4660
        %v5202 = vcombine.low %v4661, %v4662
        %v5203 = vcombine.low %v4663, %v4664
        %v5205 = vunpack.c.l.s4 1966171168
        %v5206 = vunpack.c.0.s8 %v5205
        %v5207 = vlaneseq
        %v5208 = vshrl.u32 %v5207, 7
        %v5209 = vsub.s32 %v5206, %v5208
        %v5210 = vrot.slane %v5200, %v5209
        %v5212 = vunpack.c.l.s4 1966171168
        %v5213 = vunpack.c.0.s8 %v5212
        %v5214 = vlaneseq
        %v5215 = vshrl.u32 %v5214, 7
        %v5216 = vsub.s32 %v5213, %v5215
        %v5217 = vrot.slane %v5201, %v5216
        %v5219 = vunpack.c.l.s4 1966171168
        %v5220 = vunpack.c.0.s8 %v5219
        %v5221 = vlaneseq
        %v5222 = vshrl.u32 %v5221, 7
        %v5223 = vsub.s32 %v5220, %v5222
        %v5224 = vrot.slane %v5202, %v5223
        %v5226 = vunpack.c.l.s4 1966171168
        %v5227 = vunpack.c.0.s8 %v5226
        %v5228 = vlaneseq
        %v5229 = vshrl.u32 %v5228, 7
        %v5230 = vsub.s32 %v5227, %v5229
        %v5231 = vrot.slane %v5203, %v5230
        %v5232 = vcombine.low %v5210, %v5217
        %v5233 = vcombine.low %v5224, %v5231
        %v5235 = vunpack.c.l.s4 1966171168
        %v5236 = vunpack.c.0.s8 %v5235
        %v5237 = vlaneseq
        %v5238 = vshrl.u32 %v5237, 7
        %v5239 = vsub.s32 %v5236, %v5238
        %v5240 = vrot.slane %v5232, %v5239
        %v5242 = vunpack.c.l.s4 1966171168
        %v5243 = vunpack.c.0.s8 %v5242
        %v5244 = vlaneseq
        %v5245 = vshrl.u32 %v5244, 7
        %v5246 = vsub.s32 %v5243, %v5245
        %v5247 = vrot.slane %v5233, %v5246
        %v5248 = vcombine.low %v5240, %v5247
        %v5249 = vcombine.low %v4665, %v4666
        %v5250 = vcombine.low %v4667, %v4668
        %v5251 = vcombine.low %v4669, %v4670
        %v5252 = vcombine.low %v4671, %v4672
        %v5254 = vunpack.c.l.s4 1966171168
        %v5255 = vunpack.c.0.s8 %v5254
        %v5256 = vlaneseq
        %v5257 = vshrl.u32 %v5256, 7
        %v5258 = vsub.s32 %v5255, %v5257
        %v5259 = vrot.slane %v5249, %v5258
        %v5261 = vunpack.c.l.s4 1966171168
        %v5262 = vunpack.c.0.s8 %v5261
        %v5263 = vlaneseq
        %v5264 = vshrl.u32 %v5263, 7
        %v5265 = vsub.s32 %v5262, %v5264
        %v5266 = vrot.slane %v5250, %v5265
        %v5268 = vunpack.c.l.s4 1966171168
        %v5269 = vunpack.c.0.s8 %v5268
        %v5270 = vlaneseq
        %v5271 = vshrl.u32 %v5270, 7
        %v5272 = vsub.s32 %v5269, %v5271
        %v5273 = vrot.slane %v5251, %v5272
        %v5275 = vunpack.c.l.s4 1966171168
        %v5276 = vunpack.c.0.s8 %v5275
        %v5277 = vlaneseq
        %v5278 = vshrl.u32 %v5277, 7
        %v5279 = vsub.s32 %v5276, %v5278
        %v5280 = vrot.slane %v5252, %v5279
        %v5281 = vcombine.low %v5259, %v5266
        %v5282 = vcombine.low %v5273, %v5280
        %v5284 = vunpack.c.l.s4 1966171168
        %v5285 = vunpack.c.0.s8 %v5284
        %v5286 = vlaneseq
        %v5287 = vshrl.u32 %v5286, 7
        %v5288 = vsub.s32 %v5285, %v5287
        %v5289 = vrot.slane %v5281, %v5288
        %v5291 = vunpack.c.l.s4 1966171168
        %v5292 = vunpack.c.0.s8 %v5291
        %v5293 = vlaneseq
        %v5294 = vshrl.u32 %v5293, 7
        %v5295 = vsub.s32 %v5292, %v5294
        %v5296 = vrot.slane %v5282, %v5295
        %v5297 = vcombine.low %v5289, %v5296
        %v5298 = vcombine.low %v4673, %v4674
        %v5299 = vcombine.low %v4675, %v4676
        %v5300 = vcombine.low %v4677, %v4678
        %v5301 = vcombine.low %v4679, %v4680
        %v5303 = vunpack.c.l.s4 1966171168
        %v5304 = vunpack.c.0.s8 %v5303
        %v5305 = vlaneseq
        %v5306 = vshrl.u32 %v5305, 7
        %v5307 = vsub.s32 %v5304, %v5306
        %v5308 = vrot.slane %v5298, %v5307
        %v5310 = vunpack.c.l.s4 1966171168
        %v5311 = vunpack.c.0.s8 %v5310
        %v5312 = vlaneseq
        %v5313 = vshrl.u32 %v5312, 7
        %v5314 = vsub.s32 %v5311, %v5313
        %v5315 = vrot.slane %v5299, %v5314
        %v5317 = vunpack.c.l.s4 1966171168
        %v5318 = vunpack.c.0.s8 %v5317
        %v5319 = vlaneseq
        %v5320 = vshrl.u32 %v5319, 7
        %v5321 = vsub.s32 %v5318, %v5320
        %v5322 = vrot.slane %v5300, %v5321
        %v5324 = vunpack.c.l.s4 1966171168
        %v5325 = vunpack.c.0.s8 %v5324
        %v5326 = vlaneseq
        %v5327 = vshrl.u32 %v5326, 7
        %v5328 = vsub.s32 %v5325, %v5327
        %v5329 = vrot.slane %v5301, %v5328
        %v5330 = vcombine.low %v5308, %v5315
        %v5331 = vcombine.low %v5322, %v5329
        %v5333 = vunpack.c.l.s4 1966171168
        %v5334 = vunpack.c.0.s8 %v5333
        %v5335 = vlaneseq
        %v5336 = vshrl.u32 %v5335, 7
        %v5337 = vsub.s32 %v5334, %v5336
        %v5338 = vrot.slane %v5330, %v5337
        %v5340 = vunpack.c.l.s4 1966171168
        %v5341 = vunpack.c.0.s8 %v5340
        %v5342 = vlaneseq
        %v5343 = vshrl.u32 %v5342, 7
        %v5344 = vsub.s32 %v5341, %v5343
        %v5345 = vrot.slane %v5331, %v5344
        %v5346 = vcombine.low %v5338, %v5345
        %v5347 = vcombine.low %v4681, %v4682
        %v5348 = vcombine.low %v4683, %v4684
        %v5349 = vcombine.low %v4685, %v4686
        %v5350 = vcombine.low %v4687, %v4688
        %v5352 = vunpack.c.l.s4 1966171168
        %v5353 = vunpack.c.0.s8 %v5352
        %v5354 = vlaneseq
        %v5355 = vshrl.u32 %v5354, 7
        %v5356 = vsub.s32 %v5353, %v5355
        %v5357 = vrot.slane %v5347, %v5356
        %v5359 = vunpack.c.l.s4 1966171168
        %v5360 = vunpack.c.0.s8 %v5359
        %v5361 = vlaneseq
        %v5362 = vshrl.u32 %v5361, 7
        %v5363 = vsub.s32 %v5360, %v5362
        %v5364 = vrot.slane %v5348, %v5363
        %v5366 = vunpack.c.l.s4 1966171168
        %v5367 = vunpack.c.0.s8 %v5366
        %v5368 = vlaneseq
        %v5369 = vshrl.u32 %v5368, 7
        %v5370 = vsub.s32 %v5367, %v5369
        %v5371 = vrot.slane %v5349, %v5370
        %v5373 = vunpack.c.l.s4 1966171168
        %v5374 = vunpack.c.0.s8 %v5373
        %v5375 = vlaneseq
        %v5376 = vshrl.u32 %v5375, 7
        %v5377 = vsub.s32 %v5374, %v5376
        %v5378 = vrot.slane %v5350, %v5377
        %v5379 = vcombine.low %v5357, %v5364
        %v5380 = vcombine.low %v5371, %v5378
        %v5382 = vunpack.c.l.s4 1966171168
        %v5383 = vunpack.c.0.s8 %v5382
        %v5384 = vlaneseq
        %v5385 = vshrl.u32 %v5384, 7
        %v5386 = vsub.s32 %v5383, %v5385
        %v5387 = vrot.slane %v5379, %v5386
        %v5389 = vunpack.c.l.s4 1966171168
        %v5390 = vunpack.c.0.s8 %v5389
        %v5391 = vlaneseq
        %v5392 = vshrl.u32 %v5391, 7
        %v5393 = vsub.s32 %v5390, %v5392
        %v5394 = vrot.slane %v5380, %v5393
        %v5395 = vcombine.low %v5387, %v5394
        %v5396 = vcombine.low %v4689, %v4690
        %v5397 = vcombine.low %v4691, %v4692
        %v5398 = vcombine.low %v4693, %v4694
        %v5399 = vcombine.low %v4695, %v4696
        %v5401 = vunpack.c.l.s4 1966171168
        %v5402 = vunpack.c.0.s8 %v5401
        %v5403 = vlaneseq
        %v5404 = vshrl.u32 %v5403, 7
        %v5405 = vsub.s32 %v5402, %v5404
        %v5406 = vrot.slane %v5396, %v5405
        %v5408 = vunpack.c.l.s4 1966171168
        %v5409 = vunpack.c.0.s8 %v5408
        %v5410 = vlaneseq
        %v5411 = vshrl.u32 %v5410, 7
        %v5412 = vsub.s32 %v5409, %v5411
        %v5413 = vrot.slane %v5397, %v5412
        %v5415 = vunpack.c.l.s4 1966171168
        %v5416 = vunpack.c.0.s8 %v5415
        %v5417 = vlaneseq
        %v5418 = vshrl.u32 %v5417, 7
        %v5419 = vsub.s32 %v5416, %v5418
        %v5420 = vrot.slane %v5398, %v5419
        %v5422 = vunpack.c.l.s4 1966171168
        %v5423 = vunpack.c.0.s8 %v5422
        %v5424 = vlaneseq
        %v5425 = vshrl.u32 %v5424, 7
        %v5426 = vsub.s32 %v5423, %v5425
        %v5427 = vrot.slane %v5399, %v5426
        %v5428 = vcombine.low %v5406, %v5413
        %v5429 = vcombine.low %v5420, %v5427
        %v5431 = vunpack.c.l.s4 1966171168
        %v5432 = vunpack.c.0.s8 %v5431
        %v5433 = vlaneseq
        %v5434 = vshrl.u32 %v5433, 7
        %v5435 = vsub.s32 %v5432, %v5434
        %v5436 = vrot.slane %v5428, %v5435
        %v5438 = vunpack.c.l.s4 1966171168
        %v5439 = vunpack.c.0.s8 %v5438
        %v5440 = vlaneseq
        %v5441 = vshrl.u32 %v5440, 7
        %v5442 = vsub.s32 %v5439, %v5441
        %v5443 = vrot.slane %v5429, %v5442
        %v5444 = vcombine.low %v5436, %v5443
        %v5445 = vcombine.low %v4697, %v4698
        %v5446 = vcombine.low %v4699, %v4700
        %v5447 = vcombine.low %v4701, %v4702
        %v5448 = vcombine.low %v4703, %v4704
        %v5450 = vunpack.c.l.s4 1966171168
        %v5451 = vunpack.c.0.s8 %v5450
        %v5452 = vlaneseq
        %v5453 = vshrl.u32 %v5452, 7
        %v5454 = vsub.s32 %v5451, %v5453
        %v5455 = vrot.slane %v5445, %v5454
        %v5457 = vunpack.c.l.s4 1966171168
        %v5458 = vunpack.c.0.s8 %v5457
        %v5459 = vlaneseq
        %v5460 = vshrl.u32 %v5459, 7
        %v5461 = vsub.s32 %v5458, %v5460
        %v5462 = vrot.slane %v5446, %v5461
        %v5464 = vunpack.c.l.s4 1966171168
        %v5465 = vunpack.c.0.s8 %v5464
        %v5466 = vlaneseq
        %v5467 = vshrl.u32 %v5466, 7
        %v5468 = vsub.s32 %v5465, %v5467
        %v5469 = vrot.slane %v5447, %v5468
        %v5471 = vunpack.c.l.s4 1966171168
        %v5472 = vunpack.c.0.s8 %v5471
        %v5473 = vlaneseq
        %v5474 = vshrl.u32 %v5473, 7
        %v5475 = vsub.s32 %v5472, %v5474
        %v5476 = vrot.slane %v5448, %v5475
        %v5477 = vcombine.low %v5455, %v5462
        %v5478 = vcombine.low %v5469, %v5476
        %v5480 = vunpack.c.l.s4 1966171168
        %v5481 = vunpack.c.0.s8 %v5480
        %v5482 = vlaneseq
        %v5483 = vshrl.u32 %v5482, 7
        %v5484 = vsub.s32 %v5481, %v5483
        %v5485 = vrot.slane %v5477, %v5484
        %v5487 = vunpack.c.l.s4 1966171168
        %v5488 = vunpack.c.0.s8 %v5487
        %v5489 = vlaneseq
        %v5490 = vshrl.u32 %v5489, 7
        %v5491 = vsub.s32 %v5488, %v5490
        %v5492 = vrot.slane %v5478, %v5491
        %v5493 = vcombine.low %v5485, %v5492
        %v5494 = vcombine.low %v4705, %v4706
        %v5495 = vcombine.low %v4707, %v4708
        %v5496 = vcombine.low %v4709, %v4710
        %v5497 = vcombine.low %v4711, %v4712
        %v5499 = vunpack.c.l.s4 1966171168
        %v5500 = vunpack.c.0.s8 %v5499
        %v5501 = vlaneseq
        %v5502 = vshrl.u32 %v5501, 7
        %v5503 = vsub.s32 %v5500, %v5502
        %v5504 = vrot.slane %v5494, %v5503
        %v5506 = vunpack.c.l.s4 1966171168
        %v5507 = vunpack.c.0.s8 %v5506
        %v5508 = vlaneseq
        %v5509 = vshrl.u32 %v5508, 7
        %v5510 = vsub.s32 %v5507, %v5509
        %v5511 = vrot.slane %v5495, %v5510
        %v5513 = vunpack.c.l.s4 1966171168
        %v5514 = vunpack.c.0.s8 %v5513
        %v5515 = vlaneseq
        %v5516 = vshrl.u32 %v5515, 7
        %v5517 = vsub.s32 %v5514, %v5516
        %v5518 = vrot.slane %v5496, %v5517
        %v5520 = vunpack.c.l.s4 1966171168
        %v5521 = vunpack.c.0.s8 %v5520
        %v5522 = vlaneseq
        %v5523 = vshrl.u32 %v5522, 7
        %v5524 = vsub.s32 %v5521, %v5523
        %v5525 = vrot.slane %v5497, %v5524
        %v5526 = vcombine.low %v5504, %v5511
        %v5527 = vcombine.low %v5518, %v5525
        %v5529 = vunpack.c.l.s4 1966171168
        %v5530 = vunpack.c.0.s8 %v5529
        %v5531 = vlaneseq
        %v5532 = vshrl.u32 %v5531, 7
        %v5533 = vsub.s32 %v5530, %v5532
        %v5534 = vrot.slane %v5526, %v5533
        %v5536 = vunpack.c.l.s4 1966171168
        %v5537 = vunpack.c.0.s8 %v5536
        %v5538 = vlaneseq
        %v5539 = vshrl.u32 %v5538, 7
        %v5540 = vsub.s32 %v5537, %v5539
        %v5541 = vrot.slane %v5527, %v5540
        %v5542 = vcombine.low %v5534, %v5541
        %v5543 = vcombine.low %v4713, %v4714
        %v5544 = vcombine.low %v4715, %v4716
        %v5545 = vcombine.low %v4717, %v4718
        %v5546 = vcombine.low %v4719, %v4720
        %v5548 = vunpack.c.l.s4 1966171168
        %v5549 = vunpack.c.0.s8 %v5548
        %v5550 = vlaneseq
        %v5551 = vshrl.u32 %v5550, 7
        %v5552 = vsub.s32 %v5549, %v5551
        %v5553 = vrot.slane %v5543, %v5552
        %v5555 = vunpack.c.l.s4 1966171168
        %v5556 = vunpack.c.0.s8 %v5555
        %v5557 = vlaneseq
        %v5558 = vshrl.u32 %v5557, 7
        %v5559 = vsub.s32 %v5556, %v5558
        %v5560 = vrot.slane %v5544, %v5559
        %v5562 = vunpack.c.l.s4 1966171168
        %v5563 = vunpack.c.0.s8 %v5562
        %v5564 = vlaneseq
        %v5565 = vshrl.u32 %v5564, 7
        %v5566 = vsub.s32 %v5563, %v5565
        %v5567 = vrot.slane %v5545, %v5566
        %v5569 = vunpack.c.l.s4 1966171168
        %v5570 = vunpack.c.0.s8 %v5569
        %v5571 = vlaneseq
        %v5572 = vshrl.u32 %v5571, 7
        %v5573 = vsub.s32 %v5570, %v5572
        %v5574 = vrot.slane %v5546, %v5573
        %v5575 = vcombine.low %v5553, %v5560
        %v5576 = vcombine.low %v5567, %v5574
        %v5578 = vunpack.c.l.s4 1966171168
        %v5579 = vunpack.c.0.s8 %v5578
        %v5580 = vlaneseq
        %v5581 = vshrl.u32 %v5580, 7
        %v5582 = vsub.s32 %v5579, %v5581
        %v5583 = vrot.slane %v5575, %v5582
        %v5585 = vunpack.c.l.s4 1966171168
        %v5586 = vunpack.c.0.s8 %v5585
        %v5587 = vlaneseq
        %v5588 = vshrl.u32 %v5587, 7
        %v5589 = vsub.s32 %v5586, %v5588
        %v5590 = vrot.slane %v5576, %v5589
        %v5591 = vcombine.low %v5583, %v5590
        %v5592 = vcombine.low %v4721, %v4722
        %v5593 = vcombine.low %v4723, %v4724
        %v5594 = vcombine.low %v4725, %v4726
        %v5595 = vcombine.low %v4727, %v4728
        %v5597 = vunpack.c.l.s4 1966171168
        %v5598 = vunpack.c.0.s8 %v5597
        %v5599 = vlaneseq
        %v5600 = vshrl.u32 %v5599, 7
        %v5601 = vsub.s32 %v5598, %v5600
        %v5602 = vrot.slane %v5592, %v5601
        %v5604 = vunpack.c.l.s4 1966171168
        %v5605 = vunpack.c.0.s8 %v5604
        %v5606 = vlaneseq
        %v5607 = vshrl.u32 %v5606, 7
        %v5608 = vsub.s32 %v5605, %v5607
        %v5609 = vrot.slane %v5593, %v5608
        %v5611 = vunpack.c.l.s4 1966171168
        %v5612 = vunpack.c.0.s8 %v5611
        %v5613 = vlaneseq
        %v5614 = vshrl.u32 %v5613, 7
        %v5615 = vsub.s32 %v5612, %v5614
        %v5616 = vrot.slane %v5594, %v5615
        %v5618 = vunpack.c.l.s4 1966171168
        %v5619 = vunpack.c.0.s8 %v5618
        %v5620 = vlaneseq
        %v5621 = vshrl.u32 %v5620, 7
        %v5622 = vsub.s32 %v5619, %v5621
        %v5623 = vrot.slane %v5595, %v5622
        %v5624 = vcombine.low %v5602, %v5609
        %v5625 = vcombine.low %v5616, %v5623
        %v5627 = vunpack.c.l.s4 1966171168
        %v5628 = vunpack.c.0.s8 %v5627
        %v5629 = vlaneseq
        %v5630 = vshrl.u32 %v5629, 7
        %v5631 = vsub.s32 %v5628, %v5630
        %v5632 = vrot.slane %v5624, %v5631
        %v5634 = vunpack.c.l.s4 1966171168
        %v5635 = vunpack.c.0.s8 %v5634
        %v5636 = vlaneseq
        %v5637 = vshrl.u32 %v5636, 7
        %v5638 = vsub.s32 %v5635, %v5637
        %v5639 = vrot.slane %v5625, %v5638
        %v5640 = vcombine.low %v5632, %v5639
        %5657 = vst [vmem:[%s317] sm:$0xff] %v4905
        %5658 = vst [vmem:[%s317 + $0x8] sm:$0xff] %v4954
        %5659 = vst [vmem:[%s317 + $0x10] sm:$0xff] %v5003
        %5660 = vst [vmem:[%s317 + $0x18] sm:$0xff] %v5052
        %5661 = vst [vmem:[%s317 + $0x20] sm:$0xff] %v5101
        %5662 = vst [vmem:[%s317 + $0x28] sm:$0xff] %v5150
        %5663 = vst [vmem:[%s317 + $0x30] sm:$0xff] %v5199
        %5664 = vst [vmem:[%s317 + $0x38] sm:$0xff] %v5248
        %5665 = vst [vmem:[%s317 + $0x40] sm:$0xff] %v5297
        %5666 = vst [vmem:[%s317 + $0x48] sm:$0xff] %v5346
        %5667 = vst [vmem:[%s317 + $0x50] sm:$0xff] %v5395
        %5668 = vst [vmem:[%s317 + $0x58] sm:$0xff] %v5444
        %5669 = vst [vmem:[%s317 + $0x60] sm:$0xff] %v5493
        %5670 = vst [vmem:[%s317 + $0x68] sm:$0xff] %v5542
        %5671 = vst [vmem:[%s317 + $0x70] sm:$0xff] %v5591
        %5672 = vst [vmem:[%s317 + $0x78] sm:$0xff] %v5640
        %s5673 = smul.u32 128, %s21
        %p5674 = scmp.lt.s32.totalorder %s5673, 1023
        %s5675 = scalar_select %p5674, %s5673, 1023
        %s5676 = scalar_lea.vmem %s5, %s5675
        // Predicated region
        $region61: #{variational_decoder_forward.2} parent=39 // pred_check
          %p5677 = pneg %p154
        $region62: #{variational_decoder_forward.2} parent=39 // pred_check_branch
          %5679 = sbr.rel (%p5677) target = $region64
        $region63: #{variational_decoder_forward.2} parent=39 // pred_region
          %s5680 = smul.u32 128, %s21
        $region64: #{variational_decoder_forward.2} parent=39 // pred_fallthru
          _
      $region40: #{variational_decoder_forward.2} parent=5 // pred_fallthru
        _
      %p5681 = scmp.le.s32.totalorder 2, %s16
      // Predicated region
      $region65: #{variational_decoder_forward.2} parent=5 // pred_check
        %p5682 = pneg %p5681
      $region66: #{variational_decoder_forward.2} parent=5 // pred_check_branch
        %5684 = sbr.rel (%p5682) target = $region68
      $region67: #{variational_decoder_forward.2} parent=5 // pred_region
        %s5685 = ssub.s32 %s16, 2
        // Predicated region
        $region69: #{variational_decoder_forward.2} parent=67 // pred_check
          %p5686 = pneg %p160
        $region70: #{variational_decoder_forward.2} parent=67 // pred_check_branch
          %5688 = sbr.rel (%p5686) target = $region72
        $region71: #{variational_decoder_forward.2} parent=67 // pred_region
          %s5689 = smul.u32 128, %s22
          %p5690 = scmp.lt.s32.totalorder %s5689, 1023
          %s5691 = scalar_select %p5690, %s5689, 1023
          %s5692 = scalar_lea.vmem %s5, %s5691
        $region72: #{variational_decoder_forward.2} parent=67 // pred_fallthru
          _
      $region68: #{variational_decoder_forward.2} parent=5 // pred_fallthru
        _
    $region6: #{variational_decoder_forward.2} parent=1 // loop_footer
      %s20 = sadd.s32 1, %s16
    $region7: #{variational_decoder_forward.2} parent=1 // loop_footer_branch
      %15 = sbr.rel target = $region3
    $region8: #{variational_decoder_forward.2} parent=1 // loop_exit
      _
    %5693 = vsyncpa [#allocation3], 1
    %s5694 = scalar_lea.sflag [#allocation3], 1
    %5695 = vsyncpa %s5694, 1
    %5696 = vsyncpa [#allocation5], 1
    %5697 = vsyncpa [#allocation8], 1
    %s5698 = scalar_lea.sflag [#allocation8], 1
    %5699 = vsyncpa %s5698, 1

</llo_original>
